<compile_context>
chip_gen: v7x
topology: tpu7x:2x2x1
jax: 0.10.0
libtpu: 0.0.40
codegen_flags: <defaults>
</compile_context>

<pallas_src>
import jax
import jax.numpy as jnp
from jax.experimental import pallas as pl
from jax.experimental.pallas import tpu as pltpu


LEAKY_SLOPE = 0.01  # nn.LeakyReLU() default


def _leaky(v):
    # max(v, a*v) == LeakyReLU(v) for 0 < a < 1 ; mul+max, cheaper than where.
    return jnp.maximum(v, LEAKY_SLOPE * v)


def fmlp_kernel(
    x_ref,                  # (C_in, TILE)       pixel coords tile (f32)
    w_lff_ref, b_lff_ref,   # (D, C_in) f32, (D, 1) f32     LFF 1x1 conv
    w_in_ref, b_in_ref,     # (2D, D) bf16, (2D, 1) f32     net[0]
    w1_ref, b1_ref,         # (2D, 2D) bf16, (2D, 1) f32
    w2_ref, b2_ref,
    w3_ref, b3_ref,
    w_out_ref, b_out_ref,   # (3, 2D) bf16, (3, 1) f32
    o_ref,                  # (3, TILE) f32
):
    x = x_ref[...].astype(jnp.float32)          # (C_in, T)
    wl = w_lff_ref[...]                         # (D, C_in) f32
    c_in = x_ref.shape[0]

    # LFF: per-pixel 1x1 conv done on the VPU as C_in broadcast FMAs
    # (depth-2 MXU contraction would waste 254/256 of the systolic array).
    acc = wl[:, 0:1] * x[0:1, :]                # (D, T)
    for c in range(1, c_in):
        acc = acc + wl[:, c:c + 1] * x[c:c + 1, :]
    f = jnp.sin(acc + b_lff_ref[...])           # (D, T) f32

    def layer(w_ref, b_ref, h):
        # bf16 MXU inputs, f32 accumulation; bias add + activation in f32.
        z = jnp.dot(w_ref[...], h.astype(jnp.bfloat16),
                    preferred_element_type=jnp.float32) + b_ref[...]
        return _leaky(z)

    h = layer(w_in_ref, b_in_ref, f)            # (2D, T)
    h = layer(w1_ref, b1_ref, h)
    h = layer(w2_ref, b2_ref, h)
    h = layer(w3_ref, b3_ref, h)

    out = jnp.dot(w_out_ref[...], h.astype(jnp.bfloat16),
                  preferred_element_type=jnp.float32) + b_out_ref[...]
    o_ref[...] = out.astype(o_ref.dtype)        # (3, T), lane-dense store


def fmlp_forward(coords_nchw, params, *, tile=2048):
    """coords_nchw: (B, C_in, H, W) float32. Returns (B, 3, H, W) float32."""
    B, C_in, H, W = coords_nchw.shape
    N = B * H * W

    # NCHW is already channel-major: (B, C, H, W) -> (C, B*H*W).
    x = jnp.transpose(coords_nchw, (1, 0, 2, 3)).reshape(C_in, N)

    # Pad the pixel axis to a tile multiple (zeros are harmless; sliced off).
    n_pad = pl.cdiv(N, tile) * tile
    if n_pad != N:
        x = jnp.pad(x, ((0, 0), (0, n_pad - N)))

    (w_lff, b_lff, w_in, b_in, w1, b1, w2, b2, w3, b3, w_out, b_out) = params

    # Pre-cast MXU weights to bf16 once; LFF weight (VPU path) and biases stay f32.
    w_in_b, w1_b, w2_b, w3_b, w_out_b = (
        w.astype(jnp.bfloat16) for w in (w_in, w1, w2, w3, w_out)
    )

    def full_spec(arr):
        # Whole (small) weight array, VMEM-resident for every grid step.
        return pl.BlockSpec(arr.shape, lambda i: (0, 0))

    grid = (n_pad // tile,)
    out_rows = pl.pallas_call(
        fmlp_kernel,
        out_shape=jax.ShapeDtypeStruct((3, n_pad), jnp.float32),
        grid_spec=pltpu.PrefetchScalarGridSpec(
            num_scalar_prefetch=0,
            grid=grid,
            in_specs=[
                pl.BlockSpec((C_in, tile), lambda i: (0, i)),
                full_spec(w_lff), full_spec(b_lff),
                full_spec(w_in_b), full_spec(b_in),
                full_spec(w1_b), full_spec(b1),
                full_spec(w2_b), full_spec(b2),
                full_spec(w3_b), full_spec(b3),
                full_spec(w_out_b), full_spec(b_out),
            ],
            out_specs=pl.BlockSpec((3, tile), lambda i: (0, i)),
        ),
        compiler_params=pltpu.CompilerParams(
            dimension_semantics=("parallel",),
        ),
    )(x, w_lff, b_lff, w_in_b, b_in, w1_b, b1, w2_b, b2, w3_b, b3, w_out_b, b_out)

    out_rows = out_rows[:, :N]
    # (3, N) -> (B, 3, H, W)
    return jnp.transpose(out_rows.reshape(3, B, H, W), (1, 0, 2, 3))


def init_params(key, internal_dim, num_input_channels=2):
    """Deterministic synthetic weights matching FMLP's layer shapes.

    Weights are stored channel-major as (C_out, C_in) (the natural layout of a
    1x1 conv kernel); biases as (C_out, 1)."""
    D = internal_dim
    D2 = 2 * internal_dim
    shapes = [
        (D, num_input_channels), (D, 1),   # LFF ConLinear
        (D2, D), (D2, 1),                  # net[0]
        (D2, D2), (D2, 1),                 # hidden 1
        (D2, D2), (D2, 1),                 # hidden 2
        (D2, D2), (D2, 1),                 # hidden 3
        (3, D2), (3, 1),                   # output
    ]
    keys = jax.random.split(key, len(shapes))
    params = []
    for k, s in zip(keys, shapes):
        fan_in = s[1] if s[1] > 1 else 1
        params.append(jax.random.normal(k, s, jnp.float32) / jnp.sqrt(fan_in))
    return tuple(params)


def fmlp_reference(coords_nchw, params):
    """Pure-JAX f32 reference (same math) for a sanity check."""
    B, C_in, H, W = coords_nchw.shape
    x = jnp.transpose(coords_nchw, (1, 0, 2, 3)).reshape(C_in, -1)
    (w_lff, b_lff, w_in, b_in, w1, b1, w2, b2, w3, b3, w_out, b_out) = params

    def leaky(v):
        return jnp.where(v >= 0, v, LEAKY_SLOPE * v)

    f = jnp.sin(w_lff @ x + b_lff)
    h = leaky(w_in @ f + b_in)
    h = leaky(w1 @ h + b1)
    h = leaky(w2 @ h + b2)
    h = leaky(w3 @ h + b3)
    out = w_out @ h + b_out
    return jnp.transpose(out.reshape(3, B, H, W), (1, 0, 2, 3))


if __name__ == "__main__":
    key = jax.random.PRNGKey(0)
    k_x, k_p = jax.random.split(key)

    B, C, Hs, Ws = 2, 2, 16, 16          # coords: (batch, xy, H, W)
    internal_dim = 32

    coords = jax.random.uniform(k_x, (B, C, Hs, Ws), jnp.float32, -1.0, 1.0)
    params = init_params(k_p, internal_dim, num_input_channels=C)

    out = fmlp_forward(coords, params)   # default tile=2048 (pads 512 -> 2048)
    out = jax.block_until_ready(out)

    ref = fmlp_reference(coords, params)
    assert out.shape == (B, 3, Hs, Ws)
    # bf16 MXU inputs with f32 accumulation => loosen tolerance vs. pure-f32 ref.
    assert jnp.allclose(out, ref, atol=5e-2, rtol=5e-2), (
        float(jnp.max(jnp.abs(out - ref))))

    # TODO(synk): phase_mod_type='pixelwise'/'freqwise' branches (phase_net) not
    # implemented; default construction (phase_mod_type=None) is reproduced.
    print("KERNEL_OK")
</pallas_src>

<mosaic_0001>
module attributes {stable_mosaic.version = 11 : i64} {
  func.func @fmlp_kernel(%arg0: i32, %arg1: memref<2x2048xf32, #tpu.memory_space<vmem>>, %arg2: memref<32x2xf32, #tpu.memory_space<vmem>>, %arg3: memref<32x1xf32, #tpu.memory_space<vmem>>, %arg4: memref<64x32xbf16, #tpu.memory_space<vmem>>, %arg5: memref<64x1xf32, #tpu.memory_space<vmem>>, %arg6: memref<64x64xbf16, #tpu.memory_space<vmem>>, %arg7: memref<64x1xf32, #tpu.memory_space<vmem>>, %arg8: memref<64x64xbf16, #tpu.memory_space<vmem>>, %arg9: memref<64x1xf32, #tpu.memory_space<vmem>>, %arg10: memref<64x64xbf16, #tpu.memory_space<vmem>>, %arg11: memref<64x1xf32, #tpu.memory_space<vmem>>, %arg12: memref<3x64xbf16, #tpu.memory_space<vmem>>, %arg13: memref<3x1xf32, #tpu.memory_space<vmem>>, %arg14: memref<3x2048xf32, #tpu.memory_space<vmem>>) attributes {dimension_semantics = [#tpu.dimension_semantics<parallel>], iteration_bounds = array<i64: 1>, scalar_prefetch = 0 : i64, scratch_operands = 0 : i64, tpu.core_type = #tpu.core_type<tc>, window_params = [{transform_indices = @transform_0, window_bounds = array<i64: 2, 2048>}, {pipeline_mode = #tpu.pipeline_mode<synchronous>, transform_indices = @transform_1, window_bounds = array<i64: 32, 2>}, {pipeline_mode = #tpu.pipeline_mode<synchronous>, transform_indices = @transform_2, window_bounds = array<i64: 32, 1>}, {pipeline_mode = #tpu.pipeline_mode<synchronous>, transform_indices = @transform_3, window_bounds = array<i64: 64, 32>}, {pipeline_mode = #tpu.pipeline_mode<synchronous>, transform_indices = @transform_4, window_bounds = array<i64: 64, 1>}, {pipeline_mode = #tpu.pipeline_mode<synchronous>, transform_indices = @transform_5, window_bounds = array<i64: 64, 64>}, {pipeline_mode = #tpu.pipeline_mode<synchronous>, transform_indices = @transform_6, window_bounds = array<i64: 64, 1>}, {pipeline_mode = #tpu.pipeline_mode<synchronous>, transform_indices = @transform_7, window_bounds = array<i64: 64, 64>}, {pipeline_mode = #tpu.pipeline_mode<synchronous>, transform_indices = @transform_8, window_bounds = array<i64: 64, 1>}, {pipeline_mode = #tpu.pipeline_mode<synchronous>, transform_indices = @transform_9, window_bounds = array<i64: 64, 64>}, {pipeline_mode = #tpu.pipeline_mode<synchronous>, transform_indices = @transform_10, window_bounds = array<i64: 64, 1>}, {pipeline_mode = #tpu.pipeline_mode<synchronous>, transform_indices = @transform_11, window_bounds = array<i64: 3, 64>}, {pipeline_mode = #tpu.pipeline_mode<synchronous>, transform_indices = @transform_12, window_bounds = array<i64: 3, 1>}, {transform_indices = @transform_13, window_bounds = array<i64: 3, 2048>}]} {
    %c0 = arith.constant 0 : index
    %c0_0 = arith.constant 0 : index
    %0 = vector.load %arg1[%c0, %c0_0] : memref<2x2048xf32, #tpu.memory_space<vmem>>, vector<2x2048xf32>
    %c0_1 = arith.constant 0 : index
    %c0_2 = arith.constant 0 : index
    %1 = vector.load %arg2[%c0_1, %c0_2] : memref<32x2xf32, #tpu.memory_space<vmem>>, vector<32x2xf32>
    %2 = vector.extract_strided_slice %1 {offsets = [0, 0], sizes = [32, 1], strides = [1, 1]} : vector<32x2xf32> to vector<32x1xf32>
    %3 = vector.extract_strided_slice %0 {offsets = [0, 0], sizes = [1, 2048], strides = [1, 1]} : vector<2x2048xf32> to vector<1x2048xf32>
    %4 = vector.broadcast %2 : vector<32x1xf32> to vector<32x2048xf32>
    %5 = vector.broadcast %3 : vector<1x2048xf32> to vector<32x2048xf32>
    %6 = arith.mulf %4, %5 : vector<32x2048xf32>
    %7 = vector.extract_strided_slice %1 {offsets = [0, 1], sizes = [32, 1], strides = [1, 1]} : vector<32x2xf32> to vector<32x1xf32>
    %8 = vector.extract_strided_slice %0 {offsets = [1, 0], sizes = [1, 2048], strides = [1, 1]} : vector<2x2048xf32> to vector<1x2048xf32>
    %9 = vector.broadcast %7 : vector<32x1xf32> to vector<32x2048xf32>
    %10 = vector.broadcast %8 : vector<1x2048xf32> to vector<32x2048xf32>
    %11 = arith.mulf %9, %10 : vector<32x2048xf32>
    %12 = arith.addf %6, %11 : vector<32x2048xf32>
    %c0_3 = arith.constant 0 : index
    %c0_4 = arith.constant 0 : index
    %13 = vector.load %arg3[%c0_3, %c0_4] : memref<32x1xf32, #tpu.memory_space<vmem>>, vector<32x1xf32>
    %14 = vector.broadcast %13 : vector<32x1xf32> to vector<32x2048xf32>
    %15 = arith.addf %12, %14 : vector<32x2048xf32>
    %16 = math.sin %15 : vector<32x2048xf32>
    %c0_5 = arith.constant 0 : index
    %c0_6 = arith.constant 0 : index
    %17 = vector.load %arg4[%c0_5, %c0_6] : memref<64x32xbf16, #tpu.memory_space<vmem>>, vector<64x32xbf16>
    %18 = arith.truncf %16 : vector<32x2048xf32> to vector<32x2048xbf16>
    %cst = arith.constant dense<0.000000e+00> : vector<64x2048xf32>
    %19 = tpu.matmul %17, %18, %cst {dimension_numbers = #tpu.dot_dimension_numbers<[1], [0], [0], [1], [0, 0, 1, 1], [], []>} : vector<64x32xbf16>, vector<32x2048xbf16>, vector<64x2048xf32> -> vector<64x2048xf32>
    %c0_7 = arith.constant 0 : index
    %c0_8 = arith.constant 0 : index
    %20 = vector.load %arg5[%c0_7, %c0_8] : memref<64x1xf32, #tpu.memory_space<vmem>>, vector<64x1xf32>
    %21 = vector.broadcast %20 : vector<64x1xf32> to vector<64x2048xf32>
    %22 = arith.addf %19, %21 : vector<64x2048xf32>
    %cst_9 = arith.constant 0.00999999977 : f32
    %23 = vector.broadcast %cst_9 : f32 to vector<64x2048xf32>
    %24 = arith.mulf %23, %22 : vector<64x2048xf32>
    %25 = arith.maximumf %22, %24 : vector<64x2048xf32>
    %c0_10 = arith.constant 0 : index
    %c0_11 = arith.constant 0 : index
    %26 = vector.load %arg6[%c0_10, %c0_11] : memref<64x64xbf16, #tpu.memory_space<vmem>>, vector<64x64xbf16>
    %27 = arith.truncf %25 : vector<64x2048xf32> to vector<64x2048xbf16>
    %cst_12 = arith.constant dense<0.000000e+00> : vector<64x2048xf32>
    %28 = tpu.matmul %26, %27, %cst_12 {dimension_numbers = #tpu.dot_dimension_numbers<[1], [0], [0], [1], [0, 0, 1, 1], [], []>} : vector<64x64xbf16>, vector<64x2048xbf16>, vector<64x2048xf32> -> vector<64x2048xf32>
    %c0_13 = arith.constant 0 : index
    %c0_14 = arith.constant 0 : index
    %29 = vector.load %arg7[%c0_13, %c0_14] : memref<64x1xf32, #tpu.memory_space<vmem>>, vector<64x1xf32>
    %30 = vector.broadcast %29 : vector<64x1xf32> to vector<64x2048xf32>
    %31 = arith.addf %28, %30 : vector<64x2048xf32>
    %cst_15 = arith.constant 0.00999999977 : f32
    %32 = vector.broadcast %cst_15 : f32 to vector<64x2048xf32>
    %33 = arith.mulf %32, %31 : vector<64x2048xf32>
    %34 = arith.maximumf %31, %33 : vector<64x2048xf32>
    %c0_16 = arith.constant 0 : index
    %c0_17 = arith.constant 0 : index
    %35 = vector.load %arg8[%c0_16, %c0_17] : memref<64x64xbf16, #tpu.memory_space<vmem>>, vector<64x64xbf16>
    %36 = arith.truncf %34 : vector<64x2048xf32> to vector<64x2048xbf16>
    %cst_18 = arith.constant dense<0.000000e+00> : vector<64x2048xf32>
    %37 = tpu.matmul %35, %36, %cst_18 {dimension_numbers = #tpu.dot_dimension_numbers<[1], [0], [0], [1], [0, 0, 1, 1], [], []>} : vector<64x64xbf16>, vector<64x2048xbf16>, vector<64x2048xf32> -> vector<64x2048xf32>
    %c0_19 = arith.constant 0 : index
    %c0_20 = arith.constant 0 : index
    %38 = vector.load %arg9[%c0_19, %c0_20] : memref<64x1xf32, #tpu.memory_space<vmem>>, vector<64x1xf32>
    %39 = vector.broadcast %38 : vector<64x1xf32> to vector<64x2048xf32>
    %40 = arith.addf %37, %39 : vector<64x2048xf32>
    %cst_21 = arith.constant 0.00999999977 : f32
    %41 = vector.broadcast %cst_21 : f32 to vector<64x2048xf32>
    %42 = arith.mulf %41, %40 : vector<64x2048xf32>
    %43 = arith.maximumf %40, %42 : vector<64x2048xf32>
    %c0_22 = arith.constant 0 : index
    %c0_23 = arith.constant 0 : index
    %44 = vector.load %arg10[%c0_22, %c0_23] : memref<64x64xbf16, #tpu.memory_space<vmem>>, vector<64x64xbf16>
    %45 = arith.truncf %43 : vector<64x2048xf32> to vector<64x2048xbf16>
    %cst_24 = arith.constant dense<0.000000e+00> : vector<64x2048xf32>
    %46 = tpu.matmul %44, %45, %cst_24 {dimension_numbers = #tpu.dot_dimension_numbers<[1], [0], [0], [1], [0, 0, 1, 1], [], []>} : vector<64x64xbf16>, vector<64x2048xbf16>, vector<64x2048xf32> -> vector<64x2048xf32>
    %c0_25 = arith.constant 0 : index
    %c0_26 = arith.constant 0 : index
    %47 = vector.load %arg11[%c0_25, %c0_26] : memref<64x1xf32, #tpu.memory_space<vmem>>, vector<64x1xf32>
    %48 = vector.broadcast %47 : vector<64x1xf32> to vector<64x2048xf32>
    %49 = arith.addf %46, %48 : vector<64x2048xf32>
    %cst_27 = arith.constant 0.00999999977 : f32
    %50 = vector.broadcast %cst_27 : f32 to vector<64x2048xf32>
    %51 = arith.mulf %50, %49 : vector<64x2048xf32>
    %52 = arith.maximumf %49, %51 : vector<64x2048xf32>
    %c0_28 = arith.constant 0 : index
    %c0_29 = arith.constant 0 : index
    %53 = vector.load %arg12[%c0_28, %c0_29] : memref<3x64xbf16, #tpu.memory_space<vmem>>, vector<3x64xbf16>
    %54 = arith.truncf %52 : vector<64x2048xf32> to vector<64x2048xbf16>
    %cst_30 = arith.constant dense<0.000000e+00> : vector<3x2048xf32>
    %55 = tpu.matmul %53, %54, %cst_30 {dimension_numbers = #tpu.dot_dimension_numbers<[1], [0], [0], [1], [0, 0, 1, 1], [], []>} : vector<3x64xbf16>, vector<64x2048xbf16>, vector<3x2048xf32> -> vector<3x2048xf32>
    %c0_31 = arith.constant 0 : index
    %c0_32 = arith.constant 0 : index
    %56 = vector.load %arg13[%c0_31, %c0_32] : memref<3x1xf32, #tpu.memory_space<vmem>>, vector<3x1xf32>
    %57 = vector.broadcast %56 : vector<3x1xf32> to vector<3x2048xf32>
    %58 = arith.addf %55, %57 : vector<3x2048xf32>
    %c0_33 = arith.constant 0 : index
    %c0_34 = arith.constant 0 : index
    %59 = vector.load %arg14[%c0_33, %c0_34] : memref<3x2048xf32, #tpu.memory_space<vmem>>, vector<3x2048xf32>
    tpu.vector_store %arg14[%c0_33, %c0_34], %58 {strides = array<i32>} : memref<3x2048xf32, #tpu.memory_space<vmem>>, vector<3x2048xf32>,
    return
  }
  func.func @transform_0(%arg0: i32) -> (i32, i32) {
    %c0_i32 = arith.constant 0 : i32
    %c0_i32_0 = arith.constant 0 : i32
    return %c0_i32, %arg0 : i32, i32
  }
  func.func @transform_1(%arg0: i32) -> (i32, i32) {
    %c0_i32 = arith.constant 0 : i32
    %c0_i32_0 = arith.constant 0 : i32
    %c0_i32_1 = arith.constant 0 : i32
    return %c0_i32, %c0_i32_0 : i32, i32
  }
  func.func @transform_2(%arg0: i32) -> (i32, i32) {
    %c0_i32 = arith.constant 0 : i32
    %c0_i32_0 = arith.constant 0 : i32
    %c0_i32_1 = arith.constant 0 : i32
    return %c0_i32, %c0_i32_0 : i32, i32
  }
  func.func @transform_3(%arg0: i32) -> (i32, i32) {
    %c0_i32 = arith.constant 0 : i32
    %c0_i32_0 = arith.constant 0 : i32
    %c0_i32_1 = arith.constant 0 : i32
    return %c0_i32, %c0_i32_0 : i32, i32
  }
  func.func @transform_4(%arg0: i32) -> (i32, i32) {
    %c0_i32 = arith.constant 0 : i32
    %c0_i32_0 = arith.constant 0 : i32
    %c0_i32_1 = arith.constant 0 : i32
    return %c0_i32, %c0_i32_0 : i32, i32
  }
  func.func @transform_5(%arg0: i32) -> (i32, i32) {
    %c0_i32 = arith.constant 0 : i32
    %c0_i32_0 = arith.constant 0 : i32
    %c0_i32_1 = arith.constant 0 : i32
    return %c0_i32, %c0_i32_0 : i32, i32
  }
  func.func @transform_6(%arg0: i32) -> (i32, i32) {
    %c0_i32 = arith.constant 0 : i32
    %c0_i32_0 = arith.constant 0 : i32
    %c0_i32_1 = arith.constant 0 : i32
    return %c0_i32, %c0_i32_0 : i32, i32
  }
  func.func @transform_7(%arg0: i32) -> (i32, i32) {
    %c0_i32 = arith.constant 0 : i32
    %c0_i32_0 = arith.constant 0 : i32
    %c0_i32_1 = arith.constant 0 : i32
    return %c0_i32, %c0_i32_0 : i32, i32
  }
  func.func @transform_8(%arg0: i32) -> (i32, i32) {
    %c0_i32 = arith.constant 0 : i32
    %c0_i32_0 = arith.constant 0 : i32
    %c0_i32_1 = arith.constant 0 : i32
    return %c0_i32, %c0_i32_0 : i32, i32
  }
  func.func @transform_9(%arg0: i32) -> (i32, i32) {
    %c0_i32 = arith.constant 0 : i32
    %c0_i32_0 = arith.constant 0 : i32
    %c0_i32_1 = arith.constant 0 : i32
    return %c0_i32, %c0_i32_0 : i32, i32
  }
  func.func @transform_10(%arg0: i32) -> (i32, i32) {
    %c0_i32 = arith.constant 0 : i32
    %c0_i32_0 = arith.constant 0 : i32
    %c0_i32_1 = arith.constant 0 : i32
    return %c0_i32, %c0_i32_0 : i32, i32
  }
  func.func @transform_11(%arg0: i32) -> (i32, i32) {
    %c0_i32 = arith.constant 0 : i32
    %c0_i32_0 = arith.constant 0 : i32
    %c0_i32_1 = arith.constant 0 : i32
    return %c0_i32, %c0_i32_0 : i32, i32
  }
  func.func @transform_12(%arg0: i32) -> (i32, i32) {
    %c0_i32 = arith.constant 0 : i32
    %c0_i32_0 = arith.constant 0 : i32
    %c0_i32_1 = arith.constant 0 : i32
    return %c0_i32, %c0_i32_0 : i32, i32
  }
  func.func @transform_13(%arg0: i32) -> (i32, i32) {
    %c0_i32 = arith.constant 0 : i32
    %c0_i32_0 = arith.constant 0 : i32
    return %c0_i32, %arg0 : i32, i32
  }
}

</mosaic_0001>

<llo_original>
// kernel: tpu_custom_call.1
$region0: #{tpu_custom_call.1}
  #allocation0 [shape = 'u32[]', space=smem, size = 0x4, offset = 0x4, fixed_abs, tag = 'smem constant byte address 0x4 - core index']
  #allocation1 [shape = 'u32[144,128]{1,0:T(1,128)}', space=vmem, size = 0x12000, scoped, tag = 'internal scratch']
  %s0 = inlined_call_operand.vmem [shape: f32[2,2048], index: 0, kind: input, shape index: {}]
  %s1 = inlined_call_operand.vmem [shape: f32[32,2], index: 1, kind: input, shape index: {}]
  %s2 = inlined_call_operand.vmem [shape: f32[32,1], index: 2, kind: input, shape index: {}]
  %s3 = inlined_call_operand.vmem [shape: bf16[64,32], index: 3, kind: input, shape index: {}]
  %s4 = inlined_call_operand.vmem [shape: f32[64,1], index: 4, kind: input, shape index: {}]
  %s5 = inlined_call_operand.vmem [shape: bf16[64,64], index: 5, kind: input, shape index: {}]
  %s6 = inlined_call_operand.vmem [shape: f32[64,1], index: 6, kind: input, shape index: {}]
  %s7 = inlined_call_operand.vmem [shape: bf16[64,64], index: 7, kind: input, shape index: {}]
  %s8 = inlined_call_operand.vmem [shape: f32[64,1], index: 8, kind: input, shape index: {}]
  %s9 = inlined_call_operand.vmem [shape: bf16[64,64], index: 9, kind: input, shape index: {}]
  %s10 = inlined_call_operand.vmem [shape: f32[64,1], index: 10, kind: input, shape index: {}]
  %s11 = inlined_call_operand.vmem [shape: bf16[3,64], index: 11, kind: input, shape index: {}]
  %s12 = inlined_call_operand.vmem [shape: f32[3,1], index: 12, kind: input, shape index: {}]
  %s13 = inlined_call_operand.hbm [shape: f32[3,2048], index: 13, kind: output, shape index: {}]
  %s14 = sld [smem:[#allocation0]]
  $region62: #{tpu_custom_call.1} parent=0
    _
  %s16 = ssub.s32 1, %s14
  %s17 = scalar_select 0, %s16, %s14
  $region1: #{tpu_custom_call.1} parent=0
    #allocation2 [shape = 'u8[32768]{0}', space=vmem, size = 0x8000, scoped, tag = 'output window, operand 0, single buffered']
    #allocation3 [shape = 's32[1]{0}', space=sflag, size = 0x4, scoped, tag = 'scoped memory for tpu_custom_call.1']
    %18 = vsyncpa [#allocation3], 0
    // Predicated region
    $region2: #{tpu_custom_call.1} parent=1 // pred_check
      _
    $region3: #{tpu_custom_call.1} parent=1 // pred_check_branch
      %20 = sbr.rel (0) target = $region5
    $region4: #{tpu_custom_call.1} parent=1 // pred_region
      _
    $region5: #{tpu_custom_call.1} parent=1 // pred_fallthru
      _
    // Predicated region
    $region6: #{tpu_custom_call.1} parent=1 // pred_check
      _
    $region7: #{tpu_custom_call.1} parent=1 // pred_check_branch
      %22 = sbr.rel (0) target = $region9
    $region8: #{tpu_custom_call.1} parent=1 // pred_region
      _
    $region9: #{tpu_custom_call.1} parent=1 // pred_fallthru
      _
    // Predicated region
    $region10: #{tpu_custom_call.1} parent=1 // pred_check
      _
    $region11: #{tpu_custom_call.1} parent=1 // pred_check_branch
      %24 = sbr.rel (0) target = $region13
    $region12: #{tpu_custom_call.1} parent=1 // pred_region
      _
    $region13: #{tpu_custom_call.1} parent=1 // pred_fallthru
      _
    // Predicated region
    $region14: #{tpu_custom_call.1} parent=1 // pred_check
      _
    $region15: #{tpu_custom_call.1} parent=1 // pred_check_branch
      %26 = sbr.rel (0) target = $region17
    $region16: #{tpu_custom_call.1} parent=1 // pred_region
      _
    $region17: #{tpu_custom_call.1} parent=1 // pred_fallthru
      _
    // Predicated region
    $region18: #{tpu_custom_call.1} parent=1 // pred_check
      _
    $region19: #{tpu_custom_call.1} parent=1 // pred_check_branch
      %28 = sbr.rel (0) target = $region21
    $region20: #{tpu_custom_call.1} parent=1 // pred_region
      _
    $region21: #{tpu_custom_call.1} parent=1 // pred_fallthru
      _
    // Predicated region
    $region22: #{tpu_custom_call.1} parent=1 // pred_check
      _
    $region23: #{tpu_custom_call.1} parent=1 // pred_check_branch
      %30 = sbr.rel (0) target = $region25
    $region24: #{tpu_custom_call.1} parent=1 // pred_region
      _
    $region25: #{tpu_custom_call.1} parent=1 // pred_fallthru
      _
    // Predicated region
    $region26: #{tpu_custom_call.1} parent=1 // pred_check
      _
    $region27: #{tpu_custom_call.1} parent=1 // pred_check_branch
      %32 = sbr.rel (0) target = $region29
    $region28: #{tpu_custom_call.1} parent=1 // pred_region
      _
    $region29: #{tpu_custom_call.1} parent=1 // pred_fallthru
      _
    // Predicated region
    $region30: #{tpu_custom_call.1} parent=1 // pred_check
      _
    $region31: #{tpu_custom_call.1} parent=1 // pred_check_branch
      %34 = sbr.rel (0) target = $region33
    $region32: #{tpu_custom_call.1} parent=1 // pred_region
      _
    $region33: #{tpu_custom_call.1} parent=1 // pred_fallthru
      _
    // Predicated region
    $region34: #{tpu_custom_call.1} parent=1 // pred_check
      _
    $region35: #{tpu_custom_call.1} parent=1 // pred_check_branch
      %36 = sbr.rel (0) target = $region37
    $region36: #{tpu_custom_call.1} parent=1 // pred_region
      _
    $region37: #{tpu_custom_call.1} parent=1 // pred_fallthru
      _
    // Predicated region
    $region38: #{tpu_custom_call.1} parent=1 // pred_check
      _
    $region39: #{tpu_custom_call.1} parent=1 // pred_check_branch
      %38 = sbr.rel (0) target = $region41
    $region40: #{tpu_custom_call.1} parent=1 // pred_region
      _
    $region41: #{tpu_custom_call.1} parent=1 // pred_fallthru
      _
    // Predicated region
    $region42: #{tpu_custom_call.1} parent=1 // pred_check
      _
    $region43: #{tpu_custom_call.1} parent=1 // pred_check_branch
      %40 = sbr.rel (0) target = $region45
    $region44: #{tpu_custom_call.1} parent=1 // pred_region
      _
    $region45: #{tpu_custom_call.1} parent=1 // pred_fallthru
      _
    // Predicated region
    $region46: #{tpu_custom_call.1} parent=1 // pred_check
      _
    $region47: #{tpu_custom_call.1} parent=1 // pred_check_branch
      %42 = sbr.rel (0) target = $region49
    $region48: #{tpu_custom_call.1} parent=1 // pred_region
      _
    $region49: #{tpu_custom_call.1} parent=1 // pred_fallthru
      _
    // Predicated region
    $region50: #{tpu_custom_call.1} parent=1 // pred_check
      _
    $region51: #{tpu_custom_call.1} parent=1 // pred_check_branch
      %44 = sbr.rel (0) target = $region53
    $region52: #{tpu_custom_call.1} parent=1 // pred_region
      _
    $region53: #{tpu_custom_call.1} parent=1 // pred_fallthru
      _
    %v46 = vld [vmem:[%s0] sm:$0xff]
    %v47 = vld [vmem:[%s0 + $0x8] sm:$0xff]
    %v48 = vld [vmem:[%s0 + $0x10] sm:$0xff]
    %v49 = vld [vmem:[%s0 + $0x18] sm:$0xff]
    %v50 = vld [vmem:[%s1] sm:$0xff]
    %v51 = vld [vmem:[%s1 + $0x8] sm:$0xff]
    %v52 = vld [vmem:[%s1 + $0x10] sm:$0xff]
    %v53 = vld [vmem:[%s1 + $0x18] sm:$0xff]
    %55 = vset.pattern.permute.xlu0 0
    %56 = vperm.xlu0 %55, %v50
    %v57 = vpop.permute.xlu0 %56
    %60 = vset.pattern.permute.xlu0 0
    %61 = vperm.xlu0 %60, %v51
    %v62 = vpop.permute.xlu0 %61
    %65 = vset.pattern.permute.xlu0 0
    %66 = vperm.xlu0 %65, %v52
    %v67 = vpop.permute.xlu0 %66
    %70 = vset.pattern.permute.xlu0 0
    %71 = vperm.xlu0 %70, %v53
    %v72 = vpop.permute.xlu0 %71
    %v78 = vlaneseq
    %v79 = vshrl.u32 %v78, 7
    %v80 = vsub.s32 0, %v79
    %v81 = vrot.slane %v46, %v80
    %v82 = vlaneseq
    %v83 = vshrl.u32 %v82, 7
    %v84 = vsub.s32 2, %v83
    %v85 = vrot.slane %v46, %v84
    %v86 = vlaneseq
    %v87 = vshrl.u32 %v86, 7
    %v88 = vsub.s32 4, %v87
    %v89 = vrot.slane %v46, %v88
    %v90 = vlaneseq
    %v91 = vshrl.u32 %v90, 7
    %v92 = vsub.s32 6, %v91
    %v93 = vrot.slane %v46, %v92
    %v94 = vlaneseq
    %v95 = vshrl.u32 %v94, 7
    %v96 = vsub.s32 0, %v95
    %v97 = vrot.slane %v47, %v96
    %v98 = vlaneseq
    %v99 = vshrl.u32 %v98, 7
    %v100 = vsub.s32 2, %v99
    %v101 = vrot.slane %v47, %v100
    %v102 = vlaneseq
    %v103 = vshrl.u32 %v102, 7
    %v104 = vsub.s32 4, %v103
    %v105 = vrot.slane %v47, %v104
    %v106 = vlaneseq
    %v107 = vshrl.u32 %v106, 7
    %v108 = vsub.s32 6, %v107
    %v109 = vrot.slane %v47, %v108
    %v110 = vlaneseq
    %v111 = vshrl.u32 %v110, 7
    %v112 = vsub.s32 0, %v111
    %v113 = vrot.slane %v48, %v112
    %v114 = vlaneseq
    %v115 = vshrl.u32 %v114, 7
    %v116 = vsub.s32 2, %v115
    %v117 = vrot.slane %v48, %v116
    %v118 = vlaneseq
    %v119 = vshrl.u32 %v118, 7
    %v120 = vsub.s32 4, %v119
    %v121 = vrot.slane %v48, %v120
    %v122 = vlaneseq
    %v123 = vshrl.u32 %v122, 7
    %v124 = vsub.s32 6, %v123
    %v125 = vrot.slane %v48, %v124
    %v126 = vlaneseq
    %v127 = vshrl.u32 %v126, 7
    %v128 = vsub.s32 0, %v127
    %v129 = vrot.slane %v49, %v128
    %v130 = vlaneseq
    %v131 = vshrl.u32 %v130, 7
    %v132 = vsub.s32 2, %v131
    %v133 = vrot.slane %v49, %v132
    %v134 = vlaneseq
    %v135 = vshrl.u32 %v134, 7
    %v136 = vsub.s32 4, %v135
    %v137 = vrot.slane %v49, %v136
    %v138 = vlaneseq
    %v139 = vshrl.u32 %v138, 7
    %v140 = vsub.s32 6, %v139
    %v141 = vrot.slane %v49, %v140
    %v158 = vlaneseq
    %v159 = vshrl.u32 %v158, 7
    %v160 = vsub.s32 0, %v159
    %v161 = vrot.slane %v81, %v160
    %v162 = vlaneseq
    %v163 = vshrl.u32 %v162, 7
    %v164 = vsub.s32 0, %v163
    %v165 = vrot.slane %v85, %v164
    %v166 = vlaneseq
    %v167 = vshrl.u32 %v166, 7
    %v168 = vsub.s32 0, %v167
    %v169 = vrot.slane %v89, %v168
    %v170 = vlaneseq
    %v171 = vshrl.u32 %v170, 7
    %v172 = vsub.s32 0, %v171
    %v173 = vrot.slane %v93, %v172
    %v174 = vlaneseq
    %v175 = vshrl.u32 %v174, 7
    %v176 = vsub.s32 0, %v175
    %v177 = vrot.slane %v97, %v176
    %v178 = vlaneseq
    %v179 = vshrl.u32 %v178, 7
    %v180 = vsub.s32 0, %v179
    %v181 = vrot.slane %v101, %v180
    %v182 = vlaneseq
    %v183 = vshrl.u32 %v182, 7
    %v184 = vsub.s32 0, %v183
    %v185 = vrot.slane %v105, %v184
    %v186 = vlaneseq
    %v187 = vshrl.u32 %v186, 7
    %v188 = vsub.s32 0, %v187
    %v189 = vrot.slane %v109, %v188
    %v190 = vlaneseq
    %v191 = vshrl.u32 %v190, 7
    %v192 = vsub.s32 0, %v191
    %v193 = vrot.slane %v113, %v192
    %v194 = vlaneseq
    %v195 = vshrl.u32 %v194, 7
    %v196 = vsub.s32 0, %v195
    %v197 = vrot.slane %v117, %v196
    %v198 = vlaneseq
    %v199 = vshrl.u32 %v198, 7
    %v200 = vsub.s32 0, %v199
    %v201 = vrot.slane %v121, %v200
    %v202 = vlaneseq
    %v203 = vshrl.u32 %v202, 7
    %v204 = vsub.s32 0, %v203
    %v205 = vrot.slane %v125, %v204
    %v206 = vlaneseq
    %v207 = vshrl.u32 %v206, 7
    %v208 = vsub.s32 0, %v207
    %v209 = vrot.slane %v129, %v208
    %v210 = vlaneseq
    %v211 = vshrl.u32 %v210, 7
    %v212 = vsub.s32 0, %v211
    %v213 = vrot.slane %v133, %v212
    %v214 = vlaneseq
    %v215 = vshrl.u32 %v214, 7
    %v216 = vsub.s32 0, %v215
    %v217 = vrot.slane %v137, %v216
    %v218 = vlaneseq
    %v219 = vshrl.u32 %v218, 7
    %v220 = vsub.s32 0, %v219
    %v221 = vrot.slane %v141, %v220
    %v222 = vmul.f32 %v57, %v161
    %v223 = vmul.f32 %v57, %v165
    %v224 = vmul.f32 %v57, %v169
    %v225 = vmul.f32 %v57, %v173
    %v226 = vmul.f32 %v57, %v177
    %v227 = vmul.f32 %v57, %v181
    %v228 = vmul.f32 %v57, %v185
    %v229 = vmul.f32 %v57, %v189
    %v230 = vmul.f32 %v57, %v193
    %v231 = vmul.f32 %v57, %v197
    %v232 = vmul.f32 %v57, %v201
    %v233 = vmul.f32 %v57, %v205
    %v234 = vmul.f32 %v57, %v209
    %v235 = vmul.f32 %v57, %v213
    %v236 = vmul.f32 %v57, %v217
    %v237 = vmul.f32 %v57, %v221
    %v238 = vmul.f32 %v62, %v161
    %v239 = vmul.f32 %v62, %v165
    %v240 = vmul.f32 %v62, %v169
    %v241 = vmul.f32 %v62, %v173
    %v242 = vmul.f32 %v62, %v177
    %v243 = vmul.f32 %v62, %v181
    %v244 = vmul.f32 %v62, %v185
    %v245 = vmul.f32 %v62, %v189
    %v246 = vmul.f32 %v62, %v193
    %v247 = vmul.f32 %v62, %v197
    %v248 = vmul.f32 %v62, %v201
    %v249 = vmul.f32 %v62, %v205
    %v250 = vmul.f32 %v62, %v209
    %v251 = vmul.f32 %v62, %v213
    %v252 = vmul.f32 %v62, %v217
    %v253 = vmul.f32 %v62, %v221
    %v254 = vmul.f32 %v67, %v161
    %v255 = vmul.f32 %v67, %v165
    %v256 = vmul.f32 %v67, %v169
    %v257 = vmul.f32 %v67, %v173
    %v258 = vmul.f32 %v67, %v177
    %v259 = vmul.f32 %v67, %v181
    %v260 = vmul.f32 %v67, %v185
    %v261 = vmul.f32 %v67, %v189
    %v262 = vmul.f32 %v67, %v193
    %v263 = vmul.f32 %v67, %v197
    %v264 = vmul.f32 %v67, %v201
    %v265 = vmul.f32 %v67, %v205
    %v266 = vmul.f32 %v67, %v209
    %v267 = vmul.f32 %v67, %v213
    %v268 = vmul.f32 %v67, %v217
    %v269 = vmul.f32 %v67, %v221
    %v270 = vmul.f32 %v72, %v161
    %v271 = vmul.f32 %v72, %v165
    %v272 = vmul.f32 %v72, %v169
    %v273 = vmul.f32 %v72, %v173
    %v274 = vmul.f32 %v72, %v177
    %v275 = vmul.f32 %v72, %v181
    %v276 = vmul.f32 %v72, %v185
    %v277 = vmul.f32 %v72, %v189
    %v278 = vmul.f32 %v72, %v193
    %v279 = vmul.f32 %v72, %v197
    %v280 = vmul.f32 %v72, %v201
    %v281 = vmul.f32 %v72, %v205
    %v282 = vmul.f32 %v72, %v209
    %v283 = vmul.f32 %v72, %v213
    %v284 = vmul.f32 %v72, %v217
    %v285 = vmul.f32 %v72, %v221
    %286 = vset.pattern.permute.xlu0 1
    %287 = vperm.xlu0 %286, %v50
    %v288 = vpop.permute.xlu0 %287
    %290 = vset.pattern.permute.xlu0 1
    %291 = vperm.xlu0 %290, %v51
    %v292 = vpop.permute.xlu0 %291
    %294 = vset.pattern.permute.xlu0 1
    %295 = vperm.xlu0 %294, %v52
    %v296 = vpop.permute.xlu0 %295
    %298 = vset.pattern.permute.xlu0 1
    %299 = vperm.xlu0 %298, %v53
    %v300 = vpop.permute.xlu0 %299
    %v302 = vlaneseq
    %v303 = vshrl.u32 %v302, 7
    %v304 = vsub.s32 1, %v303
    %v305 = vrot.slane %v46, %v304
    %v306 = vlaneseq
    %v307 = vshrl.u32 %v306, 7
    %v308 = vsub.s32 3, %v307
    %v309 = vrot.slane %v46, %v308
    %v310 = vlaneseq
    %v311 = vshrl.u32 %v310, 7
    %v312 = vsub.s32 5, %v311
    %v313 = vrot.slane %v46, %v312
    %v314 = vlaneseq
    %v315 = vshrl.u32 %v314, 7
    %v316 = vsub.s32 7, %v315
    %v317 = vrot.slane %v46, %v316
    %v318 = vlaneseq
    %v319 = vshrl.u32 %v318, 7
    %v320 = vsub.s32 1, %v319
    %v321 = vrot.slane %v47, %v320
    %v322 = vlaneseq
    %v323 = vshrl.u32 %v322, 7
    %v324 = vsub.s32 3, %v323
    %v325 = vrot.slane %v47, %v324
    %v326 = vlaneseq
    %v327 = vshrl.u32 %v326, 7
    %v328 = vsub.s32 5, %v327
    %v329 = vrot.slane %v47, %v328
    %v330 = vlaneseq
    %v331 = vshrl.u32 %v330, 7
    %v332 = vsub.s32 7, %v331
    %v333 = vrot.slane %v47, %v332
    %v334 = vlaneseq
    %v335 = vshrl.u32 %v334, 7
    %v336 = vsub.s32 1, %v335
    %v337 = vrot.slane %v48, %v336
    %v338 = vlaneseq
    %v339 = vshrl.u32 %v338, 7
    %v340 = vsub.s32 3, %v339
    %v341 = vrot.slane %v48, %v340
    %v342 = vlaneseq
    %v343 = vshrl.u32 %v342, 7
    %v344 = vsub.s32 5, %v343
    %v345 = vrot.slane %v48, %v344
    %v346 = vlaneseq
    %v347 = vshrl.u32 %v346, 7
    %v348 = vsub.s32 7, %v347
    %v349 = vrot.slane %v48, %v348
    %v350 = vlaneseq
    %v351 = vshrl.u32 %v350, 7
    %v352 = vsub.s32 1, %v351
    %v353 = vrot.slane %v49, %v352
    %v354 = vlaneseq
    %v355 = vshrl.u32 %v354, 7
    %v356 = vsub.s32 3, %v355
    %v357 = vrot.slane %v49, %v356
    %v358 = vlaneseq
    %v359 = vshrl.u32 %v358, 7
    %v360 = vsub.s32 5, %v359
    %v361 = vrot.slane %v49, %v360
    %v362 = vlaneseq
    %v363 = vshrl.u32 %v362, 7
    %v364 = vsub.s32 7, %v363
    %v365 = vrot.slane %v49, %v364
    %v382 = vlaneseq
    %v383 = vshrl.u32 %v382, 7
    %v384 = vsub.s32 1, %v383
    %v385 = vrot.slane %v305, %v384
    %v386 = vlaneseq
    %v387 = vshrl.u32 %v386, 7
    %v388 = vsub.s32 1, %v387
    %v389 = vrot.slane %v309, %v388
    %v390 = vlaneseq
    %v391 = vshrl.u32 %v390, 7
    %v392 = vsub.s32 1, %v391
    %v393 = vrot.slane %v313, %v392
    %v394 = vlaneseq
    %v395 = vshrl.u32 %v394, 7
    %v396 = vsub.s32 1, %v395
    %v397 = vrot.slane %v317, %v396
    %v398 = vlaneseq
    %v399 = vshrl.u32 %v398, 7
    %v400 = vsub.s32 1, %v399
    %v401 = vrot.slane %v321, %v400
    %v402 = vlaneseq
    %v403 = vshrl.u32 %v402, 7
    %v404 = vsub.s32 1, %v403
    %v405 = vrot.slane %v325, %v404
    %v406 = vlaneseq
    %v407 = vshrl.u32 %v406, 7
    %v408 = vsub.s32 1, %v407
    %v409 = vrot.slane %v329, %v408
    %v410 = vlaneseq
    %v411 = vshrl.u32 %v410, 7
    %v412 = vsub.s32 1, %v411
    %v413 = vrot.slane %v333, %v412
    %v414 = vlaneseq
    %v415 = vshrl.u32 %v414, 7
    %v416 = vsub.s32 1, %v415
    %v417 = vrot.slane %v337, %v416
    %v418 = vlaneseq
    %v419 = vshrl.u32 %v418, 7
    %v420 = vsub.s32 1, %v419
    %v421 = vrot.slane %v341, %v420
    %v422 = vlaneseq
    %v423 = vshrl.u32 %v422, 7
    %v424 = vsub.s32 1, %v423
    %v425 = vrot.slane %v345, %v424
    %v426 = vlaneseq
    %v427 = vshrl.u32 %v426, 7
    %v428 = vsub.s32 1, %v427
    %v429 = vrot.slane %v349, %v428
    %v430 = vlaneseq
    %v431 = vshrl.u32 %v430, 7
    %v432 = vsub.s32 1, %v431
    %v433 = vrot.slane %v353, %v432
    %v434 = vlaneseq
    %v435 = vshrl.u32 %v434, 7
    %v436 = vsub.s32 1, %v435
    %v437 = vrot.slane %v357, %v436
    %v438 = vlaneseq
    %v439 = vshrl.u32 %v438, 7
    %v440 = vsub.s32 1, %v439
    %v441 = vrot.slane %v361, %v440
    %v442 = vlaneseq
    %v443 = vshrl.u32 %v442, 7
    %v444 = vsub.s32 1, %v443
    %v445 = vrot.slane %v365, %v444
    %v446 = vmul.f32 %v288, %v385
    %v447 = vmul.f32 %v288, %v389
    %v448 = vmul.f32 %v288, %v393
    %v449 = vmul.f32 %v288, %v397
    %v450 = vmul.f32 %v288, %v401
    %v451 = vmul.f32 %v288, %v405
    %v452 = vmul.f32 %v288, %v409
    %v453 = vmul.f32 %v288, %v413
    %v454 = vmul.f32 %v288, %v417
    %v455 = vmul.f32 %v288, %v421
    %v456 = vmul.f32 %v288, %v425
    %v457 = vmul.f32 %v288, %v429
    %v458 = vmul.f32 %v288, %v433
    %v459 = vmul.f32 %v288, %v437
    %v460 = vmul.f32 %v288, %v441
    %v461 = vmul.f32 %v288, %v445
    %v462 = vmul.f32 %v292, %v385
    %v463 = vmul.f32 %v292, %v389
    %v464 = vmul.f32 %v292, %v393
    %v465 = vmul.f32 %v292, %v397
    %v466 = vmul.f32 %v292, %v401
    %v467 = vmul.f32 %v292, %v405
    %v468 = vmul.f32 %v292, %v409
    %v469 = vmul.f32 %v292, %v413
    %v470 = vmul.f32 %v292, %v417
    %v471 = vmul.f32 %v292, %v421
    %v472 = vmul.f32 %v292, %v425
    %v473 = vmul.f32 %v292, %v429
    %v474 = vmul.f32 %v292, %v433
    %v475 = vmul.f32 %v292, %v437
    %v476 = vmul.f32 %v292, %v441
    %v477 = vmul.f32 %v292, %v445
    %v478 = vmul.f32 %v296, %v385
    %v479 = vmul.f32 %v296, %v389
    %v480 = vmul.f32 %v296, %v393
    %v481 = vmul.f32 %v296, %v397
    %v482 = vmul.f32 %v296, %v401
    %v483 = vmul.f32 %v296, %v405
    %v484 = vmul.f32 %v296, %v409
    %v485 = vmul.f32 %v296, %v413
    %v486 = vmul.f32 %v296, %v417
    %v487 = vmul.f32 %v296, %v421
    %v488 = vmul.f32 %v296, %v425
    %v489 = vmul.f32 %v296, %v429
    %v490 = vmul.f32 %v296, %v433
    %v491 = vmul.f32 %v296, %v437
    %v492 = vmul.f32 %v296, %v441
    %v493 = vmul.f32 %v296, %v445
    %v494 = vmul.f32 %v300, %v385
    %v495 = vmul.f32 %v300, %v389
    %v496 = vmul.f32 %v300, %v393
    %v497 = vmul.f32 %v300, %v397
    %v498 = vmul.f32 %v300, %v401
    %v499 = vmul.f32 %v300, %v405
    %v500 = vmul.f32 %v300, %v409
    %v501 = vmul.f32 %v300, %v413
    %v502 = vmul.f32 %v300, %v417
    %v503 = vmul.f32 %v300, %v421
    %v504 = vmul.f32 %v300, %v425
    %v505 = vmul.f32 %v300, %v429
    %v506 = vmul.f32 %v300, %v433
    %v507 = vmul.f32 %v300, %v437
    %v508 = vmul.f32 %v300, %v441
    %v509 = vmul.f32 %v300, %v445
    %v510 = vadd.f32 %v222, %v446
    %v511 = vadd.f32 %v223, %v447
    %v512 = vadd.f32 %v224, %v448
    %v513 = vadd.f32 %v225, %v449
    %v514 = vadd.f32 %v226, %v450
    %v515 = vadd.f32 %v227, %v451
    %v516 = vadd.f32 %v228, %v452
    %v517 = vadd.f32 %v229, %v453
    %v518 = vadd.f32 %v230, %v454
    %v519 = vadd.f32 %v231, %v455
    %v520 = vadd.f32 %v232, %v456
    %v521 = vadd.f32 %v233, %v457
    %v522 = vadd.f32 %v234, %v458
    %v523 = vadd.f32 %v235, %v459
    %v524 = vadd.f32 %v236, %v460
    %v525 = vadd.f32 %v237, %v461
    %v526 = vadd.f32 %v238, %v462
    %v527 = vadd.f32 %v239, %v463
    %v528 = vadd.f32 %v240, %v464
    %v529 = vadd.f32 %v241, %v465
    %v530 = vadd.f32 %v242, %v466
    %v531 = vadd.f32 %v243, %v467
    %v532 = vadd.f32 %v244, %v468
    %v533 = vadd.f32 %v245, %v469
    %v534 = vadd.f32 %v246, %v470
    %v535 = vadd.f32 %v247, %v471
    %v536 = vadd.f32 %v248, %v472
    %v537 = vadd.f32 %v249, %v473
    %v538 = vadd.f32 %v250, %v474
    %v539 = vadd.f32 %v251, %v475
    %v540 = vadd.f32 %v252, %v476
    %v541 = vadd.f32 %v253, %v477
    %v542 = vadd.f32 %v254, %v478
    %v543 = vadd.f32 %v255, %v479
    %v544 = vadd.f32 %v256, %v480
    %v545 = vadd.f32 %v257, %v481
    %v546 = vadd.f32 %v258, %v482
    %v547 = vadd.f32 %v259, %v483
    %v548 = vadd.f32 %v260, %v484
    %v549 = vadd.f32 %v261, %v485
    %v550 = vadd.f32 %v262, %v486
    %v551 = vadd.f32 %v263, %v487
    %v552 = vadd.f32 %v264, %v488
    %v553 = vadd.f32 %v265, %v489
    %v554 = vadd.f32 %v266, %v490
    %v555 = vadd.f32 %v267, %v491
    %v556 = vadd.f32 %v268, %v492
    %v557 = vadd.f32 %v269, %v493
    %v558 = vadd.f32 %v270, %v494
    %v559 = vadd.f32 %v271, %v495
    %v560 = vadd.f32 %v272, %v496
    %v561 = vadd.f32 %v273, %v497
    %v562 = vadd.f32 %v274, %v498
    %v563 = vadd.f32 %v275, %v499
    %v564 = vadd.f32 %v276, %v500
    %v565 = vadd.f32 %v277, %v501
    %v566 = vadd.f32 %v278, %v502
    %v567 = vadd.f32 %v279, %v503
    %v568 = vadd.f32 %v280, %v504
    %v569 = vadd.f32 %v281, %v505
    %v570 = vadd.f32 %v282, %v506
    %v571 = vadd.f32 %v283, %v507
    %v572 = vadd.f32 %v284, %v508
    %v573 = vadd.f32 %v285, %v509
    %v574 = vld [vmem:[%s2] sm:$0xff]
    %v575 = vld [vmem:[%s2 + $0x8] sm:$0xff]
    %v576 = vld [vmem:[%s2 + $0x10] sm:$0xff]
    %v577 = vld [vmem:[%s2 + $0x18] sm:$0xff]
    %579 = vset.pattern.permute.xlu0 0
    %580 = vperm.xlu0 %579, %v574
    %v581 = vpop.permute.xlu0 %580
    %584 = vset.pattern.permute.xlu0 0
    %585 = vperm.xlu0 %584, %v575
    %v586 = vpop.permute.xlu0 %585
    %589 = vset.pattern.permute.xlu0 0
    %590 = vperm.xlu0 %589, %v576
    %v591 = vpop.permute.xlu0 %590
    %594 = vset.pattern.permute.xlu0 0
    %595 = vperm.xlu0 %594, %v577
    %v596 = vpop.permute.xlu0 %595
    %v598 = vadd.f32 %v510, %v581
    %v599 = vadd.f32 %v511, %v581
    %v600 = vadd.f32 %v512, %v581
    %v601 = vadd.f32 %v513, %v581
    %v602 = vadd.f32 %v514, %v581
    %v603 = vadd.f32 %v515, %v581
    %v604 = vadd.f32 %v516, %v581
    %v605 = vadd.f32 %v517, %v581
    %v606 = vadd.f32 %v518, %v581
    %v607 = vadd.f32 %v519, %v581
    %v608 = vadd.f32 %v520, %v581
    %v609 = vadd.f32 %v521, %v581
    %v610 = vadd.f32 %v522, %v581
    %v611 = vadd.f32 %v523, %v581
    %v612 = vadd.f32 %v524, %v581
    %v613 = vadd.f32 %v525, %v581
    %v614 = vadd.f32 %v526, %v586
    %v615 = vadd.f32 %v527, %v586
    %v616 = vadd.f32 %v528, %v586
    %v617 = vadd.f32 %v529, %v586
    %v618 = vadd.f32 %v530, %v586
    %v619 = vadd.f32 %v531, %v586
    %v620 = vadd.f32 %v532, %v586
    %v621 = vadd.f32 %v533, %v586
    %v622 = vadd.f32 %v534, %v586
    %v623 = vadd.f32 %v535, %v586
    %v624 = vadd.f32 %v536, %v586
    %v625 = vadd.f32 %v537, %v586
    %v626 = vadd.f32 %v538, %v586
    %v627 = vadd.f32 %v539, %v586
    %v628 = vadd.f32 %v540, %v586
    %v629 = vadd.f32 %v541, %v586
    %v630 = vadd.f32 %v542, %v591
    %v631 = vadd.f32 %v543, %v591
    %v632 = vadd.f32 %v544, %v591
    %v633 = vadd.f32 %v545, %v591
    %v634 = vadd.f32 %v546, %v591
    %v635 = vadd.f32 %v547, %v591
    %v636 = vadd.f32 %v548, %v591
    %v637 = vadd.f32 %v549, %v591
    %v638 = vadd.f32 %v550, %v591
    %v639 = vadd.f32 %v551, %v591
    %v640 = vadd.f32 %v552, %v591
    %v641 = vadd.f32 %v553, %v591
    %v642 = vadd.f32 %v554, %v591
    %v643 = vadd.f32 %v555, %v591
    %v644 = vadd.f32 %v556, %v591
    %v645 = vadd.f32 %v557, %v591
    %v646 = vadd.f32 %v558, %v596
    %v647 = vadd.f32 %v559, %v596
    %v648 = vadd.f32 %v560, %v596
    %v649 = vadd.f32 %v561, %v596
    %v650 = vadd.f32 %v562, %v596
    %v651 = vadd.f32 %v563, %v596
    %v652 = vadd.f32 %v564, %v596
    %v653 = vadd.f32 %v565, %v596
    %v654 = vadd.f32 %v566, %v596
    %v655 = vadd.f32 %v567, %v596
    %v656 = vadd.f32 %v568, %v596
    %v657 = vadd.f32 %v569, %v596
    %v658 = vadd.f32 %v570, %v596
    %v659 = vadd.f32 %v571, %v596
    %v660 = vadd.f32 %v572, %v596
    %v661 = vadd.f32 %v573, %v596
    %v662 = vand.u32 2147483647, %v598
    %vm663 = vcmp.le.f32.partialorder %v662, 0.7853982
    %vm664 = vcmp.lt.s32.totalorder %v598, 0
    %v665 = vand.u32 %v598, 2139095040
    %v666 = vshrl.u32 %v665, 23
    %v667 = vsub.s32 %v666, 127
    %v668 = vand.u32 2147483647, %v598
    %v669 = vand.u32 %v668, 8388607
    %v670 = vor.u32 %v669, 8388608
    %v671 = vsub.s32 0, %v670
    %v672 = vadd.s32 %v667, 1
    %vm673 = vcmp.gt.s32.totalorder %v672, 0
    %v674 = vsel %vm673, %v672, 0
    %v675 = vshrl.u32 %v674, 5
    %v676 = vand.u32 %v674, 31
    %v677 = vsub.s32 32, %v676
    %v678 = vshrl.u32 683565275, %v677
    %v679 = vshll.u32 683565275, %v676
    %v680 = vshrl.u32 2475754826, %v677
    %v681 = vor.u32 %v679, %v680
    %v682 = vshll.u32 2475754826, %v676
    %v683 = vshrl.u32 2131351028, %v677
    %v684 = vor.u32 %v682, %v683
    %v685 = vshll.u32 2131351028, %v676
    %v686 = vshrl.u32 2102212464, %v677
    %v687 = vor.u32 %v685, %v686
    %v688 = vshll.u32 2102212464, %v676
    %v689 = vshrl.u32 920167782, %v677
    %v690 = vor.u32 %v688, %v689
    %v691 = vshll.u32 920167782, %v676
    %v692 = vshrl.u32 1326507024, %v677
    %v693 = vor.u32 %v691, %v692
    %vm694 = vcmp.lt.s32.totalorder %v675, 1
    %vm695 = vcmp.lt.s32.totalorder %v675, 2
    %vm696 = vcmp.lt.s32.totalorder %v675, 3
    %vm697 = vcmp.lt.s32.totalorder %v675, 4
    %v698 = vsel %vm694, %v678, %v681
    %v699 = vsel %vm697, %v687, 2102212464
    %v700 = vsel %vm696, %v684, %v699
    %v701 = vsel %vm695, %v698, %v700
    %v702 = vsel %vm694, %v681, %v684
    %v703 = vsel %vm697, %v690, 920167782
    %v704 = vsel %vm696, %v687, %v703
    %v705 = vsel %vm695, %v702, %v704
    %v706 = vsel %vm694, %v684, %v687
    %v707 = vsel %vm697, %v693, 1326507024
    %v708 = vsel %vm696, %v690, %v707
    %v709 = vsel %vm695, %v706, %v708
    %v710 = vshll.u32 %v670, 8
    %v711 = vmul.u32.u64.compose %v710, %v709
    %v712 = vextract.low.u32 %v711
    %v713 = vextract.high.u32 %v711
    %v714 = vmul.u32.u64.compose %v710, %v705
    %v715 = vextract.low.u32 %v714
    %v716 = vextract.high.u32 %v714
    %v717 = vmul.u32 %v710, %v701
    %v718 = vadd.s32 %v713, %v715
    %vm719 = vc.u32 %v713, %v715
    %v720 = vadd.s32 %v716, 1
    %v721 = vsel %vm719, %v720, %v716
    %v722 = vadd.s32 %v717, %v721
    %v723 = vadd.s32 %v722, 536870912
    %v724 = vshrl.u32 %v723, 30
    %v725 = vshll.u32 %v724, 30
    %v726 = vsub.s32 %v722, %v725
    %vm727 = vcmp.lt.s32.totalorder %v726, 0
    %v728 = vsub.s32 0, %v726
    %v729 = vsel %vm727, %v728, %v726
    %v730 = vclz %v729
    %v731 = vsub.s32 %v730, 2
    %vm732 = vcmp.gt.s32.totalorder 0, %v731
    %v733 = vsel %vm732, 0, %v731
    %v734 = vsub.s32 32, %v733
    %v735 = vshll.u32 %v726, %v733
    %v736 = vshrl.u32 %v718, %v734
    %v737 = vor.u32 %v735, %v736
    %v738 = vsub.s32 4294967266, %v733
    %v739 = vadd.s32 %v738, 127
    %v740 = vshll.u32 %v739, 23
    %v741 = vor.u32 4788187, %v740
    %v742 = vand.u32 2147483647, %v741
    %v744 = vcvt.s32.f32 %v737
    %v745 = vmul.f32 %v744, %v742
    %v746 = vxor.u32 %v745, 2147483648
    %v747 = vsel %vm664, %v746, %v745
    %v748 = vsub.s32 4, %v724
    %v749 = vsel %vm664, %v748, %v724
    %v750 = vsel %vm663, %v598, %v747
    %v751 = vsel %vm663, 0, %v749
    %v752 = vcosq.f32.pop %v750
    %v753 = vsinq.f32.pop %v750
    %vm754 = vweird.f32 %v598
    %v755 = vadd.s32 %v751, 3
    %v756 = vand.u32 %v755, 3
    %vm757 = vcmp.lt.s32.totalorder %v756, 2
    %vm758 = vcmp.eq.s32.totalorder %v756, 0
    %v759 = vxor.u32 %v753, 2147483648
    %v760 = vsel %vm758, %v752, %v759
    %vm761 = vcmp.eq.s32.totalorder %v756, 2
    %v762 = vxor.u32 %v752, 2147483648
    %v763 = vsel %vm761, %v762, %v753
    %v764 = vsel %vm757, %v760, %v763
    %v765 = vsel %vm754, nan, %v764
    %v766 = vand.u32 2147483647, %v599
    %vm767 = vcmp.le.f32.partialorder %v766, 0.7853982
    %vm768 = vcmp.lt.s32.totalorder %v599, 0
    %v769 = vand.u32 %v599, 2139095040
    %v770 = vshrl.u32 %v769, 23
    %v771 = vsub.s32 %v770, 127
    %v772 = vand.u32 2147483647, %v599
    %v773 = vand.u32 %v772, 8388607
    %v774 = vor.u32 %v773, 8388608
    %v775 = vsub.s32 0, %v774
    %v776 = vadd.s32 %v771, 1
    %vm777 = vcmp.gt.s32.totalorder %v776, 0
    %v778 = vsel %vm777, %v776, 0
    %v779 = vshrl.u32 %v778, 5
    %v780 = vand.u32 %v778, 31
    %v781 = vsub.s32 32, %v780
    %v782 = vshrl.u32 683565275, %v781
    %v783 = vshll.u32 683565275, %v780
    %v784 = vshrl.u32 2475754826, %v781
    %v785 = vor.u32 %v783, %v784
    %v786 = vshll.u32 2475754826, %v780
    %v787 = vshrl.u32 2131351028, %v781
    %v788 = vor.u32 %v786, %v787
    %v789 = vshll.u32 2131351028, %v780
    %v790 = vshrl.u32 2102212464, %v781
    %v791 = vor.u32 %v789, %v790
    %v792 = vshll.u32 2102212464, %v780
    %v793 = vshrl.u32 920167782, %v781
    %v794 = vor.u32 %v792, %v793
    %v795 = vshll.u32 920167782, %v780
    %v796 = vshrl.u32 1326507024, %v781
    %v797 = vor.u32 %v795, %v796
    %vm798 = vcmp.lt.s32.totalorder %v779, 1
    %vm799 = vcmp.lt.s32.totalorder %v779, 2
    %vm800 = vcmp.lt.s32.totalorder %v779, 3
    %vm801 = vcmp.lt.s32.totalorder %v779, 4
    %v802 = vsel %vm798, %v782, %v785
    %v803 = vsel %vm801, %v791, 2102212464
    %v804 = vsel %vm800, %v788, %v803
    %v805 = vsel %vm799, %v802, %v804
    %v806 = vsel %vm798, %v785, %v788
    %v807 = vsel %vm801, %v794, 920167782
    %v808 = vsel %vm800, %v791, %v807
    %v809 = vsel %vm799, %v806, %v808
    %v810 = vsel %vm798, %v788, %v791
    %v811 = vsel %vm801, %v797, 1326507024
    %v812 = vsel %vm800, %v794, %v811
    %v813 = vsel %vm799, %v810, %v812
    %v814 = vshll.u32 %v774, 8
    %v815 = vmul.u32.u64.compose %v814, %v813
    %v816 = vextract.low.u32 %v815
    %v817 = vextract.high.u32 %v815
    %v818 = vmul.u32.u64.compose %v814, %v809
    %v819 = vextract.low.u32 %v818
    %v820 = vextract.high.u32 %v818
    %v821 = vmul.u32 %v814, %v805
    %v822 = vadd.s32 %v817, %v819
    %vm823 = vc.u32 %v817, %v819
    %v824 = vadd.s32 %v820, 1
    %v825 = vsel %vm823, %v824, %v820
    %v826 = vadd.s32 %v821, %v825
    %v827 = vadd.s32 %v826, 536870912
    %v828 = vshrl.u32 %v827, 30
    %v829 = vshll.u32 %v828, 30
    %v830 = vsub.s32 %v826, %v829
    %vm831 = vcmp.lt.s32.totalorder %v830, 0
    %v832 = vsub.s32 0, %v830
    %v833 = vsel %vm831, %v832, %v830
    %v834 = vclz %v833
    %v835 = vsub.s32 %v834, 2
    %vm836 = vcmp.gt.s32.totalorder 0, %v835
    %v837 = vsel %vm836, 0, %v835
    %v838 = vsub.s32 32, %v837
    %v839 = vshll.u32 %v830, %v837
    %v840 = vshrl.u32 %v822, %v838
    %v841 = vor.u32 %v839, %v840
    %v842 = vsub.s32 4294967266, %v837
    %v843 = vadd.s32 %v842, 127
    %v844 = vshll.u32 %v843, 23
    %v845 = vor.u32 4788187, %v844
    %v846 = vand.u32 2147483647, %v845
    %v848 = vcvt.s32.f32 %v841
    %v849 = vmul.f32 %v848, %v846
    %v850 = vxor.u32 %v849, 2147483648
    %v851 = vsel %vm768, %v850, %v849
    %v852 = vsub.s32 4, %v828
    %v853 = vsel %vm768, %v852, %v828
    %v854 = vsel %vm767, %v599, %v851
    %v855 = vsel %vm767, 0, %v853
    %v856 = vcosq.f32.pop %v854
    %v857 = vsinq.f32.pop %v854
    %vm858 = vweird.f32 %v599
    %v859 = vadd.s32 %v855, 3
    %v860 = vand.u32 %v859, 3
    %vm861 = vcmp.lt.s32.totalorder %v860, 2
    %vm862 = vcmp.eq.s32.totalorder %v860, 0
    %v863 = vxor.u32 %v857, 2147483648
    %v864 = vsel %vm862, %v856, %v863
    %vm865 = vcmp.eq.s32.totalorder %v860, 2
    %v866 = vxor.u32 %v856, 2147483648
    %v867 = vsel %vm865, %v866, %v857
    %v868 = vsel %vm861, %v864, %v867
    %v869 = vsel %vm858, nan, %v868
    %v870 = vand.u32 2147483647, %v600
    %vm871 = vcmp.le.f32.partialorder %v870, 0.7853982
    %vm872 = vcmp.lt.s32.totalorder %v600, 0
    %v873 = vand.u32 %v600, 2139095040
    %v874 = vshrl.u32 %v873, 23
    %v875 = vsub.s32 %v874, 127
    %v876 = vand.u32 2147483647, %v600
    %v877 = vand.u32 %v876, 8388607
    %v878 = vor.u32 %v877, 8388608
    %v879 = vsub.s32 0, %v878
    %v880 = vadd.s32 %v875, 1
    %vm881 = vcmp.gt.s32.totalorder %v880, 0
    %v882 = vsel %vm881, %v880, 0
    %v883 = vshrl.u32 %v882, 5
    %v884 = vand.u32 %v882, 31
    %v885 = vsub.s32 32, %v884
    %v886 = vshrl.u32 683565275, %v885
    %v887 = vshll.u32 683565275, %v884
    %v888 = vshrl.u32 2475754826, %v885
    %v889 = vor.u32 %v887, %v888
    %v890 = vshll.u32 2475754826, %v884
    %v891 = vshrl.u32 2131351028, %v885
    %v892 = vor.u32 %v890, %v891
    %v893 = vshll.u32 2131351028, %v884
    %v894 = vshrl.u32 2102212464, %v885
    %v895 = vor.u32 %v893, %v894
    %v896 = vshll.u32 2102212464, %v884
    %v897 = vshrl.u32 920167782, %v885
    %v898 = vor.u32 %v896, %v897
    %v899 = vshll.u32 920167782, %v884
    %v900 = vshrl.u32 1326507024, %v885
    %v901 = vor.u32 %v899, %v900
    %vm902 = vcmp.lt.s32.totalorder %v883, 1
    %vm903 = vcmp.lt.s32.totalorder %v883, 2
    %vm904 = vcmp.lt.s32.totalorder %v883, 3
    %vm905 = vcmp.lt.s32.totalorder %v883, 4
    %v906 = vsel %vm902, %v886, %v889
    %v907 = vsel %vm905, %v895, 2102212464
    %v908 = vsel %vm904, %v892, %v907
    %v909 = vsel %vm903, %v906, %v908
    %v910 = vsel %vm902, %v889, %v892
    %v911 = vsel %vm905, %v898, 920167782
    %v912 = vsel %vm904, %v895, %v911
    %v913 = vsel %vm903, %v910, %v912
    %v914 = vsel %vm902, %v892, %v895
    %v915 = vsel %vm905, %v901, 1326507024
    %v916 = vsel %vm904, %v898, %v915
    %v917 = vsel %vm903, %v914, %v916
    %v918 = vshll.u32 %v878, 8
    %v919 = vmul.u32.u64.compose %v918, %v917
    %v920 = vextract.low.u32 %v919
    %v921 = vextract.high.u32 %v919
    %v922 = vmul.u32.u64.compose %v918, %v913
    %v923 = vextract.low.u32 %v922
    %v924 = vextract.high.u32 %v922
    %v925 = vmul.u32 %v918, %v909
    %v926 = vadd.s32 %v921, %v923
    %vm927 = vc.u32 %v921, %v923
    %v928 = vadd.s32 %v924, 1
    %v929 = vsel %vm927, %v928, %v924
    %v930 = vadd.s32 %v925, %v929
    %v931 = vadd.s32 %v930, 536870912
    %v932 = vshrl.u32 %v931, 30
    %v933 = vshll.u32 %v932, 30
    %v934 = vsub.s32 %v930, %v933
    %vm935 = vcmp.lt.s32.totalorder %v934, 0
    %v936 = vsub.s32 0, %v934
    %v937 = vsel %vm935, %v936, %v934
    %v938 = vclz %v937
    %v939 = vsub.s32 %v938, 2
    %vm940 = vcmp.gt.s32.totalorder 0, %v939
    %v941 = vsel %vm940, 0, %v939
    %v942 = vsub.s32 32, %v941
    %v943 = vshll.u32 %v934, %v941
    %v944 = vshrl.u32 %v926, %v942
    %v945 = vor.u32 %v943, %v944
    %v946 = vsub.s32 4294967266, %v941
    %v947 = vadd.s32 %v946, 127
    %v948 = vshll.u32 %v947, 23
    %v949 = vor.u32 4788187, %v948
    %v950 = vand.u32 2147483647, %v949
    %v952 = vcvt.s32.f32 %v945
    %v953 = vmul.f32 %v952, %v950
    %v954 = vxor.u32 %v953, 2147483648
    %v955 = vsel %vm872, %v954, %v953
    %v956 = vsub.s32 4, %v932
    %v957 = vsel %vm872, %v956, %v932
    %v958 = vsel %vm871, %v600, %v955
    %v959 = vsel %vm871, 0, %v957
    %v960 = vcosq.f32.pop %v958
    %v961 = vsinq.f32.pop %v958
    %vm962 = vweird.f32 %v600
    %v963 = vadd.s32 %v959, 3
    %v964 = vand.u32 %v963, 3
    %vm965 = vcmp.lt.s32.totalorder %v964, 2
    %vm966 = vcmp.eq.s32.totalorder %v964, 0
    %v967 = vxor.u32 %v961, 2147483648
    %v968 = vsel %vm966, %v960, %v967
    %vm969 = vcmp.eq.s32.totalorder %v964, 2
    %v970 = vxor.u32 %v960, 2147483648
    %v971 = vsel %vm969, %v970, %v961
    %v972 = vsel %vm965, %v968, %v971
    %v973 = vsel %vm962, nan, %v972
    %v974 = vand.u32 2147483647, %v601
    %vm975 = vcmp.le.f32.partialorder %v974, 0.7853982
    %vm976 = vcmp.lt.s32.totalorder %v601, 0
    %v977 = vand.u32 %v601, 2139095040
    %v978 = vshrl.u32 %v977, 23
    %v979 = vsub.s32 %v978, 127
    %v980 = vand.u32 2147483647, %v601
    %v981 = vand.u32 %v980, 8388607
    %v982 = vor.u32 %v981, 8388608
    %v983 = vsub.s32 0, %v982
    %v984 = vadd.s32 %v979, 1
    %vm985 = vcmp.gt.s32.totalorder %v984, 0
    %v986 = vsel %vm985, %v984, 0
    %v987 = vshrl.u32 %v986, 5
    %v988 = vand.u32 %v986, 31
    %v989 = vsub.s32 32, %v988
    %v990 = vshrl.u32 683565275, %v989
    %v991 = vshll.u32 683565275, %v988
    %v992 = vshrl.u32 2475754826, %v989
    %v993 = vor.u32 %v991, %v992
    %v994 = vshll.u32 2475754826, %v988
    %v995 = vshrl.u32 2131351028, %v989
    %v996 = vor.u32 %v994, %v995
    %v997 = vshll.u32 2131351028, %v988
    %v998 = vshrl.u32 2102212464, %v989
    %v999 = vor.u32 %v997, %v998
    %v1000 = vshll.u32 2102212464, %v988
    %v1001 = vshrl.u32 920167782, %v989
    %v1002 = vor.u32 %v1000, %v1001
    %v1003 = vshll.u32 920167782, %v988
    %v1004 = vshrl.u32 1326507024, %v989
    %v1005 = vor.u32 %v1003, %v1004
    %vm1006 = vcmp.lt.s32.totalorder %v987, 1
    %vm1007 = vcmp.lt.s32.totalorder %v987, 2
    %vm1008 = vcmp.lt.s32.totalorder %v987, 3
    %vm1009 = vcmp.lt.s32.totalorder %v987, 4
    %v1010 = vsel %vm1006, %v990, %v993
    %v1011 = vsel %vm1009, %v999, 2102212464
    %v1012 = vsel %vm1008, %v996, %v1011
    %v1013 = vsel %vm1007, %v1010, %v1012
    %v1014 = vsel %vm1006, %v993, %v996
    %v1015 = vsel %vm1009, %v1002, 920167782
    %v1016 = vsel %vm1008, %v999, %v1015
    %v1017 = vsel %vm1007, %v1014, %v1016
    %v1018 = vsel %vm1006, %v996, %v999
    %v1019 = vsel %vm1009, %v1005, 1326507024
    %v1020 = vsel %vm1008, %v1002, %v1019
    %v1021 = vsel %vm1007, %v1018, %v1020
    %v1022 = vshll.u32 %v982, 8
    %v1023 = vmul.u32.u64.compose %v1022, %v1021
    %v1024 = vextract.low.u32 %v1023
    %v1025 = vextract.high.u32 %v1023
    %v1026 = vmul.u32.u64.compose %v1022, %v1017
    %v1027 = vextract.low.u32 %v1026
    %v1028 = vextract.high.u32 %v1026
    %v1029 = vmul.u32 %v1022, %v1013
    %v1030 = vadd.s32 %v1025, %v1027
    %vm1031 = vc.u32 %v1025, %v1027
    %v1032 = vadd.s32 %v1028, 1
    %v1033 = vsel %vm1031, %v1032, %v1028
    %v1034 = vadd.s32 %v1029, %v1033
    %v1035 = vadd.s32 %v1034, 536870912
    %v1036 = vshrl.u32 %v1035, 30
    %v1037 = vshll.u32 %v1036, 30
    %v1038 = vsub.s32 %v1034, %v1037
    %vm1039 = vcmp.lt.s32.totalorder %v1038, 0
    %v1040 = vsub.s32 0, %v1038
    %v1041 = vsel %vm1039, %v1040, %v1038
    %v1042 = vclz %v1041
    %v1043 = vsub.s32 %v1042, 2
    %vm1044 = vcmp.gt.s32.totalorder 0, %v1043
    %v1045 = vsel %vm1044, 0, %v1043
    %v1046 = vsub.s32 32, %v1045
    %v1047 = vshll.u32 %v1038, %v1045
    %v1048 = vshrl.u32 %v1030, %v1046
    %v1049 = vor.u32 %v1047, %v1048
    %v1050 = vsub.s32 4294967266, %v1045
    %v1051 = vadd.s32 %v1050, 127
    %v1052 = vshll.u32 %v1051, 23
    %v1053 = vor.u32 4788187, %v1052
    %v1054 = vand.u32 2147483647, %v1053
    %v1056 = vcvt.s32.f32 %v1049
    %v1057 = vmul.f32 %v1056, %v1054
    %v1058 = vxor.u32 %v1057, 2147483648
    %v1059 = vsel %vm976, %v1058, %v1057
    %v1060 = vsub.s32 4, %v1036
    %v1061 = vsel %vm976, %v1060, %v1036
    %v1062 = vsel %vm975, %v601, %v1059
    %v1063 = vsel %vm975, 0, %v1061
    %v1064 = vcosq.f32.pop %v1062
    %v1065 = vsinq.f32.pop %v1062
    %vm1066 = vweird.f32 %v601
    %v1067 = vadd.s32 %v1063, 3
    %v1068 = vand.u32 %v1067, 3
    %vm1069 = vcmp.lt.s32.totalorder %v1068, 2
    %vm1070 = vcmp.eq.s32.totalorder %v1068, 0
    %v1071 = vxor.u32 %v1065, 2147483648
    %v1072 = vsel %vm1070, %v1064, %v1071
    %vm1073 = vcmp.eq.s32.totalorder %v1068, 2
    %v1074 = vxor.u32 %v1064, 2147483648
    %v1075 = vsel %vm1073, %v1074, %v1065
    %v1076 = vsel %vm1069, %v1072, %v1075
    %v1077 = vsel %vm1066, nan, %v1076
    %v1078 = vand.u32 2147483647, %v602
    %vm1079 = vcmp.le.f32.partialorder %v1078, 0.7853982
    %vm1080 = vcmp.lt.s32.totalorder %v602, 0
    %v1081 = vand.u32 %v602, 2139095040
    %v1082 = vshrl.u32 %v1081, 23
    %v1083 = vsub.s32 %v1082, 127
    %v1084 = vand.u32 2147483647, %v602
    %v1085 = vand.u32 %v1084, 8388607
    %v1086 = vor.u32 %v1085, 8388608
    %v1087 = vsub.s32 0, %v1086
    %v1088 = vadd.s32 %v1083, 1
    %vm1089 = vcmp.gt.s32.totalorder %v1088, 0
    %v1090 = vsel %vm1089, %v1088, 0
    %v1091 = vshrl.u32 %v1090, 5
    %v1092 = vand.u32 %v1090, 31
    %v1093 = vsub.s32 32, %v1092
    %v1094 = vshrl.u32 683565275, %v1093
    %v1095 = vshll.u32 683565275, %v1092
    %v1096 = vshrl.u32 2475754826, %v1093
    %v1097 = vor.u32 %v1095, %v1096
    %v1098 = vshll.u32 2475754826, %v1092
    %v1099 = vshrl.u32 2131351028, %v1093
    %v1100 = vor.u32 %v1098, %v1099
    %v1101 = vshll.u32 2131351028, %v1092
    %v1102 = vshrl.u32 2102212464, %v1093
    %v1103 = vor.u32 %v1101, %v1102
    %v1104 = vshll.u32 2102212464, %v1092
    %v1105 = vshrl.u32 920167782, %v1093
    %v1106 = vor.u32 %v1104, %v1105
    %v1107 = vshll.u32 920167782, %v1092
    %v1108 = vshrl.u32 1326507024, %v1093
    %v1109 = vor.u32 %v1107, %v1108
    %vm1110 = vcmp.lt.s32.totalorder %v1091, 1
    %vm1111 = vcmp.lt.s32.totalorder %v1091, 2
    %vm1112 = vcmp.lt.s32.totalorder %v1091, 3
    %vm1113 = vcmp.lt.s32.totalorder %v1091, 4
    %v1114 = vsel %vm1110, %v1094, %v1097
    %v1115 = vsel %vm1113, %v1103, 2102212464
    %v1116 = vsel %vm1112, %v1100, %v1115
    %v1117 = vsel %vm1111, %v1114, %v1116
    %v1118 = vsel %vm1110, %v1097, %v1100
    %v1119 = vsel %vm1113, %v1106, 920167782
    %v1120 = vsel %vm1112, %v1103, %v1119
    %v1121 = vsel %vm1111, %v1118, %v1120
    %v1122 = vsel %vm1110, %v1100, %v1103
    %v1123 = vsel %vm1113, %v1109, 1326507024
    %v1124 = vsel %vm1112, %v1106, %v1123
    %v1125 = vsel %vm1111, %v1122, %v1124
    %v1126 = vshll.u32 %v1086, 8
    %v1127 = vmul.u32.u64.compose %v1126, %v1125
    %v1128 = vextract.low.u32 %v1127
    %v1129 = vextract.high.u32 %v1127
    %v1130 = vmul.u32.u64.compose %v1126, %v1121
    %v1131 = vextract.low.u32 %v1130
    %v1132 = vextract.high.u32 %v1130
    %v1133 = vmul.u32 %v1126, %v1117
    %v1134 = vadd.s32 %v1129, %v1131
    %vm1135 = vc.u32 %v1129, %v1131
    %v1136 = vadd.s32 %v1132, 1
    %v1137 = vsel %vm1135, %v1136, %v1132
    %v1138 = vadd.s32 %v1133, %v1137
    %v1139 = vadd.s32 %v1138, 536870912
    %v1140 = vshrl.u32 %v1139, 30
    %v1141 = vshll.u32 %v1140, 30
    %v1142 = vsub.s32 %v1138, %v1141
    %vm1143 = vcmp.lt.s32.totalorder %v1142, 0
    %v1144 = vsub.s32 0, %v1142
    %v1145 = vsel %vm1143, %v1144, %v1142
    %v1146 = vclz %v1145
    %v1147 = vsub.s32 %v1146, 2
    %vm1148 = vcmp.gt.s32.totalorder 0, %v1147
    %v1149 = vsel %vm1148, 0, %v1147
    %v1150 = vsub.s32 32, %v1149
    %v1151 = vshll.u32 %v1142, %v1149
    %v1152 = vshrl.u32 %v1134, %v1150
    %v1153 = vor.u32 %v1151, %v1152
    %v1154 = vsub.s32 4294967266, %v1149
    %v1155 = vadd.s32 %v1154, 127
    %v1156 = vshll.u32 %v1155, 23
    %v1157 = vor.u32 4788187, %v1156
    %v1158 = vand.u32 2147483647, %v1157
    %v1160 = vcvt.s32.f32 %v1153
    %v1161 = vmul.f32 %v1160, %v1158
    %v1162 = vxor.u32 %v1161, 2147483648
    %v1163 = vsel %vm1080, %v1162, %v1161
    %v1164 = vsub.s32 4, %v1140
    %v1165 = vsel %vm1080, %v1164, %v1140
    %v1166 = vsel %vm1079, %v602, %v1163
    %v1167 = vsel %vm1079, 0, %v1165
    %v1168 = vcosq.f32.pop %v1166
    %v1169 = vsinq.f32.pop %v1166
    %vm1170 = vweird.f32 %v602
    %v1171 = vadd.s32 %v1167, 3
    %v1172 = vand.u32 %v1171, 3
    %vm1173 = vcmp.lt.s32.totalorder %v1172, 2
    %vm1174 = vcmp.eq.s32.totalorder %v1172, 0
    %v1175 = vxor.u32 %v1169, 2147483648
    %v1176 = vsel %vm1174, %v1168, %v1175
    %vm1177 = vcmp.eq.s32.totalorder %v1172, 2
    %v1178 = vxor.u32 %v1168, 2147483648
    %v1179 = vsel %vm1177, %v1178, %v1169
    %v1180 = vsel %vm1173, %v1176, %v1179
    %v1181 = vsel %vm1170, nan, %v1180
    %v1182 = vand.u32 2147483647, %v603
    %vm1183 = vcmp.le.f32.partialorder %v1182, 0.7853982
    %vm1184 = vcmp.lt.s32.totalorder %v603, 0
    %v1185 = vand.u32 %v603, 2139095040
    %v1186 = vshrl.u32 %v1185, 23
    %v1187 = vsub.s32 %v1186, 127
    %v1188 = vand.u32 2147483647, %v603
    %v1189 = vand.u32 %v1188, 8388607
    %v1190 = vor.u32 %v1189, 8388608
    %v1191 = vsub.s32 0, %v1190
    %v1192 = vadd.s32 %v1187, 1
    %vm1193 = vcmp.gt.s32.totalorder %v1192, 0
    %v1194 = vsel %vm1193, %v1192, 0
    %v1195 = vshrl.u32 %v1194, 5
    %v1196 = vand.u32 %v1194, 31
    %v1197 = vsub.s32 32, %v1196
    %v1198 = vshrl.u32 683565275, %v1197
    %v1199 = vshll.u32 683565275, %v1196
    %v1200 = vshrl.u32 2475754826, %v1197
    %v1201 = vor.u32 %v1199, %v1200
    %v1202 = vshll.u32 2475754826, %v1196
    %v1203 = vshrl.u32 2131351028, %v1197
    %v1204 = vor.u32 %v1202, %v1203
    %v1205 = vshll.u32 2131351028, %v1196
    %v1206 = vshrl.u32 2102212464, %v1197
    %v1207 = vor.u32 %v1205, %v1206
    %v1208 = vshll.u32 2102212464, %v1196
    %v1209 = vshrl.u32 920167782, %v1197
    %v1210 = vor.u32 %v1208, %v1209
    %v1211 = vshll.u32 920167782, %v1196
    %v1212 = vshrl.u32 1326507024, %v1197
    %v1213 = vor.u32 %v1211, %v1212
    %vm1214 = vcmp.lt.s32.totalorder %v1195, 1
    %vm1215 = vcmp.lt.s32.totalorder %v1195, 2
    %vm1216 = vcmp.lt.s32.totalorder %v1195, 3
    %vm1217 = vcmp.lt.s32.totalorder %v1195, 4
    %v1218 = vsel %vm1214, %v1198, %v1201
    %v1219 = vsel %vm1217, %v1207, 2102212464
    %v1220 = vsel %vm1216, %v1204, %v1219
    %v1221 = vsel %vm1215, %v1218, %v1220
    %v1222 = vsel %vm1214, %v1201, %v1204
    %v1223 = vsel %vm1217, %v1210, 920167782
    %v1224 = vsel %vm1216, %v1207, %v1223
    %v1225 = vsel %vm1215, %v1222, %v1224
    %v1226 = vsel %vm1214, %v1204, %v1207
    %v1227 = vsel %vm1217, %v1213, 1326507024
    %v1228 = vsel %vm1216, %v1210, %v1227
    %v1229 = vsel %vm1215, %v1226, %v1228
    %v1230 = vshll.u32 %v1190, 8
    %v1231 = vmul.u32.u64.compose %v1230, %v1229
    %v1232 = vextract.low.u32 %v1231
    %v1233 = vextract.high.u32 %v1231
    %v1234 = vmul.u32.u64.compose %v1230, %v1225
    %v1235 = vextract.low.u32 %v1234
    %v1236 = vextract.high.u32 %v1234
    %v1237 = vmul.u32 %v1230, %v1221
    %v1238 = vadd.s32 %v1233, %v1235
    %vm1239 = vc.u32 %v1233, %v1235
    %v1240 = vadd.s32 %v1236, 1
    %v1241 = vsel %vm1239, %v1240, %v1236
    %v1242 = vadd.s32 %v1237, %v1241
    %v1243 = vadd.s32 %v1242, 536870912
    %v1244 = vshrl.u32 %v1243, 30
    %v1245 = vshll.u32 %v1244, 30
    %v1246 = vsub.s32 %v1242, %v1245
    %vm1247 = vcmp.lt.s32.totalorder %v1246, 0
    %v1248 = vsub.s32 0, %v1246
    %v1249 = vsel %vm1247, %v1248, %v1246
    %v1250 = vclz %v1249
    %v1251 = vsub.s32 %v1250, 2
    %vm1252 = vcmp.gt.s32.totalorder 0, %v1251
    %v1253 = vsel %vm1252, 0, %v1251
    %v1254 = vsub.s32 32, %v1253
    %v1255 = vshll.u32 %v1246, %v1253
    %v1256 = vshrl.u32 %v1238, %v1254
    %v1257 = vor.u32 %v1255, %v1256
    %v1258 = vsub.s32 4294967266, %v1253
    %v1259 = vadd.s32 %v1258, 127
    %v1260 = vshll.u32 %v1259, 23
    %v1261 = vor.u32 4788187, %v1260
    %v1262 = vand.u32 2147483647, %v1261
    %v1264 = vcvt.s32.f32 %v1257
    %v1265 = vmul.f32 %v1264, %v1262
    %v1266 = vxor.u32 %v1265, 2147483648
    %v1267 = vsel %vm1184, %v1266, %v1265
    %v1268 = vsub.s32 4, %v1244
    %v1269 = vsel %vm1184, %v1268, %v1244
    %v1270 = vsel %vm1183, %v603, %v1267
    %v1271 = vsel %vm1183, 0, %v1269
    %v1272 = vcosq.f32.pop %v1270
    %v1273 = vsinq.f32.pop %v1270
    %vm1274 = vweird.f32 %v603
    %v1275 = vadd.s32 %v1271, 3
    %v1276 = vand.u32 %v1275, 3
    %vm1277 = vcmp.lt.s32.totalorder %v1276, 2
    %vm1278 = vcmp.eq.s32.totalorder %v1276, 0
    %v1279 = vxor.u32 %v1273, 2147483648
    %v1280 = vsel %vm1278, %v1272, %v1279
    %vm1281 = vcmp.eq.s32.totalorder %v1276, 2
    %v1282 = vxor.u32 %v1272, 2147483648
    %v1283 = vsel %vm1281, %v1282, %v1273
    %v1284 = vsel %vm1277, %v1280, %v1283
    %v1285 = vsel %vm1274, nan, %v1284
    %v1286 = vand.u32 2147483647, %v604
    %vm1287 = vcmp.le.f32.partialorder %v1286, 0.7853982
    %vm1288 = vcmp.lt.s32.totalorder %v604, 0
    %v1289 = vand.u32 %v604, 2139095040
    %v1290 = vshrl.u32 %v1289, 23
    %v1291 = vsub.s32 %v1290, 127
    %v1292 = vand.u32 2147483647, %v604
    %v1293 = vand.u32 %v1292, 8388607
    %v1294 = vor.u32 %v1293, 8388608
    %v1295 = vsub.s32 0, %v1294
    %v1296 = vadd.s32 %v1291, 1
    %vm1297 = vcmp.gt.s32.totalorder %v1296, 0
    %v1298 = vsel %vm1297, %v1296, 0
    %v1299 = vshrl.u32 %v1298, 5
    %v1300 = vand.u32 %v1298, 31
    %v1301 = vsub.s32 32, %v1300
    %v1302 = vshrl.u32 683565275, %v1301
    %v1303 = vshll.u32 683565275, %v1300
    %v1304 = vshrl.u32 2475754826, %v1301
    %v1305 = vor.u32 %v1303, %v1304
    %v1306 = vshll.u32 2475754826, %v1300
    %v1307 = vshrl.u32 2131351028, %v1301
    %v1308 = vor.u32 %v1306, %v1307
    %v1309 = vshll.u32 2131351028, %v1300
    %v1310 = vshrl.u32 2102212464, %v1301
    %v1311 = vor.u32 %v1309, %v1310
    %v1312 = vshll.u32 2102212464, %v1300
    %v1313 = vshrl.u32 920167782, %v1301
    %v1314 = vor.u32 %v1312, %v1313
    %v1315 = vshll.u32 920167782, %v1300
    %v1316 = vshrl.u32 1326507024, %v1301
    %v1317 = vor.u32 %v1315, %v1316
    %vm1318 = vcmp.lt.s32.totalorder %v1299, 1
    %vm1319 = vcmp.lt.s32.totalorder %v1299, 2
    %vm1320 = vcmp.lt.s32.totalorder %v1299, 3
    %vm1321 = vcmp.lt.s32.totalorder %v1299, 4
    %v1322 = vsel %vm1318, %v1302, %v1305
    %v1323 = vsel %vm1321, %v1311, 2102212464
    %v1324 = vsel %vm1320, %v1308, %v1323
    %v1325 = vsel %vm1319, %v1322, %v1324
    %v1326 = vsel %vm1318, %v1305, %v1308
    %v1327 = vsel %vm1321, %v1314, 920167782
    %v1328 = vsel %vm1320, %v1311, %v1327
    %v1329 = vsel %vm1319, %v1326, %v1328
    %v1330 = vsel %vm1318, %v1308, %v1311
    %v1331 = vsel %vm1321, %v1317, 1326507024
    %v1332 = vsel %vm1320, %v1314, %v1331
    %v1333 = vsel %vm1319, %v1330, %v1332
    %v1334 = vshll.u32 %v1294, 8
    %v1335 = vmul.u32.u64.compose %v1334, %v1333
    %v1336 = vextract.low.u32 %v1335
    %v1337 = vextract.high.u32 %v1335
    %v1338 = vmul.u32.u64.compose %v1334, %v1329
    %v1339 = vextract.low.u32 %v1338
    %v1340 = vextract.high.u32 %v1338
    %v1341 = vmul.u32 %v1334, %v1325
    %v1342 = vadd.s32 %v1337, %v1339
    %vm1343 = vc.u32 %v1337, %v1339
    %v1344 = vadd.s32 %v1340, 1
    %v1345 = vsel %vm1343, %v1344, %v1340
    %v1346 = vadd.s32 %v1341, %v1345
    %v1347 = vadd.s32 %v1346, 536870912
    %v1348 = vshrl.u32 %v1347, 30
    %v1349 = vshll.u32 %v1348, 30
    %v1350 = vsub.s32 %v1346, %v1349
    %vm1351 = vcmp.lt.s32.totalorder %v1350, 0
    %v1352 = vsub.s32 0, %v1350
    %v1353 = vsel %vm1351, %v1352, %v1350
    %v1354 = vclz %v1353
    %v1355 = vsub.s32 %v1354, 2
    %vm1356 = vcmp.gt.s32.totalorder 0, %v1355
    %v1357 = vsel %vm1356, 0, %v1355
    %v1358 = vsub.s32 32, %v1357
    %v1359 = vshll.u32 %v1350, %v1357
    %v1360 = vshrl.u32 %v1342, %v1358
    %v1361 = vor.u32 %v1359, %v1360
    %v1362 = vsub.s32 4294967266, %v1357
    %v1363 = vadd.s32 %v1362, 127
    %v1364 = vshll.u32 %v1363, 23
    %v1365 = vor.u32 4788187, %v1364
    %v1366 = vand.u32 2147483647, %v1365
    %v1368 = vcvt.s32.f32 %v1361
    %v1369 = vmul.f32 %v1368, %v1366
    %v1370 = vxor.u32 %v1369, 2147483648
    %v1371 = vsel %vm1288, %v1370, %v1369
    %v1372 = vsub.s32 4, %v1348
    %v1373 = vsel %vm1288, %v1372, %v1348
    %v1374 = vsel %vm1287, %v604, %v1371
    %v1375 = vsel %vm1287, 0, %v1373
    %v1376 = vcosq.f32.pop %v1374
    %v1377 = vsinq.f32.pop %v1374
    %vm1378 = vweird.f32 %v604
    %v1379 = vadd.s32 %v1375, 3
    %v1380 = vand.u32 %v1379, 3
    %vm1381 = vcmp.lt.s32.totalorder %v1380, 2
    %vm1382 = vcmp.eq.s32.totalorder %v1380, 0
    %v1383 = vxor.u32 %v1377, 2147483648
    %v1384 = vsel %vm1382, %v1376, %v1383
    %vm1385 = vcmp.eq.s32.totalorder %v1380, 2
    %v1386 = vxor.u32 %v1376, 2147483648
    %v1387 = vsel %vm1385, %v1386, %v1377
    %v1388 = vsel %vm1381, %v1384, %v1387
    %v1389 = vsel %vm1378, nan, %v1388
    %v1390 = vand.u32 2147483647, %v605
    %vm1391 = vcmp.le.f32.partialorder %v1390, 0.7853982
    %vm1392 = vcmp.lt.s32.totalorder %v605, 0
    %v1393 = vand.u32 %v605, 2139095040
    %v1394 = vshrl.u32 %v1393, 23
    %v1395 = vsub.s32 %v1394, 127
    %v1396 = vand.u32 2147483647, %v605
    %v1397 = vand.u32 %v1396, 8388607
    %v1398 = vor.u32 %v1397, 8388608
    %v1399 = vsub.s32 0, %v1398
    %v1400 = vadd.s32 %v1395, 1
    %vm1401 = vcmp.gt.s32.totalorder %v1400, 0
    %v1402 = vsel %vm1401, %v1400, 0
    %v1403 = vshrl.u32 %v1402, 5
    %v1404 = vand.u32 %v1402, 31
    %v1405 = vsub.s32 32, %v1404
    %v1406 = vshrl.u32 683565275, %v1405
    %v1407 = vshll.u32 683565275, %v1404
    %v1408 = vshrl.u32 2475754826, %v1405
    %v1409 = vor.u32 %v1407, %v1408
    %v1410 = vshll.u32 2475754826, %v1404
    %v1411 = vshrl.u32 2131351028, %v1405
    %v1412 = vor.u32 %v1410, %v1411
    %v1413 = vshll.u32 2131351028, %v1404
    %v1414 = vshrl.u32 2102212464, %v1405
    %v1415 = vor.u32 %v1413, %v1414
    %v1416 = vshll.u32 2102212464, %v1404
    %v1417 = vshrl.u32 920167782, %v1405
    %v1418 = vor.u32 %v1416, %v1417
    %v1419 = vshll.u32 920167782, %v1404
    %v1420 = vshrl.u32 1326507024, %v1405
    %v1421 = vor.u32 %v1419, %v1420
    %vm1422 = vcmp.lt.s32.totalorder %v1403, 1
    %vm1423 = vcmp.lt.s32.totalorder %v1403, 2
    %vm1424 = vcmp.lt.s32.totalorder %v1403, 3
    %vm1425 = vcmp.lt.s32.totalorder %v1403, 4
    %v1426 = vsel %vm1422, %v1406, %v1409
    %v1427 = vsel %vm1425, %v1415, 2102212464
    %v1428 = vsel %vm1424, %v1412, %v1427
    %v1429 = vsel %vm1423, %v1426, %v1428
    %v1430 = vsel %vm1422, %v1409, %v1412
    %v1431 = vsel %vm1425, %v1418, 920167782
    %v1432 = vsel %vm1424, %v1415, %v1431
    %v1433 = vsel %vm1423, %v1430, %v1432
    %v1434 = vsel %vm1422, %v1412, %v1415
    %v1435 = vsel %vm1425, %v1421, 1326507024
    %v1436 = vsel %vm1424, %v1418, %v1435
    %v1437 = vsel %vm1423, %v1434, %v1436
    %v1438 = vshll.u32 %v1398, 8
    %v1439 = vmul.u32.u64.compose %v1438, %v1437
    %v1440 = vextract.low.u32 %v1439
    %v1441 = vextract.high.u32 %v1439
    %v1442 = vmul.u32.u64.compose %v1438, %v1433
    %v1443 = vextract.low.u32 %v1442
    %v1444 = vextract.high.u32 %v1442
    %v1445 = vmul.u32 %v1438, %v1429
    %v1446 = vadd.s32 %v1441, %v1443
    %vm1447 = vc.u32 %v1441, %v1443
    %v1448 = vadd.s32 %v1444, 1
    %v1449 = vsel %vm1447, %v1448, %v1444
    %v1450 = vadd.s32 %v1445, %v1449
    %v1451 = vadd.s32 %v1450, 536870912
    %v1452 = vshrl.u32 %v1451, 30
    %v1453 = vshll.u32 %v1452, 30
    %v1454 = vsub.s32 %v1450, %v1453
    %vm1455 = vcmp.lt.s32.totalorder %v1454, 0
    %v1456 = vsub.s32 0, %v1454
    %v1457 = vsel %vm1455, %v1456, %v1454
    %v1458 = vclz %v1457
    %v1459 = vsub.s32 %v1458, 2
    %vm1460 = vcmp.gt.s32.totalorder 0, %v1459
    %v1461 = vsel %vm1460, 0, %v1459
    %v1462 = vsub.s32 32, %v1461
    %v1463 = vshll.u32 %v1454, %v1461
    %v1464 = vshrl.u32 %v1446, %v1462
    %v1465 = vor.u32 %v1463, %v1464
    %v1466 = vsub.s32 4294967266, %v1461
    %v1467 = vadd.s32 %v1466, 127
    %v1468 = vshll.u32 %v1467, 23
    %v1469 = vor.u32 4788187, %v1468
    %v1470 = vand.u32 2147483647, %v1469
    %v1472 = vcvt.s32.f32 %v1465
    %v1473 = vmul.f32 %v1472, %v1470
    %v1474 = vxor.u32 %v1473, 2147483648
    %v1475 = vsel %vm1392, %v1474, %v1473
    %v1476 = vsub.s32 4, %v1452
    %v1477 = vsel %vm1392, %v1476, %v1452
    %v1478 = vsel %vm1391, %v605, %v1475
    %v1479 = vsel %vm1391, 0, %v1477
    %v1480 = vcosq.f32.pop %v1478
    %v1481 = vsinq.f32.pop %v1478
    %vm1482 = vweird.f32 %v605
    %v1483 = vadd.s32 %v1479, 3
    %v1484 = vand.u32 %v1483, 3
    %vm1485 = vcmp.lt.s32.totalorder %v1484, 2
    %vm1486 = vcmp.eq.s32.totalorder %v1484, 0
    %v1487 = vxor.u32 %v1481, 2147483648
    %v1488 = vsel %vm1486, %v1480, %v1487
    %vm1489 = vcmp.eq.s32.totalorder %v1484, 2
    %v1490 = vxor.u32 %v1480, 2147483648
    %v1491 = vsel %vm1489, %v1490, %v1481
    %v1492 = vsel %vm1485, %v1488, %v1491
    %v1493 = vsel %vm1482, nan, %v1492
    %v1494 = vand.u32 2147483647, %v606
    %vm1495 = vcmp.le.f32.partialorder %v1494, 0.7853982
    %vm1496 = vcmp.lt.s32.totalorder %v606, 0
    %v1497 = vand.u32 %v606, 2139095040
    %v1498 = vshrl.u32 %v1497, 23
    %v1499 = vsub.s32 %v1498, 127
    %v1500 = vand.u32 2147483647, %v606
    %v1501 = vand.u32 %v1500, 8388607
    %v1502 = vor.u32 %v1501, 8388608
    %v1503 = vsub.s32 0, %v1502
    %v1504 = vadd.s32 %v1499, 1
    %vm1505 = vcmp.gt.s32.totalorder %v1504, 0
    %v1506 = vsel %vm1505, %v1504, 0
    %v1507 = vshrl.u32 %v1506, 5
    %v1508 = vand.u32 %v1506, 31
    %v1509 = vsub.s32 32, %v1508
    %v1510 = vshrl.u32 683565275, %v1509
    %v1511 = vshll.u32 683565275, %v1508
    %v1512 = vshrl.u32 2475754826, %v1509
    %v1513 = vor.u32 %v1511, %v1512
    %v1514 = vshll.u32 2475754826, %v1508
    %v1515 = vshrl.u32 2131351028, %v1509
    %v1516 = vor.u32 %v1514, %v1515
    %v1517 = vshll.u32 2131351028, %v1508
    %v1518 = vshrl.u32 2102212464, %v1509
    %v1519 = vor.u32 %v1517, %v1518
    %v1520 = vshll.u32 2102212464, %v1508
    %v1521 = vshrl.u32 920167782, %v1509
    %v1522 = vor.u32 %v1520, %v1521
    %v1523 = vshll.u32 920167782, %v1508
    %v1524 = vshrl.u32 1326507024, %v1509
    %v1525 = vor.u32 %v1523, %v1524
    %vm1526 = vcmp.lt.s32.totalorder %v1507, 1
    %vm1527 = vcmp.lt.s32.totalorder %v1507, 2
    %vm1528 = vcmp.lt.s32.totalorder %v1507, 3
    %vm1529 = vcmp.lt.s32.totalorder %v1507, 4
    %v1530 = vsel %vm1526, %v1510, %v1513
    %v1531 = vsel %vm1529, %v1519, 2102212464
    %v1532 = vsel %vm1528, %v1516, %v1531
    %v1533 = vsel %vm1527, %v1530, %v1532
    %v1534 = vsel %vm1526, %v1513, %v1516
    %v1535 = vsel %vm1529, %v1522, 920167782
    %v1536 = vsel %vm1528, %v1519, %v1535
    %v1537 = vsel %vm1527, %v1534, %v1536
    %v1538 = vsel %vm1526, %v1516, %v1519
    %v1539 = vsel %vm1529, %v1525, 1326507024
    %v1540 = vsel %vm1528, %v1522, %v1539
    %v1541 = vsel %vm1527, %v1538, %v1540
    %v1542 = vshll.u32 %v1502, 8
    %v1543 = vmul.u32.u64.compose %v1542, %v1541
    %v1544 = vextract.low.u32 %v1543
    %v1545 = vextract.high.u32 %v1543
    %v1546 = vmul.u32.u64.compose %v1542, %v1537
    %v1547 = vextract.low.u32 %v1546
    %v1548 = vextract.high.u32 %v1546
    %v1549 = vmul.u32 %v1542, %v1533
    %v1550 = vadd.s32 %v1545, %v1547
    %vm1551 = vc.u32 %v1545, %v1547
    %v1552 = vadd.s32 %v1548, 1
    %v1553 = vsel %vm1551, %v1552, %v1548
    %v1554 = vadd.s32 %v1549, %v1553
    %v1555 = vadd.s32 %v1554, 536870912
    %v1556 = vshrl.u32 %v1555, 30
    %v1557 = vshll.u32 %v1556, 30
    %v1558 = vsub.s32 %v1554, %v1557
    %vm1559 = vcmp.lt.s32.totalorder %v1558, 0
    %v1560 = vsub.s32 0, %v1558
    %v1561 = vsel %vm1559, %v1560, %v1558
    %v1562 = vclz %v1561
    %v1563 = vsub.s32 %v1562, 2
    %vm1564 = vcmp.gt.s32.totalorder 0, %v1563
    %v1565 = vsel %vm1564, 0, %v1563
    %v1566 = vsub.s32 32, %v1565
    %v1567 = vshll.u32 %v1558, %v1565
    %v1568 = vshrl.u32 %v1550, %v1566
    %v1569 = vor.u32 %v1567, %v1568
    %v1570 = vsub.s32 4294967266, %v1565
    %v1571 = vadd.s32 %v1570, 127
    %v1572 = vshll.u32 %v1571, 23
    %v1573 = vor.u32 4788187, %v1572
    %v1574 = vand.u32 2147483647, %v1573
    %v1576 = vcvt.s32.f32 %v1569
    %v1577 = vmul.f32 %v1576, %v1574
    %v1578 = vxor.u32 %v1577, 2147483648
    %v1579 = vsel %vm1496, %v1578, %v1577
    %v1580 = vsub.s32 4, %v1556
    %v1581 = vsel %vm1496, %v1580, %v1556
    %v1582 = vsel %vm1495, %v606, %v1579
    %v1583 = vsel %vm1495, 0, %v1581
    %v1584 = vcosq.f32.pop %v1582
    %v1585 = vsinq.f32.pop %v1582
    %vm1586 = vweird.f32 %v606
    %v1587 = vadd.s32 %v1583, 3
    %v1588 = vand.u32 %v1587, 3
    %vm1589 = vcmp.lt.s32.totalorder %v1588, 2
    %vm1590 = vcmp.eq.s32.totalorder %v1588, 0
    %v1591 = vxor.u32 %v1585, 2147483648
    %v1592 = vsel %vm1590, %v1584, %v1591
    %vm1593 = vcmp.eq.s32.totalorder %v1588, 2
    %v1594 = vxor.u32 %v1584, 2147483648
    %v1595 = vsel %vm1593, %v1594, %v1585
    %v1596 = vsel %vm1589, %v1592, %v1595
    %v1597 = vsel %vm1586, nan, %v1596
    %v1598 = vand.u32 2147483647, %v607
    %vm1599 = vcmp.le.f32.partialorder %v1598, 0.7853982
    %vm1600 = vcmp.lt.s32.totalorder %v607, 0
    %v1601 = vand.u32 %v607, 2139095040
    %v1602 = vshrl.u32 %v1601, 23
    %v1603 = vsub.s32 %v1602, 127
    %v1604 = vand.u32 2147483647, %v607
    %v1605 = vand.u32 %v1604, 8388607
    %v1606 = vor.u32 %v1605, 8388608
    %v1607 = vsub.s32 0, %v1606
    %v1608 = vadd.s32 %v1603, 1
    %vm1609 = vcmp.gt.s32.totalorder %v1608, 0
    %v1610 = vsel %vm1609, %v1608, 0
    %v1611 = vshrl.u32 %v1610, 5
    %v1612 = vand.u32 %v1610, 31
    %v1613 = vsub.s32 32, %v1612
    %v1614 = vshrl.u32 683565275, %v1613
    %v1615 = vshll.u32 683565275, %v1612
    %v1616 = vshrl.u32 2475754826, %v1613
    %v1617 = vor.u32 %v1615, %v1616
    %v1618 = vshll.u32 2475754826, %v1612
    %v1619 = vshrl.u32 2131351028, %v1613
    %v1620 = vor.u32 %v1618, %v1619
    %v1621 = vshll.u32 2131351028, %v1612
    %v1622 = vshrl.u32 2102212464, %v1613
    %v1623 = vor.u32 %v1621, %v1622
    %v1624 = vshll.u32 2102212464, %v1612
    %v1625 = vshrl.u32 920167782, %v1613
    %v1626 = vor.u32 %v1624, %v1625
    %v1627 = vshll.u32 920167782, %v1612
    %v1628 = vshrl.u32 1326507024, %v1613
    %v1629 = vor.u32 %v1627, %v1628
    %vm1630 = vcmp.lt.s32.totalorder %v1611, 1
    %vm1631 = vcmp.lt.s32.totalorder %v1611, 2
    %vm1632 = vcmp.lt.s32.totalorder %v1611, 3
    %vm1633 = vcmp.lt.s32.totalorder %v1611, 4
    %v1634 = vsel %vm1630, %v1614, %v1617
    %v1635 = vsel %vm1633, %v1623, 2102212464
    %v1636 = vsel %vm1632, %v1620, %v1635
    %v1637 = vsel %vm1631, %v1634, %v1636
    %v1638 = vsel %vm1630, %v1617, %v1620
    %v1639 = vsel %vm1633, %v1626, 920167782
    %v1640 = vsel %vm1632, %v1623, %v1639
    %v1641 = vsel %vm1631, %v1638, %v1640
    %v1642 = vsel %vm1630, %v1620, %v1623
    %v1643 = vsel %vm1633, %v1629, 1326507024
    %v1644 = vsel %vm1632, %v1626, %v1643
    %v1645 = vsel %vm1631, %v1642, %v1644
    %v1646 = vshll.u32 %v1606, 8
    %v1647 = vmul.u32.u64.compose %v1646, %v1645
    %v1648 = vextract.low.u32 %v1647
    %v1649 = vextract.high.u32 %v1647
    %v1650 = vmul.u32.u64.compose %v1646, %v1641
    %v1651 = vextract.low.u32 %v1650
    %v1652 = vextract.high.u32 %v1650
    %v1653 = vmul.u32 %v1646, %v1637
    %v1654 = vadd.s32 %v1649, %v1651
    %vm1655 = vc.u32 %v1649, %v1651
    %v1656 = vadd.s32 %v1652, 1
    %v1657 = vsel %vm1655, %v1656, %v1652
    %v1658 = vadd.s32 %v1653, %v1657
    %v1659 = vadd.s32 %v1658, 536870912
    %v1660 = vshrl.u32 %v1659, 30
    %v1661 = vshll.u32 %v1660, 30
    %v1662 = vsub.s32 %v1658, %v1661
    %vm1663 = vcmp.lt.s32.totalorder %v1662, 0
    %v1664 = vsub.s32 0, %v1662
    %v1665 = vsel %vm1663, %v1664, %v1662
    %v1666 = vclz %v1665
    %v1667 = vsub.s32 %v1666, 2
    %vm1668 = vcmp.gt.s32.totalorder 0, %v1667
    %v1669 = vsel %vm1668, 0, %v1667
    %v1670 = vsub.s32 32, %v1669
    %v1671 = vshll.u32 %v1662, %v1669
    %v1672 = vshrl.u32 %v1654, %v1670
    %v1673 = vor.u32 %v1671, %v1672
    %v1674 = vsub.s32 4294967266, %v1669
    %v1675 = vadd.s32 %v1674, 127
    %v1676 = vshll.u32 %v1675, 23
    %v1677 = vor.u32 4788187, %v1676
    %v1678 = vand.u32 2147483647, %v1677
    %v1680 = vcvt.s32.f32 %v1673
    %v1681 = vmul.f32 %v1680, %v1678
    %v1682 = vxor.u32 %v1681, 2147483648
    %v1683 = vsel %vm1600, %v1682, %v1681
    %v1684 = vsub.s32 4, %v1660
    %v1685 = vsel %vm1600, %v1684, %v1660
    %v1686 = vsel %vm1599, %v607, %v1683
    %v1687 = vsel %vm1599, 0, %v1685
    %v1688 = vcosq.f32.pop %v1686
    %v1689 = vsinq.f32.pop %v1686
    %vm1690 = vweird.f32 %v607
    %v1691 = vadd.s32 %v1687, 3
    %v1692 = vand.u32 %v1691, 3
    %vm1693 = vcmp.lt.s32.totalorder %v1692, 2
    %vm1694 = vcmp.eq.s32.totalorder %v1692, 0
    %v1695 = vxor.u32 %v1689, 2147483648
    %v1696 = vsel %vm1694, %v1688, %v1695
    %vm1697 = vcmp.eq.s32.totalorder %v1692, 2
    %v1698 = vxor.u32 %v1688, 2147483648
    %v1699 = vsel %vm1697, %v1698, %v1689
    %v1700 = vsel %vm1693, %v1696, %v1699
    %v1701 = vsel %vm1690, nan, %v1700
    %v1702 = vand.u32 2147483647, %v608
    %vm1703 = vcmp.le.f32.partialorder %v1702, 0.7853982
    %vm1704 = vcmp.lt.s32.totalorder %v608, 0
    %v1705 = vand.u32 %v608, 2139095040
    %v1706 = vshrl.u32 %v1705, 23
    %v1707 = vsub.s32 %v1706, 127
    %v1708 = vand.u32 2147483647, %v608
    %v1709 = vand.u32 %v1708, 8388607
    %v1710 = vor.u32 %v1709, 8388608
    %v1711 = vsub.s32 0, %v1710
    %v1712 = vadd.s32 %v1707, 1
    %vm1713 = vcmp.gt.s32.totalorder %v1712, 0
    %v1714 = vsel %vm1713, %v1712, 0
    %v1715 = vshrl.u32 %v1714, 5
    %v1716 = vand.u32 %v1714, 31
    %v1717 = vsub.s32 32, %v1716
    %v1718 = vshrl.u32 683565275, %v1717
    %v1719 = vshll.u32 683565275, %v1716
    %v1720 = vshrl.u32 2475754826, %v1717
    %v1721 = vor.u32 %v1719, %v1720
    %v1722 = vshll.u32 2475754826, %v1716
    %v1723 = vshrl.u32 2131351028, %v1717
    %v1724 = vor.u32 %v1722, %v1723
    %v1725 = vshll.u32 2131351028, %v1716
    %v1726 = vshrl.u32 2102212464, %v1717
    %v1727 = vor.u32 %v1725, %v1726
    %v1728 = vshll.u32 2102212464, %v1716
    %v1729 = vshrl.u32 920167782, %v1717
    %v1730 = vor.u32 %v1728, %v1729
    %v1731 = vshll.u32 920167782, %v1716
    %v1732 = vshrl.u32 1326507024, %v1717
    %v1733 = vor.u32 %v1731, %v1732
    %vm1734 = vcmp.lt.s32.totalorder %v1715, 1
    %vm1735 = vcmp.lt.s32.totalorder %v1715, 2
    %vm1736 = vcmp.lt.s32.totalorder %v1715, 3
    %vm1737 = vcmp.lt.s32.totalorder %v1715, 4
    %v1738 = vsel %vm1734, %v1718, %v1721
    %v1739 = vsel %vm1737, %v1727, 2102212464
    %v1740 = vsel %vm1736, %v1724, %v1739
    %v1741 = vsel %vm1735, %v1738, %v1740
    %v1742 = vsel %vm1734, %v1721, %v1724
    %v1743 = vsel %vm1737, %v1730, 920167782
    %v1744 = vsel %vm1736, %v1727, %v1743
    %v1745 = vsel %vm1735, %v1742, %v1744
    %v1746 = vsel %vm1734, %v1724, %v1727
    %v1747 = vsel %vm1737, %v1733, 1326507024
    %v1748 = vsel %vm1736, %v1730, %v1747
    %v1749 = vsel %vm1735, %v1746, %v1748
    %v1750 = vshll.u32 %v1710, 8
    %v1751 = vmul.u32.u64.compose %v1750, %v1749
    %v1752 = vextract.low.u32 %v1751
    %v1753 = vextract.high.u32 %v1751
    %v1754 = vmul.u32.u64.compose %v1750, %v1745
    %v1755 = vextract.low.u32 %v1754
    %v1756 = vextract.high.u32 %v1754
    %v1757 = vmul.u32 %v1750, %v1741
    %v1758 = vadd.s32 %v1753, %v1755
    %vm1759 = vc.u32 %v1753, %v1755
    %v1760 = vadd.s32 %v1756, 1
    %v1761 = vsel %vm1759, %v1760, %v1756
    %v1762 = vadd.s32 %v1757, %v1761
    %v1763 = vadd.s32 %v1762, 536870912
    %v1764 = vshrl.u32 %v1763, 30
    %v1765 = vshll.u32 %v1764, 30
    %v1766 = vsub.s32 %v1762, %v1765
    %vm1767 = vcmp.lt.s32.totalorder %v1766, 0
    %v1768 = vsub.s32 0, %v1766
    %v1769 = vsel %vm1767, %v1768, %v1766
    %v1770 = vclz %v1769
    %v1771 = vsub.s32 %v1770, 2
    %vm1772 = vcmp.gt.s32.totalorder 0, %v1771
    %v1773 = vsel %vm1772, 0, %v1771
    %v1774 = vsub.s32 32, %v1773
    %v1775 = vshll.u32 %v1766, %v1773
    %v1776 = vshrl.u32 %v1758, %v1774
    %v1777 = vor.u32 %v1775, %v1776
    %v1778 = vsub.s32 4294967266, %v1773
    %v1779 = vadd.s32 %v1778, 127
    %v1780 = vshll.u32 %v1779, 23
    %v1781 = vor.u32 4788187, %v1780
    %v1782 = vand.u32 2147483647, %v1781
    %v1784 = vcvt.s32.f32 %v1777
    %v1785 = vmul.f32 %v1784, %v1782
    %v1786 = vxor.u32 %v1785, 2147483648
    %v1787 = vsel %vm1704, %v1786, %v1785
    %v1788 = vsub.s32 4, %v1764
    %v1789 = vsel %vm1704, %v1788, %v1764
    %v1790 = vsel %vm1703, %v608, %v1787
    %v1791 = vsel %vm1703, 0, %v1789
    %v1792 = vcosq.f32.pop %v1790
    %v1793 = vsinq.f32.pop %v1790
    %vm1794 = vweird.f32 %v608
    %v1795 = vadd.s32 %v1791, 3
    %v1796 = vand.u32 %v1795, 3
    %vm1797 = vcmp.lt.s32.totalorder %v1796, 2
    %vm1798 = vcmp.eq.s32.totalorder %v1796, 0
    %v1799 = vxor.u32 %v1793, 2147483648
    %v1800 = vsel %vm1798, %v1792, %v1799
    %vm1801 = vcmp.eq.s32.totalorder %v1796, 2
    %v1802 = vxor.u32 %v1792, 2147483648
    %v1803 = vsel %vm1801, %v1802, %v1793
    %v1804 = vsel %vm1797, %v1800, %v1803
    %v1805 = vsel %vm1794, nan, %v1804
    %v1806 = vand.u32 2147483647, %v609
    %vm1807 = vcmp.le.f32.partialorder %v1806, 0.7853982
    %vm1808 = vcmp.lt.s32.totalorder %v609, 0
    %v1809 = vand.u32 %v609, 2139095040
    %v1810 = vshrl.u32 %v1809, 23
    %v1811 = vsub.s32 %v1810, 127
    %v1812 = vand.u32 2147483647, %v609
    %v1813 = vand.u32 %v1812, 8388607
    %v1814 = vor.u32 %v1813, 8388608
    %v1815 = vsub.s32 0, %v1814
    %v1816 = vadd.s32 %v1811, 1
    %vm1817 = vcmp.gt.s32.totalorder %v1816, 0
    %v1818 = vsel %vm1817, %v1816, 0
    %v1819 = vshrl.u32 %v1818, 5
    %v1820 = vand.u32 %v1818, 31
    %v1821 = vsub.s32 32, %v1820
    %v1822 = vshrl.u32 683565275, %v1821
    %v1823 = vshll.u32 683565275, %v1820
    %v1824 = vshrl.u32 2475754826, %v1821
    %v1825 = vor.u32 %v1823, %v1824
    %v1826 = vshll.u32 2475754826, %v1820
    %v1827 = vshrl.u32 2131351028, %v1821
    %v1828 = vor.u32 %v1826, %v1827
    %v1829 = vshll.u32 2131351028, %v1820
    %v1830 = vshrl.u32 2102212464, %v1821
    %v1831 = vor.u32 %v1829, %v1830
    %v1832 = vshll.u32 2102212464, %v1820
    %v1833 = vshrl.u32 920167782, %v1821
    %v1834 = vor.u32 %v1832, %v1833
    %v1835 = vshll.u32 920167782, %v1820
    %v1836 = vshrl.u32 1326507024, %v1821
    %v1837 = vor.u32 %v1835, %v1836
    %vm1838 = vcmp.lt.s32.totalorder %v1819, 1
    %vm1839 = vcmp.lt.s32.totalorder %v1819, 2
    %vm1840 = vcmp.lt.s32.totalorder %v1819, 3
    %vm1841 = vcmp.lt.s32.totalorder %v1819, 4
    %v1842 = vsel %vm1838, %v1822, %v1825
    %v1843 = vsel %vm1841, %v1831, 2102212464
    %v1844 = vsel %vm1840, %v1828, %v1843
    %v1845 = vsel %vm1839, %v1842, %v1844
    %v1846 = vsel %vm1838, %v1825, %v1828
    %v1847 = vsel %vm1841, %v1834, 920167782
    %v1848 = vsel %vm1840, %v1831, %v1847
    %v1849 = vsel %vm1839, %v1846, %v1848
    %v1850 = vsel %vm1838, %v1828, %v1831
    %v1851 = vsel %vm1841, %v1837, 1326507024
    %v1852 = vsel %vm1840, %v1834, %v1851
    %v1853 = vsel %vm1839, %v1850, %v1852
    %v1854 = vshll.u32 %v1814, 8
    %v1855 = vmul.u32.u64.compose %v1854, %v1853
    %v1856 = vextract.low.u32 %v1855
    %v1857 = vextract.high.u32 %v1855
    %v1858 = vmul.u32.u64.compose %v1854, %v1849
    %v1859 = vextract.low.u32 %v1858
    %v1860 = vextract.high.u32 %v1858
    %v1861 = vmul.u32 %v1854, %v1845
    %v1862 = vadd.s32 %v1857, %v1859
    %vm1863 = vc.u32 %v1857, %v1859
    %v1864 = vadd.s32 %v1860, 1
    %v1865 = vsel %vm1863, %v1864, %v1860
    %v1866 = vadd.s32 %v1861, %v1865
    %v1867 = vadd.s32 %v1866, 536870912
    %v1868 = vshrl.u32 %v1867, 30
    %v1869 = vshll.u32 %v1868, 30
    %v1870 = vsub.s32 %v1866, %v1869
    %vm1871 = vcmp.lt.s32.totalorder %v1870, 0
    %v1872 = vsub.s32 0, %v1870
    %v1873 = vsel %vm1871, %v1872, %v1870
    %v1874 = vclz %v1873
    %v1875 = vsub.s32 %v1874, 2
    %vm1876 = vcmp.gt.s32.totalorder 0, %v1875
    %v1877 = vsel %vm1876, 0, %v1875
    %v1878 = vsub.s32 32, %v1877
    %v1879 = vshll.u32 %v1870, %v1877
    %v1880 = vshrl.u32 %v1862, %v1878
    %v1881 = vor.u32 %v1879, %v1880
    %v1882 = vsub.s32 4294967266, %v1877
    %v1883 = vadd.s32 %v1882, 127
    %v1884 = vshll.u32 %v1883, 23
    %v1885 = vor.u32 4788187, %v1884
    %v1886 = vand.u32 2147483647, %v1885
    %v1888 = vcvt.s32.f32 %v1881
    %v1889 = vmul.f32 %v1888, %v1886
    %v1890 = vxor.u32 %v1889, 2147483648
    %v1891 = vsel %vm1808, %v1890, %v1889
    %v1892 = vsub.s32 4, %v1868
    %v1893 = vsel %vm1808, %v1892, %v1868
    %v1894 = vsel %vm1807, %v609, %v1891
    %v1895 = vsel %vm1807, 0, %v1893
    %v1896 = vcosq.f32.pop %v1894
    %v1897 = vsinq.f32.pop %v1894
    %vm1898 = vweird.f32 %v609
    %v1899 = vadd.s32 %v1895, 3
    %v1900 = vand.u32 %v1899, 3
    %vm1901 = vcmp.lt.s32.totalorder %v1900, 2
    %vm1902 = vcmp.eq.s32.totalorder %v1900, 0
    %v1903 = vxor.u32 %v1897, 2147483648
    %v1904 = vsel %vm1902, %v1896, %v1903
    %vm1905 = vcmp.eq.s32.totalorder %v1900, 2
    %v1906 = vxor.u32 %v1896, 2147483648
    %v1907 = vsel %vm1905, %v1906, %v1897
    %v1908 = vsel %vm1901, %v1904, %v1907
    %v1909 = vsel %vm1898, nan, %v1908
    %v1910 = vand.u32 2147483647, %v610
    %vm1911 = vcmp.le.f32.partialorder %v1910, 0.7853982
    %vm1912 = vcmp.lt.s32.totalorder %v610, 0
    %v1913 = vand.u32 %v610, 2139095040
    %v1914 = vshrl.u32 %v1913, 23
    %v1915 = vsub.s32 %v1914, 127
    %v1916 = vand.u32 2147483647, %v610
    %v1917 = vand.u32 %v1916, 8388607
    %v1918 = vor.u32 %v1917, 8388608
    %v1919 = vsub.s32 0, %v1918
    %v1920 = vadd.s32 %v1915, 1
    %vm1921 = vcmp.gt.s32.totalorder %v1920, 0
    %v1922 = vsel %vm1921, %v1920, 0
    %v1923 = vshrl.u32 %v1922, 5
    %v1924 = vand.u32 %v1922, 31
    %v1925 = vsub.s32 32, %v1924
    %v1926 = vshrl.u32 683565275, %v1925
    %v1927 = vshll.u32 683565275, %v1924
    %v1928 = vshrl.u32 2475754826, %v1925
    %v1929 = vor.u32 %v1927, %v1928
    %v1930 = vshll.u32 2475754826, %v1924
    %v1931 = vshrl.u32 2131351028, %v1925
    %v1932 = vor.u32 %v1930, %v1931
    %v1933 = vshll.u32 2131351028, %v1924
    %v1934 = vshrl.u32 2102212464, %v1925
    %v1935 = vor.u32 %v1933, %v1934
    %v1936 = vshll.u32 2102212464, %v1924
    %v1937 = vshrl.u32 920167782, %v1925
    %v1938 = vor.u32 %v1936, %v1937
    %v1939 = vshll.u32 920167782, %v1924
    %v1940 = vshrl.u32 1326507024, %v1925
    %v1941 = vor.u32 %v1939, %v1940
    %vm1942 = vcmp.lt.s32.totalorder %v1923, 1
    %vm1943 = vcmp.lt.s32.totalorder %v1923, 2
    %vm1944 = vcmp.lt.s32.totalorder %v1923, 3
    %vm1945 = vcmp.lt.s32.totalorder %v1923, 4
    %v1946 = vsel %vm1942, %v1926, %v1929
    %v1947 = vsel %vm1945, %v1935, 2102212464
    %v1948 = vsel %vm1944, %v1932, %v1947
    %v1949 = vsel %vm1943, %v1946, %v1948
    %v1950 = vsel %vm1942, %v1929, %v1932
    %v1951 = vsel %vm1945, %v1938, 920167782
    %v1952 = vsel %vm1944, %v1935, %v1951
    %v1953 = vsel %vm1943, %v1950, %v1952
    %v1954 = vsel %vm1942, %v1932, %v1935
    %v1955 = vsel %vm1945, %v1941, 1326507024
    %v1956 = vsel %vm1944, %v1938, %v1955
    %v1957 = vsel %vm1943, %v1954, %v1956
    %v1958 = vshll.u32 %v1918, 8
    %v1959 = vmul.u32.u64.compose %v1958, %v1957
    %v1960 = vextract.low.u32 %v1959
    %v1961 = vextract.high.u32 %v1959
    %v1962 = vmul.u32.u64.compose %v1958, %v1953
    %v1963 = vextract.low.u32 %v1962
    %v1964 = vextract.high.u32 %v1962
    %v1965 = vmul.u32 %v1958, %v1949
    %v1966 = vadd.s32 %v1961, %v1963
    %vm1967 = vc.u32 %v1961, %v1963
    %v1968 = vadd.s32 %v1964, 1
    %v1969 = vsel %vm1967, %v1968, %v1964
    %v1970 = vadd.s32 %v1965, %v1969
    %v1971 = vadd.s32 %v1970, 536870912
    %v1972 = vshrl.u32 %v1971, 30
    %v1973 = vshll.u32 %v1972, 30
    %v1974 = vsub.s32 %v1970, %v1973
    %vm1975 = vcmp.lt.s32.totalorder %v1974, 0
    %v1976 = vsub.s32 0, %v1974
    %v1977 = vsel %vm1975, %v1976, %v1974
    %v1978 = vclz %v1977
    %v1979 = vsub.s32 %v1978, 2
    %vm1980 = vcmp.gt.s32.totalorder 0, %v1979
    %v1981 = vsel %vm1980, 0, %v1979
    %v1982 = vsub.s32 32, %v1981
    %v1983 = vshll.u32 %v1974, %v1981
    %v1984 = vshrl.u32 %v1966, %v1982
    %v1985 = vor.u32 %v1983, %v1984
    %v1986 = vsub.s32 4294967266, %v1981
    %v1987 = vadd.s32 %v1986, 127
    %v1988 = vshll.u32 %v1987, 23
    %v1989 = vor.u32 4788187, %v1988
    %v1990 = vand.u32 2147483647, %v1989
    %v1992 = vcvt.s32.f32 %v1985
    %v1993 = vmul.f32 %v1992, %v1990
    %v1994 = vxor.u32 %v1993, 2147483648
    %v1995 = vsel %vm1912, %v1994, %v1993
    %v1996 = vsub.s32 4, %v1972
    %v1997 = vsel %vm1912, %v1996, %v1972
    %v1998 = vsel %vm1911, %v610, %v1995
    %v1999 = vsel %vm1911, 0, %v1997
    %v2000 = vcosq.f32.pop %v1998
    %v2001 = vsinq.f32.pop %v1998
    %vm2002 = vweird.f32 %v610
    %v2003 = vadd.s32 %v1999, 3
    %v2004 = vand.u32 %v2003, 3
    %vm2005 = vcmp.lt.s32.totalorder %v2004, 2
    %vm2006 = vcmp.eq.s32.totalorder %v2004, 0
    %v2007 = vxor.u32 %v2001, 2147483648
    %v2008 = vsel %vm2006, %v2000, %v2007
    %vm2009 = vcmp.eq.s32.totalorder %v2004, 2
    %v2010 = vxor.u32 %v2000, 2147483648
    %v2011 = vsel %vm2009, %v2010, %v2001
    %v2012 = vsel %vm2005, %v2008, %v2011
    %v2013 = vsel %vm2002, nan, %v2012
    %v2014 = vand.u32 2147483647, %v611
    %vm2015 = vcmp.le.f32.partialorder %v2014, 0.7853982
    %vm2016 = vcmp.lt.s32.totalorder %v611, 0
    %v2017 = vand.u32 %v611, 2139095040
    %v2018 = vshrl.u32 %v2017, 23
    %v2019 = vsub.s32 %v2018, 127
    %v2020 = vand.u32 2147483647, %v611
    %v2021 = vand.u32 %v2020, 8388607
    %v2022 = vor.u32 %v2021, 8388608
    %v2023 = vsub.s32 0, %v2022
    %v2024 = vadd.s32 %v2019, 1
    %vm2025 = vcmp.gt.s32.totalorder %v2024, 0
    %v2026 = vsel %vm2025, %v2024, 0
    %v2027 = vshrl.u32 %v2026, 5
    %v2028 = vand.u32 %v2026, 31
    %v2029 = vsub.s32 32, %v2028
    %v2030 = vshrl.u32 683565275, %v2029
    %v2031 = vshll.u32 683565275, %v2028
    %v2032 = vshrl.u32 2475754826, %v2029
    %v2033 = vor.u32 %v2031, %v2032
    %v2034 = vshll.u32 2475754826, %v2028
    %v2035 = vshrl.u32 2131351028, %v2029
    %v2036 = vor.u32 %v2034, %v2035
    %v2037 = vshll.u32 2131351028, %v2028
    %v2038 = vshrl.u32 2102212464, %v2029
    %v2039 = vor.u32 %v2037, %v2038
    %v2040 = vshll.u32 2102212464, %v2028
    %v2041 = vshrl.u32 920167782, %v2029
    %v2042 = vor.u32 %v2040, %v2041
    %v2043 = vshll.u32 920167782, %v2028
    %v2044 = vshrl.u32 1326507024, %v2029
    %v2045 = vor.u32 %v2043, %v2044
    %vm2046 = vcmp.lt.s32.totalorder %v2027, 1
    %vm2047 = vcmp.lt.s32.totalorder %v2027, 2
    %vm2048 = vcmp.lt.s32.totalorder %v2027, 3
    %vm2049 = vcmp.lt.s32.totalorder %v2027, 4
    %v2050 = vsel %vm2046, %v2030, %v2033
    %v2051 = vsel %vm2049, %v2039, 2102212464
    %v2052 = vsel %vm2048, %v2036, %v2051
    %v2053 = vsel %vm2047, %v2050, %v2052
    %v2054 = vsel %vm2046, %v2033, %v2036
    %v2055 = vsel %vm2049, %v2042, 920167782
    %v2056 = vsel %vm2048, %v2039, %v2055
    %v2057 = vsel %vm2047, %v2054, %v2056
    %v2058 = vsel %vm2046, %v2036, %v2039
    %v2059 = vsel %vm2049, %v2045, 1326507024
    %v2060 = vsel %vm2048, %v2042, %v2059
    %v2061 = vsel %vm2047, %v2058, %v2060
    %v2062 = vshll.u32 %v2022, 8
    %v2063 = vmul.u32.u64.compose %v2062, %v2061
    %v2064 = vextract.low.u32 %v2063
    %v2065 = vextract.high.u32 %v2063
    %v2066 = vmul.u32.u64.compose %v2062, %v2057
    %v2067 = vextract.low.u32 %v2066
    %v2068 = vextract.high.u32 %v2066
    %v2069 = vmul.u32 %v2062, %v2053
    %v2070 = vadd.s32 %v2065, %v2067
    %vm2071 = vc.u32 %v2065, %v2067
    %v2072 = vadd.s32 %v2068, 1
    %v2073 = vsel %vm2071, %v2072, %v2068
    %v2074 = vadd.s32 %v2069, %v2073
    %v2075 = vadd.s32 %v2074, 536870912
    %v2076 = vshrl.u32 %v2075, 30
    %v2077 = vshll.u32 %v2076, 30
    %v2078 = vsub.s32 %v2074, %v2077
    %vm2079 = vcmp.lt.s32.totalorder %v2078, 0
    %v2080 = vsub.s32 0, %v2078
    %v2081 = vsel %vm2079, %v2080, %v2078
    %v2082 = vclz %v2081
    %v2083 = vsub.s32 %v2082, 2
    %vm2084 = vcmp.gt.s32.totalorder 0, %v2083
    %v2085 = vsel %vm2084, 0, %v2083
    %v2086 = vsub.s32 32, %v2085
    %v2087 = vshll.u32 %v2078, %v2085
    %v2088 = vshrl.u32 %v2070, %v2086
    %v2089 = vor.u32 %v2087, %v2088
    %v2090 = vsub.s32 4294967266, %v2085
    %v2091 = vadd.s32 %v2090, 127
    %v2092 = vshll.u32 %v2091, 23
    %v2093 = vor.u32 4788187, %v2092
    %v2094 = vand.u32 2147483647, %v2093
    %v2096 = vcvt.s32.f32 %v2089
    %v2097 = vmul.f32 %v2096, %v2094
    %v2098 = vxor.u32 %v2097, 2147483648
    %v2099 = vsel %vm2016, %v2098, %v2097
    %v2100 = vsub.s32 4, %v2076
    %v2101 = vsel %vm2016, %v2100, %v2076
    %v2102 = vsel %vm2015, %v611, %v2099
    %v2103 = vsel %vm2015, 0, %v2101
    %v2104 = vcosq.f32.pop %v2102
    %v2105 = vsinq.f32.pop %v2102
    %vm2106 = vweird.f32 %v611
    %v2107 = vadd.s32 %v2103, 3
    %v2108 = vand.u32 %v2107, 3
    %vm2109 = vcmp.lt.s32.totalorder %v2108, 2
    %vm2110 = vcmp.eq.s32.totalorder %v2108, 0
    %v2111 = vxor.u32 %v2105, 2147483648
    %v2112 = vsel %vm2110, %v2104, %v2111
    %vm2113 = vcmp.eq.s32.totalorder %v2108, 2
    %v2114 = vxor.u32 %v2104, 2147483648
    %v2115 = vsel %vm2113, %v2114, %v2105
    %v2116 = vsel %vm2109, %v2112, %v2115
    %v2117 = vsel %vm2106, nan, %v2116
    %v2118 = vand.u32 2147483647, %v612
    %vm2119 = vcmp.le.f32.partialorder %v2118, 0.7853982
    %vm2120 = vcmp.lt.s32.totalorder %v612, 0
    %v2121 = vand.u32 %v612, 2139095040
    %v2122 = vshrl.u32 %v2121, 23
    %v2123 = vsub.s32 %v2122, 127
    %v2124 = vand.u32 2147483647, %v612
    %v2125 = vand.u32 %v2124, 8388607
    %v2126 = vor.u32 %v2125, 8388608
    %v2127 = vsub.s32 0, %v2126
    %v2128 = vadd.s32 %v2123, 1
    %vm2129 = vcmp.gt.s32.totalorder %v2128, 0
    %v2130 = vsel %vm2129, %v2128, 0
    %v2131 = vshrl.u32 %v2130, 5
    %v2132 = vand.u32 %v2130, 31
    %v2133 = vsub.s32 32, %v2132
    %v2134 = vshrl.u32 683565275, %v2133
    %v2135 = vshll.u32 683565275, %v2132
    %v2136 = vshrl.u32 2475754826, %v2133
    %v2137 = vor.u32 %v2135, %v2136
    %v2138 = vshll.u32 2475754826, %v2132
    %v2139 = vshrl.u32 2131351028, %v2133
    %v2140 = vor.u32 %v2138, %v2139
    %v2141 = vshll.u32 2131351028, %v2132
    %v2142 = vshrl.u32 2102212464, %v2133
    %v2143 = vor.u32 %v2141, %v2142
    %v2144 = vshll.u32 2102212464, %v2132
    %v2145 = vshrl.u32 920167782, %v2133
    %v2146 = vor.u32 %v2144, %v2145
    %v2147 = vshll.u32 920167782, %v2132
    %v2148 = vshrl.u32 1326507024, %v2133
    %v2149 = vor.u32 %v2147, %v2148
    %vm2150 = vcmp.lt.s32.totalorder %v2131, 1
    %vm2151 = vcmp.lt.s32.totalorder %v2131, 2
    %vm2152 = vcmp.lt.s32.totalorder %v2131, 3
    %vm2153 = vcmp.lt.s32.totalorder %v2131, 4
    %v2154 = vsel %vm2150, %v2134, %v2137
    %v2155 = vsel %vm2153, %v2143, 2102212464
    %v2156 = vsel %vm2152, %v2140, %v2155
    %v2157 = vsel %vm2151, %v2154, %v2156
    %v2158 = vsel %vm2150, %v2137, %v2140
    %v2159 = vsel %vm2153, %v2146, 920167782
    %v2160 = vsel %vm2152, %v2143, %v2159
    %v2161 = vsel %vm2151, %v2158, %v2160
    %v2162 = vsel %vm2150, %v2140, %v2143
    %v2163 = vsel %vm2153, %v2149, 1326507024
    %v2164 = vsel %vm2152, %v2146, %v2163
    %v2165 = vsel %vm2151, %v2162, %v2164
    %v2166 = vshll.u32 %v2126, 8
    %v2167 = vmul.u32.u64.compose %v2166, %v2165
    %v2168 = vextract.low.u32 %v2167
    %v2169 = vextract.high.u32 %v2167
    %v2170 = vmul.u32.u64.compose %v2166, %v2161
    %v2171 = vextract.low.u32 %v2170
    %v2172 = vextract.high.u32 %v2170
    %v2173 = vmul.u32 %v2166, %v2157
    %v2174 = vadd.s32 %v2169, %v2171
    %vm2175 = vc.u32 %v2169, %v2171
    %v2176 = vadd.s32 %v2172, 1
    %v2177 = vsel %vm2175, %v2176, %v2172
    %v2178 = vadd.s32 %v2173, %v2177
    %v2179 = vadd.s32 %v2178, 536870912
    %v2180 = vshrl.u32 %v2179, 30
    %v2181 = vshll.u32 %v2180, 30
    %v2182 = vsub.s32 %v2178, %v2181
    %vm2183 = vcmp.lt.s32.totalorder %v2182, 0
    %v2184 = vsub.s32 0, %v2182
    %v2185 = vsel %vm2183, %v2184, %v2182
    %v2186 = vclz %v2185
    %v2187 = vsub.s32 %v2186, 2
    %vm2188 = vcmp.gt.s32.totalorder 0, %v2187
    %v2189 = vsel %vm2188, 0, %v2187
    %v2190 = vsub.s32 32, %v2189
    %v2191 = vshll.u32 %v2182, %v2189
    %v2192 = vshrl.u32 %v2174, %v2190
    %v2193 = vor.u32 %v2191, %v2192
    %v2194 = vsub.s32 4294967266, %v2189
    %v2195 = vadd.s32 %v2194, 127
    %v2196 = vshll.u32 %v2195, 23
    %v2197 = vor.u32 4788187, %v2196
    %v2198 = vand.u32 2147483647, %v2197
    %v2200 = vcvt.s32.f32 %v2193
    %v2201 = vmul.f32 %v2200, %v2198
    %v2202 = vxor.u32 %v2201, 2147483648
    %v2203 = vsel %vm2120, %v2202, %v2201
    %v2204 = vsub.s32 4, %v2180
    %v2205 = vsel %vm2120, %v2204, %v2180
    %v2206 = vsel %vm2119, %v612, %v2203
    %v2207 = vsel %vm2119, 0, %v2205
    %v2208 = vcosq.f32.pop %v2206
    %v2209 = vsinq.f32.pop %v2206
    %vm2210 = vweird.f32 %v612
    %v2211 = vadd.s32 %v2207, 3
    %v2212 = vand.u32 %v2211, 3
    %vm2213 = vcmp.lt.s32.totalorder %v2212, 2
    %vm2214 = vcmp.eq.s32.totalorder %v2212, 0
    %v2215 = vxor.u32 %v2209, 2147483648
    %v2216 = vsel %vm2214, %v2208, %v2215
    %vm2217 = vcmp.eq.s32.totalorder %v2212, 2
    %v2218 = vxor.u32 %v2208, 2147483648
    %v2219 = vsel %vm2217, %v2218, %v2209
    %v2220 = vsel %vm2213, %v2216, %v2219
    %v2221 = vsel %vm2210, nan, %v2220
    %v2222 = vand.u32 2147483647, %v613
    %vm2223 = vcmp.le.f32.partialorder %v2222, 0.7853982
    %vm2224 = vcmp.lt.s32.totalorder %v613, 0
    %v2225 = vand.u32 %v613, 2139095040
    %v2226 = vshrl.u32 %v2225, 23
    %v2227 = vsub.s32 %v2226, 127
    %v2228 = vand.u32 2147483647, %v613
    %v2229 = vand.u32 %v2228, 8388607
    %v2230 = vor.u32 %v2229, 8388608
    %v2231 = vsub.s32 0, %v2230
    %v2232 = vadd.s32 %v2227, 1
    %vm2233 = vcmp.gt.s32.totalorder %v2232, 0
    %v2234 = vsel %vm2233, %v2232, 0
    %v2235 = vshrl.u32 %v2234, 5
    %v2236 = vand.u32 %v2234, 31
    %v2237 = vsub.s32 32, %v2236
    %v2238 = vshrl.u32 683565275, %v2237
    %v2239 = vshll.u32 683565275, %v2236
    %v2240 = vshrl.u32 2475754826, %v2237
    %v2241 = vor.u32 %v2239, %v2240
    %v2242 = vshll.u32 2475754826, %v2236
    %v2243 = vshrl.u32 2131351028, %v2237
    %v2244 = vor.u32 %v2242, %v2243
    %v2245 = vshll.u32 2131351028, %v2236
    %v2246 = vshrl.u32 2102212464, %v2237
    %v2247 = vor.u32 %v2245, %v2246
    %v2248 = vshll.u32 2102212464, %v2236
    %v2249 = vshrl.u32 920167782, %v2237
    %v2250 = vor.u32 %v2248, %v2249
    %v2251 = vshll.u32 920167782, %v2236
    %v2252 = vshrl.u32 1326507024, %v2237
    %v2253 = vor.u32 %v2251, %v2252
    %vm2254 = vcmp.lt.s32.totalorder %v2235, 1
    %vm2255 = vcmp.lt.s32.totalorder %v2235, 2
    %vm2256 = vcmp.lt.s32.totalorder %v2235, 3
    %vm2257 = vcmp.lt.s32.totalorder %v2235, 4
    %v2258 = vsel %vm2254, %v2238, %v2241
    %v2259 = vsel %vm2257, %v2247, 2102212464
    %v2260 = vsel %vm2256, %v2244, %v2259
    %v2261 = vsel %vm2255, %v2258, %v2260
    %v2262 = vsel %vm2254, %v2241, %v2244
    %v2263 = vsel %vm2257, %v2250, 920167782
    %v2264 = vsel %vm2256, %v2247, %v2263
    %v2265 = vsel %vm2255, %v2262, %v2264
    %v2266 = vsel %vm2254, %v2244, %v2247
    %v2267 = vsel %vm2257, %v2253, 1326507024
    %v2268 = vsel %vm2256, %v2250, %v2267
    %v2269 = vsel %vm2255, %v2266, %v2268
    %v2270 = vshll.u32 %v2230, 8
    %v2271 = vmul.u32.u64.compose %v2270, %v2269
    %v2272 = vextract.low.u32 %v2271
    %v2273 = vextract.high.u32 %v2271
    %v2274 = vmul.u32.u64.compose %v2270, %v2265
    %v2275 = vextract.low.u32 %v2274
    %v2276 = vextract.high.u32 %v2274
    %v2277 = vmul.u32 %v2270, %v2261
    %v2278 = vadd.s32 %v2273, %v2275
    %vm2279 = vc.u32 %v2273, %v2275
    %v2280 = vadd.s32 %v2276, 1
    %v2281 = vsel %vm2279, %v2280, %v2276
    %v2282 = vadd.s32 %v2277, %v2281
    %v2283 = vadd.s32 %v2282, 536870912
    %v2284 = vshrl.u32 %v2283, 30
    %v2285 = vshll.u32 %v2284, 30
    %v2286 = vsub.s32 %v2282, %v2285
    %vm2287 = vcmp.lt.s32.totalorder %v2286, 0
    %v2288 = vsub.s32 0, %v2286
    %v2289 = vsel %vm2287, %v2288, %v2286
    %v2290 = vclz %v2289
    %v2291 = vsub.s32 %v2290, 2
    %vm2292 = vcmp.gt.s32.totalorder 0, %v2291
    %v2293 = vsel %vm2292, 0, %v2291
    %v2294 = vsub.s32 32, %v2293
    %v2295 = vshll.u32 %v2286, %v2293
    %v2296 = vshrl.u32 %v2278, %v2294
    %v2297 = vor.u32 %v2295, %v2296
    %v2298 = vsub.s32 4294967266, %v2293
    %v2299 = vadd.s32 %v2298, 127
    %v2300 = vshll.u32 %v2299, 23
    %v2301 = vor.u32 4788187, %v2300
    %v2302 = vand.u32 2147483647, %v2301
    %v2304 = vcvt.s32.f32 %v2297
    %v2305 = vmul.f32 %v2304, %v2302
    %v2306 = vxor.u32 %v2305, 2147483648
    %v2307 = vsel %vm2224, %v2306, %v2305
    %v2308 = vsub.s32 4, %v2284
    %v2309 = vsel %vm2224, %v2308, %v2284
    %v2310 = vsel %vm2223, %v613, %v2307
    %v2311 = vsel %vm2223, 0, %v2309
    %v2312 = vcosq.f32.pop %v2310
    %v2313 = vsinq.f32.pop %v2310
    %vm2314 = vweird.f32 %v613
    %v2315 = vadd.s32 %v2311, 3
    %v2316 = vand.u32 %v2315, 3
    %vm2317 = vcmp.lt.s32.totalorder %v2316, 2
    %vm2318 = vcmp.eq.s32.totalorder %v2316, 0
    %v2319 = vxor.u32 %v2313, 2147483648
    %v2320 = vsel %vm2318, %v2312, %v2319
    %vm2321 = vcmp.eq.s32.totalorder %v2316, 2
    %v2322 = vxor.u32 %v2312, 2147483648
    %v2323 = vsel %vm2321, %v2322, %v2313
    %v2324 = vsel %vm2317, %v2320, %v2323
    %v2325 = vsel %vm2314, nan, %v2324
    %v2326 = vand.u32 2147483647, %v614
    %vm2327 = vcmp.le.f32.partialorder %v2326, 0.7853982
    %vm2328 = vcmp.lt.s32.totalorder %v614, 0
    %v2329 = vand.u32 %v614, 2139095040
    %v2330 = vshrl.u32 %v2329, 23
    %v2331 = vsub.s32 %v2330, 127
    %v2332 = vand.u32 2147483647, %v614
    %v2333 = vand.u32 %v2332, 8388607
    %v2334 = vor.u32 %v2333, 8388608
    %v2335 = vsub.s32 0, %v2334
    %v2336 = vadd.s32 %v2331, 1
    %vm2337 = vcmp.gt.s32.totalorder %v2336, 0
    %v2338 = vsel %vm2337, %v2336, 0
    %v2339 = vshrl.u32 %v2338, 5
    %v2340 = vand.u32 %v2338, 31
    %v2341 = vsub.s32 32, %v2340
    %v2342 = vshrl.u32 683565275, %v2341
    %v2343 = vshll.u32 683565275, %v2340
    %v2344 = vshrl.u32 2475754826, %v2341
    %v2345 = vor.u32 %v2343, %v2344
    %v2346 = vshll.u32 2475754826, %v2340
    %v2347 = vshrl.u32 2131351028, %v2341
    %v2348 = vor.u32 %v2346, %v2347
    %v2349 = vshll.u32 2131351028, %v2340
    %v2350 = vshrl.u32 2102212464, %v2341
    %v2351 = vor.u32 %v2349, %v2350
    %v2352 = vshll.u32 2102212464, %v2340
    %v2353 = vshrl.u32 920167782, %v2341
    %v2354 = vor.u32 %v2352, %v2353
    %v2355 = vshll.u32 920167782, %v2340
    %v2356 = vshrl.u32 1326507024, %v2341
    %v2357 = vor.u32 %v2355, %v2356
    %vm2358 = vcmp.lt.s32.totalorder %v2339, 1
    %vm2359 = vcmp.lt.s32.totalorder %v2339, 2
    %vm2360 = vcmp.lt.s32.totalorder %v2339, 3
    %vm2361 = vcmp.lt.s32.totalorder %v2339, 4
    %v2362 = vsel %vm2358, %v2342, %v2345
    %v2363 = vsel %vm2361, %v2351, 2102212464
    %v2364 = vsel %vm2360, %v2348, %v2363
    %v2365 = vsel %vm2359, %v2362, %v2364
    %v2366 = vsel %vm2358, %v2345, %v2348
    %v2367 = vsel %vm2361, %v2354, 920167782
    %v2368 = vsel %vm2360, %v2351, %v2367
    %v2369 = vsel %vm2359, %v2366, %v2368
    %v2370 = vsel %vm2358, %v2348, %v2351
    %v2371 = vsel %vm2361, %v2357, 1326507024
    %v2372 = vsel %vm2360, %v2354, %v2371
    %v2373 = vsel %vm2359, %v2370, %v2372
    %v2374 = vshll.u32 %v2334, 8
    %v2375 = vmul.u32.u64.compose %v2374, %v2373
    %v2376 = vextract.low.u32 %v2375
    %v2377 = vextract.high.u32 %v2375
    %v2378 = vmul.u32.u64.compose %v2374, %v2369
    %v2379 = vextract.low.u32 %v2378
    %v2380 = vextract.high.u32 %v2378
    %v2381 = vmul.u32 %v2374, %v2365
    %v2382 = vadd.s32 %v2377, %v2379
    %vm2383 = vc.u32 %v2377, %v2379
    %v2384 = vadd.s32 %v2380, 1
    %v2385 = vsel %vm2383, %v2384, %v2380
    %v2386 = vadd.s32 %v2381, %v2385
    %v2387 = vadd.s32 %v2386, 536870912
    %v2388 = vshrl.u32 %v2387, 30
    %v2389 = vshll.u32 %v2388, 30
    %v2390 = vsub.s32 %v2386, %v2389
    %vm2391 = vcmp.lt.s32.totalorder %v2390, 0
    %v2392 = vsub.s32 0, %v2390
    %v2393 = vsel %vm2391, %v2392, %v2390
    %v2394 = vclz %v2393
    %v2395 = vsub.s32 %v2394, 2
    %vm2396 = vcmp.gt.s32.totalorder 0, %v2395
    %v2397 = vsel %vm2396, 0, %v2395
    %v2398 = vsub.s32 32, %v2397
    %v2399 = vshll.u32 %v2390, %v2397
    %v2400 = vshrl.u32 %v2382, %v2398
    %v2401 = vor.u32 %v2399, %v2400
    %v2402 = vsub.s32 4294967266, %v2397
    %v2403 = vadd.s32 %v2402, 127
    %v2404 = vshll.u32 %v2403, 23
    %v2405 = vor.u32 4788187, %v2404
    %v2406 = vand.u32 2147483647, %v2405
    %v2408 = vcvt.s32.f32 %v2401
    %v2409 = vmul.f32 %v2408, %v2406
    %v2410 = vxor.u32 %v2409, 2147483648
    %v2411 = vsel %vm2328, %v2410, %v2409
    %v2412 = vsub.s32 4, %v2388
    %v2413 = vsel %vm2328, %v2412, %v2388
    %v2414 = vsel %vm2327, %v614, %v2411
    %v2415 = vsel %vm2327, 0, %v2413
    %v2416 = vcosq.f32.pop %v2414
    %v2417 = vsinq.f32.pop %v2414
    %vm2418 = vweird.f32 %v614
    %v2419 = vadd.s32 %v2415, 3
    %v2420 = vand.u32 %v2419, 3
    %vm2421 = vcmp.lt.s32.totalorder %v2420, 2
    %vm2422 = vcmp.eq.s32.totalorder %v2420, 0
    %v2423 = vxor.u32 %v2417, 2147483648
    %v2424 = vsel %vm2422, %v2416, %v2423
    %vm2425 = vcmp.eq.s32.totalorder %v2420, 2
    %v2426 = vxor.u32 %v2416, 2147483648
    %v2427 = vsel %vm2425, %v2426, %v2417
    %v2428 = vsel %vm2421, %v2424, %v2427
    %v2429 = vsel %vm2418, nan, %v2428
    %v2430 = vand.u32 2147483647, %v615
    %vm2431 = vcmp.le.f32.partialorder %v2430, 0.7853982
    %vm2432 = vcmp.lt.s32.totalorder %v615, 0
    %v2433 = vand.u32 %v615, 2139095040
    %v2434 = vshrl.u32 %v2433, 23
    %v2435 = vsub.s32 %v2434, 127
    %v2436 = vand.u32 2147483647, %v615
    %v2437 = vand.u32 %v2436, 8388607
    %v2438 = vor.u32 %v2437, 8388608
    %v2439 = vsub.s32 0, %v2438
    %v2440 = vadd.s32 %v2435, 1
    %vm2441 = vcmp.gt.s32.totalorder %v2440, 0
    %v2442 = vsel %vm2441, %v2440, 0
    %v2443 = vshrl.u32 %v2442, 5
    %v2444 = vand.u32 %v2442, 31
    %v2445 = vsub.s32 32, %v2444
    %v2446 = vshrl.u32 683565275, %v2445
    %v2447 = vshll.u32 683565275, %v2444
    %v2448 = vshrl.u32 2475754826, %v2445
    %v2449 = vor.u32 %v2447, %v2448
    %v2450 = vshll.u32 2475754826, %v2444
    %v2451 = vshrl.u32 2131351028, %v2445
    %v2452 = vor.u32 %v2450, %v2451
    %v2453 = vshll.u32 2131351028, %v2444
    %v2454 = vshrl.u32 2102212464, %v2445
    %v2455 = vor.u32 %v2453, %v2454
    %v2456 = vshll.u32 2102212464, %v2444
    %v2457 = vshrl.u32 920167782, %v2445
    %v2458 = vor.u32 %v2456, %v2457
    %v2459 = vshll.u32 920167782, %v2444
    %v2460 = vshrl.u32 1326507024, %v2445
    %v2461 = vor.u32 %v2459, %v2460
    %vm2462 = vcmp.lt.s32.totalorder %v2443, 1
    %vm2463 = vcmp.lt.s32.totalorder %v2443, 2
    %vm2464 = vcmp.lt.s32.totalorder %v2443, 3
    %vm2465 = vcmp.lt.s32.totalorder %v2443, 4
    %v2466 = vsel %vm2462, %v2446, %v2449
    %v2467 = vsel %vm2465, %v2455, 2102212464
    %v2468 = vsel %vm2464, %v2452, %v2467
    %v2469 = vsel %vm2463, %v2466, %v2468
    %v2470 = vsel %vm2462, %v2449, %v2452
    %v2471 = vsel %vm2465, %v2458, 920167782
    %v2472 = vsel %vm2464, %v2455, %v2471
    %v2473 = vsel %vm2463, %v2470, %v2472
    %v2474 = vsel %vm2462, %v2452, %v2455
    %v2475 = vsel %vm2465, %v2461, 1326507024
    %v2476 = vsel %vm2464, %v2458, %v2475
    %v2477 = vsel %vm2463, %v2474, %v2476
    %v2478 = vshll.u32 %v2438, 8
    %v2479 = vmul.u32.u64.compose %v2478, %v2477
    %v2480 = vextract.low.u32 %v2479
    %v2481 = vextract.high.u32 %v2479
    %v2482 = vmul.u32.u64.compose %v2478, %v2473
    %v2483 = vextract.low.u32 %v2482
    %v2484 = vextract.high.u32 %v2482
    %v2485 = vmul.u32 %v2478, %v2469
    %v2486 = vadd.s32 %v2481, %v2483
    %vm2487 = vc.u32 %v2481, %v2483
    %v2488 = vadd.s32 %v2484, 1
    %v2489 = vsel %vm2487, %v2488, %v2484
    %v2490 = vadd.s32 %v2485, %v2489
    %v2491 = vadd.s32 %v2490, 536870912
    %v2492 = vshrl.u32 %v2491, 30
    %v2493 = vshll.u32 %v2492, 30
    %v2494 = vsub.s32 %v2490, %v2493
    %vm2495 = vcmp.lt.s32.totalorder %v2494, 0
    %v2496 = vsub.s32 0, %v2494
    %v2497 = vsel %vm2495, %v2496, %v2494
    %v2498 = vclz %v2497
    %v2499 = vsub.s32 %v2498, 2
    %vm2500 = vcmp.gt.s32.totalorder 0, %v2499
    %v2501 = vsel %vm2500, 0, %v2499
    %v2502 = vsub.s32 32, %v2501
    %v2503 = vshll.u32 %v2494, %v2501
    %v2504 = vshrl.u32 %v2486, %v2502
    %v2505 = vor.u32 %v2503, %v2504
    %v2506 = vsub.s32 4294967266, %v2501
    %v2507 = vadd.s32 %v2506, 127
    %v2508 = vshll.u32 %v2507, 23
    %v2509 = vor.u32 4788187, %v2508
    %v2510 = vand.u32 2147483647, %v2509
    %v2512 = vcvt.s32.f32 %v2505
    %v2513 = vmul.f32 %v2512, %v2510
    %v2514 = vxor.u32 %v2513, 2147483648
    %v2515 = vsel %vm2432, %v2514, %v2513
    %v2516 = vsub.s32 4, %v2492
    %v2517 = vsel %vm2432, %v2516, %v2492
    %v2518 = vsel %vm2431, %v615, %v2515
    %v2519 = vsel %vm2431, 0, %v2517
    %v2520 = vcosq.f32.pop %v2518
    %v2521 = vsinq.f32.pop %v2518
    %vm2522 = vweird.f32 %v615
    %v2523 = vadd.s32 %v2519, 3
    %v2524 = vand.u32 %v2523, 3
    %vm2525 = vcmp.lt.s32.totalorder %v2524, 2
    %vm2526 = vcmp.eq.s32.totalorder %v2524, 0
    %v2527 = vxor.u32 %v2521, 2147483648
    %v2528 = vsel %vm2526, %v2520, %v2527
    %vm2529 = vcmp.eq.s32.totalorder %v2524, 2
    %v2530 = vxor.u32 %v2520, 2147483648
    %v2531 = vsel %vm2529, %v2530, %v2521
    %v2532 = vsel %vm2525, %v2528, %v2531
    %v2533 = vsel %vm2522, nan, %v2532
    %v2534 = vand.u32 2147483647, %v616
    %vm2535 = vcmp.le.f32.partialorder %v2534, 0.7853982
    %vm2536 = vcmp.lt.s32.totalorder %v616, 0
    %v2537 = vand.u32 %v616, 2139095040
    %v2538 = vshrl.u32 %v2537, 23
    %v2539 = vsub.s32 %v2538, 127
    %v2540 = vand.u32 2147483647, %v616
    %v2541 = vand.u32 %v2540, 8388607
    %v2542 = vor.u32 %v2541, 8388608
    %v2543 = vsub.s32 0, %v2542
    %v2544 = vadd.s32 %v2539, 1
    %vm2545 = vcmp.gt.s32.totalorder %v2544, 0
    %v2546 = vsel %vm2545, %v2544, 0
    %v2547 = vshrl.u32 %v2546, 5
    %v2548 = vand.u32 %v2546, 31
    %v2549 = vsub.s32 32, %v2548
    %v2550 = vshrl.u32 683565275, %v2549
    %v2551 = vshll.u32 683565275, %v2548
    %v2552 = vshrl.u32 2475754826, %v2549
    %v2553 = vor.u32 %v2551, %v2552
    %v2554 = vshll.u32 2475754826, %v2548
    %v2555 = vshrl.u32 2131351028, %v2549
    %v2556 = vor.u32 %v2554, %v2555
    %v2557 = vshll.u32 2131351028, %v2548
    %v2558 = vshrl.u32 2102212464, %v2549
    %v2559 = vor.u32 %v2557, %v2558
    %v2560 = vshll.u32 2102212464, %v2548
    %v2561 = vshrl.u32 920167782, %v2549
    %v2562 = vor.u32 %v2560, %v2561
    %v2563 = vshll.u32 920167782, %v2548
    %v2564 = vshrl.u32 1326507024, %v2549
    %v2565 = vor.u32 %v2563, %v2564
    %vm2566 = vcmp.lt.s32.totalorder %v2547, 1
    %vm2567 = vcmp.lt.s32.totalorder %v2547, 2
    %vm2568 = vcmp.lt.s32.totalorder %v2547, 3
    %vm2569 = vcmp.lt.s32.totalorder %v2547, 4
    %v2570 = vsel %vm2566, %v2550, %v2553
    %v2571 = vsel %vm2569, %v2559, 2102212464
    %v2572 = vsel %vm2568, %v2556, %v2571
    %v2573 = vsel %vm2567, %v2570, %v2572
    %v2574 = vsel %vm2566, %v2553, %v2556
    %v2575 = vsel %vm2569, %v2562, 920167782
    %v2576 = vsel %vm2568, %v2559, %v2575
    %v2577 = vsel %vm2567, %v2574, %v2576
    %v2578 = vsel %vm2566, %v2556, %v2559
    %v2579 = vsel %vm2569, %v2565, 1326507024
    %v2580 = vsel %vm2568, %v2562, %v2579
    %v2581 = vsel %vm2567, %v2578, %v2580
    %v2582 = vshll.u32 %v2542, 8
    %v2583 = vmul.u32.u64.compose %v2582, %v2581
    %v2584 = vextract.low.u32 %v2583
    %v2585 = vextract.high.u32 %v2583
    %v2586 = vmul.u32.u64.compose %v2582, %v2577
    %v2587 = vextract.low.u32 %v2586
    %v2588 = vextract.high.u32 %v2586
    %v2589 = vmul.u32 %v2582, %v2573
    %v2590 = vadd.s32 %v2585, %v2587
    %vm2591 = vc.u32 %v2585, %v2587
    %v2592 = vadd.s32 %v2588, 1
    %v2593 = vsel %vm2591, %v2592, %v2588
    %v2594 = vadd.s32 %v2589, %v2593
    %v2595 = vadd.s32 %v2594, 536870912
    %v2596 = vshrl.u32 %v2595, 30
    %v2597 = vshll.u32 %v2596, 30
    %v2598 = vsub.s32 %v2594, %v2597
    %vm2599 = vcmp.lt.s32.totalorder %v2598, 0
    %v2600 = vsub.s32 0, %v2598
    %v2601 = vsel %vm2599, %v2600, %v2598
    %v2602 = vclz %v2601
    %v2603 = vsub.s32 %v2602, 2
    %vm2604 = vcmp.gt.s32.totalorder 0, %v2603
    %v2605 = vsel %vm2604, 0, %v2603
    %v2606 = vsub.s32 32, %v2605
    %v2607 = vshll.u32 %v2598, %v2605
    %v2608 = vshrl.u32 %v2590, %v2606
    %v2609 = vor.u32 %v2607, %v2608
    %v2610 = vsub.s32 4294967266, %v2605
    %v2611 = vadd.s32 %v2610, 127
    %v2612 = vshll.u32 %v2611, 23
    %v2613 = vor.u32 4788187, %v2612
    %v2614 = vand.u32 2147483647, %v2613
    %v2616 = vcvt.s32.f32 %v2609
    %v2617 = vmul.f32 %v2616, %v2614
    %v2618 = vxor.u32 %v2617, 2147483648
    %v2619 = vsel %vm2536, %v2618, %v2617
    %v2620 = vsub.s32 4, %v2596
    %v2621 = vsel %vm2536, %v2620, %v2596
    %v2622 = vsel %vm2535, %v616, %v2619
    %v2623 = vsel %vm2535, 0, %v2621
    %v2624 = vcosq.f32.pop %v2622
    %v2625 = vsinq.f32.pop %v2622
    %vm2626 = vweird.f32 %v616
    %v2627 = vadd.s32 %v2623, 3
    %v2628 = vand.u32 %v2627, 3
    %vm2629 = vcmp.lt.s32.totalorder %v2628, 2
    %vm2630 = vcmp.eq.s32.totalorder %v2628, 0
    %v2631 = vxor.u32 %v2625, 2147483648
    %v2632 = vsel %vm2630, %v2624, %v2631
    %vm2633 = vcmp.eq.s32.totalorder %v2628, 2
    %v2634 = vxor.u32 %v2624, 2147483648
    %v2635 = vsel %vm2633, %v2634, %v2625
    %v2636 = vsel %vm2629, %v2632, %v2635
    %v2637 = vsel %vm2626, nan, %v2636
    %v2638 = vand.u32 2147483647, %v617
    %vm2639 = vcmp.le.f32.partialorder %v2638, 0.7853982
    %vm2640 = vcmp.lt.s32.totalorder %v617, 0
    %v2641 = vand.u32 %v617, 2139095040
    %v2642 = vshrl.u32 %v2641, 23
    %v2643 = vsub.s32 %v2642, 127
    %v2644 = vand.u32 2147483647, %v617
    %v2645 = vand.u32 %v2644, 8388607
    %v2646 = vor.u32 %v2645, 8388608
    %v2647 = vsub.s32 0, %v2646
    %v2648 = vadd.s32 %v2643, 1
    %vm2649 = vcmp.gt.s32.totalorder %v2648, 0
    %v2650 = vsel %vm2649, %v2648, 0
    %v2651 = vshrl.u32 %v2650, 5
    %v2652 = vand.u32 %v2650, 31
    %v2653 = vsub.s32 32, %v2652
    %v2654 = vshrl.u32 683565275, %v2653
    %v2655 = vshll.u32 683565275, %v2652
    %v2656 = vshrl.u32 2475754826, %v2653
    %v2657 = vor.u32 %v2655, %v2656
    %v2658 = vshll.u32 2475754826, %v2652
    %v2659 = vshrl.u32 2131351028, %v2653
    %v2660 = vor.u32 %v2658, %v2659
    %v2661 = vshll.u32 2131351028, %v2652
    %v2662 = vshrl.u32 2102212464, %v2653
    %v2663 = vor.u32 %v2661, %v2662
    %v2664 = vshll.u32 2102212464, %v2652
    %v2665 = vshrl.u32 920167782, %v2653
    %v2666 = vor.u32 %v2664, %v2665
    %v2667 = vshll.u32 920167782, %v2652
    %v2668 = vshrl.u32 1326507024, %v2653
    %v2669 = vor.u32 %v2667, %v2668
    %vm2670 = vcmp.lt.s32.totalorder %v2651, 1
    %vm2671 = vcmp.lt.s32.totalorder %v2651, 2
    %vm2672 = vcmp.lt.s32.totalorder %v2651, 3
    %vm2673 = vcmp.lt.s32.totalorder %v2651, 4
    %v2674 = vsel %vm2670, %v2654, %v2657
    %v2675 = vsel %vm2673, %v2663, 2102212464
    %v2676 = vsel %vm2672, %v2660, %v2675
    %v2677 = vsel %vm2671, %v2674, %v2676
    %v2678 = vsel %vm2670, %v2657, %v2660
    %v2679 = vsel %vm2673, %v2666, 920167782
    %v2680 = vsel %vm2672, %v2663, %v2679
    %v2681 = vsel %vm2671, %v2678, %v2680
    %v2682 = vsel %vm2670, %v2660, %v2663
    %v2683 = vsel %vm2673, %v2669, 1326507024
    %v2684 = vsel %vm2672, %v2666, %v2683
    %v2685 = vsel %vm2671, %v2682, %v2684
    %v2686 = vshll.u32 %v2646, 8
    %v2687 = vmul.u32.u64.compose %v2686, %v2685
    %v2688 = vextract.low.u32 %v2687
    %v2689 = vextract.high.u32 %v2687
    %v2690 = vmul.u32.u64.compose %v2686, %v2681
    %v2691 = vextract.low.u32 %v2690
    %v2692 = vextract.high.u32 %v2690
    %v2693 = vmul.u32 %v2686, %v2677
    %v2694 = vadd.s32 %v2689, %v2691
    %vm2695 = vc.u32 %v2689, %v2691
    %v2696 = vadd.s32 %v2692, 1
    %v2697 = vsel %vm2695, %v2696, %v2692
    %v2698 = vadd.s32 %v2693, %v2697
    %v2699 = vadd.s32 %v2698, 536870912
    %v2700 = vshrl.u32 %v2699, 30
    %v2701 = vshll.u32 %v2700, 30
    %v2702 = vsub.s32 %v2698, %v2701
    %vm2703 = vcmp.lt.s32.totalorder %v2702, 0
    %v2704 = vsub.s32 0, %v2702
    %v2705 = vsel %vm2703, %v2704, %v2702
    %v2706 = vclz %v2705
    %v2707 = vsub.s32 %v2706, 2
    %vm2708 = vcmp.gt.s32.totalorder 0, %v2707
    %v2709 = vsel %vm2708, 0, %v2707
    %v2710 = vsub.s32 32, %v2709
    %v2711 = vshll.u32 %v2702, %v2709
    %v2712 = vshrl.u32 %v2694, %v2710
    %v2713 = vor.u32 %v2711, %v2712
    %v2714 = vsub.s32 4294967266, %v2709
    %v2715 = vadd.s32 %v2714, 127
    %v2716 = vshll.u32 %v2715, 23
    %v2717 = vor.u32 4788187, %v2716
    %v2718 = vand.u32 2147483647, %v2717
    %v2720 = vcvt.s32.f32 %v2713
    %v2721 = vmul.f32 %v2720, %v2718
    %v2722 = vxor.u32 %v2721, 2147483648
    %v2723 = vsel %vm2640, %v2722, %v2721
    %v2724 = vsub.s32 4, %v2700
    %v2725 = vsel %vm2640, %v2724, %v2700
    %v2726 = vsel %vm2639, %v617, %v2723
    %v2727 = vsel %vm2639, 0, %v2725
    %v2728 = vcosq.f32.pop %v2726
    %v2729 = vsinq.f32.pop %v2726
    %vm2730 = vweird.f32 %v617
    %v2731 = vadd.s32 %v2727, 3
    %v2732 = vand.u32 %v2731, 3
    %vm2733 = vcmp.lt.s32.totalorder %v2732, 2
    %vm2734 = vcmp.eq.s32.totalorder %v2732, 0
    %v2735 = vxor.u32 %v2729, 2147483648
    %v2736 = vsel %vm2734, %v2728, %v2735
    %vm2737 = vcmp.eq.s32.totalorder %v2732, 2
    %v2738 = vxor.u32 %v2728, 2147483648
    %v2739 = vsel %vm2737, %v2738, %v2729
    %v2740 = vsel %vm2733, %v2736, %v2739
    %v2741 = vsel %vm2730, nan, %v2740
    %v2742 = vand.u32 2147483647, %v618
    %vm2743 = vcmp.le.f32.partialorder %v2742, 0.7853982
    %vm2744 = vcmp.lt.s32.totalorder %v618, 0
    %v2745 = vand.u32 %v618, 2139095040
    %v2746 = vshrl.u32 %v2745, 23
    %v2747 = vsub.s32 %v2746, 127
    %v2748 = vand.u32 2147483647, %v618
    %v2749 = vand.u32 %v2748, 8388607
    %v2750 = vor.u32 %v2749, 8388608
    %v2751 = vsub.s32 0, %v2750
    %v2752 = vadd.s32 %v2747, 1
    %vm2753 = vcmp.gt.s32.totalorder %v2752, 0
    %v2754 = vsel %vm2753, %v2752, 0
    %v2755 = vshrl.u32 %v2754, 5
    %v2756 = vand.u32 %v2754, 31
    %v2757 = vsub.s32 32, %v2756
    %v2758 = vshrl.u32 683565275, %v2757
    %v2759 = vshll.u32 683565275, %v2756
    %v2760 = vshrl.u32 2475754826, %v2757
    %v2761 = vor.u32 %v2759, %v2760
    %v2762 = vshll.u32 2475754826, %v2756
    %v2763 = vshrl.u32 2131351028, %v2757
    %v2764 = vor.u32 %v2762, %v2763
    %v2765 = vshll.u32 2131351028, %v2756
    %v2766 = vshrl.u32 2102212464, %v2757
    %v2767 = vor.u32 %v2765, %v2766
    %v2768 = vshll.u32 2102212464, %v2756
    %v2769 = vshrl.u32 920167782, %v2757
    %v2770 = vor.u32 %v2768, %v2769
    %v2771 = vshll.u32 920167782, %v2756
    %v2772 = vshrl.u32 1326507024, %v2757
    %v2773 = vor.u32 %v2771, %v2772
    %vm2774 = vcmp.lt.s32.totalorder %v2755, 1
    %vm2775 = vcmp.lt.s32.totalorder %v2755, 2
    %vm2776 = vcmp.lt.s32.totalorder %v2755, 3
    %vm2777 = vcmp.lt.s32.totalorder %v2755, 4
    %v2778 = vsel %vm2774, %v2758, %v2761
    %v2779 = vsel %vm2777, %v2767, 2102212464
    %v2780 = vsel %vm2776, %v2764, %v2779
    %v2781 = vsel %vm2775, %v2778, %v2780
    %v2782 = vsel %vm2774, %v2761, %v2764
    %v2783 = vsel %vm2777, %v2770, 920167782
    %v2784 = vsel %vm2776, %v2767, %v2783
    %v2785 = vsel %vm2775, %v2782, %v2784
    %v2786 = vsel %vm2774, %v2764, %v2767
    %v2787 = vsel %vm2777, %v2773, 1326507024
    %v2788 = vsel %vm2776, %v2770, %v2787
    %v2789 = vsel %vm2775, %v2786, %v2788
    %v2790 = vshll.u32 %v2750, 8
    %v2791 = vmul.u32.u64.compose %v2790, %v2789
    %v2792 = vextract.low.u32 %v2791
    %v2793 = vextract.high.u32 %v2791
    %v2794 = vmul.u32.u64.compose %v2790, %v2785
    %v2795 = vextract.low.u32 %v2794
    %v2796 = vextract.high.u32 %v2794
    %v2797 = vmul.u32 %v2790, %v2781
    %v2798 = vadd.s32 %v2793, %v2795
    %vm2799 = vc.u32 %v2793, %v2795
    %v2800 = vadd.s32 %v2796, 1
    %v2801 = vsel %vm2799, %v2800, %v2796
    %v2802 = vadd.s32 %v2797, %v2801
    %v2803 = vadd.s32 %v2802, 536870912
    %v2804 = vshrl.u32 %v2803, 30
    %v2805 = vshll.u32 %v2804, 30
    %v2806 = vsub.s32 %v2802, %v2805
    %vm2807 = vcmp.lt.s32.totalorder %v2806, 0
    %v2808 = vsub.s32 0, %v2806
    %v2809 = vsel %vm2807, %v2808, %v2806
    %v2810 = vclz %v2809
    %v2811 = vsub.s32 %v2810, 2
    %vm2812 = vcmp.gt.s32.totalorder 0, %v2811
    %v2813 = vsel %vm2812, 0, %v2811
    %v2814 = vsub.s32 32, %v2813
    %v2815 = vshll.u32 %v2806, %v2813
    %v2816 = vshrl.u32 %v2798, %v2814
    %v2817 = vor.u32 %v2815, %v2816
    %v2818 = vsub.s32 4294967266, %v2813
    %v2819 = vadd.s32 %v2818, 127
    %v2820 = vshll.u32 %v2819, 23
    %v2821 = vor.u32 4788187, %v2820
    %v2822 = vand.u32 2147483647, %v2821
    %v2824 = vcvt.s32.f32 %v2817
    %v2825 = vmul.f32 %v2824, %v2822
    %v2826 = vxor.u32 %v2825, 2147483648
    %v2827 = vsel %vm2744, %v2826, %v2825
    %v2828 = vsub.s32 4, %v2804
    %v2829 = vsel %vm2744, %v2828, %v2804
    %v2830 = vsel %vm2743, %v618, %v2827
    %v2831 = vsel %vm2743, 0, %v2829
    %v2832 = vcosq.f32.pop %v2830
    %v2833 = vsinq.f32.pop %v2830
    %vm2834 = vweird.f32 %v618
    %v2835 = vadd.s32 %v2831, 3
    %v2836 = vand.u32 %v2835, 3
    %vm2837 = vcmp.lt.s32.totalorder %v2836, 2
    %vm2838 = vcmp.eq.s32.totalorder %v2836, 0
    %v2839 = vxor.u32 %v2833, 2147483648
    %v2840 = vsel %vm2838, %v2832, %v2839
    %vm2841 = vcmp.eq.s32.totalorder %v2836, 2
    %v2842 = vxor.u32 %v2832, 2147483648
    %v2843 = vsel %vm2841, %v2842, %v2833
    %v2844 = vsel %vm2837, %v2840, %v2843
    %v2845 = vsel %vm2834, nan, %v2844
    %v2846 = vand.u32 2147483647, %v619
    %vm2847 = vcmp.le.f32.partialorder %v2846, 0.7853982
    %vm2848 = vcmp.lt.s32.totalorder %v619, 0
    %v2849 = vand.u32 %v619, 2139095040
    %v2850 = vshrl.u32 %v2849, 23
    %v2851 = vsub.s32 %v2850, 127
    %v2852 = vand.u32 2147483647, %v619
    %v2853 = vand.u32 %v2852, 8388607
    %v2854 = vor.u32 %v2853, 8388608
    %v2855 = vsub.s32 0, %v2854
    %v2856 = vadd.s32 %v2851, 1
    %vm2857 = vcmp.gt.s32.totalorder %v2856, 0
    %v2858 = vsel %vm2857, %v2856, 0
    %v2859 = vshrl.u32 %v2858, 5
    %v2860 = vand.u32 %v2858, 31
    %v2861 = vsub.s32 32, %v2860
    %v2862 = vshrl.u32 683565275, %v2861
    %v2863 = vshll.u32 683565275, %v2860
    %v2864 = vshrl.u32 2475754826, %v2861
    %v2865 = vor.u32 %v2863, %v2864
    %v2866 = vshll.u32 2475754826, %v2860
    %v2867 = vshrl.u32 2131351028, %v2861
    %v2868 = vor.u32 %v2866, %v2867
    %v2869 = vshll.u32 2131351028, %v2860
    %v2870 = vshrl.u32 2102212464, %v2861
    %v2871 = vor.u32 %v2869, %v2870
    %v2872 = vshll.u32 2102212464, %v2860
    %v2873 = vshrl.u32 920167782, %v2861
    %v2874 = vor.u32 %v2872, %v2873
    %v2875 = vshll.u32 920167782, %v2860
    %v2876 = vshrl.u32 1326507024, %v2861
    %v2877 = vor.u32 %v2875, %v2876
    %vm2878 = vcmp.lt.s32.totalorder %v2859, 1
    %vm2879 = vcmp.lt.s32.totalorder %v2859, 2
    %vm2880 = vcmp.lt.s32.totalorder %v2859, 3
    %vm2881 = vcmp.lt.s32.totalorder %v2859, 4
    %v2882 = vsel %vm2878, %v2862, %v2865
    %v2883 = vsel %vm2881, %v2871, 2102212464
    %v2884 = vsel %vm2880, %v2868, %v2883
    %v2885 = vsel %vm2879, %v2882, %v2884
    %v2886 = vsel %vm2878, %v2865, %v2868
    %v2887 = vsel %vm2881, %v2874, 920167782
    %v2888 = vsel %vm2880, %v2871, %v2887
    %v2889 = vsel %vm2879, %v2886, %v2888
    %v2890 = vsel %vm2878, %v2868, %v2871
    %v2891 = vsel %vm2881, %v2877, 1326507024
    %v2892 = vsel %vm2880, %v2874, %v2891
    %v2893 = vsel %vm2879, %v2890, %v2892
    %v2894 = vshll.u32 %v2854, 8
    %v2895 = vmul.u32.u64.compose %v2894, %v2893
    %v2896 = vextract.low.u32 %v2895
    %v2897 = vextract.high.u32 %v2895
    %v2898 = vmul.u32.u64.compose %v2894, %v2889
    %v2899 = vextract.low.u32 %v2898
    %v2900 = vextract.high.u32 %v2898
    %v2901 = vmul.u32 %v2894, %v2885
    %v2902 = vadd.s32 %v2897, %v2899
    %vm2903 = vc.u32 %v2897, %v2899
    %v2904 = vadd.s32 %v2900, 1
    %v2905 = vsel %vm2903, %v2904, %v2900
    %v2906 = vadd.s32 %v2901, %v2905
    %v2907 = vadd.s32 %v2906, 536870912
    %v2908 = vshrl.u32 %v2907, 30
    %v2909 = vshll.u32 %v2908, 30
    %v2910 = vsub.s32 %v2906, %v2909
    %vm2911 = vcmp.lt.s32.totalorder %v2910, 0
    %v2912 = vsub.s32 0, %v2910
    %v2913 = vsel %vm2911, %v2912, %v2910
    %v2914 = vclz %v2913
    %v2915 = vsub.s32 %v2914, 2
    %vm2916 = vcmp.gt.s32.totalorder 0, %v2915
    %v2917 = vsel %vm2916, 0, %v2915
    %v2918 = vsub.s32 32, %v2917
    %v2919 = vshll.u32 %v2910, %v2917
    %v2920 = vshrl.u32 %v2902, %v2918
    %v2921 = vor.u32 %v2919, %v2920
    %v2922 = vsub.s32 4294967266, %v2917
    %v2923 = vadd.s32 %v2922, 127
    %v2924 = vshll.u32 %v2923, 23
    %v2925 = vor.u32 4788187, %v2924
    %v2926 = vand.u32 2147483647, %v2925
    %v2928 = vcvt.s32.f32 %v2921
    %v2929 = vmul.f32 %v2928, %v2926
    %v2930 = vxor.u32 %v2929, 2147483648
    %v2931 = vsel %vm2848, %v2930, %v2929
    %v2932 = vsub.s32 4, %v2908
    %v2933 = vsel %vm2848, %v2932, %v2908
    %v2934 = vsel %vm2847, %v619, %v2931
    %v2935 = vsel %vm2847, 0, %v2933
    %v2936 = vcosq.f32.pop %v2934
    %v2937 = vsinq.f32.pop %v2934
    %vm2938 = vweird.f32 %v619
    %v2939 = vadd.s32 %v2935, 3
    %v2940 = vand.u32 %v2939, 3
    %vm2941 = vcmp.lt.s32.totalorder %v2940, 2
    %vm2942 = vcmp.eq.s32.totalorder %v2940, 0
    %v2943 = vxor.u32 %v2937, 2147483648
    %v2944 = vsel %vm2942, %v2936, %v2943
    %vm2945 = vcmp.eq.s32.totalorder %v2940, 2
    %v2946 = vxor.u32 %v2936, 2147483648
    %v2947 = vsel %vm2945, %v2946, %v2937
    %v2948 = vsel %vm2941, %v2944, %v2947
    %v2949 = vsel %vm2938, nan, %v2948
    %v2950 = vand.u32 2147483647, %v620
    %vm2951 = vcmp.le.f32.partialorder %v2950, 0.7853982
    %vm2952 = vcmp.lt.s32.totalorder %v620, 0
    %v2953 = vand.u32 %v620, 2139095040
    %v2954 = vshrl.u32 %v2953, 23
    %v2955 = vsub.s32 %v2954, 127
    %v2956 = vand.u32 2147483647, %v620
    %v2957 = vand.u32 %v2956, 8388607
    %v2958 = vor.u32 %v2957, 8388608
    %v2959 = vsub.s32 0, %v2958
    %v2960 = vadd.s32 %v2955, 1
    %vm2961 = vcmp.gt.s32.totalorder %v2960, 0
    %v2962 = vsel %vm2961, %v2960, 0
    %v2963 = vshrl.u32 %v2962, 5
    %v2964 = vand.u32 %v2962, 31
    %v2965 = vsub.s32 32, %v2964
    %v2966 = vshrl.u32 683565275, %v2965
    %v2967 = vshll.u32 683565275, %v2964
    %v2968 = vshrl.u32 2475754826, %v2965
    %v2969 = vor.u32 %v2967, %v2968
    %v2970 = vshll.u32 2475754826, %v2964
    %v2971 = vshrl.u32 2131351028, %v2965
    %v2972 = vor.u32 %v2970, %v2971
    %v2973 = vshll.u32 2131351028, %v2964
    %v2974 = vshrl.u32 2102212464, %v2965
    %v2975 = vor.u32 %v2973, %v2974
    %v2976 = vshll.u32 2102212464, %v2964
    %v2977 = vshrl.u32 920167782, %v2965
    %v2978 = vor.u32 %v2976, %v2977
    %v2979 = vshll.u32 920167782, %v2964
    %v2980 = vshrl.u32 1326507024, %v2965
    %v2981 = vor.u32 %v2979, %v2980
    %vm2982 = vcmp.lt.s32.totalorder %v2963, 1
    %vm2983 = vcmp.lt.s32.totalorder %v2963, 2
    %vm2984 = vcmp.lt.s32.totalorder %v2963, 3
    %vm2985 = vcmp.lt.s32.totalorder %v2963, 4
    %v2986 = vsel %vm2982, %v2966, %v2969
    %v2987 = vsel %vm2985, %v2975, 2102212464
    %v2988 = vsel %vm2984, %v2972, %v2987
    %v2989 = vsel %vm2983, %v2986, %v2988
    %v2990 = vsel %vm2982, %v2969, %v2972
    %v2991 = vsel %vm2985, %v2978, 920167782
    %v2992 = vsel %vm2984, %v2975, %v2991
    %v2993 = vsel %vm2983, %v2990, %v2992
    %v2994 = vsel %vm2982, %v2972, %v2975
    %v2995 = vsel %vm2985, %v2981, 1326507024
    %v2996 = vsel %vm2984, %v2978, %v2995
    %v2997 = vsel %vm2983, %v2994, %v2996
    %v2998 = vshll.u32 %v2958, 8
    %v2999 = vmul.u32.u64.compose %v2998, %v2997
    %v3000 = vextract.low.u32 %v2999
    %v3001 = vextract.high.u32 %v2999
    %v3002 = vmul.u32.u64.compose %v2998, %v2993
    %v3003 = vextract.low.u32 %v3002
    %v3004 = vextract.high.u32 %v3002
    %v3005 = vmul.u32 %v2998, %v2989
    %v3006 = vadd.s32 %v3001, %v3003
    %vm3007 = vc.u32 %v3001, %v3003
    %v3008 = vadd.s32 %v3004, 1
    %v3009 = vsel %vm3007, %v3008, %v3004
    %v3010 = vadd.s32 %v3005, %v3009
    %v3011 = vadd.s32 %v3010, 536870912
    %v3012 = vshrl.u32 %v3011, 30
    %v3013 = vshll.u32 %v3012, 30
    %v3014 = vsub.s32 %v3010, %v3013
    %vm3015 = vcmp.lt.s32.totalorder %v3014, 0
    %v3016 = vsub.s32 0, %v3014
    %v3017 = vsel %vm3015, %v3016, %v3014
    %v3018 = vclz %v3017
    %v3019 = vsub.s32 %v3018, 2
    %vm3020 = vcmp.gt.s32.totalorder 0, %v3019
    %v3021 = vsel %vm3020, 0, %v3019
    %v3022 = vsub.s32 32, %v3021
    %v3023 = vshll.u32 %v3014, %v3021
    %v3024 = vshrl.u32 %v3006, %v3022
    %v3025 = vor.u32 %v3023, %v3024
    %v3026 = vsub.s32 4294967266, %v3021
    %v3027 = vadd.s32 %v3026, 127
    %v3028 = vshll.u32 %v3027, 23
    %v3029 = vor.u32 4788187, %v3028
    %v3030 = vand.u32 2147483647, %v3029
    %v3032 = vcvt.s32.f32 %v3025
    %v3033 = vmul.f32 %v3032, %v3030
    %v3034 = vxor.u32 %v3033, 2147483648
    %v3035 = vsel %vm2952, %v3034, %v3033
    %v3036 = vsub.s32 4, %v3012
    %v3037 = vsel %vm2952, %v3036, %v3012
    %v3038 = vsel %vm2951, %v620, %v3035
    %v3039 = vsel %vm2951, 0, %v3037
    %v3040 = vcosq.f32.pop %v3038
    %v3041 = vsinq.f32.pop %v3038
    %vm3042 = vweird.f32 %v620
    %v3043 = vadd.s32 %v3039, 3
    %v3044 = vand.u32 %v3043, 3
    %vm3045 = vcmp.lt.s32.totalorder %v3044, 2
    %vm3046 = vcmp.eq.s32.totalorder %v3044, 0
    %v3047 = vxor.u32 %v3041, 2147483648
    %v3048 = vsel %vm3046, %v3040, %v3047
    %vm3049 = vcmp.eq.s32.totalorder %v3044, 2
    %v3050 = vxor.u32 %v3040, 2147483648
    %v3051 = vsel %vm3049, %v3050, %v3041
    %v3052 = vsel %vm3045, %v3048, %v3051
    %v3053 = vsel %vm3042, nan, %v3052
    %v3054 = vand.u32 2147483647, %v621
    %vm3055 = vcmp.le.f32.partialorder %v3054, 0.7853982
    %vm3056 = vcmp.lt.s32.totalorder %v621, 0
    %v3057 = vand.u32 %v621, 2139095040
    %v3058 = vshrl.u32 %v3057, 23
    %v3059 = vsub.s32 %v3058, 127
    %v3060 = vand.u32 2147483647, %v621
    %v3061 = vand.u32 %v3060, 8388607
    %v3062 = vor.u32 %v3061, 8388608
    %v3063 = vsub.s32 0, %v3062
    %v3064 = vadd.s32 %v3059, 1
    %vm3065 = vcmp.gt.s32.totalorder %v3064, 0
    %v3066 = vsel %vm3065, %v3064, 0
    %v3067 = vshrl.u32 %v3066, 5
    %v3068 = vand.u32 %v3066, 31
    %v3069 = vsub.s32 32, %v3068
    %v3070 = vshrl.u32 683565275, %v3069
    %v3071 = vshll.u32 683565275, %v3068
    %v3072 = vshrl.u32 2475754826, %v3069
    %v3073 = vor.u32 %v3071, %v3072
    %v3074 = vshll.u32 2475754826, %v3068
    %v3075 = vshrl.u32 2131351028, %v3069
    %v3076 = vor.u32 %v3074, %v3075
    %v3077 = vshll.u32 2131351028, %v3068
    %v3078 = vshrl.u32 2102212464, %v3069
    %v3079 = vor.u32 %v3077, %v3078
    %v3080 = vshll.u32 2102212464, %v3068
    %v3081 = vshrl.u32 920167782, %v3069
    %v3082 = vor.u32 %v3080, %v3081
    %v3083 = vshll.u32 920167782, %v3068
    %v3084 = vshrl.u32 1326507024, %v3069
    %v3085 = vor.u32 %v3083, %v3084
    %vm3086 = vcmp.lt.s32.totalorder %v3067, 1
    %vm3087 = vcmp.lt.s32.totalorder %v3067, 2
    %vm3088 = vcmp.lt.s32.totalorder %v3067, 3
    %vm3089 = vcmp.lt.s32.totalorder %v3067, 4
    %v3090 = vsel %vm3086, %v3070, %v3073
    %v3091 = vsel %vm3089, %v3079, 2102212464
    %v3092 = vsel %vm3088, %v3076, %v3091
    %v3093 = vsel %vm3087, %v3090, %v3092
    %v3094 = vsel %vm3086, %v3073, %v3076
    %v3095 = vsel %vm3089, %v3082, 920167782
    %v3096 = vsel %vm3088, %v3079, %v3095
    %v3097 = vsel %vm3087, %v3094, %v3096
    %v3098 = vsel %vm3086, %v3076, %v3079
    %v3099 = vsel %vm3089, %v3085, 1326507024
    %v3100 = vsel %vm3088, %v3082, %v3099
    %v3101 = vsel %vm3087, %v3098, %v3100
    %v3102 = vshll.u32 %v3062, 8
    %v3103 = vmul.u32.u64.compose %v3102, %v3101
    %v3104 = vextract.low.u32 %v3103
    %v3105 = vextract.high.u32 %v3103
    %v3106 = vmul.u32.u64.compose %v3102, %v3097
    %v3107 = vextract.low.u32 %v3106
    %v3108 = vextract.high.u32 %v3106
    %v3109 = vmul.u32 %v3102, %v3093
    %v3110 = vadd.s32 %v3105, %v3107
    %vm3111 = vc.u32 %v3105, %v3107
    %v3112 = vadd.s32 %v3108, 1
    %v3113 = vsel %vm3111, %v3112, %v3108
    %v3114 = vadd.s32 %v3109, %v3113
    %v3115 = vadd.s32 %v3114, 536870912
    %v3116 = vshrl.u32 %v3115, 30
    %v3117 = vshll.u32 %v3116, 30
    %v3118 = vsub.s32 %v3114, %v3117
    %vm3119 = vcmp.lt.s32.totalorder %v3118, 0
    %v3120 = vsub.s32 0, %v3118
    %v3121 = vsel %vm3119, %v3120, %v3118
    %v3122 = vclz %v3121
    %v3123 = vsub.s32 %v3122, 2
    %vm3124 = vcmp.gt.s32.totalorder 0, %v3123
    %v3125 = vsel %vm3124, 0, %v3123
    %v3126 = vsub.s32 32, %v3125
    %v3127 = vshll.u32 %v3118, %v3125
    %v3128 = vshrl.u32 %v3110, %v3126
    %v3129 = vor.u32 %v3127, %v3128
    %v3130 = vsub.s32 4294967266, %v3125
    %v3131 = vadd.s32 %v3130, 127
    %v3132 = vshll.u32 %v3131, 23
    %v3133 = vor.u32 4788187, %v3132
    %v3134 = vand.u32 2147483647, %v3133
    %v3136 = vcvt.s32.f32 %v3129
    %v3137 = vmul.f32 %v3136, %v3134
    %v3138 = vxor.u32 %v3137, 2147483648
    %v3139 = vsel %vm3056, %v3138, %v3137
    %v3140 = vsub.s32 4, %v3116
    %v3141 = vsel %vm3056, %v3140, %v3116
    %v3142 = vsel %vm3055, %v621, %v3139
    %v3143 = vsel %vm3055, 0, %v3141
    %v3144 = vcosq.f32.pop %v3142
    %v3145 = vsinq.f32.pop %v3142
    %vm3146 = vweird.f32 %v621
    %v3147 = vadd.s32 %v3143, 3
    %v3148 = vand.u32 %v3147, 3
    %vm3149 = vcmp.lt.s32.totalorder %v3148, 2
    %vm3150 = vcmp.eq.s32.totalorder %v3148, 0
    %v3151 = vxor.u32 %v3145, 2147483648
    %v3152 = vsel %vm3150, %v3144, %v3151
    %vm3153 = vcmp.eq.s32.totalorder %v3148, 2
    %v3154 = vxor.u32 %v3144, 2147483648
    %v3155 = vsel %vm3153, %v3154, %v3145
    %v3156 = vsel %vm3149, %v3152, %v3155
    %v3157 = vsel %vm3146, nan, %v3156
    %v3158 = vand.u32 2147483647, %v622
    %vm3159 = vcmp.le.f32.partialorder %v3158, 0.7853982
    %vm3160 = vcmp.lt.s32.totalorder %v622, 0
    %v3161 = vand.u32 %v622, 2139095040
    %v3162 = vshrl.u32 %v3161, 23
    %v3163 = vsub.s32 %v3162, 127
    %v3164 = vand.u32 2147483647, %v622
    %v3165 = vand.u32 %v3164, 8388607
    %v3166 = vor.u32 %v3165, 8388608
    %v3167 = vsub.s32 0, %v3166
    %v3168 = vadd.s32 %v3163, 1
    %vm3169 = vcmp.gt.s32.totalorder %v3168, 0
    %v3170 = vsel %vm3169, %v3168, 0
    %v3171 = vshrl.u32 %v3170, 5
    %v3172 = vand.u32 %v3170, 31
    %v3173 = vsub.s32 32, %v3172
    %v3174 = vshrl.u32 683565275, %v3173
    %v3175 = vshll.u32 683565275, %v3172
    %v3176 = vshrl.u32 2475754826, %v3173
    %v3177 = vor.u32 %v3175, %v3176
    %v3178 = vshll.u32 2475754826, %v3172
    %v3179 = vshrl.u32 2131351028, %v3173
    %v3180 = vor.u32 %v3178, %v3179
    %v3181 = vshll.u32 2131351028, %v3172
    %v3182 = vshrl.u32 2102212464, %v3173
    %v3183 = vor.u32 %v3181, %v3182
    %v3184 = vshll.u32 2102212464, %v3172
    %v3185 = vshrl.u32 920167782, %v3173
    %v3186 = vor.u32 %v3184, %v3185
    %v3187 = vshll.u32 920167782, %v3172
    %v3188 = vshrl.u32 1326507024, %v3173
    %v3189 = vor.u32 %v3187, %v3188
    %vm3190 = vcmp.lt.s32.totalorder %v3171, 1
    %vm3191 = vcmp.lt.s32.totalorder %v3171, 2
    %vm3192 = vcmp.lt.s32.totalorder %v3171, 3
    %vm3193 = vcmp.lt.s32.totalorder %v3171, 4
    %v3194 = vsel %vm3190, %v3174, %v3177
    %v3195 = vsel %vm3193, %v3183, 2102212464
    %v3196 = vsel %vm3192, %v3180, %v3195
    %v3197 = vsel %vm3191, %v3194, %v3196
    %v3198 = vsel %vm3190, %v3177, %v3180
    %v3199 = vsel %vm3193, %v3186, 920167782
    %v3200 = vsel %vm3192, %v3183, %v3199
    %v3201 = vsel %vm3191, %v3198, %v3200
    %v3202 = vsel %vm3190, %v3180, %v3183
    %v3203 = vsel %vm3193, %v3189, 1326507024
    %v3204 = vsel %vm3192, %v3186, %v3203
    %v3205 = vsel %vm3191, %v3202, %v3204
    %v3206 = vshll.u32 %v3166, 8
    %v3207 = vmul.u32.u64.compose %v3206, %v3205
    %v3208 = vextract.low.u32 %v3207
    %v3209 = vextract.high.u32 %v3207
    %v3210 = vmul.u32.u64.compose %v3206, %v3201
    %v3211 = vextract.low.u32 %v3210
    %v3212 = vextract.high.u32 %v3210
    %v3213 = vmul.u32 %v3206, %v3197
    %v3214 = vadd.s32 %v3209, %v3211
    %vm3215 = vc.u32 %v3209, %v3211
    %v3216 = vadd.s32 %v3212, 1
    %v3217 = vsel %vm3215, %v3216, %v3212
    %v3218 = vadd.s32 %v3213, %v3217
    %v3219 = vadd.s32 %v3218, 536870912
    %v3220 = vshrl.u32 %v3219, 30
    %v3221 = vshll.u32 %v3220, 30
    %v3222 = vsub.s32 %v3218, %v3221
    %vm3223 = vcmp.lt.s32.totalorder %v3222, 0
    %v3224 = vsub.s32 0, %v3222
    %v3225 = vsel %vm3223, %v3224, %v3222
    %v3226 = vclz %v3225
    %v3227 = vsub.s32 %v3226, 2
    %vm3228 = vcmp.gt.s32.totalorder 0, %v3227
    %v3229 = vsel %vm3228, 0, %v3227
    %v3230 = vsub.s32 32, %v3229
    %v3231 = vshll.u32 %v3222, %v3229
    %v3232 = vshrl.u32 %v3214, %v3230
    %v3233 = vor.u32 %v3231, %v3232
    %v3234 = vsub.s32 4294967266, %v3229
    %v3235 = vadd.s32 %v3234, 127
    %v3236 = vshll.u32 %v3235, 23
    %v3237 = vor.u32 4788187, %v3236
    %v3238 = vand.u32 2147483647, %v3237
    %v3240 = vcvt.s32.f32 %v3233
    %v3241 = vmul.f32 %v3240, %v3238
    %v3242 = vxor.u32 %v3241, 2147483648
    %v3243 = vsel %vm3160, %v3242, %v3241
    %v3244 = vsub.s32 4, %v3220
    %v3245 = vsel %vm3160, %v3244, %v3220
    %v3246 = vsel %vm3159, %v622, %v3243
    %v3247 = vsel %vm3159, 0, %v3245
    %v3248 = vcosq.f32.pop %v3246
    %v3249 = vsinq.f32.pop %v3246
    %vm3250 = vweird.f32 %v622
    %v3251 = vadd.s32 %v3247, 3
    %v3252 = vand.u32 %v3251, 3
    %vm3253 = vcmp.lt.s32.totalorder %v3252, 2
    %vm3254 = vcmp.eq.s32.totalorder %v3252, 0
    %v3255 = vxor.u32 %v3249, 2147483648
    %v3256 = vsel %vm3254, %v3248, %v3255
    %vm3257 = vcmp.eq.s32.totalorder %v3252, 2
    %v3258 = vxor.u32 %v3248, 2147483648
    %v3259 = vsel %vm3257, %v3258, %v3249
    %v3260 = vsel %vm3253, %v3256, %v3259
    %v3261 = vsel %vm3250, nan, %v3260
    %v3262 = vand.u32 2147483647, %v623
    %vm3263 = vcmp.le.f32.partialorder %v3262, 0.7853982
    %vm3264 = vcmp.lt.s32.totalorder %v623, 0
    %v3265 = vand.u32 %v623, 2139095040
    %v3266 = vshrl.u32 %v3265, 23
    %v3267 = vsub.s32 %v3266, 127
    %v3268 = vand.u32 2147483647, %v623
    %v3269 = vand.u32 %v3268, 8388607
    %v3270 = vor.u32 %v3269, 8388608
    %v3271 = vsub.s32 0, %v3270
    %v3272 = vadd.s32 %v3267, 1
    %vm3273 = vcmp.gt.s32.totalorder %v3272, 0
    %v3274 = vsel %vm3273, %v3272, 0
    %v3275 = vshrl.u32 %v3274, 5
    %v3276 = vand.u32 %v3274, 31
    %v3277 = vsub.s32 32, %v3276
    %v3278 = vshrl.u32 683565275, %v3277
    %v3279 = vshll.u32 683565275, %v3276
    %v3280 = vshrl.u32 2475754826, %v3277
    %v3281 = vor.u32 %v3279, %v3280
    %v3282 = vshll.u32 2475754826, %v3276
    %v3283 = vshrl.u32 2131351028, %v3277
    %v3284 = vor.u32 %v3282, %v3283
    %v3285 = vshll.u32 2131351028, %v3276
    %v3286 = vshrl.u32 2102212464, %v3277
    %v3287 = vor.u32 %v3285, %v3286
    %v3288 = vshll.u32 2102212464, %v3276
    %v3289 = vshrl.u32 920167782, %v3277
    %v3290 = vor.u32 %v3288, %v3289
    %v3291 = vshll.u32 920167782, %v3276
    %v3292 = vshrl.u32 1326507024, %v3277
    %v3293 = vor.u32 %v3291, %v3292
    %vm3294 = vcmp.lt.s32.totalorder %v3275, 1
    %vm3295 = vcmp.lt.s32.totalorder %v3275, 2
    %vm3296 = vcmp.lt.s32.totalorder %v3275, 3
    %vm3297 = vcmp.lt.s32.totalorder %v3275, 4
    %v3298 = vsel %vm3294, %v3278, %v3281
    %v3299 = vsel %vm3297, %v3287, 2102212464
    %v3300 = vsel %vm3296, %v3284, %v3299
    %v3301 = vsel %vm3295, %v3298, %v3300
    %v3302 = vsel %vm3294, %v3281, %v3284
    %v3303 = vsel %vm3297, %v3290, 920167782
    %v3304 = vsel %vm3296, %v3287, %v3303
    %v3305 = vsel %vm3295, %v3302, %v3304
    %v3306 = vsel %vm3294, %v3284, %v3287
    %v3307 = vsel %vm3297, %v3293, 1326507024
    %v3308 = vsel %vm3296, %v3290, %v3307
    %v3309 = vsel %vm3295, %v3306, %v3308
    %v3310 = vshll.u32 %v3270, 8
    %v3311 = vmul.u32.u64.compose %v3310, %v3309
    %v3312 = vextract.low.u32 %v3311
    %v3313 = vextract.high.u32 %v3311
    %v3314 = vmul.u32.u64.compose %v3310, %v3305
    %v3315 = vextract.low.u32 %v3314
    %v3316 = vextract.high.u32 %v3314
    %v3317 = vmul.u32 %v3310, %v3301
    %v3318 = vadd.s32 %v3313, %v3315
    %vm3319 = vc.u32 %v3313, %v3315
    %v3320 = vadd.s32 %v3316, 1
    %v3321 = vsel %vm3319, %v3320, %v3316
    %v3322 = vadd.s32 %v3317, %v3321
    %v3323 = vadd.s32 %v3322, 536870912
    %v3324 = vshrl.u32 %v3323, 30
    %v3325 = vshll.u32 %v3324, 30
    %v3326 = vsub.s32 %v3322, %v3325
    %vm3327 = vcmp.lt.s32.totalorder %v3326, 0
    %v3328 = vsub.s32 0, %v3326
    %v3329 = vsel %vm3327, %v3328, %v3326
    %v3330 = vclz %v3329
    %v3331 = vsub.s32 %v3330, 2
    %vm3332 = vcmp.gt.s32.totalorder 0, %v3331
    %v3333 = vsel %vm3332, 0, %v3331
    %v3334 = vsub.s32 32, %v3333
    %v3335 = vshll.u32 %v3326, %v3333
    %v3336 = vshrl.u32 %v3318, %v3334
    %v3337 = vor.u32 %v3335, %v3336
    %v3338 = vsub.s32 4294967266, %v3333
    %v3339 = vadd.s32 %v3338, 127
    %v3340 = vshll.u32 %v3339, 23
    %v3341 = vor.u32 4788187, %v3340
    %v3342 = vand.u32 2147483647, %v3341
    %v3344 = vcvt.s32.f32 %v3337
    %v3345 = vmul.f32 %v3344, %v3342
    %v3346 = vxor.u32 %v3345, 2147483648
    %v3347 = vsel %vm3264, %v3346, %v3345
    %v3348 = vsub.s32 4, %v3324
    %v3349 = vsel %vm3264, %v3348, %v3324
    %v3350 = vsel %vm3263, %v623, %v3347
    %v3351 = vsel %vm3263, 0, %v3349
    %v3352 = vcosq.f32.pop %v3350
    %v3353 = vsinq.f32.pop %v3350
    %vm3354 = vweird.f32 %v623
    %v3355 = vadd.s32 %v3351, 3
    %v3356 = vand.u32 %v3355, 3
    %vm3357 = vcmp.lt.s32.totalorder %v3356, 2
    %vm3358 = vcmp.eq.s32.totalorder %v3356, 0
    %v3359 = vxor.u32 %v3353, 2147483648
    %v3360 = vsel %vm3358, %v3352, %v3359
    %vm3361 = vcmp.eq.s32.totalorder %v3356, 2
    %v3362 = vxor.u32 %v3352, 2147483648
    %v3363 = vsel %vm3361, %v3362, %v3353
    %v3364 = vsel %vm3357, %v3360, %v3363
    %v3365 = vsel %vm3354, nan, %v3364
    %v3366 = vand.u32 2147483647, %v624
    %vm3367 = vcmp.le.f32.partialorder %v3366, 0.7853982
    %vm3368 = vcmp.lt.s32.totalorder %v624, 0
    %v3369 = vand.u32 %v624, 2139095040
    %v3370 = vshrl.u32 %v3369, 23
    %v3371 = vsub.s32 %v3370, 127
    %v3372 = vand.u32 2147483647, %v624
    %v3373 = vand.u32 %v3372, 8388607
    %v3374 = vor.u32 %v3373, 8388608
    %v3375 = vsub.s32 0, %v3374
    %v3376 = vadd.s32 %v3371, 1
    %vm3377 = vcmp.gt.s32.totalorder %v3376, 0
    %v3378 = vsel %vm3377, %v3376, 0
    %v3379 = vshrl.u32 %v3378, 5
    %v3380 = vand.u32 %v3378, 31
    %v3381 = vsub.s32 32, %v3380
    %v3382 = vshrl.u32 683565275, %v3381
    %v3383 = vshll.u32 683565275, %v3380
    %v3384 = vshrl.u32 2475754826, %v3381
    %v3385 = vor.u32 %v3383, %v3384
    %v3386 = vshll.u32 2475754826, %v3380
    %v3387 = vshrl.u32 2131351028, %v3381
    %v3388 = vor.u32 %v3386, %v3387
    %v3389 = vshll.u32 2131351028, %v3380
    %v3390 = vshrl.u32 2102212464, %v3381
    %v3391 = vor.u32 %v3389, %v3390
    %v3392 = vshll.u32 2102212464, %v3380
    %v3393 = vshrl.u32 920167782, %v3381
    %v3394 = vor.u32 %v3392, %v3393
    %v3395 = vshll.u32 920167782, %v3380
    %v3396 = vshrl.u32 1326507024, %v3381
    %v3397 = vor.u32 %v3395, %v3396
    %vm3398 = vcmp.lt.s32.totalorder %v3379, 1
    %vm3399 = vcmp.lt.s32.totalorder %v3379, 2
    %vm3400 = vcmp.lt.s32.totalorder %v3379, 3
    %vm3401 = vcmp.lt.s32.totalorder %v3379, 4
    %v3402 = vsel %vm3398, %v3382, %v3385
    %v3403 = vsel %vm3401, %v3391, 2102212464
    %v3404 = vsel %vm3400, %v3388, %v3403
    %v3405 = vsel %vm3399, %v3402, %v3404
    %v3406 = vsel %vm3398, %v3385, %v3388
    %v3407 = vsel %vm3401, %v3394, 920167782
    %v3408 = vsel %vm3400, %v3391, %v3407
    %v3409 = vsel %vm3399, %v3406, %v3408
    %v3410 = vsel %vm3398, %v3388, %v3391
    %v3411 = vsel %vm3401, %v3397, 1326507024
    %v3412 = vsel %vm3400, %v3394, %v3411
    %v3413 = vsel %vm3399, %v3410, %v3412
    %v3414 = vshll.u32 %v3374, 8
    %v3415 = vmul.u32.u64.compose %v3414, %v3413
    %v3416 = vextract.low.u32 %v3415
    %v3417 = vextract.high.u32 %v3415
    %v3418 = vmul.u32.u64.compose %v3414, %v3409
    %v3419 = vextract.low.u32 %v3418
    %v3420 = vextract.high.u32 %v3418
    %v3421 = vmul.u32 %v3414, %v3405
    %v3422 = vadd.s32 %v3417, %v3419
    %vm3423 = vc.u32 %v3417, %v3419
    %v3424 = vadd.s32 %v3420, 1
    %v3425 = vsel %vm3423, %v3424, %v3420
    %v3426 = vadd.s32 %v3421, %v3425
    %v3427 = vadd.s32 %v3426, 536870912
    %v3428 = vshrl.u32 %v3427, 30
    %v3429 = vshll.u32 %v3428, 30
    %v3430 = vsub.s32 %v3426, %v3429
    %vm3431 = vcmp.lt.s32.totalorder %v3430, 0
    %v3432 = vsub.s32 0, %v3430
    %v3433 = vsel %vm3431, %v3432, %v3430
    %v3434 = vclz %v3433
    %v3435 = vsub.s32 %v3434, 2
    %vm3436 = vcmp.gt.s32.totalorder 0, %v3435
    %v3437 = vsel %vm3436, 0, %v3435
    %v3438 = vsub.s32 32, %v3437
    %v3439 = vshll.u32 %v3430, %v3437
    %v3440 = vshrl.u32 %v3422, %v3438
    %v3441 = vor.u32 %v3439, %v3440
    %v3442 = vsub.s32 4294967266, %v3437
    %v3443 = vadd.s32 %v3442, 127
    %v3444 = vshll.u32 %v3443, 23
    %v3445 = vor.u32 4788187, %v3444
    %v3446 = vand.u32 2147483647, %v3445
    %v3448 = vcvt.s32.f32 %v3441
    %v3449 = vmul.f32 %v3448, %v3446
    %v3450 = vxor.u32 %v3449, 2147483648
    %v3451 = vsel %vm3368, %v3450, %v3449
    %v3452 = vsub.s32 4, %v3428
    %v3453 = vsel %vm3368, %v3452, %v3428
    %v3454 = vsel %vm3367, %v624, %v3451
    %v3455 = vsel %vm3367, 0, %v3453
    %v3456 = vcosq.f32.pop %v3454
    %v3457 = vsinq.f32.pop %v3454
    %vm3458 = vweird.f32 %v624
    %v3459 = vadd.s32 %v3455, 3
    %v3460 = vand.u32 %v3459, 3
    %vm3461 = vcmp.lt.s32.totalorder %v3460, 2
    %vm3462 = vcmp.eq.s32.totalorder %v3460, 0
    %v3463 = vxor.u32 %v3457, 2147483648
    %v3464 = vsel %vm3462, %v3456, %v3463
    %vm3465 = vcmp.eq.s32.totalorder %v3460, 2
    %v3466 = vxor.u32 %v3456, 2147483648
    %v3467 = vsel %vm3465, %v3466, %v3457
    %v3468 = vsel %vm3461, %v3464, %v3467
    %v3469 = vsel %vm3458, nan, %v3468
    %v3470 = vand.u32 2147483647, %v625
    %vm3471 = vcmp.le.f32.partialorder %v3470, 0.7853982
    %vm3472 = vcmp.lt.s32.totalorder %v625, 0
    %v3473 = vand.u32 %v625, 2139095040
    %v3474 = vshrl.u32 %v3473, 23
    %v3475 = vsub.s32 %v3474, 127
    %v3476 = vand.u32 2147483647, %v625
    %v3477 = vand.u32 %v3476, 8388607
    %v3478 = vor.u32 %v3477, 8388608
    %v3479 = vsub.s32 0, %v3478
    %v3480 = vadd.s32 %v3475, 1
    %vm3481 = vcmp.gt.s32.totalorder %v3480, 0
    %v3482 = vsel %vm3481, %v3480, 0
    %v3483 = vshrl.u32 %v3482, 5
    %v3484 = vand.u32 %v3482, 31
    %v3485 = vsub.s32 32, %v3484
    %v3486 = vshrl.u32 683565275, %v3485
    %v3487 = vshll.u32 683565275, %v3484
    %v3488 = vshrl.u32 2475754826, %v3485
    %v3489 = vor.u32 %v3487, %v3488
    %v3490 = vshll.u32 2475754826, %v3484
    %v3491 = vshrl.u32 2131351028, %v3485
    %v3492 = vor.u32 %v3490, %v3491
    %v3493 = vshll.u32 2131351028, %v3484
    %v3494 = vshrl.u32 2102212464, %v3485
    %v3495 = vor.u32 %v3493, %v3494
    %v3496 = vshll.u32 2102212464, %v3484
    %v3497 = vshrl.u32 920167782, %v3485
    %v3498 = vor.u32 %v3496, %v3497
    %v3499 = vshll.u32 920167782, %v3484
    %v3500 = vshrl.u32 1326507024, %v3485
    %v3501 = vor.u32 %v3499, %v3500
    %vm3502 = vcmp.lt.s32.totalorder %v3483, 1
    %vm3503 = vcmp.lt.s32.totalorder %v3483, 2
    %vm3504 = vcmp.lt.s32.totalorder %v3483, 3
    %vm3505 = vcmp.lt.s32.totalorder %v3483, 4
    %v3506 = vsel %vm3502, %v3486, %v3489
    %v3507 = vsel %vm3505, %v3495, 2102212464
    %v3508 = vsel %vm3504, %v3492, %v3507
    %v3509 = vsel %vm3503, %v3506, %v3508
    %v3510 = vsel %vm3502, %v3489, %v3492
    %v3511 = vsel %vm3505, %v3498, 920167782
    %v3512 = vsel %vm3504, %v3495, %v3511
    %v3513 = vsel %vm3503, %v3510, %v3512
    %v3514 = vsel %vm3502, %v3492, %v3495
    %v3515 = vsel %vm3505, %v3501, 1326507024
    %v3516 = vsel %vm3504, %v3498, %v3515
    %v3517 = vsel %vm3503, %v3514, %v3516
    %v3518 = vshll.u32 %v3478, 8
    %v3519 = vmul.u32.u64.compose %v3518, %v3517
    %v3520 = vextract.low.u32 %v3519
    %v3521 = vextract.high.u32 %v3519
    %v3522 = vmul.u32.u64.compose %v3518, %v3513
    %v3523 = vextract.low.u32 %v3522
    %v3524 = vextract.high.u32 %v3522
    %v3525 = vmul.u32 %v3518, %v3509
    %v3526 = vadd.s32 %v3521, %v3523
    %vm3527 = vc.u32 %v3521, %v3523
    %v3528 = vadd.s32 %v3524, 1
    %v3529 = vsel %vm3527, %v3528, %v3524
    %v3530 = vadd.s32 %v3525, %v3529
    %v3531 = vadd.s32 %v3530, 536870912
    %v3532 = vshrl.u32 %v3531, 30
    %v3533 = vshll.u32 %v3532, 30
    %v3534 = vsub.s32 %v3530, %v3533
    %vm3535 = vcmp.lt.s32.totalorder %v3534, 0
    %v3536 = vsub.s32 0, %v3534
    %v3537 = vsel %vm3535, %v3536, %v3534
    %v3538 = vclz %v3537
    %v3539 = vsub.s32 %v3538, 2
    %vm3540 = vcmp.gt.s32.totalorder 0, %v3539
    %v3541 = vsel %vm3540, 0, %v3539
    %v3542 = vsub.s32 32, %v3541
    %v3543 = vshll.u32 %v3534, %v3541
    %v3544 = vshrl.u32 %v3526, %v3542
    %v3545 = vor.u32 %v3543, %v3544
    %v3546 = vsub.s32 4294967266, %v3541
    %v3547 = vadd.s32 %v3546, 127
    %v3548 = vshll.u32 %v3547, 23
    %v3549 = vor.u32 4788187, %v3548
    %v3550 = vand.u32 2147483647, %v3549
    %v3552 = vcvt.s32.f32 %v3545
    %v3553 = vmul.f32 %v3552, %v3550
    %v3554 = vxor.u32 %v3553, 2147483648
    %v3555 = vsel %vm3472, %v3554, %v3553
    %v3556 = vsub.s32 4, %v3532
    %v3557 = vsel %vm3472, %v3556, %v3532
    %v3558 = vsel %vm3471, %v625, %v3555
    %v3559 = vsel %vm3471, 0, %v3557
    %v3560 = vcosq.f32.pop %v3558
    %v3561 = vsinq.f32.pop %v3558
    %vm3562 = vweird.f32 %v625
    %v3563 = vadd.s32 %v3559, 3
    %v3564 = vand.u32 %v3563, 3
    %vm3565 = vcmp.lt.s32.totalorder %v3564, 2
    %vm3566 = vcmp.eq.s32.totalorder %v3564, 0
    %v3567 = vxor.u32 %v3561, 2147483648
    %v3568 = vsel %vm3566, %v3560, %v3567
    %vm3569 = vcmp.eq.s32.totalorder %v3564, 2
    %v3570 = vxor.u32 %v3560, 2147483648
    %v3571 = vsel %vm3569, %v3570, %v3561
    %v3572 = vsel %vm3565, %v3568, %v3571
    %v3573 = vsel %vm3562, nan, %v3572
    %v3574 = vand.u32 2147483647, %v626
    %vm3575 = vcmp.le.f32.partialorder %v3574, 0.7853982
    %vm3576 = vcmp.lt.s32.totalorder %v626, 0
    %v3577 = vand.u32 %v626, 2139095040
    %v3578 = vshrl.u32 %v3577, 23
    %v3579 = vsub.s32 %v3578, 127
    %v3580 = vand.u32 2147483647, %v626
    %v3581 = vand.u32 %v3580, 8388607
    %v3582 = vor.u32 %v3581, 8388608
    %v3583 = vsub.s32 0, %v3582
    %v3584 = vadd.s32 %v3579, 1
    %vm3585 = vcmp.gt.s32.totalorder %v3584, 0
    %v3586 = vsel %vm3585, %v3584, 0
    %v3587 = vshrl.u32 %v3586, 5
    %v3588 = vand.u32 %v3586, 31
    %v3589 = vsub.s32 32, %v3588
    %v3590 = vshrl.u32 683565275, %v3589
    %v3591 = vshll.u32 683565275, %v3588
    %v3592 = vshrl.u32 2475754826, %v3589
    %v3593 = vor.u32 %v3591, %v3592
    %v3594 = vshll.u32 2475754826, %v3588
    %v3595 = vshrl.u32 2131351028, %v3589
    %v3596 = vor.u32 %v3594, %v3595
    %v3597 = vshll.u32 2131351028, %v3588
    %v3598 = vshrl.u32 2102212464, %v3589
    %v3599 = vor.u32 %v3597, %v3598
    %v3600 = vshll.u32 2102212464, %v3588
    %v3601 = vshrl.u32 920167782, %v3589
    %v3602 = vor.u32 %v3600, %v3601
    %v3603 = vshll.u32 920167782, %v3588
    %v3604 = vshrl.u32 1326507024, %v3589
    %v3605 = vor.u32 %v3603, %v3604
    %vm3606 = vcmp.lt.s32.totalorder %v3587, 1
    %vm3607 = vcmp.lt.s32.totalorder %v3587, 2
    %vm3608 = vcmp.lt.s32.totalorder %v3587, 3
    %vm3609 = vcmp.lt.s32.totalorder %v3587, 4
    %v3610 = vsel %vm3606, %v3590, %v3593
    %v3611 = vsel %vm3609, %v3599, 2102212464
    %v3612 = vsel %vm3608, %v3596, %v3611
    %v3613 = vsel %vm3607, %v3610, %v3612
    %v3614 = vsel %vm3606, %v3593, %v3596
    %v3615 = vsel %vm3609, %v3602, 920167782
    %v3616 = vsel %vm3608, %v3599, %v3615
    %v3617 = vsel %vm3607, %v3614, %v3616
    %v3618 = vsel %vm3606, %v3596, %v3599
    %v3619 = vsel %vm3609, %v3605, 1326507024
    %v3620 = vsel %vm3608, %v3602, %v3619
    %v3621 = vsel %vm3607, %v3618, %v3620
    %v3622 = vshll.u32 %v3582, 8
    %v3623 = vmul.u32.u64.compose %v3622, %v3621
    %v3624 = vextract.low.u32 %v3623
    %v3625 = vextract.high.u32 %v3623
    %v3626 = vmul.u32.u64.compose %v3622, %v3617
    %v3627 = vextract.low.u32 %v3626
    %v3628 = vextract.high.u32 %v3626
    %v3629 = vmul.u32 %v3622, %v3613
    %v3630 = vadd.s32 %v3625, %v3627
    %vm3631 = vc.u32 %v3625, %v3627
    %v3632 = vadd.s32 %v3628, 1
    %v3633 = vsel %vm3631, %v3632, %v3628
    %v3634 = vadd.s32 %v3629, %v3633
    %v3635 = vadd.s32 %v3634, 536870912
    %v3636 = vshrl.u32 %v3635, 30
    %v3637 = vshll.u32 %v3636, 30
    %v3638 = vsub.s32 %v3634, %v3637
    %vm3639 = vcmp.lt.s32.totalorder %v3638, 0
    %v3640 = vsub.s32 0, %v3638
    %v3641 = vsel %vm3639, %v3640, %v3638
    %v3642 = vclz %v3641
    %v3643 = vsub.s32 %v3642, 2
    %vm3644 = vcmp.gt.s32.totalorder 0, %v3643
    %v3645 = vsel %vm3644, 0, %v3643
    %v3646 = vsub.s32 32, %v3645
    %v3647 = vshll.u32 %v3638, %v3645
    %v3648 = vshrl.u32 %v3630, %v3646
    %v3649 = vor.u32 %v3647, %v3648
    %v3650 = vsub.s32 4294967266, %v3645
    %v3651 = vadd.s32 %v3650, 127
    %v3652 = vshll.u32 %v3651, 23
    %v3653 = vor.u32 4788187, %v3652
    %v3654 = vand.u32 2147483647, %v3653
    %v3656 = vcvt.s32.f32 %v3649
    %v3657 = vmul.f32 %v3656, %v3654
    %v3658 = vxor.u32 %v3657, 2147483648
    %v3659 = vsel %vm3576, %v3658, %v3657
    %v3660 = vsub.s32 4, %v3636
    %v3661 = vsel %vm3576, %v3660, %v3636
    %v3662 = vsel %vm3575, %v626, %v3659
    %v3663 = vsel %vm3575, 0, %v3661
    %v3664 = vcosq.f32.pop %v3662
    %v3665 = vsinq.f32.pop %v3662
    %vm3666 = vweird.f32 %v626
    %v3667 = vadd.s32 %v3663, 3
    %v3668 = vand.u32 %v3667, 3
    %vm3669 = vcmp.lt.s32.totalorder %v3668, 2
    %vm3670 = vcmp.eq.s32.totalorder %v3668, 0
    %v3671 = vxor.u32 %v3665, 2147483648
    %v3672 = vsel %vm3670, %v3664, %v3671
    %vm3673 = vcmp.eq.s32.totalorder %v3668, 2
    %v3674 = vxor.u32 %v3664, 2147483648
    %v3675 = vsel %vm3673, %v3674, %v3665
    %v3676 = vsel %vm3669, %v3672, %v3675
    %v3677 = vsel %vm3666, nan, %v3676
    %v3678 = vand.u32 2147483647, %v627
    %vm3679 = vcmp.le.f32.partialorder %v3678, 0.7853982
    %vm3680 = vcmp.lt.s32.totalorder %v627, 0
    %v3681 = vand.u32 %v627, 2139095040
    %v3682 = vshrl.u32 %v3681, 23
    %v3683 = vsub.s32 %v3682, 127
    %v3684 = vand.u32 2147483647, %v627
    %v3685 = vand.u32 %v3684, 8388607
    %v3686 = vor.u32 %v3685, 8388608
    %v3687 = vsub.s32 0, %v3686
    %v3688 = vadd.s32 %v3683, 1
    %vm3689 = vcmp.gt.s32.totalorder %v3688, 0
    %v3690 = vsel %vm3689, %v3688, 0
    %v3691 = vshrl.u32 %v3690, 5
    %v3692 = vand.u32 %v3690, 31
    %v3693 = vsub.s32 32, %v3692
    %v3694 = vshrl.u32 683565275, %v3693
    %v3695 = vshll.u32 683565275, %v3692
    %v3696 = vshrl.u32 2475754826, %v3693
    %v3697 = vor.u32 %v3695, %v3696
    %v3698 = vshll.u32 2475754826, %v3692
    %v3699 = vshrl.u32 2131351028, %v3693
    %v3700 = vor.u32 %v3698, %v3699
    %v3701 = vshll.u32 2131351028, %v3692
    %v3702 = vshrl.u32 2102212464, %v3693
    %v3703 = vor.u32 %v3701, %v3702
    %v3704 = vshll.u32 2102212464, %v3692
    %v3705 = vshrl.u32 920167782, %v3693
    %v3706 = vor.u32 %v3704, %v3705
    %v3707 = vshll.u32 920167782, %v3692
    %v3708 = vshrl.u32 1326507024, %v3693
    %v3709 = vor.u32 %v3707, %v3708
    %vm3710 = vcmp.lt.s32.totalorder %v3691, 1
    %vm3711 = vcmp.lt.s32.totalorder %v3691, 2
    %vm3712 = vcmp.lt.s32.totalorder %v3691, 3
    %vm3713 = vcmp.lt.s32.totalorder %v3691, 4
    %v3714 = vsel %vm3710, %v3694, %v3697
    %v3715 = vsel %vm3713, %v3703, 2102212464
    %v3716 = vsel %vm3712, %v3700, %v3715
    %v3717 = vsel %vm3711, %v3714, %v3716
    %v3718 = vsel %vm3710, %v3697, %v3700
    %v3719 = vsel %vm3713, %v3706, 920167782
    %v3720 = vsel %vm3712, %v3703, %v3719
    %v3721 = vsel %vm3711, %v3718, %v3720
    %v3722 = vsel %vm3710, %v3700, %v3703
    %v3723 = vsel %vm3713, %v3709, 1326507024
    %v3724 = vsel %vm3712, %v3706, %v3723
    %v3725 = vsel %vm3711, %v3722, %v3724
    %v3726 = vshll.u32 %v3686, 8
    %v3727 = vmul.u32.u64.compose %v3726, %v3725
    %v3728 = vextract.low.u32 %v3727
    %v3729 = vextract.high.u32 %v3727
    %v3730 = vmul.u32.u64.compose %v3726, %v3721
    %v3731 = vextract.low.u32 %v3730
    %v3732 = vextract.high.u32 %v3730
    %v3733 = vmul.u32 %v3726, %v3717
    %v3734 = vadd.s32 %v3729, %v3731
    %vm3735 = vc.u32 %v3729, %v3731
    %v3736 = vadd.s32 %v3732, 1
    %v3737 = vsel %vm3735, %v3736, %v3732
    %v3738 = vadd.s32 %v3733, %v3737
    %v3739 = vadd.s32 %v3738, 536870912
    %v3740 = vshrl.u32 %v3739, 30
    %v3741 = vshll.u32 %v3740, 30
    %v3742 = vsub.s32 %v3738, %v3741
    %vm3743 = vcmp.lt.s32.totalorder %v3742, 0
    %v3744 = vsub.s32 0, %v3742
    %v3745 = vsel %vm3743, %v3744, %v3742
    %v3746 = vclz %v3745
    %v3747 = vsub.s32 %v3746, 2
    %vm3748 = vcmp.gt.s32.totalorder 0, %v3747
    %v3749 = vsel %vm3748, 0, %v3747
    %v3750 = vsub.s32 32, %v3749
    %v3751 = vshll.u32 %v3742, %v3749
    %v3752 = vshrl.u32 %v3734, %v3750
    %v3753 = vor.u32 %v3751, %v3752
    %v3754 = vsub.s32 4294967266, %v3749
    %v3755 = vadd.s32 %v3754, 127
    %v3756 = vshll.u32 %v3755, 23
    %v3757 = vor.u32 4788187, %v3756
    %v3758 = vand.u32 2147483647, %v3757
    %v3760 = vcvt.s32.f32 %v3753
    %v3761 = vmul.f32 %v3760, %v3758
    %v3762 = vxor.u32 %v3761, 2147483648
    %v3763 = vsel %vm3680, %v3762, %v3761
    %v3764 = vsub.s32 4, %v3740
    %v3765 = vsel %vm3680, %v3764, %v3740
    %v3766 = vsel %vm3679, %v627, %v3763
    %v3767 = vsel %vm3679, 0, %v3765
    %v3768 = vcosq.f32.pop %v3766
    %v3769 = vsinq.f32.pop %v3766
    %vm3770 = vweird.f32 %v627
    %v3771 = vadd.s32 %v3767, 3
    %v3772 = vand.u32 %v3771, 3
    %vm3773 = vcmp.lt.s32.totalorder %v3772, 2
    %vm3774 = vcmp.eq.s32.totalorder %v3772, 0
    %v3775 = vxor.u32 %v3769, 2147483648
    %v3776 = vsel %vm3774, %v3768, %v3775
    %vm3777 = vcmp.eq.s32.totalorder %v3772, 2
    %v3778 = vxor.u32 %v3768, 2147483648
    %v3779 = vsel %vm3777, %v3778, %v3769
    %v3780 = vsel %vm3773, %v3776, %v3779
    %v3781 = vsel %vm3770, nan, %v3780
    %v3782 = vand.u32 2147483647, %v628
    %vm3783 = vcmp.le.f32.partialorder %v3782, 0.7853982
    %vm3784 = vcmp.lt.s32.totalorder %v628, 0
    %v3785 = vand.u32 %v628, 2139095040
    %v3786 = vshrl.u32 %v3785, 23
    %v3787 = vsub.s32 %v3786, 127
    %v3788 = vand.u32 2147483647, %v628
    %v3789 = vand.u32 %v3788, 8388607
    %v3790 = vor.u32 %v3789, 8388608
    %v3791 = vsub.s32 0, %v3790
    %v3792 = vadd.s32 %v3787, 1
    %vm3793 = vcmp.gt.s32.totalorder %v3792, 0
    %v3794 = vsel %vm3793, %v3792, 0
    %v3795 = vshrl.u32 %v3794, 5
    %v3796 = vand.u32 %v3794, 31
    %v3797 = vsub.s32 32, %v3796
    %v3798 = vshrl.u32 683565275, %v3797
    %v3799 = vshll.u32 683565275, %v3796
    %v3800 = vshrl.u32 2475754826, %v3797
    %v3801 = vor.u32 %v3799, %v3800
    %v3802 = vshll.u32 2475754826, %v3796
    %v3803 = vshrl.u32 2131351028, %v3797
    %v3804 = vor.u32 %v3802, %v3803
    %v3805 = vshll.u32 2131351028, %v3796
    %v3806 = vshrl.u32 2102212464, %v3797
    %v3807 = vor.u32 %v3805, %v3806
    %v3808 = vshll.u32 2102212464, %v3796
    %v3809 = vshrl.u32 920167782, %v3797
    %v3810 = vor.u32 %v3808, %v3809
    %v3811 = vshll.u32 920167782, %v3796
    %v3812 = vshrl.u32 1326507024, %v3797
    %v3813 = vor.u32 %v3811, %v3812
    %vm3814 = vcmp.lt.s32.totalorder %v3795, 1
    %vm3815 = vcmp.lt.s32.totalorder %v3795, 2
    %vm3816 = vcmp.lt.s32.totalorder %v3795, 3
    %vm3817 = vcmp.lt.s32.totalorder %v3795, 4
    %v3818 = vsel %vm3814, %v3798, %v3801
    %v3819 = vsel %vm3817, %v3807, 2102212464
    %v3820 = vsel %vm3816, %v3804, %v3819
    %v3821 = vsel %vm3815, %v3818, %v3820
    %v3822 = vsel %vm3814, %v3801, %v3804
    %v3823 = vsel %vm3817, %v3810, 920167782
    %v3824 = vsel %vm3816, %v3807, %v3823
    %v3825 = vsel %vm3815, %v3822, %v3824
    %v3826 = vsel %vm3814, %v3804, %v3807
    %v3827 = vsel %vm3817, %v3813, 1326507024
    %v3828 = vsel %vm3816, %v3810, %v3827
    %v3829 = vsel %vm3815, %v3826, %v3828
    %v3830 = vshll.u32 %v3790, 8
    %v3831 = vmul.u32.u64.compose %v3830, %v3829
    %v3832 = vextract.low.u32 %v3831
    %v3833 = vextract.high.u32 %v3831
    %v3834 = vmul.u32.u64.compose %v3830, %v3825
    %v3835 = vextract.low.u32 %v3834
    %v3836 = vextract.high.u32 %v3834
    %v3837 = vmul.u32 %v3830, %v3821
    %v3838 = vadd.s32 %v3833, %v3835
    %vm3839 = vc.u32 %v3833, %v3835
    %v3840 = vadd.s32 %v3836, 1
    %v3841 = vsel %vm3839, %v3840, %v3836
    %v3842 = vadd.s32 %v3837, %v3841
    %v3843 = vadd.s32 %v3842, 536870912
    %v3844 = vshrl.u32 %v3843, 30
    %v3845 = vshll.u32 %v3844, 30
    %v3846 = vsub.s32 %v3842, %v3845
    %vm3847 = vcmp.lt.s32.totalorder %v3846, 0
    %v3848 = vsub.s32 0, %v3846
    %v3849 = vsel %vm3847, %v3848, %v3846
    %v3850 = vclz %v3849
    %v3851 = vsub.s32 %v3850, 2
    %vm3852 = vcmp.gt.s32.totalorder 0, %v3851
    %v3853 = vsel %vm3852, 0, %v3851
    %v3854 = vsub.s32 32, %v3853
    %v3855 = vshll.u32 %v3846, %v3853
    %v3856 = vshrl.u32 %v3838, %v3854
    %v3857 = vor.u32 %v3855, %v3856
    %v3858 = vsub.s32 4294967266, %v3853
    %v3859 = vadd.s32 %v3858, 127
    %v3860 = vshll.u32 %v3859, 23
    %v3861 = vor.u32 4788187, %v3860
    %v3862 = vand.u32 2147483647, %v3861
    %v3864 = vcvt.s32.f32 %v3857
    %v3865 = vmul.f32 %v3864, %v3862
    %v3866 = vxor.u32 %v3865, 2147483648
    %v3867 = vsel %vm3784, %v3866, %v3865
    %v3868 = vsub.s32 4, %v3844
    %v3869 = vsel %vm3784, %v3868, %v3844
    %v3870 = vsel %vm3783, %v628, %v3867
    %v3871 = vsel %vm3783, 0, %v3869
    %v3872 = vcosq.f32.pop %v3870
    %v3873 = vsinq.f32.pop %v3870
    %vm3874 = vweird.f32 %v628
    %v3875 = vadd.s32 %v3871, 3
    %v3876 = vand.u32 %v3875, 3
    %vm3877 = vcmp.lt.s32.totalorder %v3876, 2
    %vm3878 = vcmp.eq.s32.totalorder %v3876, 0
    %v3879 = vxor.u32 %v3873, 2147483648
    %v3880 = vsel %vm3878, %v3872, %v3879
    %vm3881 = vcmp.eq.s32.totalorder %v3876, 2
    %v3882 = vxor.u32 %v3872, 2147483648
    %v3883 = vsel %vm3881, %v3882, %v3873
    %v3884 = vsel %vm3877, %v3880, %v3883
    %v3885 = vsel %vm3874, nan, %v3884
    %v3886 = vand.u32 2147483647, %v629
    %vm3887 = vcmp.le.f32.partialorder %v3886, 0.7853982
    %vm3888 = vcmp.lt.s32.totalorder %v629, 0
    %v3889 = vand.u32 %v629, 2139095040
    %v3890 = vshrl.u32 %v3889, 23
    %v3891 = vsub.s32 %v3890, 127
    %v3892 = vand.u32 2147483647, %v629
    %v3893 = vand.u32 %v3892, 8388607
    %v3894 = vor.u32 %v3893, 8388608
    %v3895 = vsub.s32 0, %v3894
    %v3896 = vadd.s32 %v3891, 1
    %vm3897 = vcmp.gt.s32.totalorder %v3896, 0
    %v3898 = vsel %vm3897, %v3896, 0
    %v3899 = vshrl.u32 %v3898, 5
    %v3900 = vand.u32 %v3898, 31
    %v3901 = vsub.s32 32, %v3900
    %v3902 = vshrl.u32 683565275, %v3901
    %v3903 = vshll.u32 683565275, %v3900
    %v3904 = vshrl.u32 2475754826, %v3901
    %v3905 = vor.u32 %v3903, %v3904
    %v3906 = vshll.u32 2475754826, %v3900
    %v3907 = vshrl.u32 2131351028, %v3901
    %v3908 = vor.u32 %v3906, %v3907
    %v3909 = vshll.u32 2131351028, %v3900
    %v3910 = vshrl.u32 2102212464, %v3901
    %v3911 = vor.u32 %v3909, %v3910
    %v3912 = vshll.u32 2102212464, %v3900
    %v3913 = vshrl.u32 920167782, %v3901
    %v3914 = vor.u32 %v3912, %v3913
    %v3915 = vshll.u32 920167782, %v3900
    %v3916 = vshrl.u32 1326507024, %v3901
    %v3917 = vor.u32 %v3915, %v3916
    %vm3918 = vcmp.lt.s32.totalorder %v3899, 1
    %vm3919 = vcmp.lt.s32.totalorder %v3899, 2
    %vm3920 = vcmp.lt.s32.totalorder %v3899, 3
    %vm3921 = vcmp.lt.s32.totalorder %v3899, 4
    %v3922 = vsel %vm3918, %v3902, %v3905
    %v3923 = vsel %vm3921, %v3911, 2102212464
    %v3924 = vsel %vm3920, %v3908, %v3923
    %v3925 = vsel %vm3919, %v3922, %v3924
    %v3926 = vsel %vm3918, %v3905, %v3908
    %v3927 = vsel %vm3921, %v3914, 920167782
    %v3928 = vsel %vm3920, %v3911, %v3927
    %v3929 = vsel %vm3919, %v3926, %v3928
    %v3930 = vsel %vm3918, %v3908, %v3911
    %v3931 = vsel %vm3921, %v3917, 1326507024
    %v3932 = vsel %vm3920, %v3914, %v3931
    %v3933 = vsel %vm3919, %v3930, %v3932
    %v3934 = vshll.u32 %v3894, 8
    %v3935 = vmul.u32.u64.compose %v3934, %v3933
    %v3936 = vextract.low.u32 %v3935
    %v3937 = vextract.high.u32 %v3935
    %v3938 = vmul.u32.u64.compose %v3934, %v3929
    %v3939 = vextract.low.u32 %v3938
    %v3940 = vextract.high.u32 %v3938
    %v3941 = vmul.u32 %v3934, %v3925
    %v3942 = vadd.s32 %v3937, %v3939
    %vm3943 = vc.u32 %v3937, %v3939
    %v3944 = vadd.s32 %v3940, 1
    %v3945 = vsel %vm3943, %v3944, %v3940
    %v3946 = vadd.s32 %v3941, %v3945
    %v3947 = vadd.s32 %v3946, 536870912
    %v3948 = vshrl.u32 %v3947, 30
    %v3949 = vshll.u32 %v3948, 30
    %v3950 = vsub.s32 %v3946, %v3949
    %vm3951 = vcmp.lt.s32.totalorder %v3950, 0
    %v3952 = vsub.s32 0, %v3950
    %v3953 = vsel %vm3951, %v3952, %v3950
    %v3954 = vclz %v3953
    %v3955 = vsub.s32 %v3954, 2
    %vm3956 = vcmp.gt.s32.totalorder 0, %v3955
    %v3957 = vsel %vm3956, 0, %v3955
    %v3958 = vsub.s32 32, %v3957
    %v3959 = vshll.u32 %v3950, %v3957
    %v3960 = vshrl.u32 %v3942, %v3958
    %v3961 = vor.u32 %v3959, %v3960
    %v3962 = vsub.s32 4294967266, %v3957
    %v3963 = vadd.s32 %v3962, 127
    %v3964 = vshll.u32 %v3963, 23
    %v3965 = vor.u32 4788187, %v3964
    %v3966 = vand.u32 2147483647, %v3965
    %v3968 = vcvt.s32.f32 %v3961
    %v3969 = vmul.f32 %v3968, %v3966
    %v3970 = vxor.u32 %v3969, 2147483648
    %v3971 = vsel %vm3888, %v3970, %v3969
    %v3972 = vsub.s32 4, %v3948
    %v3973 = vsel %vm3888, %v3972, %v3948
    %v3974 = vsel %vm3887, %v629, %v3971
    %v3975 = vsel %vm3887, 0, %v3973
    %v3976 = vcosq.f32.pop %v3974
    %v3977 = vsinq.f32.pop %v3974
    %vm3978 = vweird.f32 %v629
    %v3979 = vadd.s32 %v3975, 3
    %v3980 = vand.u32 %v3979, 3
    %vm3981 = vcmp.lt.s32.totalorder %v3980, 2
    %vm3982 = vcmp.eq.s32.totalorder %v3980, 0
    %v3983 = vxor.u32 %v3977, 2147483648
    %v3984 = vsel %vm3982, %v3976, %v3983
    %vm3985 = vcmp.eq.s32.totalorder %v3980, 2
    %v3986 = vxor.u32 %v3976, 2147483648
    %v3987 = vsel %vm3985, %v3986, %v3977
    %v3988 = vsel %vm3981, %v3984, %v3987
    %v3989 = vsel %vm3978, nan, %v3988
    %v3990 = vand.u32 2147483647, %v630
    %vm3991 = vcmp.le.f32.partialorder %v3990, 0.7853982
    %vm3992 = vcmp.lt.s32.totalorder %v630, 0
    %v3993 = vand.u32 %v630, 2139095040
    %v3994 = vshrl.u32 %v3993, 23
    %v3995 = vsub.s32 %v3994, 127
    %v3996 = vand.u32 2147483647, %v630
    %v3997 = vand.u32 %v3996, 8388607
    %v3998 = vor.u32 %v3997, 8388608
    %v3999 = vsub.s32 0, %v3998
    %v4000 = vadd.s32 %v3995, 1
    %vm4001 = vcmp.gt.s32.totalorder %v4000, 0
    %v4002 = vsel %vm4001, %v4000, 0
    %v4003 = vshrl.u32 %v4002, 5
    %v4004 = vand.u32 %v4002, 31
    %v4005 = vsub.s32 32, %v4004
    %v4006 = vshrl.u32 683565275, %v4005
    %v4007 = vshll.u32 683565275, %v4004
    %v4008 = vshrl.u32 2475754826, %v4005
    %v4009 = vor.u32 %v4007, %v4008
    %v4010 = vshll.u32 2475754826, %v4004
    %v4011 = vshrl.u32 2131351028, %v4005
    %v4012 = vor.u32 %v4010, %v4011
    %v4013 = vshll.u32 2131351028, %v4004
    %v4014 = vshrl.u32 2102212464, %v4005
    %v4015 = vor.u32 %v4013, %v4014
    %v4016 = vshll.u32 2102212464, %v4004
    %v4017 = vshrl.u32 920167782, %v4005
    %v4018 = vor.u32 %v4016, %v4017
    %v4019 = vshll.u32 920167782, %v4004
    %v4020 = vshrl.u32 1326507024, %v4005
    %v4021 = vor.u32 %v4019, %v4020
    %vm4022 = vcmp.lt.s32.totalorder %v4003, 1
    %vm4023 = vcmp.lt.s32.totalorder %v4003, 2
    %vm4024 = vcmp.lt.s32.totalorder %v4003, 3
    %vm4025 = vcmp.lt.s32.totalorder %v4003, 4
    %v4026 = vsel %vm4022, %v4006, %v4009
    %v4027 = vsel %vm4025, %v4015, 2102212464
    %v4028 = vsel %vm4024, %v4012, %v4027
    %v4029 = vsel %vm4023, %v4026, %v4028
    %v4030 = vsel %vm4022, %v4009, %v4012
    %v4031 = vsel %vm4025, %v4018, 920167782
    %v4032 = vsel %vm4024, %v4015, %v4031
    %v4033 = vsel %vm4023, %v4030, %v4032
    %v4034 = vsel %vm4022, %v4012, %v4015
    %v4035 = vsel %vm4025, %v4021, 1326507024
    %v4036 = vsel %vm4024, %v4018, %v4035
    %v4037 = vsel %vm4023, %v4034, %v4036
    %v4038 = vshll.u32 %v3998, 8
    %v4039 = vmul.u32.u64.compose %v4038, %v4037
    %v4040 = vextract.low.u32 %v4039
    %v4041 = vextract.high.u32 %v4039
    %v4042 = vmul.u32.u64.compose %v4038, %v4033
    %v4043 = vextract.low.u32 %v4042
    %v4044 = vextract.high.u32 %v4042
    %v4045 = vmul.u32 %v4038, %v4029
    %v4046 = vadd.s32 %v4041, %v4043
    %vm4047 = vc.u32 %v4041, %v4043
    %v4048 = vadd.s32 %v4044, 1
    %v4049 = vsel %vm4047, %v4048, %v4044
    %v4050 = vadd.s32 %v4045, %v4049
    %v4051 = vadd.s32 %v4050, 536870912
    %v4052 = vshrl.u32 %v4051, 30
    %v4053 = vshll.u32 %v4052, 30
    %v4054 = vsub.s32 %v4050, %v4053
    %vm4055 = vcmp.lt.s32.totalorder %v4054, 0
    %v4056 = vsub.s32 0, %v4054
    %v4057 = vsel %vm4055, %v4056, %v4054
    %v4058 = vclz %v4057
    %v4059 = vsub.s32 %v4058, 2
    %vm4060 = vcmp.gt.s32.totalorder 0, %v4059
    %v4061 = vsel %vm4060, 0, %v4059
    %v4062 = vsub.s32 32, %v4061
    %v4063 = vshll.u32 %v4054, %v4061
    %v4064 = vshrl.u32 %v4046, %v4062
    %v4065 = vor.u32 %v4063, %v4064
    %v4066 = vsub.s32 4294967266, %v4061
    %v4067 = vadd.s32 %v4066, 127
    %v4068 = vshll.u32 %v4067, 23
    %v4069 = vor.u32 4788187, %v4068
    %v4070 = vand.u32 2147483647, %v4069
    %v4072 = vcvt.s32.f32 %v4065
    %v4073 = vmul.f32 %v4072, %v4070
    %v4074 = vxor.u32 %v4073, 2147483648
    %v4075 = vsel %vm3992, %v4074, %v4073
    %v4076 = vsub.s32 4, %v4052
    %v4077 = vsel %vm3992, %v4076, %v4052
    %v4078 = vsel %vm3991, %v630, %v4075
    %v4079 = vsel %vm3991, 0, %v4077
    %v4080 = vcosq.f32.pop %v4078
    %v4081 = vsinq.f32.pop %v4078
    %vm4082 = vweird.f32 %v630
    %v4083 = vadd.s32 %v4079, 3
    %v4084 = vand.u32 %v4083, 3
    %vm4085 = vcmp.lt.s32.totalorder %v4084, 2
    %vm4086 = vcmp.eq.s32.totalorder %v4084, 0
    %v4087 = vxor.u32 %v4081, 2147483648
    %v4088 = vsel %vm4086, %v4080, %v4087
    %vm4089 = vcmp.eq.s32.totalorder %v4084, 2
    %v4090 = vxor.u32 %v4080, 2147483648
    %v4091 = vsel %vm4089, %v4090, %v4081
    %v4092 = vsel %vm4085, %v4088, %v4091
    %v4093 = vsel %vm4082, nan, %v4092
    %v4094 = vand.u32 2147483647, %v631
    %vm4095 = vcmp.le.f32.partialorder %v4094, 0.7853982
    %vm4096 = vcmp.lt.s32.totalorder %v631, 0
    %v4097 = vand.u32 %v631, 2139095040
    %v4098 = vshrl.u32 %v4097, 23
    %v4099 = vsub.s32 %v4098, 127
    %v4100 = vand.u32 2147483647, %v631
    %v4101 = vand.u32 %v4100, 8388607
    %v4102 = vor.u32 %v4101, 8388608
    %v4103 = vsub.s32 0, %v4102
    %v4104 = vadd.s32 %v4099, 1
    %vm4105 = vcmp.gt.s32.totalorder %v4104, 0
    %v4106 = vsel %vm4105, %v4104, 0
    %v4107 = vshrl.u32 %v4106, 5
    %v4108 = vand.u32 %v4106, 31
    %v4109 = vsub.s32 32, %v4108
    %v4110 = vshrl.u32 683565275, %v4109
    %v4111 = vshll.u32 683565275, %v4108
    %v4112 = vshrl.u32 2475754826, %v4109
    %v4113 = vor.u32 %v4111, %v4112
    %v4114 = vshll.u32 2475754826, %v4108
    %v4115 = vshrl.u32 2131351028, %v4109
    %v4116 = vor.u32 %v4114, %v4115
    %v4117 = vshll.u32 2131351028, %v4108
    %v4118 = vshrl.u32 2102212464, %v4109
    %v4119 = vor.u32 %v4117, %v4118
    %v4120 = vshll.u32 2102212464, %v4108
    %v4121 = vshrl.u32 920167782, %v4109
    %v4122 = vor.u32 %v4120, %v4121
    %v4123 = vshll.u32 920167782, %v4108
    %v4124 = vshrl.u32 1326507024, %v4109
    %v4125 = vor.u32 %v4123, %v4124
    %vm4126 = vcmp.lt.s32.totalorder %v4107, 1
    %vm4127 = vcmp.lt.s32.totalorder %v4107, 2
    %vm4128 = vcmp.lt.s32.totalorder %v4107, 3
    %vm4129 = vcmp.lt.s32.totalorder %v4107, 4
    %v4130 = vsel %vm4126, %v4110, %v4113
    %v4131 = vsel %vm4129, %v4119, 2102212464
    %v4132 = vsel %vm4128, %v4116, %v4131
    %v4133 = vsel %vm4127, %v4130, %v4132
    %v4134 = vsel %vm4126, %v4113, %v4116
    %v4135 = vsel %vm4129, %v4122, 920167782
    %v4136 = vsel %vm4128, %v4119, %v4135
    %v4137 = vsel %vm4127, %v4134, %v4136
    %v4138 = vsel %vm4126, %v4116, %v4119
    %v4139 = vsel %vm4129, %v4125, 1326507024
    %v4140 = vsel %vm4128, %v4122, %v4139
    %v4141 = vsel %vm4127, %v4138, %v4140
    %v4142 = vshll.u32 %v4102, 8
    %v4143 = vmul.u32.u64.compose %v4142, %v4141
    %v4144 = vextract.low.u32 %v4143
    %v4145 = vextract.high.u32 %v4143
    %v4146 = vmul.u32.u64.compose %v4142, %v4137
    %v4147 = vextract.low.u32 %v4146
    %v4148 = vextract.high.u32 %v4146
    %v4149 = vmul.u32 %v4142, %v4133
    %v4150 = vadd.s32 %v4145, %v4147
    %vm4151 = vc.u32 %v4145, %v4147
    %v4152 = vadd.s32 %v4148, 1
    %v4153 = vsel %vm4151, %v4152, %v4148
    %v4154 = vadd.s32 %v4149, %v4153
    %v4155 = vadd.s32 %v4154, 536870912
    %v4156 = vshrl.u32 %v4155, 30
    %v4157 = vshll.u32 %v4156, 30
    %v4158 = vsub.s32 %v4154, %v4157
    %vm4159 = vcmp.lt.s32.totalorder %v4158, 0
    %v4160 = vsub.s32 0, %v4158
    %v4161 = vsel %vm4159, %v4160, %v4158
    %v4162 = vclz %v4161
    %v4163 = vsub.s32 %v4162, 2
    %vm4164 = vcmp.gt.s32.totalorder 0, %v4163
    %v4165 = vsel %vm4164, 0, %v4163
    %v4166 = vsub.s32 32, %v4165
    %v4167 = vshll.u32 %v4158, %v4165
    %v4168 = vshrl.u32 %v4150, %v4166
    %v4169 = vor.u32 %v4167, %v4168
    %v4170 = vsub.s32 4294967266, %v4165
    %v4171 = vadd.s32 %v4170, 127
    %v4172 = vshll.u32 %v4171, 23
    %v4173 = vor.u32 4788187, %v4172
    %v4174 = vand.u32 2147483647, %v4173
    %v4176 = vcvt.s32.f32 %v4169
    %v4177 = vmul.f32 %v4176, %v4174
    %v4178 = vxor.u32 %v4177, 2147483648
    %v4179 = vsel %vm4096, %v4178, %v4177
    %v4180 = vsub.s32 4, %v4156
    %v4181 = vsel %vm4096, %v4180, %v4156
    %v4182 = vsel %vm4095, %v631, %v4179
    %v4183 = vsel %vm4095, 0, %v4181
    %v4184 = vcosq.f32.pop %v4182
    %v4185 = vsinq.f32.pop %v4182
    %vm4186 = vweird.f32 %v631
    %v4187 = vadd.s32 %v4183, 3
    %v4188 = vand.u32 %v4187, 3
    %vm4189 = vcmp.lt.s32.totalorder %v4188, 2
    %vm4190 = vcmp.eq.s32.totalorder %v4188, 0
    %v4191 = vxor.u32 %v4185, 2147483648
    %v4192 = vsel %vm4190, %v4184, %v4191
    %vm4193 = vcmp.eq.s32.totalorder %v4188, 2
    %v4194 = vxor.u32 %v4184, 2147483648
    %v4195 = vsel %vm4193, %v4194, %v4185
    %v4196 = vsel %vm4189, %v4192, %v4195
    %v4197 = vsel %vm4186, nan, %v4196
    %v4198 = vand.u32 2147483647, %v632
    %vm4199 = vcmp.le.f32.partialorder %v4198, 0.7853982
    %vm4200 = vcmp.lt.s32.totalorder %v632, 0
    %v4201 = vand.u32 %v632, 2139095040
    %v4202 = vshrl.u32 %v4201, 23
    %v4203 = vsub.s32 %v4202, 127
    %v4204 = vand.u32 2147483647, %v632
    %v4205 = vand.u32 %v4204, 8388607
    %v4206 = vor.u32 %v4205, 8388608
    %v4207 = vsub.s32 0, %v4206
    %v4208 = vadd.s32 %v4203, 1
    %vm4209 = vcmp.gt.s32.totalorder %v4208, 0
    %v4210 = vsel %vm4209, %v4208, 0
    %v4211 = vshrl.u32 %v4210, 5
    %v4212 = vand.u32 %v4210, 31
    %v4213 = vsub.s32 32, %v4212
    %v4214 = vshrl.u32 683565275, %v4213
    %v4215 = vshll.u32 683565275, %v4212
    %v4216 = vshrl.u32 2475754826, %v4213
    %v4217 = vor.u32 %v4215, %v4216
    %v4218 = vshll.u32 2475754826, %v4212
    %v4219 = vshrl.u32 2131351028, %v4213
    %v4220 = vor.u32 %v4218, %v4219
    %v4221 = vshll.u32 2131351028, %v4212
    %v4222 = vshrl.u32 2102212464, %v4213
    %v4223 = vor.u32 %v4221, %v4222
    %v4224 = vshll.u32 2102212464, %v4212
    %v4225 = vshrl.u32 920167782, %v4213
    %v4226 = vor.u32 %v4224, %v4225
    %v4227 = vshll.u32 920167782, %v4212
    %v4228 = vshrl.u32 1326507024, %v4213
    %v4229 = vor.u32 %v4227, %v4228
    %vm4230 = vcmp.lt.s32.totalorder %v4211, 1
    %vm4231 = vcmp.lt.s32.totalorder %v4211, 2
    %vm4232 = vcmp.lt.s32.totalorder %v4211, 3
    %vm4233 = vcmp.lt.s32.totalorder %v4211, 4
    %v4234 = vsel %vm4230, %v4214, %v4217
    %v4235 = vsel %vm4233, %v4223, 2102212464
    %v4236 = vsel %vm4232, %v4220, %v4235
    %v4237 = vsel %vm4231, %v4234, %v4236
    %v4238 = vsel %vm4230, %v4217, %v4220
    %v4239 = vsel %vm4233, %v4226, 920167782
    %v4240 = vsel %vm4232, %v4223, %v4239
    %v4241 = vsel %vm4231, %v4238, %v4240
    %v4242 = vsel %vm4230, %v4220, %v4223
    %v4243 = vsel %vm4233, %v4229, 1326507024
    %v4244 = vsel %vm4232, %v4226, %v4243
    %v4245 = vsel %vm4231, %v4242, %v4244
    %v4246 = vshll.u32 %v4206, 8
    %v4247 = vmul.u32.u64.compose %v4246, %v4245
    %v4248 = vextract.low.u32 %v4247
    %v4249 = vextract.high.u32 %v4247
    %v4250 = vmul.u32.u64.compose %v4246, %v4241
    %v4251 = vextract.low.u32 %v4250
    %v4252 = vextract.high.u32 %v4250
    %v4253 = vmul.u32 %v4246, %v4237
    %v4254 = vadd.s32 %v4249, %v4251
    %vm4255 = vc.u32 %v4249, %v4251
    %v4256 = vadd.s32 %v4252, 1
    %v4257 = vsel %vm4255, %v4256, %v4252
    %v4258 = vadd.s32 %v4253, %v4257
    %v4259 = vadd.s32 %v4258, 536870912
    %v4260 = vshrl.u32 %v4259, 30
    %v4261 = vshll.u32 %v4260, 30
    %v4262 = vsub.s32 %v4258, %v4261
    %vm4263 = vcmp.lt.s32.totalorder %v4262, 0
    %v4264 = vsub.s32 0, %v4262
    %v4265 = vsel %vm4263, %v4264, %v4262
    %v4266 = vclz %v4265
    %v4267 = vsub.s32 %v4266, 2
    %vm4268 = vcmp.gt.s32.totalorder 0, %v4267
    %v4269 = vsel %vm4268, 0, %v4267
    %v4270 = vsub.s32 32, %v4269
    %v4271 = vshll.u32 %v4262, %v4269
    %v4272 = vshrl.u32 %v4254, %v4270
    %v4273 = vor.u32 %v4271, %v4272
    %v4274 = vsub.s32 4294967266, %v4269
    %v4275 = vadd.s32 %v4274, 127
    %v4276 = vshll.u32 %v4275, 23
    %v4277 = vor.u32 4788187, %v4276
    %v4278 = vand.u32 2147483647, %v4277
    %v4280 = vcvt.s32.f32 %v4273
    %v4281 = vmul.f32 %v4280, %v4278
    %v4282 = vxor.u32 %v4281, 2147483648
    %v4283 = vsel %vm4200, %v4282, %v4281
    %v4284 = vsub.s32 4, %v4260
    %v4285 = vsel %vm4200, %v4284, %v4260
    %v4286 = vsel %vm4199, %v632, %v4283
    %v4287 = vsel %vm4199, 0, %v4285
    %v4288 = vcosq.f32.pop %v4286
    %v4289 = vsinq.f32.pop %v4286
    %vm4290 = vweird.f32 %v632
    %v4291 = vadd.s32 %v4287, 3
    %v4292 = vand.u32 %v4291, 3
    %vm4293 = vcmp.lt.s32.totalorder %v4292, 2
    %vm4294 = vcmp.eq.s32.totalorder %v4292, 0
    %v4295 = vxor.u32 %v4289, 2147483648
    %v4296 = vsel %vm4294, %v4288, %v4295
    %vm4297 = vcmp.eq.s32.totalorder %v4292, 2
    %v4298 = vxor.u32 %v4288, 2147483648
    %v4299 = vsel %vm4297, %v4298, %v4289
    %v4300 = vsel %vm4293, %v4296, %v4299
    %v4301 = vsel %vm4290, nan, %v4300
    %v4302 = vand.u32 2147483647, %v633
    %vm4303 = vcmp.le.f32.partialorder %v4302, 0.7853982
    %vm4304 = vcmp.lt.s32.totalorder %v633, 0
    %v4305 = vand.u32 %v633, 2139095040
    %v4306 = vshrl.u32 %v4305, 23
    %v4307 = vsub.s32 %v4306, 127
    %v4308 = vand.u32 2147483647, %v633
    %v4309 = vand.u32 %v4308, 8388607
    %v4310 = vor.u32 %v4309, 8388608
    %v4311 = vsub.s32 0, %v4310
    %v4312 = vadd.s32 %v4307, 1
    %vm4313 = vcmp.gt.s32.totalorder %v4312, 0
    %v4314 = vsel %vm4313, %v4312, 0
    %v4315 = vshrl.u32 %v4314, 5
    %v4316 = vand.u32 %v4314, 31
    %v4317 = vsub.s32 32, %v4316
    %v4318 = vshrl.u32 683565275, %v4317
    %v4319 = vshll.u32 683565275, %v4316
    %v4320 = vshrl.u32 2475754826, %v4317
    %v4321 = vor.u32 %v4319, %v4320
    %v4322 = vshll.u32 2475754826, %v4316
    %v4323 = vshrl.u32 2131351028, %v4317
    %v4324 = vor.u32 %v4322, %v4323
    %v4325 = vshll.u32 2131351028, %v4316
    %v4326 = vshrl.u32 2102212464, %v4317
    %v4327 = vor.u32 %v4325, %v4326
    %v4328 = vshll.u32 2102212464, %v4316
    %v4329 = vshrl.u32 920167782, %v4317
    %v4330 = vor.u32 %v4328, %v4329
    %v4331 = vshll.u32 920167782, %v4316
    %v4332 = vshrl.u32 1326507024, %v4317
    %v4333 = vor.u32 %v4331, %v4332
    %vm4334 = vcmp.lt.s32.totalorder %v4315, 1
    %vm4335 = vcmp.lt.s32.totalorder %v4315, 2
    %vm4336 = vcmp.lt.s32.totalorder %v4315, 3
    %vm4337 = vcmp.lt.s32.totalorder %v4315, 4
    %v4338 = vsel %vm4334, %v4318, %v4321
    %v4339 = vsel %vm4337, %v4327, 2102212464
    %v4340 = vsel %vm4336, %v4324, %v4339
    %v4341 = vsel %vm4335, %v4338, %v4340
    %v4342 = vsel %vm4334, %v4321, %v4324
    %v4343 = vsel %vm4337, %v4330, 920167782
    %v4344 = vsel %vm4336, %v4327, %v4343
    %v4345 = vsel %vm4335, %v4342, %v4344
    %v4346 = vsel %vm4334, %v4324, %v4327
    %v4347 = vsel %vm4337, %v4333, 1326507024
    %v4348 = vsel %vm4336, %v4330, %v4347
    %v4349 = vsel %vm4335, %v4346, %v4348
    %v4350 = vshll.u32 %v4310, 8
    %v4351 = vmul.u32.u64.compose %v4350, %v4349
    %v4352 = vextract.low.u32 %v4351
    %v4353 = vextract.high.u32 %v4351
    %v4354 = vmul.u32.u64.compose %v4350, %v4345
    %v4355 = vextract.low.u32 %v4354
    %v4356 = vextract.high.u32 %v4354
    %v4357 = vmul.u32 %v4350, %v4341
    %v4358 = vadd.s32 %v4353, %v4355
    %vm4359 = vc.u32 %v4353, %v4355
    %v4360 = vadd.s32 %v4356, 1
    %v4361 = vsel %vm4359, %v4360, %v4356
    %v4362 = vadd.s32 %v4357, %v4361
    %v4363 = vadd.s32 %v4362, 536870912
    %v4364 = vshrl.u32 %v4363, 30
    %v4365 = vshll.u32 %v4364, 30
    %v4366 = vsub.s32 %v4362, %v4365
    %vm4367 = vcmp.lt.s32.totalorder %v4366, 0
    %v4368 = vsub.s32 0, %v4366
    %v4369 = vsel %vm4367, %v4368, %v4366
    %v4370 = vclz %v4369
    %v4371 = vsub.s32 %v4370, 2
    %vm4372 = vcmp.gt.s32.totalorder 0, %v4371
    %v4373 = vsel %vm4372, 0, %v4371
    %v4374 = vsub.s32 32, %v4373
    %v4375 = vshll.u32 %v4366, %v4373
    %v4376 = vshrl.u32 %v4358, %v4374
    %v4377 = vor.u32 %v4375, %v4376
    %v4378 = vsub.s32 4294967266, %v4373
    %v4379 = vadd.s32 %v4378, 127
    %v4380 = vshll.u32 %v4379, 23
    %v4381 = vor.u32 4788187, %v4380
    %v4382 = vand.u32 2147483647, %v4381
    %v4384 = vcvt.s32.f32 %v4377
    %v4385 = vmul.f32 %v4384, %v4382
    %v4386 = vxor.u32 %v4385, 2147483648
    %v4387 = vsel %vm4304, %v4386, %v4385
    %v4388 = vsub.s32 4, %v4364
    %v4389 = vsel %vm4304, %v4388, %v4364
    %v4390 = vsel %vm4303, %v633, %v4387
    %v4391 = vsel %vm4303, 0, %v4389
    %v4392 = vcosq.f32.pop %v4390
    %v4393 = vsinq.f32.pop %v4390
    %vm4394 = vweird.f32 %v633
    %v4395 = vadd.s32 %v4391, 3
    %v4396 = vand.u32 %v4395, 3
    %vm4397 = vcmp.lt.s32.totalorder %v4396, 2
    %vm4398 = vcmp.eq.s32.totalorder %v4396, 0
    %v4399 = vxor.u32 %v4393, 2147483648
    %v4400 = vsel %vm4398, %v4392, %v4399
    %vm4401 = vcmp.eq.s32.totalorder %v4396, 2
    %v4402 = vxor.u32 %v4392, 2147483648
    %v4403 = vsel %vm4401, %v4402, %v4393
    %v4404 = vsel %vm4397, %v4400, %v4403
    %v4405 = vsel %vm4394, nan, %v4404
    %v4406 = vand.u32 2147483647, %v634
    %vm4407 = vcmp.le.f32.partialorder %v4406, 0.7853982
    %vm4408 = vcmp.lt.s32.totalorder %v634, 0
    %v4409 = vand.u32 %v634, 2139095040
    %v4410 = vshrl.u32 %v4409, 23
    %v4411 = vsub.s32 %v4410, 127
    %v4412 = vand.u32 2147483647, %v634
    %v4413 = vand.u32 %v4412, 8388607
    %v4414 = vor.u32 %v4413, 8388608
    %v4415 = vsub.s32 0, %v4414
    %v4416 = vadd.s32 %v4411, 1
    %vm4417 = vcmp.gt.s32.totalorder %v4416, 0
    %v4418 = vsel %vm4417, %v4416, 0
    %v4419 = vshrl.u32 %v4418, 5
    %v4420 = vand.u32 %v4418, 31
    %v4421 = vsub.s32 32, %v4420
    %v4422 = vshrl.u32 683565275, %v4421
    %v4423 = vshll.u32 683565275, %v4420
    %v4424 = vshrl.u32 2475754826, %v4421
    %v4425 = vor.u32 %v4423, %v4424
    %v4426 = vshll.u32 2475754826, %v4420
    %v4427 = vshrl.u32 2131351028, %v4421
    %v4428 = vor.u32 %v4426, %v4427
    %v4429 = vshll.u32 2131351028, %v4420
    %v4430 = vshrl.u32 2102212464, %v4421
    %v4431 = vor.u32 %v4429, %v4430
    %v4432 = vshll.u32 2102212464, %v4420
    %v4433 = vshrl.u32 920167782, %v4421
    %v4434 = vor.u32 %v4432, %v4433
    %v4435 = vshll.u32 920167782, %v4420
    %v4436 = vshrl.u32 1326507024, %v4421
    %v4437 = vor.u32 %v4435, %v4436
    %vm4438 = vcmp.lt.s32.totalorder %v4419, 1
    %vm4439 = vcmp.lt.s32.totalorder %v4419, 2
    %vm4440 = vcmp.lt.s32.totalorder %v4419, 3
    %vm4441 = vcmp.lt.s32.totalorder %v4419, 4
    %v4442 = vsel %vm4438, %v4422, %v4425
    %v4443 = vsel %vm4441, %v4431, 2102212464
    %v4444 = vsel %vm4440, %v4428, %v4443
    %v4445 = vsel %vm4439, %v4442, %v4444
    %v4446 = vsel %vm4438, %v4425, %v4428
    %v4447 = vsel %vm4441, %v4434, 920167782
    %v4448 = vsel %vm4440, %v4431, %v4447
    %v4449 = vsel %vm4439, %v4446, %v4448
    %v4450 = vsel %vm4438, %v4428, %v4431
    %v4451 = vsel %vm4441, %v4437, 1326507024
    %v4452 = vsel %vm4440, %v4434, %v4451
    %v4453 = vsel %vm4439, %v4450, %v4452
    %v4454 = vshll.u32 %v4414, 8
    %v4455 = vmul.u32.u64.compose %v4454, %v4453
    %v4456 = vextract.low.u32 %v4455
    %v4457 = vextract.high.u32 %v4455
    %v4458 = vmul.u32.u64.compose %v4454, %v4449
    %v4459 = vextract.low.u32 %v4458
    %v4460 = vextract.high.u32 %v4458
    %v4461 = vmul.u32 %v4454, %v4445
    %v4462 = vadd.s32 %v4457, %v4459
    %vm4463 = vc.u32 %v4457, %v4459
    %v4464 = vadd.s32 %v4460, 1
    %v4465 = vsel %vm4463, %v4464, %v4460
    %v4466 = vadd.s32 %v4461, %v4465
    %v4467 = vadd.s32 %v4466, 536870912
    %v4468 = vshrl.u32 %v4467, 30
    %v4469 = vshll.u32 %v4468, 30
    %v4470 = vsub.s32 %v4466, %v4469
    %vm4471 = vcmp.lt.s32.totalorder %v4470, 0
    %v4472 = vsub.s32 0, %v4470
    %v4473 = vsel %vm4471, %v4472, %v4470
    %v4474 = vclz %v4473
    %v4475 = vsub.s32 %v4474, 2
    %vm4476 = vcmp.gt.s32.totalorder 0, %v4475
    %v4477 = vsel %vm4476, 0, %v4475
    %v4478 = vsub.s32 32, %v4477
    %v4479 = vshll.u32 %v4470, %v4477
    %v4480 = vshrl.u32 %v4462, %v4478
    %v4481 = vor.u32 %v4479, %v4480
    %v4482 = vsub.s32 4294967266, %v4477
    %v4483 = vadd.s32 %v4482, 127
    %v4484 = vshll.u32 %v4483, 23
    %v4485 = vor.u32 4788187, %v4484
    %v4486 = vand.u32 2147483647, %v4485
    %v4488 = vcvt.s32.f32 %v4481
    %v4489 = vmul.f32 %v4488, %v4486
    %v4490 = vxor.u32 %v4489, 2147483648
    %v4491 = vsel %vm4408, %v4490, %v4489
    %v4492 = vsub.s32 4, %v4468
    %v4493 = vsel %vm4408, %v4492, %v4468
    %v4494 = vsel %vm4407, %v634, %v4491
    %v4495 = vsel %vm4407, 0, %v4493
    %v4496 = vcosq.f32.pop %v4494
    %v4497 = vsinq.f32.pop %v4494
    %vm4498 = vweird.f32 %v634
    %v4499 = vadd.s32 %v4495, 3
    %v4500 = vand.u32 %v4499, 3
    %vm4501 = vcmp.lt.s32.totalorder %v4500, 2
    %vm4502 = vcmp.eq.s32.totalorder %v4500, 0
    %v4503 = vxor.u32 %v4497, 2147483648
    %v4504 = vsel %vm4502, %v4496, %v4503
    %vm4505 = vcmp.eq.s32.totalorder %v4500, 2
    %v4506 = vxor.u32 %v4496, 2147483648
    %v4507 = vsel %vm4505, %v4506, %v4497
    %v4508 = vsel %vm4501, %v4504, %v4507
    %v4509 = vsel %vm4498, nan, %v4508
    %v4510 = vand.u32 2147483647, %v635
    %vm4511 = vcmp.le.f32.partialorder %v4510, 0.7853982
    %vm4512 = vcmp.lt.s32.totalorder %v635, 0
    %v4513 = vand.u32 %v635, 2139095040
    %v4514 = vshrl.u32 %v4513, 23
    %v4515 = vsub.s32 %v4514, 127
    %v4516 = vand.u32 2147483647, %v635
    %v4517 = vand.u32 %v4516, 8388607
    %v4518 = vor.u32 %v4517, 8388608
    %v4519 = vsub.s32 0, %v4518
    %v4520 = vadd.s32 %v4515, 1
    %vm4521 = vcmp.gt.s32.totalorder %v4520, 0
    %v4522 = vsel %vm4521, %v4520, 0
    %v4523 = vshrl.u32 %v4522, 5
    %v4524 = vand.u32 %v4522, 31
    %v4525 = vsub.s32 32, %v4524
    %v4526 = vshrl.u32 683565275, %v4525
    %v4527 = vshll.u32 683565275, %v4524
    %v4528 = vshrl.u32 2475754826, %v4525
    %v4529 = vor.u32 %v4527, %v4528
    %v4530 = vshll.u32 2475754826, %v4524
    %v4531 = vshrl.u32 2131351028, %v4525
    %v4532 = vor.u32 %v4530, %v4531
    %v4533 = vshll.u32 2131351028, %v4524
    %v4534 = vshrl.u32 2102212464, %v4525
    %v4535 = vor.u32 %v4533, %v4534
    %v4536 = vshll.u32 2102212464, %v4524
    %v4537 = vshrl.u32 920167782, %v4525
    %v4538 = vor.u32 %v4536, %v4537
    %v4539 = vshll.u32 920167782, %v4524
    %v4540 = vshrl.u32 1326507024, %v4525
    %v4541 = vor.u32 %v4539, %v4540
    %vm4542 = vcmp.lt.s32.totalorder %v4523, 1
    %vm4543 = vcmp.lt.s32.totalorder %v4523, 2
    %vm4544 = vcmp.lt.s32.totalorder %v4523, 3
    %vm4545 = vcmp.lt.s32.totalorder %v4523, 4
    %v4546 = vsel %vm4542, %v4526, %v4529
    %v4547 = vsel %vm4545, %v4535, 2102212464
    %v4548 = vsel %vm4544, %v4532, %v4547
    %v4549 = vsel %vm4543, %v4546, %v4548
    %v4550 = vsel %vm4542, %v4529, %v4532
    %v4551 = vsel %vm4545, %v4538, 920167782
    %v4552 = vsel %vm4544, %v4535, %v4551
    %v4553 = vsel %vm4543, %v4550, %v4552
    %v4554 = vsel %vm4542, %v4532, %v4535
    %v4555 = vsel %vm4545, %v4541, 1326507024
    %v4556 = vsel %vm4544, %v4538, %v4555
    %v4557 = vsel %vm4543, %v4554, %v4556
    %v4558 = vshll.u32 %v4518, 8
    %v4559 = vmul.u32.u64.compose %v4558, %v4557
    %v4560 = vextract.low.u32 %v4559
    %v4561 = vextract.high.u32 %v4559
    %v4562 = vmul.u32.u64.compose %v4558, %v4553
    %v4563 = vextract.low.u32 %v4562
    %v4564 = vextract.high.u32 %v4562
    %v4565 = vmul.u32 %v4558, %v4549
    %v4566 = vadd.s32 %v4561, %v4563
    %vm4567 = vc.u32 %v4561, %v4563
    %v4568 = vadd.s32 %v4564, 1
    %v4569 = vsel %vm4567, %v4568, %v4564
    %v4570 = vadd.s32 %v4565, %v4569
    %v4571 = vadd.s32 %v4570, 536870912
    %v4572 = vshrl.u32 %v4571, 30
    %v4573 = vshll.u32 %v4572, 30
    %v4574 = vsub.s32 %v4570, %v4573
    %vm4575 = vcmp.lt.s32.totalorder %v4574, 0
    %v4576 = vsub.s32 0, %v4574
    %v4577 = vsel %vm4575, %v4576, %v4574
    %v4578 = vclz %v4577
    %v4579 = vsub.s32 %v4578, 2
    %vm4580 = vcmp.gt.s32.totalorder 0, %v4579
    %v4581 = vsel %vm4580, 0, %v4579
    %v4582 = vsub.s32 32, %v4581
    %v4583 = vshll.u32 %v4574, %v4581
    %v4584 = vshrl.u32 %v4566, %v4582
    %v4585 = vor.u32 %v4583, %v4584
    %v4586 = vsub.s32 4294967266, %v4581
    %v4587 = vadd.s32 %v4586, 127
    %v4588 = vshll.u32 %v4587, 23
    %v4589 = vor.u32 4788187, %v4588
    %v4590 = vand.u32 2147483647, %v4589
    %v4592 = vcvt.s32.f32 %v4585
    %v4593 = vmul.f32 %v4592, %v4590
    %v4594 = vxor.u32 %v4593, 2147483648
    %v4595 = vsel %vm4512, %v4594, %v4593
    %v4596 = vsub.s32 4, %v4572
    %v4597 = vsel %vm4512, %v4596, %v4572
    %v4598 = vsel %vm4511, %v635, %v4595
    %v4599 = vsel %vm4511, 0, %v4597
    %v4600 = vcosq.f32.pop %v4598
    %v4601 = vsinq.f32.pop %v4598
    %vm4602 = vweird.f32 %v635
    %v4603 = vadd.s32 %v4599, 3
    %v4604 = vand.u32 %v4603, 3
    %vm4605 = vcmp.lt.s32.totalorder %v4604, 2
    %vm4606 = vcmp.eq.s32.totalorder %v4604, 0
    %v4607 = vxor.u32 %v4601, 2147483648
    %v4608 = vsel %vm4606, %v4600, %v4607
    %vm4609 = vcmp.eq.s32.totalorder %v4604, 2
    %v4610 = vxor.u32 %v4600, 2147483648
    %v4611 = vsel %vm4609, %v4610, %v4601
    %v4612 = vsel %vm4605, %v4608, %v4611
    %v4613 = vsel %vm4602, nan, %v4612
    %v4614 = vand.u32 2147483647, %v636
    %vm4615 = vcmp.le.f32.partialorder %v4614, 0.7853982
    %vm4616 = vcmp.lt.s32.totalorder %v636, 0
    %v4617 = vand.u32 %v636, 2139095040
    %v4618 = vshrl.u32 %v4617, 23
    %v4619 = vsub.s32 %v4618, 127
    %v4620 = vand.u32 2147483647, %v636
    %v4621 = vand.u32 %v4620, 8388607
    %v4622 = vor.u32 %v4621, 8388608
    %v4623 = vsub.s32 0, %v4622
    %v4624 = vadd.s32 %v4619, 1
    %vm4625 = vcmp.gt.s32.totalorder %v4624, 0
    %v4626 = vsel %vm4625, %v4624, 0
    %v4627 = vshrl.u32 %v4626, 5
    %v4628 = vand.u32 %v4626, 31
    %v4629 = vsub.s32 32, %v4628
    %v4630 = vshrl.u32 683565275, %v4629
    %v4631 = vshll.u32 683565275, %v4628
    %v4632 = vshrl.u32 2475754826, %v4629
    %v4633 = vor.u32 %v4631, %v4632
    %v4634 = vshll.u32 2475754826, %v4628
    %v4635 = vshrl.u32 2131351028, %v4629
    %v4636 = vor.u32 %v4634, %v4635
    %v4637 = vshll.u32 2131351028, %v4628
    %v4638 = vshrl.u32 2102212464, %v4629
    %v4639 = vor.u32 %v4637, %v4638
    %v4640 = vshll.u32 2102212464, %v4628
    %v4641 = vshrl.u32 920167782, %v4629
    %v4642 = vor.u32 %v4640, %v4641
    %v4643 = vshll.u32 920167782, %v4628
    %v4644 = vshrl.u32 1326507024, %v4629
    %v4645 = vor.u32 %v4643, %v4644
    %vm4646 = vcmp.lt.s32.totalorder %v4627, 1
    %vm4647 = vcmp.lt.s32.totalorder %v4627, 2
    %vm4648 = vcmp.lt.s32.totalorder %v4627, 3
    %vm4649 = vcmp.lt.s32.totalorder %v4627, 4
    %v4650 = vsel %vm4646, %v4630, %v4633
    %v4651 = vsel %vm4649, %v4639, 2102212464
    %v4652 = vsel %vm4648, %v4636, %v4651
    %v4653 = vsel %vm4647, %v4650, %v4652
    %v4654 = vsel %vm4646, %v4633, %v4636
    %v4655 = vsel %vm4649, %v4642, 920167782
    %v4656 = vsel %vm4648, %v4639, %v4655
    %v4657 = vsel %vm4647, %v4654, %v4656
    %v4658 = vsel %vm4646, %v4636, %v4639
    %v4659 = vsel %vm4649, %v4645, 1326507024
    %v4660 = vsel %vm4648, %v4642, %v4659
    %v4661 = vsel %vm4647, %v4658, %v4660
    %v4662 = vshll.u32 %v4622, 8
    %v4663 = vmul.u32.u64.compose %v4662, %v4661
    %v4664 = vextract.low.u32 %v4663
    %v4665 = vextract.high.u32 %v4663
    %v4666 = vmul.u32.u64.compose %v4662, %v4657
    %v4667 = vextract.low.u32 %v4666
    %v4668 = vextract.high.u32 %v4666
    %v4669 = vmul.u32 %v4662, %v4653
    %v4670 = vadd.s32 %v4665, %v4667
    %vm4671 = vc.u32 %v4665, %v4667
    %v4672 = vadd.s32 %v4668, 1
    %v4673 = vsel %vm4671, %v4672, %v4668
    %v4674 = vadd.s32 %v4669, %v4673
    %v4675 = vadd.s32 %v4674, 536870912
    %v4676 = vshrl.u32 %v4675, 30
    %v4677 = vshll.u32 %v4676, 30
    %v4678 = vsub.s32 %v4674, %v4677
    %vm4679 = vcmp.lt.s32.totalorder %v4678, 0
    %v4680 = vsub.s32 0, %v4678
    %v4681 = vsel %vm4679, %v4680, %v4678
    %v4682 = vclz %v4681
    %v4683 = vsub.s32 %v4682, 2
    %vm4684 = vcmp.gt.s32.totalorder 0, %v4683
    %v4685 = vsel %vm4684, 0, %v4683
    %v4686 = vsub.s32 32, %v4685
    %v4687 = vshll.u32 %v4678, %v4685
    %v4688 = vshrl.u32 %v4670, %v4686
    %v4689 = vor.u32 %v4687, %v4688
    %v4690 = vsub.s32 4294967266, %v4685
    %v4691 = vadd.s32 %v4690, 127
    %v4692 = vshll.u32 %v4691, 23
    %v4693 = vor.u32 4788187, %v4692
    %v4694 = vand.u32 2147483647, %v4693
    %v4696 = vcvt.s32.f32 %v4689
    %v4697 = vmul.f32 %v4696, %v4694
    %v4698 = vxor.u32 %v4697, 2147483648
    %v4699 = vsel %vm4616, %v4698, %v4697
    %v4700 = vsub.s32 4, %v4676
    %v4701 = vsel %vm4616, %v4700, %v4676
    %v4702 = vsel %vm4615, %v636, %v4699
    %v4703 = vsel %vm4615, 0, %v4701
    %v4704 = vcosq.f32.pop %v4702
    %v4705 = vsinq.f32.pop %v4702
    %vm4706 = vweird.f32 %v636
    %v4707 = vadd.s32 %v4703, 3
    %v4708 = vand.u32 %v4707, 3
    %vm4709 = vcmp.lt.s32.totalorder %v4708, 2
    %vm4710 = vcmp.eq.s32.totalorder %v4708, 0
    %v4711 = vxor.u32 %v4705, 2147483648
    %v4712 = vsel %vm4710, %v4704, %v4711
    %vm4713 = vcmp.eq.s32.totalorder %v4708, 2
    %v4714 = vxor.u32 %v4704, 2147483648
    %v4715 = vsel %vm4713, %v4714, %v4705
    %v4716 = vsel %vm4709, %v4712, %v4715
    %v4717 = vsel %vm4706, nan, %v4716
    %v4718 = vand.u32 2147483647, %v637
    %vm4719 = vcmp.le.f32.partialorder %v4718, 0.7853982
    %vm4720 = vcmp.lt.s32.totalorder %v637, 0
    %v4721 = vand.u32 %v637, 2139095040
    %v4722 = vshrl.u32 %v4721, 23
    %v4723 = vsub.s32 %v4722, 127
    %v4724 = vand.u32 2147483647, %v637
    %v4725 = vand.u32 %v4724, 8388607
    %v4726 = vor.u32 %v4725, 8388608
    %v4727 = vsub.s32 0, %v4726
    %v4728 = vadd.s32 %v4723, 1
    %vm4729 = vcmp.gt.s32.totalorder %v4728, 0
    %v4730 = vsel %vm4729, %v4728, 0
    %v4731 = vshrl.u32 %v4730, 5
    %v4732 = vand.u32 %v4730, 31
    %v4733 = vsub.s32 32, %v4732
    %v4734 = vshrl.u32 683565275, %v4733
    %v4735 = vshll.u32 683565275, %v4732
    %v4736 = vshrl.u32 2475754826, %v4733
    %v4737 = vor.u32 %v4735, %v4736
    %v4738 = vshll.u32 2475754826, %v4732
    %v4739 = vshrl.u32 2131351028, %v4733
    %v4740 = vor.u32 %v4738, %v4739
    %v4741 = vshll.u32 2131351028, %v4732
    %v4742 = vshrl.u32 2102212464, %v4733
    %v4743 = vor.u32 %v4741, %v4742
    %v4744 = vshll.u32 2102212464, %v4732
    %v4745 = vshrl.u32 920167782, %v4733
    %v4746 = vor.u32 %v4744, %v4745
    %v4747 = vshll.u32 920167782, %v4732
    %v4748 = vshrl.u32 1326507024, %v4733
    %v4749 = vor.u32 %v4747, %v4748
    %vm4750 = vcmp.lt.s32.totalorder %v4731, 1
    %vm4751 = vcmp.lt.s32.totalorder %v4731, 2
    %vm4752 = vcmp.lt.s32.totalorder %v4731, 3
    %vm4753 = vcmp.lt.s32.totalorder %v4731, 4
    %v4754 = vsel %vm4750, %v4734, %v4737
    %v4755 = vsel %vm4753, %v4743, 2102212464
    %v4756 = vsel %vm4752, %v4740, %v4755
    %v4757 = vsel %vm4751, %v4754, %v4756
    %v4758 = vsel %vm4750, %v4737, %v4740
    %v4759 = vsel %vm4753, %v4746, 920167782
    %v4760 = vsel %vm4752, %v4743, %v4759
    %v4761 = vsel %vm4751, %v4758, %v4760
    %v4762 = vsel %vm4750, %v4740, %v4743
    %v4763 = vsel %vm4753, %v4749, 1326507024
    %v4764 = vsel %vm4752, %v4746, %v4763
    %v4765 = vsel %vm4751, %v4762, %v4764
    %v4766 = vshll.u32 %v4726, 8
    %v4767 = vmul.u32.u64.compose %v4766, %v4765
    %v4768 = vextract.low.u32 %v4767
    %v4769 = vextract.high.u32 %v4767
    %v4770 = vmul.u32.u64.compose %v4766, %v4761
    %v4771 = vextract.low.u32 %v4770
    %v4772 = vextract.high.u32 %v4770
    %v4773 = vmul.u32 %v4766, %v4757
    %v4774 = vadd.s32 %v4769, %v4771
    %vm4775 = vc.u32 %v4769, %v4771
    %v4776 = vadd.s32 %v4772, 1
    %v4777 = vsel %vm4775, %v4776, %v4772
    %v4778 = vadd.s32 %v4773, %v4777
    %v4779 = vadd.s32 %v4778, 536870912
    %v4780 = vshrl.u32 %v4779, 30
    %v4781 = vshll.u32 %v4780, 30
    %v4782 = vsub.s32 %v4778, %v4781
    %vm4783 = vcmp.lt.s32.totalorder %v4782, 0
    %v4784 = vsub.s32 0, %v4782
    %v4785 = vsel %vm4783, %v4784, %v4782
    %v4786 = vclz %v4785
    %v4787 = vsub.s32 %v4786, 2
    %vm4788 = vcmp.gt.s32.totalorder 0, %v4787
    %v4789 = vsel %vm4788, 0, %v4787
    %v4790 = vsub.s32 32, %v4789
    %v4791 = vshll.u32 %v4782, %v4789
    %v4792 = vshrl.u32 %v4774, %v4790
    %v4793 = vor.u32 %v4791, %v4792
    %v4794 = vsub.s32 4294967266, %v4789
    %v4795 = vadd.s32 %v4794, 127
    %v4796 = vshll.u32 %v4795, 23
    %v4797 = vor.u32 4788187, %v4796
    %v4798 = vand.u32 2147483647, %v4797
    %v4800 = vcvt.s32.f32 %v4793
    %v4801 = vmul.f32 %v4800, %v4798
    %v4802 = vxor.u32 %v4801, 2147483648
    %v4803 = vsel %vm4720, %v4802, %v4801
    %v4804 = vsub.s32 4, %v4780
    %v4805 = vsel %vm4720, %v4804, %v4780
    %v4806 = vsel %vm4719, %v637, %v4803
    %v4807 = vsel %vm4719, 0, %v4805
    %v4808 = vcosq.f32.pop %v4806
    %v4809 = vsinq.f32.pop %v4806
    %vm4810 = vweird.f32 %v637
    %v4811 = vadd.s32 %v4807, 3
    %v4812 = vand.u32 %v4811, 3
    %vm4813 = vcmp.lt.s32.totalorder %v4812, 2
    %vm4814 = vcmp.eq.s32.totalorder %v4812, 0
    %v4815 = vxor.u32 %v4809, 2147483648
    %v4816 = vsel %vm4814, %v4808, %v4815
    %vm4817 = vcmp.eq.s32.totalorder %v4812, 2
    %v4818 = vxor.u32 %v4808, 2147483648
    %v4819 = vsel %vm4817, %v4818, %v4809
    %v4820 = vsel %vm4813, %v4816, %v4819
    %v4821 = vsel %vm4810, nan, %v4820
    %v4822 = vand.u32 2147483647, %v638
    %vm4823 = vcmp.le.f32.partialorder %v4822, 0.7853982
    %vm4824 = vcmp.lt.s32.totalorder %v638, 0
    %v4825 = vand.u32 %v638, 2139095040
    %v4826 = vshrl.u32 %v4825, 23
    %v4827 = vsub.s32 %v4826, 127
    %v4828 = vand.u32 2147483647, %v638
    %v4829 = vand.u32 %v4828, 8388607
    %v4830 = vor.u32 %v4829, 8388608
    %v4831 = vsub.s32 0, %v4830
    %v4832 = vadd.s32 %v4827, 1
    %vm4833 = vcmp.gt.s32.totalorder %v4832, 0
    %v4834 = vsel %vm4833, %v4832, 0
    %v4835 = vshrl.u32 %v4834, 5
    %v4836 = vand.u32 %v4834, 31
    %v4837 = vsub.s32 32, %v4836
    %v4838 = vshrl.u32 683565275, %v4837
    %v4839 = vshll.u32 683565275, %v4836
    %v4840 = vshrl.u32 2475754826, %v4837
    %v4841 = vor.u32 %v4839, %v4840
    %v4842 = vshll.u32 2475754826, %v4836
    %v4843 = vshrl.u32 2131351028, %v4837
    %v4844 = vor.u32 %v4842, %v4843
    %v4845 = vshll.u32 2131351028, %v4836
    %v4846 = vshrl.u32 2102212464, %v4837
    %v4847 = vor.u32 %v4845, %v4846
    %v4848 = vshll.u32 2102212464, %v4836
    %v4849 = vshrl.u32 920167782, %v4837
    %v4850 = vor.u32 %v4848, %v4849
    %v4851 = vshll.u32 920167782, %v4836
    %v4852 = vshrl.u32 1326507024, %v4837
    %v4853 = vor.u32 %v4851, %v4852
    %vm4854 = vcmp.lt.s32.totalorder %v4835, 1
    %vm4855 = vcmp.lt.s32.totalorder %v4835, 2
    %vm4856 = vcmp.lt.s32.totalorder %v4835, 3
    %vm4857 = vcmp.lt.s32.totalorder %v4835, 4
    %v4858 = vsel %vm4854, %v4838, %v4841
    %v4859 = vsel %vm4857, %v4847, 2102212464
    %v4860 = vsel %vm4856, %v4844, %v4859
    %v4861 = vsel %vm4855, %v4858, %v4860
    %v4862 = vsel %vm4854, %v4841, %v4844
    %v4863 = vsel %vm4857, %v4850, 920167782
    %v4864 = vsel %vm4856, %v4847, %v4863
    %v4865 = vsel %vm4855, %v4862, %v4864
    %v4866 = vsel %vm4854, %v4844, %v4847
    %v4867 = vsel %vm4857, %v4853, 1326507024
    %v4868 = vsel %vm4856, %v4850, %v4867
    %v4869 = vsel %vm4855, %v4866, %v4868
    %v4870 = vshll.u32 %v4830, 8
    %v4871 = vmul.u32.u64.compose %v4870, %v4869
    %v4872 = vextract.low.u32 %v4871
    %v4873 = vextract.high.u32 %v4871
    %v4874 = vmul.u32.u64.compose %v4870, %v4865
    %v4875 = vextract.low.u32 %v4874
    %v4876 = vextract.high.u32 %v4874
    %v4877 = vmul.u32 %v4870, %v4861
    %v4878 = vadd.s32 %v4873, %v4875
    %vm4879 = vc.u32 %v4873, %v4875
    %v4880 = vadd.s32 %v4876, 1
    %v4881 = vsel %vm4879, %v4880, %v4876
    %v4882 = vadd.s32 %v4877, %v4881
    %v4883 = vadd.s32 %v4882, 536870912
    %v4884 = vshrl.u32 %v4883, 30
    %v4885 = vshll.u32 %v4884, 30
    %v4886 = vsub.s32 %v4882, %v4885
    %vm4887 = vcmp.lt.s32.totalorder %v4886, 0
    %v4888 = vsub.s32 0, %v4886
    %v4889 = vsel %vm4887, %v4888, %v4886
    %v4890 = vclz %v4889
    %v4891 = vsub.s32 %v4890, 2
    %vm4892 = vcmp.gt.s32.totalorder 0, %v4891
    %v4893 = vsel %vm4892, 0, %v4891
    %v4894 = vsub.s32 32, %v4893
    %v4895 = vshll.u32 %v4886, %v4893
    %v4896 = vshrl.u32 %v4878, %v4894
    %v4897 = vor.u32 %v4895, %v4896
    %v4898 = vsub.s32 4294967266, %v4893
    %v4899 = vadd.s32 %v4898, 127
    %v4900 = vshll.u32 %v4899, 23
    %v4901 = vor.u32 4788187, %v4900
    %v4902 = vand.u32 2147483647, %v4901
    %v4904 = vcvt.s32.f32 %v4897
    %v4905 = vmul.f32 %v4904, %v4902
    %v4906 = vxor.u32 %v4905, 2147483648
    %v4907 = vsel %vm4824, %v4906, %v4905
    %v4908 = vsub.s32 4, %v4884
    %v4909 = vsel %vm4824, %v4908, %v4884
    %v4910 = vsel %vm4823, %v638, %v4907
    %v4911 = vsel %vm4823, 0, %v4909
    %v4912 = vcosq.f32.pop %v4910
    %v4913 = vsinq.f32.pop %v4910
    %vm4914 = vweird.f32 %v638
    %v4915 = vadd.s32 %v4911, 3
    %v4916 = vand.u32 %v4915, 3
    %vm4917 = vcmp.lt.s32.totalorder %v4916, 2
    %vm4918 = vcmp.eq.s32.totalorder %v4916, 0
    %v4919 = vxor.u32 %v4913, 2147483648
    %v4920 = vsel %vm4918, %v4912, %v4919
    %vm4921 = vcmp.eq.s32.totalorder %v4916, 2
    %v4922 = vxor.u32 %v4912, 2147483648
    %v4923 = vsel %vm4921, %v4922, %v4913
    %v4924 = vsel %vm4917, %v4920, %v4923
    %v4925 = vsel %vm4914, nan, %v4924
    %v4926 = vand.u32 2147483647, %v639
    %vm4927 = vcmp.le.f32.partialorder %v4926, 0.7853982
    %vm4928 = vcmp.lt.s32.totalorder %v639, 0
    %v4929 = vand.u32 %v639, 2139095040
    %v4930 = vshrl.u32 %v4929, 23
    %v4931 = vsub.s32 %v4930, 127
    %v4932 = vand.u32 2147483647, %v639
    %v4933 = vand.u32 %v4932, 8388607
    %v4934 = vor.u32 %v4933, 8388608
    %v4935 = vsub.s32 0, %v4934
    %v4936 = vadd.s32 %v4931, 1
    %vm4937 = vcmp.gt.s32.totalorder %v4936, 0
    %v4938 = vsel %vm4937, %v4936, 0
    %v4939 = vshrl.u32 %v4938, 5
    %v4940 = vand.u32 %v4938, 31
    %v4941 = vsub.s32 32, %v4940
    %v4942 = vshrl.u32 683565275, %v4941
    %v4943 = vshll.u32 683565275, %v4940
    %v4944 = vshrl.u32 2475754826, %v4941
    %v4945 = vor.u32 %v4943, %v4944
    %v4946 = vshll.u32 2475754826, %v4940
    %v4947 = vshrl.u32 2131351028, %v4941
    %v4948 = vor.u32 %v4946, %v4947
    %v4949 = vshll.u32 2131351028, %v4940
    %v4950 = vshrl.u32 2102212464, %v4941
    %v4951 = vor.u32 %v4949, %v4950
    %v4952 = vshll.u32 2102212464, %v4940
    %v4953 = vshrl.u32 920167782, %v4941
    %v4954 = vor.u32 %v4952, %v4953
    %v4955 = vshll.u32 920167782, %v4940
    %v4956 = vshrl.u32 1326507024, %v4941
    %v4957 = vor.u32 %v4955, %v4956
    %vm4958 = vcmp.lt.s32.totalorder %v4939, 1
    %vm4959 = vcmp.lt.s32.totalorder %v4939, 2
    %vm4960 = vcmp.lt.s32.totalorder %v4939, 3
    %vm4961 = vcmp.lt.s32.totalorder %v4939, 4
    %v4962 = vsel %vm4958, %v4942, %v4945
    %v4963 = vsel %vm4961, %v4951, 2102212464
    %v4964 = vsel %vm4960, %v4948, %v4963
    %v4965 = vsel %vm4959, %v4962, %v4964
    %v4966 = vsel %vm4958, %v4945, %v4948
    %v4967 = vsel %vm4961, %v4954, 920167782
    %v4968 = vsel %vm4960, %v4951, %v4967
    %v4969 = vsel %vm4959, %v4966, %v4968
    %v4970 = vsel %vm4958, %v4948, %v4951
    %v4971 = vsel %vm4961, %v4957, 1326507024
    %v4972 = vsel %vm4960, %v4954, %v4971
    %v4973 = vsel %vm4959, %v4970, %v4972
    %v4974 = vshll.u32 %v4934, 8
    %v4975 = vmul.u32.u64.compose %v4974, %v4973
    %v4976 = vextract.low.u32 %v4975
    %v4977 = vextract.high.u32 %v4975
    %v4978 = vmul.u32.u64.compose %v4974, %v4969
    %v4979 = vextract.low.u32 %v4978
    %v4980 = vextract.high.u32 %v4978
    %v4981 = vmul.u32 %v4974, %v4965
    %v4982 = vadd.s32 %v4977, %v4979
    %vm4983 = vc.u32 %v4977, %v4979
    %v4984 = vadd.s32 %v4980, 1
    %v4985 = vsel %vm4983, %v4984, %v4980
    %v4986 = vadd.s32 %v4981, %v4985
    %v4987 = vadd.s32 %v4986, 536870912
    %v4988 = vshrl.u32 %v4987, 30
    %v4989 = vshll.u32 %v4988, 30
    %v4990 = vsub.s32 %v4986, %v4989
    %vm4991 = vcmp.lt.s32.totalorder %v4990, 0
    %v4992 = vsub.s32 0, %v4990
    %v4993 = vsel %vm4991, %v4992, %v4990
    %v4994 = vclz %v4993
    %v4995 = vsub.s32 %v4994, 2
    %vm4996 = vcmp.gt.s32.totalorder 0, %v4995
    %v4997 = vsel %vm4996, 0, %v4995
    %v4998 = vsub.s32 32, %v4997
    %v4999 = vshll.u32 %v4990, %v4997
    %v5000 = vshrl.u32 %v4982, %v4998
    %v5001 = vor.u32 %v4999, %v5000
    %v5002 = vsub.s32 4294967266, %v4997
    %v5003 = vadd.s32 %v5002, 127
    %v5004 = vshll.u32 %v5003, 23
    %v5005 = vor.u32 4788187, %v5004
    %v5006 = vand.u32 2147483647, %v5005
    %v5008 = vcvt.s32.f32 %v5001
    %v5009 = vmul.f32 %v5008, %v5006
    %v5010 = vxor.u32 %v5009, 2147483648
    %v5011 = vsel %vm4928, %v5010, %v5009
    %v5012 = vsub.s32 4, %v4988
    %v5013 = vsel %vm4928, %v5012, %v4988
    %v5014 = vsel %vm4927, %v639, %v5011
    %v5015 = vsel %vm4927, 0, %v5013
    %v5016 = vcosq.f32.pop %v5014
    %v5017 = vsinq.f32.pop %v5014
    %vm5018 = vweird.f32 %v639
    %v5019 = vadd.s32 %v5015, 3
    %v5020 = vand.u32 %v5019, 3
    %vm5021 = vcmp.lt.s32.totalorder %v5020, 2
    %vm5022 = vcmp.eq.s32.totalorder %v5020, 0
    %v5023 = vxor.u32 %v5017, 2147483648
    %v5024 = vsel %vm5022, %v5016, %v5023
    %vm5025 = vcmp.eq.s32.totalorder %v5020, 2
    %v5026 = vxor.u32 %v5016, 2147483648
    %v5027 = vsel %vm5025, %v5026, %v5017
    %v5028 = vsel %vm5021, %v5024, %v5027
    %v5029 = vsel %vm5018, nan, %v5028
    %v5030 = vand.u32 2147483647, %v640
    %vm5031 = vcmp.le.f32.partialorder %v5030, 0.7853982
    %vm5032 = vcmp.lt.s32.totalorder %v640, 0
    %v5033 = vand.u32 %v640, 2139095040
    %v5034 = vshrl.u32 %v5033, 23
    %v5035 = vsub.s32 %v5034, 127
    %v5036 = vand.u32 2147483647, %v640
    %v5037 = vand.u32 %v5036, 8388607
    %v5038 = vor.u32 %v5037, 8388608
    %v5039 = vsub.s32 0, %v5038
    %v5040 = vadd.s32 %v5035, 1
    %vm5041 = vcmp.gt.s32.totalorder %v5040, 0
    %v5042 = vsel %vm5041, %v5040, 0
    %v5043 = vshrl.u32 %v5042, 5
    %v5044 = vand.u32 %v5042, 31
    %v5045 = vsub.s32 32, %v5044
    %v5046 = vshrl.u32 683565275, %v5045
    %v5047 = vshll.u32 683565275, %v5044
    %v5048 = vshrl.u32 2475754826, %v5045
    %v5049 = vor.u32 %v5047, %v5048
    %v5050 = vshll.u32 2475754826, %v5044
    %v5051 = vshrl.u32 2131351028, %v5045
    %v5052 = vor.u32 %v5050, %v5051
    %v5053 = vshll.u32 2131351028, %v5044
    %v5054 = vshrl.u32 2102212464, %v5045
    %v5055 = vor.u32 %v5053, %v5054
    %v5056 = vshll.u32 2102212464, %v5044
    %v5057 = vshrl.u32 920167782, %v5045
    %v5058 = vor.u32 %v5056, %v5057
    %v5059 = vshll.u32 920167782, %v5044
    %v5060 = vshrl.u32 1326507024, %v5045
    %v5061 = vor.u32 %v5059, %v5060
    %vm5062 = vcmp.lt.s32.totalorder %v5043, 1
    %vm5063 = vcmp.lt.s32.totalorder %v5043, 2
    %vm5064 = vcmp.lt.s32.totalorder %v5043, 3
    %vm5065 = vcmp.lt.s32.totalorder %v5043, 4
    %v5066 = vsel %vm5062, %v5046, %v5049
    %v5067 = vsel %vm5065, %v5055, 2102212464
    %v5068 = vsel %vm5064, %v5052, %v5067
    %v5069 = vsel %vm5063, %v5066, %v5068
    %v5070 = vsel %vm5062, %v5049, %v5052
    %v5071 = vsel %vm5065, %v5058, 920167782
    %v5072 = vsel %vm5064, %v5055, %v5071
    %v5073 = vsel %vm5063, %v5070, %v5072
    %v5074 = vsel %vm5062, %v5052, %v5055
    %v5075 = vsel %vm5065, %v5061, 1326507024
    %v5076 = vsel %vm5064, %v5058, %v5075
    %v5077 = vsel %vm5063, %v5074, %v5076
    %v5078 = vshll.u32 %v5038, 8
    %v5079 = vmul.u32.u64.compose %v5078, %v5077
    %v5080 = vextract.low.u32 %v5079
    %v5081 = vextract.high.u32 %v5079
    %v5082 = vmul.u32.u64.compose %v5078, %v5073
    %v5083 = vextract.low.u32 %v5082
    %v5084 = vextract.high.u32 %v5082
    %v5085 = vmul.u32 %v5078, %v5069
    %v5086 = vadd.s32 %v5081, %v5083
    %vm5087 = vc.u32 %v5081, %v5083
    %v5088 = vadd.s32 %v5084, 1
    %v5089 = vsel %vm5087, %v5088, %v5084
    %v5090 = vadd.s32 %v5085, %v5089
    %v5091 = vadd.s32 %v5090, 536870912
    %v5092 = vshrl.u32 %v5091, 30
    %v5093 = vshll.u32 %v5092, 30
    %v5094 = vsub.s32 %v5090, %v5093
    %vm5095 = vcmp.lt.s32.totalorder %v5094, 0
    %v5096 = vsub.s32 0, %v5094
    %v5097 = vsel %vm5095, %v5096, %v5094
    %v5098 = vclz %v5097
    %v5099 = vsub.s32 %v5098, 2
    %vm5100 = vcmp.gt.s32.totalorder 0, %v5099
    %v5101 = vsel %vm5100, 0, %v5099
    %v5102 = vsub.s32 32, %v5101
    %v5103 = vshll.u32 %v5094, %v5101
    %v5104 = vshrl.u32 %v5086, %v5102
    %v5105 = vor.u32 %v5103, %v5104
    %v5106 = vsub.s32 4294967266, %v5101
    %v5107 = vadd.s32 %v5106, 127
    %v5108 = vshll.u32 %v5107, 23
    %v5109 = vor.u32 4788187, %v5108
    %v5110 = vand.u32 2147483647, %v5109
    %v5112 = vcvt.s32.f32 %v5105
    %v5113 = vmul.f32 %v5112, %v5110
    %v5114 = vxor.u32 %v5113, 2147483648
    %v5115 = vsel %vm5032, %v5114, %v5113
    %v5116 = vsub.s32 4, %v5092
    %v5117 = vsel %vm5032, %v5116, %v5092
    %v5118 = vsel %vm5031, %v640, %v5115
    %v5119 = vsel %vm5031, 0, %v5117
    %v5120 = vcosq.f32.pop %v5118
    %v5121 = vsinq.f32.pop %v5118
    %vm5122 = vweird.f32 %v640
    %v5123 = vadd.s32 %v5119, 3
    %v5124 = vand.u32 %v5123, 3
    %vm5125 = vcmp.lt.s32.totalorder %v5124, 2
    %vm5126 = vcmp.eq.s32.totalorder %v5124, 0
    %v5127 = vxor.u32 %v5121, 2147483648
    %v5128 = vsel %vm5126, %v5120, %v5127
    %vm5129 = vcmp.eq.s32.totalorder %v5124, 2
    %v5130 = vxor.u32 %v5120, 2147483648
    %v5131 = vsel %vm5129, %v5130, %v5121
    %v5132 = vsel %vm5125, %v5128, %v5131
    %v5133 = vsel %vm5122, nan, %v5132
    %v5134 = vand.u32 2147483647, %v641
    %vm5135 = vcmp.le.f32.partialorder %v5134, 0.7853982
    %vm5136 = vcmp.lt.s32.totalorder %v641, 0
    %v5137 = vand.u32 %v641, 2139095040
    %v5138 = vshrl.u32 %v5137, 23
    %v5139 = vsub.s32 %v5138, 127
    %v5140 = vand.u32 2147483647, %v641
    %v5141 = vand.u32 %v5140, 8388607
    %v5142 = vor.u32 %v5141, 8388608
    %v5143 = vsub.s32 0, %v5142
    %v5144 = vadd.s32 %v5139, 1
    %vm5145 = vcmp.gt.s32.totalorder %v5144, 0
    %v5146 = vsel %vm5145, %v5144, 0
    %v5147 = vshrl.u32 %v5146, 5
    %v5148 = vand.u32 %v5146, 31
    %v5149 = vsub.s32 32, %v5148
    %v5150 = vshrl.u32 683565275, %v5149
    %v5151 = vshll.u32 683565275, %v5148
    %v5152 = vshrl.u32 2475754826, %v5149
    %v5153 = vor.u32 %v5151, %v5152
    %v5154 = vshll.u32 2475754826, %v5148
    %v5155 = vshrl.u32 2131351028, %v5149
    %v5156 = vor.u32 %v5154, %v5155
    %v5157 = vshll.u32 2131351028, %v5148
    %v5158 = vshrl.u32 2102212464, %v5149
    %v5159 = vor.u32 %v5157, %v5158
    %v5160 = vshll.u32 2102212464, %v5148
    %v5161 = vshrl.u32 920167782, %v5149
    %v5162 = vor.u32 %v5160, %v5161
    %v5163 = vshll.u32 920167782, %v5148
    %v5164 = vshrl.u32 1326507024, %v5149
    %v5165 = vor.u32 %v5163, %v5164
    %vm5166 = vcmp.lt.s32.totalorder %v5147, 1
    %vm5167 = vcmp.lt.s32.totalorder %v5147, 2
    %vm5168 = vcmp.lt.s32.totalorder %v5147, 3
    %vm5169 = vcmp.lt.s32.totalorder %v5147, 4
    %v5170 = vsel %vm5166, %v5150, %v5153
    %v5171 = vsel %vm5169, %v5159, 2102212464
    %v5172 = vsel %vm5168, %v5156, %v5171
    %v5173 = vsel %vm5167, %v5170, %v5172
    %v5174 = vsel %vm5166, %v5153, %v5156
    %v5175 = vsel %vm5169, %v5162, 920167782
    %v5176 = vsel %vm5168, %v5159, %v5175
    %v5177 = vsel %vm5167, %v5174, %v5176
    %v5178 = vsel %vm5166, %v5156, %v5159
    %v5179 = vsel %vm5169, %v5165, 1326507024
    %v5180 = vsel %vm5168, %v5162, %v5179
    %v5181 = vsel %vm5167, %v5178, %v5180
    %v5182 = vshll.u32 %v5142, 8
    %v5183 = vmul.u32.u64.compose %v5182, %v5181
    %v5184 = vextract.low.u32 %v5183
    %v5185 = vextract.high.u32 %v5183
    %v5186 = vmul.u32.u64.compose %v5182, %v5177
    %v5187 = vextract.low.u32 %v5186
    %v5188 = vextract.high.u32 %v5186
    %v5189 = vmul.u32 %v5182, %v5173
    %v5190 = vadd.s32 %v5185, %v5187
    %vm5191 = vc.u32 %v5185, %v5187
    %v5192 = vadd.s32 %v5188, 1
    %v5193 = vsel %vm5191, %v5192, %v5188
    %v5194 = vadd.s32 %v5189, %v5193
    %v5195 = vadd.s32 %v5194, 536870912
    %v5196 = vshrl.u32 %v5195, 30
    %v5197 = vshll.u32 %v5196, 30
    %v5198 = vsub.s32 %v5194, %v5197
    %vm5199 = vcmp.lt.s32.totalorder %v5198, 0
    %v5200 = vsub.s32 0, %v5198
    %v5201 = vsel %vm5199, %v5200, %v5198
    %v5202 = vclz %v5201
    %v5203 = vsub.s32 %v5202, 2
    %vm5204 = vcmp.gt.s32.totalorder 0, %v5203
    %v5205 = vsel %vm5204, 0, %v5203
    %v5206 = vsub.s32 32, %v5205
    %v5207 = vshll.u32 %v5198, %v5205
    %v5208 = vshrl.u32 %v5190, %v5206
    %v5209 = vor.u32 %v5207, %v5208
    %v5210 = vsub.s32 4294967266, %v5205
    %v5211 = vadd.s32 %v5210, 127
    %v5212 = vshll.u32 %v5211, 23
    %v5213 = vor.u32 4788187, %v5212
    %v5214 = vand.u32 2147483647, %v5213
    %v5216 = vcvt.s32.f32 %v5209
    %v5217 = vmul.f32 %v5216, %v5214
    %v5218 = vxor.u32 %v5217, 2147483648
    %v5219 = vsel %vm5136, %v5218, %v5217
    %v5220 = vsub.s32 4, %v5196
    %v5221 = vsel %vm5136, %v5220, %v5196
    %v5222 = vsel %vm5135, %v641, %v5219
    %v5223 = vsel %vm5135, 0, %v5221
    %v5224 = vcosq.f32.pop %v5222
    %v5225 = vsinq.f32.pop %v5222
    %vm5226 = vweird.f32 %v641
    %v5227 = vadd.s32 %v5223, 3
    %v5228 = vand.u32 %v5227, 3
    %vm5229 = vcmp.lt.s32.totalorder %v5228, 2
    %vm5230 = vcmp.eq.s32.totalorder %v5228, 0
    %v5231 = vxor.u32 %v5225, 2147483648
    %v5232 = vsel %vm5230, %v5224, %v5231
    %vm5233 = vcmp.eq.s32.totalorder %v5228, 2
    %v5234 = vxor.u32 %v5224, 2147483648
    %v5235 = vsel %vm5233, %v5234, %v5225
    %v5236 = vsel %vm5229, %v5232, %v5235
    %v5237 = vsel %vm5226, nan, %v5236
    %v5238 = vand.u32 2147483647, %v642
    %vm5239 = vcmp.le.f32.partialorder %v5238, 0.7853982
    %vm5240 = vcmp.lt.s32.totalorder %v642, 0
    %v5241 = vand.u32 %v642, 2139095040
    %v5242 = vshrl.u32 %v5241, 23
    %v5243 = vsub.s32 %v5242, 127
    %v5244 = vand.u32 2147483647, %v642
    %v5245 = vand.u32 %v5244, 8388607
    %v5246 = vor.u32 %v5245, 8388608
    %v5247 = vsub.s32 0, %v5246
    %v5248 = vadd.s32 %v5243, 1
    %vm5249 = vcmp.gt.s32.totalorder %v5248, 0
    %v5250 = vsel %vm5249, %v5248, 0
    %v5251 = vshrl.u32 %v5250, 5
    %v5252 = vand.u32 %v5250, 31
    %v5253 = vsub.s32 32, %v5252
    %v5254 = vshrl.u32 683565275, %v5253
    %v5255 = vshll.u32 683565275, %v5252
    %v5256 = vshrl.u32 2475754826, %v5253
    %v5257 = vor.u32 %v5255, %v5256
    %v5258 = vshll.u32 2475754826, %v5252
    %v5259 = vshrl.u32 2131351028, %v5253
    %v5260 = vor.u32 %v5258, %v5259
    %v5261 = vshll.u32 2131351028, %v5252
    %v5262 = vshrl.u32 2102212464, %v5253
    %v5263 = vor.u32 %v5261, %v5262
    %v5264 = vshll.u32 2102212464, %v5252
    %v5265 = vshrl.u32 920167782, %v5253
    %v5266 = vor.u32 %v5264, %v5265
    %v5267 = vshll.u32 920167782, %v5252
    %v5268 = vshrl.u32 1326507024, %v5253
    %v5269 = vor.u32 %v5267, %v5268
    %vm5270 = vcmp.lt.s32.totalorder %v5251, 1
    %vm5271 = vcmp.lt.s32.totalorder %v5251, 2
    %vm5272 = vcmp.lt.s32.totalorder %v5251, 3
    %vm5273 = vcmp.lt.s32.totalorder %v5251, 4
    %v5274 = vsel %vm5270, %v5254, %v5257
    %v5275 = vsel %vm5273, %v5263, 2102212464
    %v5276 = vsel %vm5272, %v5260, %v5275
    %v5277 = vsel %vm5271, %v5274, %v5276
    %v5278 = vsel %vm5270, %v5257, %v5260
    %v5279 = vsel %vm5273, %v5266, 920167782
    %v5280 = vsel %vm5272, %v5263, %v5279
    %v5281 = vsel %vm5271, %v5278, %v5280
    %v5282 = vsel %vm5270, %v5260, %v5263
    %v5283 = vsel %vm5273, %v5269, 1326507024
    %v5284 = vsel %vm5272, %v5266, %v5283
    %v5285 = vsel %vm5271, %v5282, %v5284
    %v5286 = vshll.u32 %v5246, 8
    %v5287 = vmul.u32.u64.compose %v5286, %v5285
    %v5288 = vextract.low.u32 %v5287
    %v5289 = vextract.high.u32 %v5287
    %v5290 = vmul.u32.u64.compose %v5286, %v5281
    %v5291 = vextract.low.u32 %v5290
    %v5292 = vextract.high.u32 %v5290
    %v5293 = vmul.u32 %v5286, %v5277
    %v5294 = vadd.s32 %v5289, %v5291
    %vm5295 = vc.u32 %v5289, %v5291
    %v5296 = vadd.s32 %v5292, 1
    %v5297 = vsel %vm5295, %v5296, %v5292
    %v5298 = vadd.s32 %v5293, %v5297
    %v5299 = vadd.s32 %v5298, 536870912
    %v5300 = vshrl.u32 %v5299, 30
    %v5301 = vshll.u32 %v5300, 30
    %v5302 = vsub.s32 %v5298, %v5301
    %vm5303 = vcmp.lt.s32.totalorder %v5302, 0
    %v5304 = vsub.s32 0, %v5302
    %v5305 = vsel %vm5303, %v5304, %v5302
    %v5306 = vclz %v5305
    %v5307 = vsub.s32 %v5306, 2
    %vm5308 = vcmp.gt.s32.totalorder 0, %v5307
    %v5309 = vsel %vm5308, 0, %v5307
    %v5310 = vsub.s32 32, %v5309
    %v5311 = vshll.u32 %v5302, %v5309
    %v5312 = vshrl.u32 %v5294, %v5310
    %v5313 = vor.u32 %v5311, %v5312
    %v5314 = vsub.s32 4294967266, %v5309
    %v5315 = vadd.s32 %v5314, 127
    %v5316 = vshll.u32 %v5315, 23
    %v5317 = vor.u32 4788187, %v5316
    %v5318 = vand.u32 2147483647, %v5317
    %v5320 = vcvt.s32.f32 %v5313
    %v5321 = vmul.f32 %v5320, %v5318
    %v5322 = vxor.u32 %v5321, 2147483648
    %v5323 = vsel %vm5240, %v5322, %v5321
    %v5324 = vsub.s32 4, %v5300
    %v5325 = vsel %vm5240, %v5324, %v5300
    %v5326 = vsel %vm5239, %v642, %v5323
    %v5327 = vsel %vm5239, 0, %v5325
    %v5328 = vcosq.f32.pop %v5326
    %v5329 = vsinq.f32.pop %v5326
    %vm5330 = vweird.f32 %v642
    %v5331 = vadd.s32 %v5327, 3
    %v5332 = vand.u32 %v5331, 3
    %vm5333 = vcmp.lt.s32.totalorder %v5332, 2
    %vm5334 = vcmp.eq.s32.totalorder %v5332, 0
    %v5335 = vxor.u32 %v5329, 2147483648
    %v5336 = vsel %vm5334, %v5328, %v5335
    %vm5337 = vcmp.eq.s32.totalorder %v5332, 2
    %v5338 = vxor.u32 %v5328, 2147483648
    %v5339 = vsel %vm5337, %v5338, %v5329
    %v5340 = vsel %vm5333, %v5336, %v5339
    %v5341 = vsel %vm5330, nan, %v5340
    %v5342 = vand.u32 2147483647, %v643
    %vm5343 = vcmp.le.f32.partialorder %v5342, 0.7853982
    %vm5344 = vcmp.lt.s32.totalorder %v643, 0
    %v5345 = vand.u32 %v643, 2139095040
    %v5346 = vshrl.u32 %v5345, 23
    %v5347 = vsub.s32 %v5346, 127
    %v5348 = vand.u32 2147483647, %v643
    %v5349 = vand.u32 %v5348, 8388607
    %v5350 = vor.u32 %v5349, 8388608
    %v5351 = vsub.s32 0, %v5350
    %v5352 = vadd.s32 %v5347, 1
    %vm5353 = vcmp.gt.s32.totalorder %v5352, 0
    %v5354 = vsel %vm5353, %v5352, 0
    %v5355 = vshrl.u32 %v5354, 5
    %v5356 = vand.u32 %v5354, 31
    %v5357 = vsub.s32 32, %v5356
    %v5358 = vshrl.u32 683565275, %v5357
    %v5359 = vshll.u32 683565275, %v5356
    %v5360 = vshrl.u32 2475754826, %v5357
    %v5361 = vor.u32 %v5359, %v5360
    %v5362 = vshll.u32 2475754826, %v5356
    %v5363 = vshrl.u32 2131351028, %v5357
    %v5364 = vor.u32 %v5362, %v5363
    %v5365 = vshll.u32 2131351028, %v5356
    %v5366 = vshrl.u32 2102212464, %v5357
    %v5367 = vor.u32 %v5365, %v5366
    %v5368 = vshll.u32 2102212464, %v5356
    %v5369 = vshrl.u32 920167782, %v5357
    %v5370 = vor.u32 %v5368, %v5369
    %v5371 = vshll.u32 920167782, %v5356
    %v5372 = vshrl.u32 1326507024, %v5357
    %v5373 = vor.u32 %v5371, %v5372
    %vm5374 = vcmp.lt.s32.totalorder %v5355, 1
    %vm5375 = vcmp.lt.s32.totalorder %v5355, 2
    %vm5376 = vcmp.lt.s32.totalorder %v5355, 3
    %vm5377 = vcmp.lt.s32.totalorder %v5355, 4
    %v5378 = vsel %vm5374, %v5358, %v5361
    %v5379 = vsel %vm5377, %v5367, 2102212464
    %v5380 = vsel %vm5376, %v5364, %v5379
    %v5381 = vsel %vm5375, %v5378, %v5380
    %v5382 = vsel %vm5374, %v5361, %v5364
    %v5383 = vsel %vm5377, %v5370, 920167782
    %v5384 = vsel %vm5376, %v5367, %v5383
    %v5385 = vsel %vm5375, %v5382, %v5384
    %v5386 = vsel %vm5374, %v5364, %v5367
    %v5387 = vsel %vm5377, %v5373, 1326507024
    %v5388 = vsel %vm5376, %v5370, %v5387
    %v5389 = vsel %vm5375, %v5386, %v5388
    %v5390 = vshll.u32 %v5350, 8
    %v5391 = vmul.u32.u64.compose %v5390, %v5389
    %v5392 = vextract.low.u32 %v5391
    %v5393 = vextract.high.u32 %v5391
    %v5394 = vmul.u32.u64.compose %v5390, %v5385
    %v5395 = vextract.low.u32 %v5394
    %v5396 = vextract.high.u32 %v5394
    %v5397 = vmul.u32 %v5390, %v5381
    %v5398 = vadd.s32 %v5393, %v5395
    %vm5399 = vc.u32 %v5393, %v5395
    %v5400 = vadd.s32 %v5396, 1
    %v5401 = vsel %vm5399, %v5400, %v5396
    %v5402 = vadd.s32 %v5397, %v5401
    %v5403 = vadd.s32 %v5402, 536870912
    %v5404 = vshrl.u32 %v5403, 30
    %v5405 = vshll.u32 %v5404, 30
    %v5406 = vsub.s32 %v5402, %v5405
    %vm5407 = vcmp.lt.s32.totalorder %v5406, 0
    %v5408 = vsub.s32 0, %v5406
    %v5409 = vsel %vm5407, %v5408, %v5406
    %v5410 = vclz %v5409
    %v5411 = vsub.s32 %v5410, 2
    %vm5412 = vcmp.gt.s32.totalorder 0, %v5411
    %v5413 = vsel %vm5412, 0, %v5411
    %v5414 = vsub.s32 32, %v5413
    %v5415 = vshll.u32 %v5406, %v5413
    %v5416 = vshrl.u32 %v5398, %v5414
    %v5417 = vor.u32 %v5415, %v5416
    %v5418 = vsub.s32 4294967266, %v5413
    %v5419 = vadd.s32 %v5418, 127
    %v5420 = vshll.u32 %v5419, 23
    %v5421 = vor.u32 4788187, %v5420
    %v5422 = vand.u32 2147483647, %v5421
    %v5424 = vcvt.s32.f32 %v5417
    %v5425 = vmul.f32 %v5424, %v5422
    %v5426 = vxor.u32 %v5425, 2147483648
    %v5427 = vsel %vm5344, %v5426, %v5425
    %v5428 = vsub.s32 4, %v5404
    %v5429 = vsel %vm5344, %v5428, %v5404
    %v5430 = vsel %vm5343, %v643, %v5427
    %v5431 = vsel %vm5343, 0, %v5429
    %v5432 = vcosq.f32.pop %v5430
    %v5433 = vsinq.f32.pop %v5430
    %vm5434 = vweird.f32 %v643
    %v5435 = vadd.s32 %v5431, 3
    %v5436 = vand.u32 %v5435, 3
    %vm5437 = vcmp.lt.s32.totalorder %v5436, 2
    %vm5438 = vcmp.eq.s32.totalorder %v5436, 0
    %v5439 = vxor.u32 %v5433, 2147483648
    %v5440 = vsel %vm5438, %v5432, %v5439
    %vm5441 = vcmp.eq.s32.totalorder %v5436, 2
    %v5442 = vxor.u32 %v5432, 2147483648
    %v5443 = vsel %vm5441, %v5442, %v5433
    %v5444 = vsel %vm5437, %v5440, %v5443
    %v5445 = vsel %vm5434, nan, %v5444
    %v5446 = vand.u32 2147483647, %v644
    %vm5447 = vcmp.le.f32.partialorder %v5446, 0.7853982
    %vm5448 = vcmp.lt.s32.totalorder %v644, 0
    %v5449 = vand.u32 %v644, 2139095040
    %v5450 = vshrl.u32 %v5449, 23
    %v5451 = vsub.s32 %v5450, 127
    %v5452 = vand.u32 2147483647, %v644
    %v5453 = vand.u32 %v5452, 8388607
    %v5454 = vor.u32 %v5453, 8388608
    %v5455 = vsub.s32 0, %v5454
    %v5456 = vadd.s32 %v5451, 1
    %vm5457 = vcmp.gt.s32.totalorder %v5456, 0
    %v5458 = vsel %vm5457, %v5456, 0
    %v5459 = vshrl.u32 %v5458, 5
    %v5460 = vand.u32 %v5458, 31
    %v5461 = vsub.s32 32, %v5460
    %v5462 = vshrl.u32 683565275, %v5461
    %v5463 = vshll.u32 683565275, %v5460
    %v5464 = vshrl.u32 2475754826, %v5461
    %v5465 = vor.u32 %v5463, %v5464
    %v5466 = vshll.u32 2475754826, %v5460
    %v5467 = vshrl.u32 2131351028, %v5461
    %v5468 = vor.u32 %v5466, %v5467
    %v5469 = vshll.u32 2131351028, %v5460
    %v5470 = vshrl.u32 2102212464, %v5461
    %v5471 = vor.u32 %v5469, %v5470
    %v5472 = vshll.u32 2102212464, %v5460
    %v5473 = vshrl.u32 920167782, %v5461
    %v5474 = vor.u32 %v5472, %v5473
    %v5475 = vshll.u32 920167782, %v5460
    %v5476 = vshrl.u32 1326507024, %v5461
    %v5477 = vor.u32 %v5475, %v5476
    %vm5478 = vcmp.lt.s32.totalorder %v5459, 1
    %vm5479 = vcmp.lt.s32.totalorder %v5459, 2
    %vm5480 = vcmp.lt.s32.totalorder %v5459, 3
    %vm5481 = vcmp.lt.s32.totalorder %v5459, 4
    %v5482 = vsel %vm5478, %v5462, %v5465
    %v5483 = vsel %vm5481, %v5471, 2102212464
    %v5484 = vsel %vm5480, %v5468, %v5483
    %v5485 = vsel %vm5479, %v5482, %v5484
    %v5486 = vsel %vm5478, %v5465, %v5468
    %v5487 = vsel %vm5481, %v5474, 920167782
    %v5488 = vsel %vm5480, %v5471, %v5487
    %v5489 = vsel %vm5479, %v5486, %v5488
    %v5490 = vsel %vm5478, %v5468, %v5471
    %v5491 = vsel %vm5481, %v5477, 1326507024
    %v5492 = vsel %vm5480, %v5474, %v5491
    %v5493 = vsel %vm5479, %v5490, %v5492
    %v5494 = vshll.u32 %v5454, 8
    %v5495 = vmul.u32.u64.compose %v5494, %v5493
    %v5496 = vextract.low.u32 %v5495
    %v5497 = vextract.high.u32 %v5495
    %v5498 = vmul.u32.u64.compose %v5494, %v5489
    %v5499 = vextract.low.u32 %v5498
    %v5500 = vextract.high.u32 %v5498
    %v5501 = vmul.u32 %v5494, %v5485
    %v5502 = vadd.s32 %v5497, %v5499
    %vm5503 = vc.u32 %v5497, %v5499
    %v5504 = vadd.s32 %v5500, 1
    %v5505 = vsel %vm5503, %v5504, %v5500
    %v5506 = vadd.s32 %v5501, %v5505
    %v5507 = vadd.s32 %v5506, 536870912
    %v5508 = vshrl.u32 %v5507, 30
    %v5509 = vshll.u32 %v5508, 30
    %v5510 = vsub.s32 %v5506, %v5509
    %vm5511 = vcmp.lt.s32.totalorder %v5510, 0
    %v5512 = vsub.s32 0, %v5510
    %v5513 = vsel %vm5511, %v5512, %v5510
    %v5514 = vclz %v5513
    %v5515 = vsub.s32 %v5514, 2
    %vm5516 = vcmp.gt.s32.totalorder 0, %v5515
    %v5517 = vsel %vm5516, 0, %v5515
    %v5518 = vsub.s32 32, %v5517
    %v5519 = vshll.u32 %v5510, %v5517
    %v5520 = vshrl.u32 %v5502, %v5518
    %v5521 = vor.u32 %v5519, %v5520
    %v5522 = vsub.s32 4294967266, %v5517
    %v5523 = vadd.s32 %v5522, 127
    %v5524 = vshll.u32 %v5523, 23
    %v5525 = vor.u32 4788187, %v5524
    %v5526 = vand.u32 2147483647, %v5525
    %v5528 = vcvt.s32.f32 %v5521
    %v5529 = vmul.f32 %v5528, %v5526
    %v5530 = vxor.u32 %v5529, 2147483648
    %v5531 = vsel %vm5448, %v5530, %v5529
    %v5532 = vsub.s32 4, %v5508
    %v5533 = vsel %vm5448, %v5532, %v5508
    %v5534 = vsel %vm5447, %v644, %v5531
    %v5535 = vsel %vm5447, 0, %v5533
    %v5536 = vcosq.f32.pop %v5534
    %v5537 = vsinq.f32.pop %v5534
    %vm5538 = vweird.f32 %v644
    %v5539 = vadd.s32 %v5535, 3
    %v5540 = vand.u32 %v5539, 3
    %vm5541 = vcmp.lt.s32.totalorder %v5540, 2
    %vm5542 = vcmp.eq.s32.totalorder %v5540, 0
    %v5543 = vxor.u32 %v5537, 2147483648
    %v5544 = vsel %vm5542, %v5536, %v5543
    %vm5545 = vcmp.eq.s32.totalorder %v5540, 2
    %v5546 = vxor.u32 %v5536, 2147483648
    %v5547 = vsel %vm5545, %v5546, %v5537
    %v5548 = vsel %vm5541, %v5544, %v5547
    %v5549 = vsel %vm5538, nan, %v5548
    %v5550 = vand.u32 2147483647, %v645
    %vm5551 = vcmp.le.f32.partialorder %v5550, 0.7853982
    %vm5552 = vcmp.lt.s32.totalorder %v645, 0
    %v5553 = vand.u32 %v645, 2139095040
    %v5554 = vshrl.u32 %v5553, 23
    %v5555 = vsub.s32 %v5554, 127
    %v5556 = vand.u32 2147483647, %v645
    %v5557 = vand.u32 %v5556, 8388607
    %v5558 = vor.u32 %v5557, 8388608
    %v5559 = vsub.s32 0, %v5558
    %v5560 = vadd.s32 %v5555, 1
    %vm5561 = vcmp.gt.s32.totalorder %v5560, 0
    %v5562 = vsel %vm5561, %v5560, 0
    %v5563 = vshrl.u32 %v5562, 5
    %v5564 = vand.u32 %v5562, 31
    %v5565 = vsub.s32 32, %v5564
    %v5566 = vshrl.u32 683565275, %v5565
    %v5567 = vshll.u32 683565275, %v5564
    %v5568 = vshrl.u32 2475754826, %v5565
    %v5569 = vor.u32 %v5567, %v5568
    %v5570 = vshll.u32 2475754826, %v5564
    %v5571 = vshrl.u32 2131351028, %v5565
    %v5572 = vor.u32 %v5570, %v5571
    %v5573 = vshll.u32 2131351028, %v5564
    %v5574 = vshrl.u32 2102212464, %v5565
    %v5575 = vor.u32 %v5573, %v5574
    %v5576 = vshll.u32 2102212464, %v5564
    %v5577 = vshrl.u32 920167782, %v5565
    %v5578 = vor.u32 %v5576, %v5577
    %v5579 = vshll.u32 920167782, %v5564
    %v5580 = vshrl.u32 1326507024, %v5565
    %v5581 = vor.u32 %v5579, %v5580
    %vm5582 = vcmp.lt.s32.totalorder %v5563, 1
    %vm5583 = vcmp.lt.s32.totalorder %v5563, 2
    %vm5584 = vcmp.lt.s32.totalorder %v5563, 3
    %vm5585 = vcmp.lt.s32.totalorder %v5563, 4
    %v5586 = vsel %vm5582, %v5566, %v5569
    %v5587 = vsel %vm5585, %v5575, 2102212464
    %v5588 = vsel %vm5584, %v5572, %v5587
    %v5589 = vsel %vm5583, %v5586, %v5588
    %v5590 = vsel %vm5582, %v5569, %v5572
    %v5591 = vsel %vm5585, %v5578, 920167782
    %v5592 = vsel %vm5584, %v5575, %v5591
    %v5593 = vsel %vm5583, %v5590, %v5592
    %v5594 = vsel %vm5582, %v5572, %v5575
    %v5595 = vsel %vm5585, %v5581, 1326507024
    %v5596 = vsel %vm5584, %v5578, %v5595
    %v5597 = vsel %vm5583, %v5594, %v5596
    %v5598 = vshll.u32 %v5558, 8
    %v5599 = vmul.u32.u64.compose %v5598, %v5597
    %v5600 = vextract.low.u32 %v5599
    %v5601 = vextract.high.u32 %v5599
    %v5602 = vmul.u32.u64.compose %v5598, %v5593
    %v5603 = vextract.low.u32 %v5602
    %v5604 = vextract.high.u32 %v5602
    %v5605 = vmul.u32 %v5598, %v5589
    %v5606 = vadd.s32 %v5601, %v5603
    %vm5607 = vc.u32 %v5601, %v5603
    %v5608 = vadd.s32 %v5604, 1
    %v5609 = vsel %vm5607, %v5608, %v5604
    %v5610 = vadd.s32 %v5605, %v5609
    %v5611 = vadd.s32 %v5610, 536870912
    %v5612 = vshrl.u32 %v5611, 30
    %v5613 = vshll.u32 %v5612, 30
    %v5614 = vsub.s32 %v5610, %v5613
    %vm5615 = vcmp.lt.s32.totalorder %v5614, 0
    %v5616 = vsub.s32 0, %v5614
    %v5617 = vsel %vm5615, %v5616, %v5614
    %v5618 = vclz %v5617
    %v5619 = vsub.s32 %v5618, 2
    %vm5620 = vcmp.gt.s32.totalorder 0, %v5619
    %v5621 = vsel %vm5620, 0, %v5619
    %v5622 = vsub.s32 32, %v5621
    %v5623 = vshll.u32 %v5614, %v5621
    %v5624 = vshrl.u32 %v5606, %v5622
    %v5625 = vor.u32 %v5623, %v5624
    %v5626 = vsub.s32 4294967266, %v5621
    %v5627 = vadd.s32 %v5626, 127
    %v5628 = vshll.u32 %v5627, 23
    %v5629 = vor.u32 4788187, %v5628
    %v5630 = vand.u32 2147483647, %v5629
    %v5632 = vcvt.s32.f32 %v5625
    %v5633 = vmul.f32 %v5632, %v5630
    %v5634 = vxor.u32 %v5633, 2147483648
    %v5635 = vsel %vm5552, %v5634, %v5633
    %v5636 = vsub.s32 4, %v5612
    %v5637 = vsel %vm5552, %v5636, %v5612
    %v5638 = vsel %vm5551, %v645, %v5635
    %v5639 = vsel %vm5551, 0, %v5637
    %v5640 = vcosq.f32.pop %v5638
    %v5641 = vsinq.f32.pop %v5638
    %vm5642 = vweird.f32 %v645
    %v5643 = vadd.s32 %v5639, 3
    %v5644 = vand.u32 %v5643, 3
    %vm5645 = vcmp.lt.s32.totalorder %v5644, 2
    %vm5646 = vcmp.eq.s32.totalorder %v5644, 0
    %v5647 = vxor.u32 %v5641, 2147483648
    %v5648 = vsel %vm5646, %v5640, %v5647
    %vm5649 = vcmp.eq.s32.totalorder %v5644, 2
    %v5650 = vxor.u32 %v5640, 2147483648
    %v5651 = vsel %vm5649, %v5650, %v5641
    %v5652 = vsel %vm5645, %v5648, %v5651
    %v5653 = vsel %vm5642, nan, %v5652
    %v5654 = vand.u32 2147483647, %v646
    %vm5655 = vcmp.le.f32.partialorder %v5654, 0.7853982
    %vm5656 = vcmp.lt.s32.totalorder %v646, 0
    %v5657 = vand.u32 %v646, 2139095040
    %v5658 = vshrl.u32 %v5657, 23
    %v5659 = vsub.s32 %v5658, 127
    %v5660 = vand.u32 2147483647, %v646
    %v5661 = vand.u32 %v5660, 8388607
    %v5662 = vor.u32 %v5661, 8388608
    %v5663 = vsub.s32 0, %v5662
    %v5664 = vadd.s32 %v5659, 1
    %vm5665 = vcmp.gt.s32.totalorder %v5664, 0
    %v5666 = vsel %vm5665, %v5664, 0
    %v5667 = vshrl.u32 %v5666, 5
    %v5668 = vand.u32 %v5666, 31
    %v5669 = vsub.s32 32, %v5668
    %v5670 = vshrl.u32 683565275, %v5669
    %v5671 = vshll.u32 683565275, %v5668
    %v5672 = vshrl.u32 2475754826, %v5669
    %v5673 = vor.u32 %v5671, %v5672
    %v5674 = vshll.u32 2475754826, %v5668
    %v5675 = vshrl.u32 2131351028, %v5669
    %v5676 = vor.u32 %v5674, %v5675
    %v5677 = vshll.u32 2131351028, %v5668
    %v5678 = vshrl.u32 2102212464, %v5669
    %v5679 = vor.u32 %v5677, %v5678
    %v5680 = vshll.u32 2102212464, %v5668
    %v5681 = vshrl.u32 920167782, %v5669
    %v5682 = vor.u32 %v5680, %v5681
    %v5683 = vshll.u32 920167782, %v5668
    %v5684 = vshrl.u32 1326507024, %v5669
    %v5685 = vor.u32 %v5683, %v5684
    %vm5686 = vcmp.lt.s32.totalorder %v5667, 1
    %vm5687 = vcmp.lt.s32.totalorder %v5667, 2
    %vm5688 = vcmp.lt.s32.totalorder %v5667, 3
    %vm5689 = vcmp.lt.s32.totalorder %v5667, 4
    %v5690 = vsel %vm5686, %v5670, %v5673
    %v5691 = vsel %vm5689, %v5679, 2102212464
    %v5692 = vsel %vm5688, %v5676, %v5691
    %v5693 = vsel %vm5687, %v5690, %v5692
    %v5694 = vsel %vm5686, %v5673, %v5676
    %v5695 = vsel %vm5689, %v5682, 920167782
    %v5696 = vsel %vm5688, %v5679, %v5695
    %v5697 = vsel %vm5687, %v5694, %v5696
    %v5698 = vsel %vm5686, %v5676, %v5679
    %v5699 = vsel %vm5689, %v5685, 1326507024
    %v5700 = vsel %vm5688, %v5682, %v5699
    %v5701 = vsel %vm5687, %v5698, %v5700
    %v5702 = vshll.u32 %v5662, 8
    %v5703 = vmul.u32.u64.compose %v5702, %v5701
    %v5704 = vextract.low.u32 %v5703
    %v5705 = vextract.high.u32 %v5703
    %v5706 = vmul.u32.u64.compose %v5702, %v5697
    %v5707 = vextract.low.u32 %v5706
    %v5708 = vextract.high.u32 %v5706
    %v5709 = vmul.u32 %v5702, %v5693
    %v5710 = vadd.s32 %v5705, %v5707
    %vm5711 = vc.u32 %v5705, %v5707
    %v5712 = vadd.s32 %v5708, 1
    %v5713 = vsel %vm5711, %v5712, %v5708
    %v5714 = vadd.s32 %v5709, %v5713
    %v5715 = vadd.s32 %v5714, 536870912
    %v5716 = vshrl.u32 %v5715, 30
    %v5717 = vshll.u32 %v5716, 30
    %v5718 = vsub.s32 %v5714, %v5717
    %vm5719 = vcmp.lt.s32.totalorder %v5718, 0
    %v5720 = vsub.s32 0, %v5718
    %v5721 = vsel %vm5719, %v5720, %v5718
    %v5722 = vclz %v5721
    %v5723 = vsub.s32 %v5722, 2
    %vm5724 = vcmp.gt.s32.totalorder 0, %v5723
    %v5725 = vsel %vm5724, 0, %v5723
    %v5726 = vsub.s32 32, %v5725
    %v5727 = vshll.u32 %v5718, %v5725
    %v5728 = vshrl.u32 %v5710, %v5726
    %v5729 = vor.u32 %v5727, %v5728
    %v5730 = vsub.s32 4294967266, %v5725
    %v5731 = vadd.s32 %v5730, 127
    %v5732 = vshll.u32 %v5731, 23
    %v5733 = vor.u32 4788187, %v5732
    %v5734 = vand.u32 2147483647, %v5733
    %v5736 = vcvt.s32.f32 %v5729
    %v5737 = vmul.f32 %v5736, %v5734
    %v5738 = vxor.u32 %v5737, 2147483648
    %v5739 = vsel %vm5656, %v5738, %v5737
    %v5740 = vsub.s32 4, %v5716
    %v5741 = vsel %vm5656, %v5740, %v5716
    %v5742 = vsel %vm5655, %v646, %v5739
    %v5743 = vsel %vm5655, 0, %v5741
    %v5744 = vcosq.f32.pop %v5742
    %v5745 = vsinq.f32.pop %v5742
    %vm5746 = vweird.f32 %v646
    %v5747 = vadd.s32 %v5743, 3
    %v5748 = vand.u32 %v5747, 3
    %vm5749 = vcmp.lt.s32.totalorder %v5748, 2
    %vm5750 = vcmp.eq.s32.totalorder %v5748, 0
    %v5751 = vxor.u32 %v5745, 2147483648
    %v5752 = vsel %vm5750, %v5744, %v5751
    %vm5753 = vcmp.eq.s32.totalorder %v5748, 2
    %v5754 = vxor.u32 %v5744, 2147483648
    %v5755 = vsel %vm5753, %v5754, %v5745
    %v5756 = vsel %vm5749, %v5752, %v5755
    %v5757 = vsel %vm5746, nan, %v5756
    %v5758 = vand.u32 2147483647, %v647
    %vm5759 = vcmp.le.f32.partialorder %v5758, 0.7853982
    %vm5760 = vcmp.lt.s32.totalorder %v647, 0
    %v5761 = vand.u32 %v647, 2139095040
    %v5762 = vshrl.u32 %v5761, 23
    %v5763 = vsub.s32 %v5762, 127
    %v5764 = vand.u32 2147483647, %v647
    %v5765 = vand.u32 %v5764, 8388607
    %v5766 = vor.u32 %v5765, 8388608
    %v5767 = vsub.s32 0, %v5766
    %v5768 = vadd.s32 %v5763, 1
    %vm5769 = vcmp.gt.s32.totalorder %v5768, 0
    %v5770 = vsel %vm5769, %v5768, 0
    %v5771 = vshrl.u32 %v5770, 5
    %v5772 = vand.u32 %v5770, 31
    %v5773 = vsub.s32 32, %v5772
    %v5774 = vshrl.u32 683565275, %v5773
    %v5775 = vshll.u32 683565275, %v5772
    %v5776 = vshrl.u32 2475754826, %v5773
    %v5777 = vor.u32 %v5775, %v5776
    %v5778 = vshll.u32 2475754826, %v5772
    %v5779 = vshrl.u32 2131351028, %v5773
    %v5780 = vor.u32 %v5778, %v5779
    %v5781 = vshll.u32 2131351028, %v5772
    %v5782 = vshrl.u32 2102212464, %v5773
    %v5783 = vor.u32 %v5781, %v5782
    %v5784 = vshll.u32 2102212464, %v5772
    %v5785 = vshrl.u32 920167782, %v5773
    %v5786 = vor.u32 %v5784, %v5785
    %v5787 = vshll.u32 920167782, %v5772
    %v5788 = vshrl.u32 1326507024, %v5773
    %v5789 = vor.u32 %v5787, %v5788
    %vm5790 = vcmp.lt.s32.totalorder %v5771, 1
    %vm5791 = vcmp.lt.s32.totalorder %v5771, 2
    %vm5792 = vcmp.lt.s32.totalorder %v5771, 3
    %vm5793 = vcmp.lt.s32.totalorder %v5771, 4
    %v5794 = vsel %vm5790, %v5774, %v5777
    %v5795 = vsel %vm5793, %v5783, 2102212464
    %v5796 = vsel %vm5792, %v5780, %v5795
    %v5797 = vsel %vm5791, %v5794, %v5796
    %v5798 = vsel %vm5790, %v5777, %v5780
    %v5799 = vsel %vm5793, %v5786, 920167782
    %v5800 = vsel %vm5792, %v5783, %v5799
    %v5801 = vsel %vm5791, %v5798, %v5800
    %v5802 = vsel %vm5790, %v5780, %v5783
    %v5803 = vsel %vm5793, %v5789, 1326507024
    %v5804 = vsel %vm5792, %v5786, %v5803
    %v5805 = vsel %vm5791, %v5802, %v5804
    %v5806 = vshll.u32 %v5766, 8
    %v5807 = vmul.u32.u64.compose %v5806, %v5805
    %v5808 = vextract.low.u32 %v5807
    %v5809 = vextract.high.u32 %v5807
    %v5810 = vmul.u32.u64.compose %v5806, %v5801
    %v5811 = vextract.low.u32 %v5810
    %v5812 = vextract.high.u32 %v5810
    %v5813 = vmul.u32 %v5806, %v5797
    %v5814 = vadd.s32 %v5809, %v5811
    %vm5815 = vc.u32 %v5809, %v5811
    %v5816 = vadd.s32 %v5812, 1
    %v5817 = vsel %vm5815, %v5816, %v5812
    %v5818 = vadd.s32 %v5813, %v5817
    %v5819 = vadd.s32 %v5818, 536870912
    %v5820 = vshrl.u32 %v5819, 30
    %v5821 = vshll.u32 %v5820, 30
    %v5822 = vsub.s32 %v5818, %v5821
    %vm5823 = vcmp.lt.s32.totalorder %v5822, 0
    %v5824 = vsub.s32 0, %v5822
    %v5825 = vsel %vm5823, %v5824, %v5822
    %v5826 = vclz %v5825
    %v5827 = vsub.s32 %v5826, 2
    %vm5828 = vcmp.gt.s32.totalorder 0, %v5827
    %v5829 = vsel %vm5828, 0, %v5827
    %v5830 = vsub.s32 32, %v5829
    %v5831 = vshll.u32 %v5822, %v5829
    %v5832 = vshrl.u32 %v5814, %v5830
    %v5833 = vor.u32 %v5831, %v5832
    %v5834 = vsub.s32 4294967266, %v5829
    %v5835 = vadd.s32 %v5834, 127
    %v5836 = vshll.u32 %v5835, 23
    %v5837 = vor.u32 4788187, %v5836
    %v5838 = vand.u32 2147483647, %v5837
    %v5840 = vcvt.s32.f32 %v5833
    %v5841 = vmul.f32 %v5840, %v5838
    %v5842 = vxor.u32 %v5841, 2147483648
    %v5843 = vsel %vm5760, %v5842, %v5841
    %v5844 = vsub.s32 4, %v5820
    %v5845 = vsel %vm5760, %v5844, %v5820
    %v5846 = vsel %vm5759, %v647, %v5843
    %v5847 = vsel %vm5759, 0, %v5845
    %v5848 = vcosq.f32.pop %v5846
    %v5849 = vsinq.f32.pop %v5846
    %vm5850 = vweird.f32 %v647
    %v5851 = vadd.s32 %v5847, 3
    %v5852 = vand.u32 %v5851, 3
    %vm5853 = vcmp.lt.s32.totalorder %v5852, 2
    %vm5854 = vcmp.eq.s32.totalorder %v5852, 0
    %v5855 = vxor.u32 %v5849, 2147483648
    %v5856 = vsel %vm5854, %v5848, %v5855
    %vm5857 = vcmp.eq.s32.totalorder %v5852, 2
    %v5858 = vxor.u32 %v5848, 2147483648
    %v5859 = vsel %vm5857, %v5858, %v5849
    %v5860 = vsel %vm5853, %v5856, %v5859
    %v5861 = vsel %vm5850, nan, %v5860
    %v5862 = vand.u32 2147483647, %v648
    %vm5863 = vcmp.le.f32.partialorder %v5862, 0.7853982
    %vm5864 = vcmp.lt.s32.totalorder %v648, 0
    %v5865 = vand.u32 %v648, 2139095040
    %v5866 = vshrl.u32 %v5865, 23
    %v5867 = vsub.s32 %v5866, 127
    %v5868 = vand.u32 2147483647, %v648
    %v5869 = vand.u32 %v5868, 8388607
    %v5870 = vor.u32 %v5869, 8388608
    %v5871 = vsub.s32 0, %v5870
    %v5872 = vadd.s32 %v5867, 1
    %vm5873 = vcmp.gt.s32.totalorder %v5872, 0
    %v5874 = vsel %vm5873, %v5872, 0
    %v5875 = vshrl.u32 %v5874, 5
    %v5876 = vand.u32 %v5874, 31
    %v5877 = vsub.s32 32, %v5876
    %v5878 = vshrl.u32 683565275, %v5877
    %v5879 = vshll.u32 683565275, %v5876
    %v5880 = vshrl.u32 2475754826, %v5877
    %v5881 = vor.u32 %v5879, %v5880
    %v5882 = vshll.u32 2475754826, %v5876
    %v5883 = vshrl.u32 2131351028, %v5877
    %v5884 = vor.u32 %v5882, %v5883
    %v5885 = vshll.u32 2131351028, %v5876
    %v5886 = vshrl.u32 2102212464, %v5877
    %v5887 = vor.u32 %v5885, %v5886
    %v5888 = vshll.u32 2102212464, %v5876
    %v5889 = vshrl.u32 920167782, %v5877
    %v5890 = vor.u32 %v5888, %v5889
    %v5891 = vshll.u32 920167782, %v5876
    %v5892 = vshrl.u32 1326507024, %v5877
    %v5893 = vor.u32 %v5891, %v5892
    %vm5894 = vcmp.lt.s32.totalorder %v5875, 1
    %vm5895 = vcmp.lt.s32.totalorder %v5875, 2
    %vm5896 = vcmp.lt.s32.totalorder %v5875, 3
    %vm5897 = vcmp.lt.s32.totalorder %v5875, 4
    %v5898 = vsel %vm5894, %v5878, %v5881
    %v5899 = vsel %vm5897, %v5887, 2102212464
    %v5900 = vsel %vm5896, %v5884, %v5899
    %v5901 = vsel %vm5895, %v5898, %v5900
    %v5902 = vsel %vm5894, %v5881, %v5884
    %v5903 = vsel %vm5897, %v5890, 920167782
    %v5904 = vsel %vm5896, %v5887, %v5903
    %v5905 = vsel %vm5895, %v5902, %v5904
    %v5906 = vsel %vm5894, %v5884, %v5887
    %v5907 = vsel %vm5897, %v5893, 1326507024
    %v5908 = vsel %vm5896, %v5890, %v5907
    %v5909 = vsel %vm5895, %v5906, %v5908
    %v5910 = vshll.u32 %v5870, 8
    %v5911 = vmul.u32.u64.compose %v5910, %v5909
    %v5912 = vextract.low.u32 %v5911
    %v5913 = vextract.high.u32 %v5911
    %v5914 = vmul.u32.u64.compose %v5910, %v5905
    %v5915 = vextract.low.u32 %v5914
    %v5916 = vextract.high.u32 %v5914
    %v5917 = vmul.u32 %v5910, %v5901
    %v5918 = vadd.s32 %v5913, %v5915
    %vm5919 = vc.u32 %v5913, %v5915
    %v5920 = vadd.s32 %v5916, 1
    %v5921 = vsel %vm5919, %v5920, %v5916
    %v5922 = vadd.s32 %v5917, %v5921
    %v5923 = vadd.s32 %v5922, 536870912
    %v5924 = vshrl.u32 %v5923, 30
    %v5925 = vshll.u32 %v5924, 30
    %v5926 = vsub.s32 %v5922, %v5925
    %vm5927 = vcmp.lt.s32.totalorder %v5926, 0
    %v5928 = vsub.s32 0, %v5926
    %v5929 = vsel %vm5927, %v5928, %v5926
    %v5930 = vclz %v5929
    %v5931 = vsub.s32 %v5930, 2
    %vm5932 = vcmp.gt.s32.totalorder 0, %v5931
    %v5933 = vsel %vm5932, 0, %v5931
    %v5934 = vsub.s32 32, %v5933
    %v5935 = vshll.u32 %v5926, %v5933
    %v5936 = vshrl.u32 %v5918, %v5934
    %v5937 = vor.u32 %v5935, %v5936
    %v5938 = vsub.s32 4294967266, %v5933
    %v5939 = vadd.s32 %v5938, 127
    %v5940 = vshll.u32 %v5939, 23
    %v5941 = vor.u32 4788187, %v5940
    %v5942 = vand.u32 2147483647, %v5941
    %v5944 = vcvt.s32.f32 %v5937
    %v5945 = vmul.f32 %v5944, %v5942
    %v5946 = vxor.u32 %v5945, 2147483648
    %v5947 = vsel %vm5864, %v5946, %v5945
    %v5948 = vsub.s32 4, %v5924
    %v5949 = vsel %vm5864, %v5948, %v5924
    %v5950 = vsel %vm5863, %v648, %v5947
    %v5951 = vsel %vm5863, 0, %v5949
    %v5952 = vcosq.f32.pop %v5950
    %v5953 = vsinq.f32.pop %v5950
    %vm5954 = vweird.f32 %v648
    %v5955 = vadd.s32 %v5951, 3
    %v5956 = vand.u32 %v5955, 3
    %vm5957 = vcmp.lt.s32.totalorder %v5956, 2
    %vm5958 = vcmp.eq.s32.totalorder %v5956, 0
    %v5959 = vxor.u32 %v5953, 2147483648
    %v5960 = vsel %vm5958, %v5952, %v5959
    %vm5961 = vcmp.eq.s32.totalorder %v5956, 2
    %v5962 = vxor.u32 %v5952, 2147483648
    %v5963 = vsel %vm5961, %v5962, %v5953
    %v5964 = vsel %vm5957, %v5960, %v5963
    %v5965 = vsel %vm5954, nan, %v5964
    %v5966 = vand.u32 2147483647, %v649
    %vm5967 = vcmp.le.f32.partialorder %v5966, 0.7853982
    %vm5968 = vcmp.lt.s32.totalorder %v649, 0
    %v5969 = vand.u32 %v649, 2139095040
    %v5970 = vshrl.u32 %v5969, 23
    %v5971 = vsub.s32 %v5970, 127
    %v5972 = vand.u32 2147483647, %v649
    %v5973 = vand.u32 %v5972, 8388607
    %v5974 = vor.u32 %v5973, 8388608
    %v5975 = vsub.s32 0, %v5974
    %v5976 = vadd.s32 %v5971, 1
    %vm5977 = vcmp.gt.s32.totalorder %v5976, 0
    %v5978 = vsel %vm5977, %v5976, 0
    %v5979 = vshrl.u32 %v5978, 5
    %v5980 = vand.u32 %v5978, 31
    %v5981 = vsub.s32 32, %v5980
    %v5982 = vshrl.u32 683565275, %v5981
    %v5983 = vshll.u32 683565275, %v5980
    %v5984 = vshrl.u32 2475754826, %v5981
    %v5985 = vor.u32 %v5983, %v5984
    %v5986 = vshll.u32 2475754826, %v5980
    %v5987 = vshrl.u32 2131351028, %v5981
    %v5988 = vor.u32 %v5986, %v5987
    %v5989 = vshll.u32 2131351028, %v5980
    %v5990 = vshrl.u32 2102212464, %v5981
    %v5991 = vor.u32 %v5989, %v5990
    %v5992 = vshll.u32 2102212464, %v5980
    %v5993 = vshrl.u32 920167782, %v5981
    %v5994 = vor.u32 %v5992, %v5993
    %v5995 = vshll.u32 920167782, %v5980
    %v5996 = vshrl.u32 1326507024, %v5981
    %v5997 = vor.u32 %v5995, %v5996
    %vm5998 = vcmp.lt.s32.totalorder %v5979, 1
    %vm5999 = vcmp.lt.s32.totalorder %v5979, 2
    %vm6000 = vcmp.lt.s32.totalorder %v5979, 3
    %vm6001 = vcmp.lt.s32.totalorder %v5979, 4
    %v6002 = vsel %vm5998, %v5982, %v5985
    %v6003 = vsel %vm6001, %v5991, 2102212464
    %v6004 = vsel %vm6000, %v5988, %v6003
    %v6005 = vsel %vm5999, %v6002, %v6004
    %v6006 = vsel %vm5998, %v5985, %v5988
    %v6007 = vsel %vm6001, %v5994, 920167782
    %v6008 = vsel %vm6000, %v5991, %v6007
    %v6009 = vsel %vm5999, %v6006, %v6008
    %v6010 = vsel %vm5998, %v5988, %v5991
    %v6011 = vsel %vm6001, %v5997, 1326507024
    %v6012 = vsel %vm6000, %v5994, %v6011
    %v6013 = vsel %vm5999, %v6010, %v6012
    %v6014 = vshll.u32 %v5974, 8
    %v6015 = vmul.u32.u64.compose %v6014, %v6013
    %v6016 = vextract.low.u32 %v6015
    %v6017 = vextract.high.u32 %v6015
    %v6018 = vmul.u32.u64.compose %v6014, %v6009
    %v6019 = vextract.low.u32 %v6018
    %v6020 = vextract.high.u32 %v6018
    %v6021 = vmul.u32 %v6014, %v6005
    %v6022 = vadd.s32 %v6017, %v6019
    %vm6023 = vc.u32 %v6017, %v6019
    %v6024 = vadd.s32 %v6020, 1
    %v6025 = vsel %vm6023, %v6024, %v6020
    %v6026 = vadd.s32 %v6021, %v6025
    %v6027 = vadd.s32 %v6026, 536870912
    %v6028 = vshrl.u32 %v6027, 30
    %v6029 = vshll.u32 %v6028, 30
    %v6030 = vsub.s32 %v6026, %v6029
    %vm6031 = vcmp.lt.s32.totalorder %v6030, 0
    %v6032 = vsub.s32 0, %v6030
    %v6033 = vsel %vm6031, %v6032, %v6030
    %v6034 = vclz %v6033
    %v6035 = vsub.s32 %v6034, 2
    %vm6036 = vcmp.gt.s32.totalorder 0, %v6035
    %v6037 = vsel %vm6036, 0, %v6035
    %v6038 = vsub.s32 32, %v6037
    %v6039 = vshll.u32 %v6030, %v6037
    %v6040 = vshrl.u32 %v6022, %v6038
    %v6041 = vor.u32 %v6039, %v6040
    %v6042 = vsub.s32 4294967266, %v6037
    %v6043 = vadd.s32 %v6042, 127
    %v6044 = vshll.u32 %v6043, 23
    %v6045 = vor.u32 4788187, %v6044
    %v6046 = vand.u32 2147483647, %v6045
    %v6048 = vcvt.s32.f32 %v6041
    %v6049 = vmul.f32 %v6048, %v6046
    %v6050 = vxor.u32 %v6049, 2147483648
    %v6051 = vsel %vm5968, %v6050, %v6049
    %v6052 = vsub.s32 4, %v6028
    %v6053 = vsel %vm5968, %v6052, %v6028
    %v6054 = vsel %vm5967, %v649, %v6051
    %v6055 = vsel %vm5967, 0, %v6053
    %v6056 = vcosq.f32.pop %v6054
    %v6057 = vsinq.f32.pop %v6054
    %vm6058 = vweird.f32 %v649
    %v6059 = vadd.s32 %v6055, 3
    %v6060 = vand.u32 %v6059, 3
    %vm6061 = vcmp.lt.s32.totalorder %v6060, 2
    %vm6062 = vcmp.eq.s32.totalorder %v6060, 0
    %v6063 = vxor.u32 %v6057, 2147483648
    %v6064 = vsel %vm6062, %v6056, %v6063
    %vm6065 = vcmp.eq.s32.totalorder %v6060, 2
    %v6066 = vxor.u32 %v6056, 2147483648
    %v6067 = vsel %vm6065, %v6066, %v6057
    %v6068 = vsel %vm6061, %v6064, %v6067
    %v6069 = vsel %vm6058, nan, %v6068
    %v6070 = vand.u32 2147483647, %v650
    %vm6071 = vcmp.le.f32.partialorder %v6070, 0.7853982
    %vm6072 = vcmp.lt.s32.totalorder %v650, 0
    %v6073 = vand.u32 %v650, 2139095040
    %v6074 = vshrl.u32 %v6073, 23
    %v6075 = vsub.s32 %v6074, 127
    %v6076 = vand.u32 2147483647, %v650
    %v6077 = vand.u32 %v6076, 8388607
    %v6078 = vor.u32 %v6077, 8388608
    %v6079 = vsub.s32 0, %v6078
    %v6080 = vadd.s32 %v6075, 1
    %vm6081 = vcmp.gt.s32.totalorder %v6080, 0
    %v6082 = vsel %vm6081, %v6080, 0
    %v6083 = vshrl.u32 %v6082, 5
    %v6084 = vand.u32 %v6082, 31
    %v6085 = vsub.s32 32, %v6084
    %v6086 = vshrl.u32 683565275, %v6085
    %v6087 = vshll.u32 683565275, %v6084
    %v6088 = vshrl.u32 2475754826, %v6085
    %v6089 = vor.u32 %v6087, %v6088
    %v6090 = vshll.u32 2475754826, %v6084
    %v6091 = vshrl.u32 2131351028, %v6085
    %v6092 = vor.u32 %v6090, %v6091
    %v6093 = vshll.u32 2131351028, %v6084
    %v6094 = vshrl.u32 2102212464, %v6085
    %v6095 = vor.u32 %v6093, %v6094
    %v6096 = vshll.u32 2102212464, %v6084
    %v6097 = vshrl.u32 920167782, %v6085
    %v6098 = vor.u32 %v6096, %v6097
    %v6099 = vshll.u32 920167782, %v6084
    %v6100 = vshrl.u32 1326507024, %v6085
    %v6101 = vor.u32 %v6099, %v6100
    %vm6102 = vcmp.lt.s32.totalorder %v6083, 1
    %vm6103 = vcmp.lt.s32.totalorder %v6083, 2
    %vm6104 = vcmp.lt.s32.totalorder %v6083, 3
    %vm6105 = vcmp.lt.s32.totalorder %v6083, 4
    %v6106 = vsel %vm6102, %v6086, %v6089
    %v6107 = vsel %vm6105, %v6095, 2102212464
    %v6108 = vsel %vm6104, %v6092, %v6107
    %v6109 = vsel %vm6103, %v6106, %v6108
    %v6110 = vsel %vm6102, %v6089, %v6092
    %v6111 = vsel %vm6105, %v6098, 920167782
    %v6112 = vsel %vm6104, %v6095, %v6111
    %v6113 = vsel %vm6103, %v6110, %v6112
    %v6114 = vsel %vm6102, %v6092, %v6095
    %v6115 = vsel %vm6105, %v6101, 1326507024
    %v6116 = vsel %vm6104, %v6098, %v6115
    %v6117 = vsel %vm6103, %v6114, %v6116
    %v6118 = vshll.u32 %v6078, 8
    %v6119 = vmul.u32.u64.compose %v6118, %v6117
    %v6120 = vextract.low.u32 %v6119
    %v6121 = vextract.high.u32 %v6119
    %v6122 = vmul.u32.u64.compose %v6118, %v6113
    %v6123 = vextract.low.u32 %v6122
    %v6124 = vextract.high.u32 %v6122
    %v6125 = vmul.u32 %v6118, %v6109
    %v6126 = vadd.s32 %v6121, %v6123
    %vm6127 = vc.u32 %v6121, %v6123
    %v6128 = vadd.s32 %v6124, 1
    %v6129 = vsel %vm6127, %v6128, %v6124
    %v6130 = vadd.s32 %v6125, %v6129
    %v6131 = vadd.s32 %v6130, 536870912
    %v6132 = vshrl.u32 %v6131, 30
    %v6133 = vshll.u32 %v6132, 30
    %v6134 = vsub.s32 %v6130, %v6133
    %vm6135 = vcmp.lt.s32.totalorder %v6134, 0
    %v6136 = vsub.s32 0, %v6134
    %v6137 = vsel %vm6135, %v6136, %v6134
    %v6138 = vclz %v6137
    %v6139 = vsub.s32 %v6138, 2
    %vm6140 = vcmp.gt.s32.totalorder 0, %v6139
    %v6141 = vsel %vm6140, 0, %v6139
    %v6142 = vsub.s32 32, %v6141
    %v6143 = vshll.u32 %v6134, %v6141
    %v6144 = vshrl.u32 %v6126, %v6142
    %v6145 = vor.u32 %v6143, %v6144
    %v6146 = vsub.s32 4294967266, %v6141
    %v6147 = vadd.s32 %v6146, 127
    %v6148 = vshll.u32 %v6147, 23
    %v6149 = vor.u32 4788187, %v6148
    %v6150 = vand.u32 2147483647, %v6149
    %v6152 = vcvt.s32.f32 %v6145
    %v6153 = vmul.f32 %v6152, %v6150
    %v6154 = vxor.u32 %v6153, 2147483648
    %v6155 = vsel %vm6072, %v6154, %v6153
    %v6156 = vsub.s32 4, %v6132
    %v6157 = vsel %vm6072, %v6156, %v6132
    %v6158 = vsel %vm6071, %v650, %v6155
    %v6159 = vsel %vm6071, 0, %v6157
    %v6160 = vcosq.f32.pop %v6158
    %v6161 = vsinq.f32.pop %v6158
    %vm6162 = vweird.f32 %v650
    %v6163 = vadd.s32 %v6159, 3
    %v6164 = vand.u32 %v6163, 3
    %vm6165 = vcmp.lt.s32.totalorder %v6164, 2
    %vm6166 = vcmp.eq.s32.totalorder %v6164, 0
    %v6167 = vxor.u32 %v6161, 2147483648
    %v6168 = vsel %vm6166, %v6160, %v6167
    %vm6169 = vcmp.eq.s32.totalorder %v6164, 2
    %v6170 = vxor.u32 %v6160, 2147483648
    %v6171 = vsel %vm6169, %v6170, %v6161
    %v6172 = vsel %vm6165, %v6168, %v6171
    %v6173 = vsel %vm6162, nan, %v6172
    %v6174 = vand.u32 2147483647, %v651
    %vm6175 = vcmp.le.f32.partialorder %v6174, 0.7853982
    %vm6176 = vcmp.lt.s32.totalorder %v651, 0
    %v6177 = vand.u32 %v651, 2139095040
    %v6178 = vshrl.u32 %v6177, 23
    %v6179 = vsub.s32 %v6178, 127
    %v6180 = vand.u32 2147483647, %v651
    %v6181 = vand.u32 %v6180, 8388607
    %v6182 = vor.u32 %v6181, 8388608
    %v6183 = vsub.s32 0, %v6182
    %v6184 = vadd.s32 %v6179, 1
    %vm6185 = vcmp.gt.s32.totalorder %v6184, 0
    %v6186 = vsel %vm6185, %v6184, 0
    %v6187 = vshrl.u32 %v6186, 5
    %v6188 = vand.u32 %v6186, 31
    %v6189 = vsub.s32 32, %v6188
    %v6190 = vshrl.u32 683565275, %v6189
    %v6191 = vshll.u32 683565275, %v6188
    %v6192 = vshrl.u32 2475754826, %v6189
    %v6193 = vor.u32 %v6191, %v6192
    %v6194 = vshll.u32 2475754826, %v6188
    %v6195 = vshrl.u32 2131351028, %v6189
    %v6196 = vor.u32 %v6194, %v6195
    %v6197 = vshll.u32 2131351028, %v6188
    %v6198 = vshrl.u32 2102212464, %v6189
    %v6199 = vor.u32 %v6197, %v6198
    %v6200 = vshll.u32 2102212464, %v6188
    %v6201 = vshrl.u32 920167782, %v6189
    %v6202 = vor.u32 %v6200, %v6201
    %v6203 = vshll.u32 920167782, %v6188
    %v6204 = vshrl.u32 1326507024, %v6189
    %v6205 = vor.u32 %v6203, %v6204
    %vm6206 = vcmp.lt.s32.totalorder %v6187, 1
    %vm6207 = vcmp.lt.s32.totalorder %v6187, 2
    %vm6208 = vcmp.lt.s32.totalorder %v6187, 3
    %vm6209 = vcmp.lt.s32.totalorder %v6187, 4
    %v6210 = vsel %vm6206, %v6190, %v6193
    %v6211 = vsel %vm6209, %v6199, 2102212464
    %v6212 = vsel %vm6208, %v6196, %v6211
    %v6213 = vsel %vm6207, %v6210, %v6212
    %v6214 = vsel %vm6206, %v6193, %v6196
    %v6215 = vsel %vm6209, %v6202, 920167782
    %v6216 = vsel %vm6208, %v6199, %v6215
    %v6217 = vsel %vm6207, %v6214, %v6216
    %v6218 = vsel %vm6206, %v6196, %v6199
    %v6219 = vsel %vm6209, %v6205, 1326507024
    %v6220 = vsel %vm6208, %v6202, %v6219
    %v6221 = vsel %vm6207, %v6218, %v6220
    %v6222 = vshll.u32 %v6182, 8
    %v6223 = vmul.u32.u64.compose %v6222, %v6221
    %v6224 = vextract.low.u32 %v6223
    %v6225 = vextract.high.u32 %v6223
    %v6226 = vmul.u32.u64.compose %v6222, %v6217
    %v6227 = vextract.low.u32 %v6226
    %v6228 = vextract.high.u32 %v6226
    %v6229 = vmul.u32 %v6222, %v6213
    %v6230 = vadd.s32 %v6225, %v6227
    %vm6231 = vc.u32 %v6225, %v6227
    %v6232 = vadd.s32 %v6228, 1
    %v6233 = vsel %vm6231, %v6232, %v6228
    %v6234 = vadd.s32 %v6229, %v6233
    %v6235 = vadd.s32 %v6234, 536870912
    %v6236 = vshrl.u32 %v6235, 30
    %v6237 = vshll.u32 %v6236, 30
    %v6238 = vsub.s32 %v6234, %v6237
    %vm6239 = vcmp.lt.s32.totalorder %v6238, 0
    %v6240 = vsub.s32 0, %v6238
    %v6241 = vsel %vm6239, %v6240, %v6238
    %v6242 = vclz %v6241
    %v6243 = vsub.s32 %v6242, 2
    %vm6244 = vcmp.gt.s32.totalorder 0, %v6243
    %v6245 = vsel %vm6244, 0, %v6243
    %v6246 = vsub.s32 32, %v6245
    %v6247 = vshll.u32 %v6238, %v6245
    %v6248 = vshrl.u32 %v6230, %v6246
    %v6249 = vor.u32 %v6247, %v6248
    %v6250 = vsub.s32 4294967266, %v6245
    %v6251 = vadd.s32 %v6250, 127
    %v6252 = vshll.u32 %v6251, 23
    %v6253 = vor.u32 4788187, %v6252
    %v6254 = vand.u32 2147483647, %v6253
    %v6256 = vcvt.s32.f32 %v6249
    %v6257 = vmul.f32 %v6256, %v6254
    %v6258 = vxor.u32 %v6257, 2147483648
    %v6259 = vsel %vm6176, %v6258, %v6257
    %v6260 = vsub.s32 4, %v6236
    %v6261 = vsel %vm6176, %v6260, %v6236
    %v6262 = vsel %vm6175, %v651, %v6259
    %v6263 = vsel %vm6175, 0, %v6261
    %v6264 = vcosq.f32.pop %v6262
    %v6265 = vsinq.f32.pop %v6262
    %vm6266 = vweird.f32 %v651
    %v6267 = vadd.s32 %v6263, 3
    %v6268 = vand.u32 %v6267, 3
    %vm6269 = vcmp.lt.s32.totalorder %v6268, 2
    %vm6270 = vcmp.eq.s32.totalorder %v6268, 0
    %v6271 = vxor.u32 %v6265, 2147483648
    %v6272 = vsel %vm6270, %v6264, %v6271
    %vm6273 = vcmp.eq.s32.totalorder %v6268, 2
    %v6274 = vxor.u32 %v6264, 2147483648
    %v6275 = vsel %vm6273, %v6274, %v6265
    %v6276 = vsel %vm6269, %v6272, %v6275
    %v6277 = vsel %vm6266, nan, %v6276
    %v6278 = vand.u32 2147483647, %v652
    %vm6279 = vcmp.le.f32.partialorder %v6278, 0.7853982
    %vm6280 = vcmp.lt.s32.totalorder %v652, 0
    %v6281 = vand.u32 %v652, 2139095040
    %v6282 = vshrl.u32 %v6281, 23
    %v6283 = vsub.s32 %v6282, 127
    %v6284 = vand.u32 2147483647, %v652
    %v6285 = vand.u32 %v6284, 8388607
    %v6286 = vor.u32 %v6285, 8388608
    %v6287 = vsub.s32 0, %v6286
    %v6288 = vadd.s32 %v6283, 1
    %vm6289 = vcmp.gt.s32.totalorder %v6288, 0
    %v6290 = vsel %vm6289, %v6288, 0
    %v6291 = vshrl.u32 %v6290, 5
    %v6292 = vand.u32 %v6290, 31
    %v6293 = vsub.s32 32, %v6292
    %v6294 = vshrl.u32 683565275, %v6293
    %v6295 = vshll.u32 683565275, %v6292
    %v6296 = vshrl.u32 2475754826, %v6293
    %v6297 = vor.u32 %v6295, %v6296
    %v6298 = vshll.u32 2475754826, %v6292
    %v6299 = vshrl.u32 2131351028, %v6293
    %v6300 = vor.u32 %v6298, %v6299
    %v6301 = vshll.u32 2131351028, %v6292
    %v6302 = vshrl.u32 2102212464, %v6293
    %v6303 = vor.u32 %v6301, %v6302
    %v6304 = vshll.u32 2102212464, %v6292
    %v6305 = vshrl.u32 920167782, %v6293
    %v6306 = vor.u32 %v6304, %v6305
    %v6307 = vshll.u32 920167782, %v6292
    %v6308 = vshrl.u32 1326507024, %v6293
    %v6309 = vor.u32 %v6307, %v6308
    %vm6310 = vcmp.lt.s32.totalorder %v6291, 1
    %vm6311 = vcmp.lt.s32.totalorder %v6291, 2
    %vm6312 = vcmp.lt.s32.totalorder %v6291, 3
    %vm6313 = vcmp.lt.s32.totalorder %v6291, 4
    %v6314 = vsel %vm6310, %v6294, %v6297
    %v6315 = vsel %vm6313, %v6303, 2102212464
    %v6316 = vsel %vm6312, %v6300, %v6315
    %v6317 = vsel %vm6311, %v6314, %v6316
    %v6318 = vsel %vm6310, %v6297, %v6300
    %v6319 = vsel %vm6313, %v6306, 920167782
    %v6320 = vsel %vm6312, %v6303, %v6319
    %v6321 = vsel %vm6311, %v6318, %v6320
    %v6322 = vsel %vm6310, %v6300, %v6303
    %v6323 = vsel %vm6313, %v6309, 1326507024
    %v6324 = vsel %vm6312, %v6306, %v6323
    %v6325 = vsel %vm6311, %v6322, %v6324
    %v6326 = vshll.u32 %v6286, 8
    %v6327 = vmul.u32.u64.compose %v6326, %v6325
    %v6328 = vextract.low.u32 %v6327
    %v6329 = vextract.high.u32 %v6327
    %v6330 = vmul.u32.u64.compose %v6326, %v6321
    %v6331 = vextract.low.u32 %v6330
    %v6332 = vextract.high.u32 %v6330
    %v6333 = vmul.u32 %v6326, %v6317
    %v6334 = vadd.s32 %v6329, %v6331
    %vm6335 = vc.u32 %v6329, %v6331
    %v6336 = vadd.s32 %v6332, 1
    %v6337 = vsel %vm6335, %v6336, %v6332
    %v6338 = vadd.s32 %v6333, %v6337
    %v6339 = vadd.s32 %v6338, 536870912
    %v6340 = vshrl.u32 %v6339, 30
    %v6341 = vshll.u32 %v6340, 30
    %v6342 = vsub.s32 %v6338, %v6341
    %vm6343 = vcmp.lt.s32.totalorder %v6342, 0
    %v6344 = vsub.s32 0, %v6342
    %v6345 = vsel %vm6343, %v6344, %v6342
    %v6346 = vclz %v6345
    %v6347 = vsub.s32 %v6346, 2
    %vm6348 = vcmp.gt.s32.totalorder 0, %v6347
    %v6349 = vsel %vm6348, 0, %v6347
    %v6350 = vsub.s32 32, %v6349
    %v6351 = vshll.u32 %v6342, %v6349
    %v6352 = vshrl.u32 %v6334, %v6350
    %v6353 = vor.u32 %v6351, %v6352
    %v6354 = vsub.s32 4294967266, %v6349
    %v6355 = vadd.s32 %v6354, 127
    %v6356 = vshll.u32 %v6355, 23
    %v6357 = vor.u32 4788187, %v6356
    %v6358 = vand.u32 2147483647, %v6357
    %v6360 = vcvt.s32.f32 %v6353
    %v6361 = vmul.f32 %v6360, %v6358
    %v6362 = vxor.u32 %v6361, 2147483648
    %v6363 = vsel %vm6280, %v6362, %v6361
    %v6364 = vsub.s32 4, %v6340
    %v6365 = vsel %vm6280, %v6364, %v6340
    %v6366 = vsel %vm6279, %v652, %v6363
    %v6367 = vsel %vm6279, 0, %v6365
    %v6368 = vcosq.f32.pop %v6366
    %v6369 = vsinq.f32.pop %v6366
    %vm6370 = vweird.f32 %v652
    %v6371 = vadd.s32 %v6367, 3
    %v6372 = vand.u32 %v6371, 3
    %vm6373 = vcmp.lt.s32.totalorder %v6372, 2
    %vm6374 = vcmp.eq.s32.totalorder %v6372, 0
    %v6375 = vxor.u32 %v6369, 2147483648
    %v6376 = vsel %vm6374, %v6368, %v6375
    %vm6377 = vcmp.eq.s32.totalorder %v6372, 2
    %v6378 = vxor.u32 %v6368, 2147483648
    %v6379 = vsel %vm6377, %v6378, %v6369
    %v6380 = vsel %vm6373, %v6376, %v6379
    %v6381 = vsel %vm6370, nan, %v6380
    %v6382 = vand.u32 2147483647, %v653
    %vm6383 = vcmp.le.f32.partialorder %v6382, 0.7853982
    %vm6384 = vcmp.lt.s32.totalorder %v653, 0
    %v6385 = vand.u32 %v653, 2139095040
    %v6386 = vshrl.u32 %v6385, 23
    %v6387 = vsub.s32 %v6386, 127
    %v6388 = vand.u32 2147483647, %v653
    %v6389 = vand.u32 %v6388, 8388607
    %v6390 = vor.u32 %v6389, 8388608
    %v6391 = vsub.s32 0, %v6390
    %v6392 = vadd.s32 %v6387, 1
    %vm6393 = vcmp.gt.s32.totalorder %v6392, 0
    %v6394 = vsel %vm6393, %v6392, 0
    %v6395 = vshrl.u32 %v6394, 5
    %v6396 = vand.u32 %v6394, 31
    %v6397 = vsub.s32 32, %v6396
    %v6398 = vshrl.u32 683565275, %v6397
    %v6399 = vshll.u32 683565275, %v6396
    %v6400 = vshrl.u32 2475754826, %v6397
    %v6401 = vor.u32 %v6399, %v6400
    %v6402 = vshll.u32 2475754826, %v6396
    %v6403 = vshrl.u32 2131351028, %v6397
    %v6404 = vor.u32 %v6402, %v6403
    %v6405 = vshll.u32 2131351028, %v6396
    %v6406 = vshrl.u32 2102212464, %v6397
    %v6407 = vor.u32 %v6405, %v6406
    %v6408 = vshll.u32 2102212464, %v6396
    %v6409 = vshrl.u32 920167782, %v6397
    %v6410 = vor.u32 %v6408, %v6409
    %v6411 = vshll.u32 920167782, %v6396
    %v6412 = vshrl.u32 1326507024, %v6397
    %v6413 = vor.u32 %v6411, %v6412
    %vm6414 = vcmp.lt.s32.totalorder %v6395, 1
    %vm6415 = vcmp.lt.s32.totalorder %v6395, 2
    %vm6416 = vcmp.lt.s32.totalorder %v6395, 3
    %vm6417 = vcmp.lt.s32.totalorder %v6395, 4
    %v6418 = vsel %vm6414, %v6398, %v6401
    %v6419 = vsel %vm6417, %v6407, 2102212464
    %v6420 = vsel %vm6416, %v6404, %v6419
    %v6421 = vsel %vm6415, %v6418, %v6420
    %v6422 = vsel %vm6414, %v6401, %v6404
    %v6423 = vsel %vm6417, %v6410, 920167782
    %v6424 = vsel %vm6416, %v6407, %v6423
    %v6425 = vsel %vm6415, %v6422, %v6424
    %v6426 = vsel %vm6414, %v6404, %v6407
    %v6427 = vsel %vm6417, %v6413, 1326507024
    %v6428 = vsel %vm6416, %v6410, %v6427
    %v6429 = vsel %vm6415, %v6426, %v6428
    %v6430 = vshll.u32 %v6390, 8
    %v6431 = vmul.u32.u64.compose %v6430, %v6429
    %v6432 = vextract.low.u32 %v6431
    %v6433 = vextract.high.u32 %v6431
    %v6434 = vmul.u32.u64.compose %v6430, %v6425
    %v6435 = vextract.low.u32 %v6434
    %v6436 = vextract.high.u32 %v6434
    %v6437 = vmul.u32 %v6430, %v6421
    %v6438 = vadd.s32 %v6433, %v6435
    %vm6439 = vc.u32 %v6433, %v6435
    %v6440 = vadd.s32 %v6436, 1
    %v6441 = vsel %vm6439, %v6440, %v6436
    %v6442 = vadd.s32 %v6437, %v6441
    %v6443 = vadd.s32 %v6442, 536870912
    %v6444 = vshrl.u32 %v6443, 30
    %v6445 = vshll.u32 %v6444, 30
    %v6446 = vsub.s32 %v6442, %v6445
    %vm6447 = vcmp.lt.s32.totalorder %v6446, 0
    %v6448 = vsub.s32 0, %v6446
    %v6449 = vsel %vm6447, %v6448, %v6446
    %v6450 = vclz %v6449
    %v6451 = vsub.s32 %v6450, 2
    %vm6452 = vcmp.gt.s32.totalorder 0, %v6451
    %v6453 = vsel %vm6452, 0, %v6451
    %v6454 = vsub.s32 32, %v6453
    %v6455 = vshll.u32 %v6446, %v6453
    %v6456 = vshrl.u32 %v6438, %v6454
    %v6457 = vor.u32 %v6455, %v6456
    %v6458 = vsub.s32 4294967266, %v6453
    %v6459 = vadd.s32 %v6458, 127
    %v6460 = vshll.u32 %v6459, 23
    %v6461 = vor.u32 4788187, %v6460
    %v6462 = vand.u32 2147483647, %v6461
    %v6464 = vcvt.s32.f32 %v6457
    %v6465 = vmul.f32 %v6464, %v6462
    %v6466 = vxor.u32 %v6465, 2147483648
    %v6467 = vsel %vm6384, %v6466, %v6465
    %v6468 = vsub.s32 4, %v6444
    %v6469 = vsel %vm6384, %v6468, %v6444
    %v6470 = vsel %vm6383, %v653, %v6467
    %v6471 = vsel %vm6383, 0, %v6469
    %v6472 = vcosq.f32.pop %v6470
    %v6473 = vsinq.f32.pop %v6470
    %vm6474 = vweird.f32 %v653
    %v6475 = vadd.s32 %v6471, 3
    %v6476 = vand.u32 %v6475, 3
    %vm6477 = vcmp.lt.s32.totalorder %v6476, 2
    %vm6478 = vcmp.eq.s32.totalorder %v6476, 0
    %v6479 = vxor.u32 %v6473, 2147483648
    %v6480 = vsel %vm6478, %v6472, %v6479
    %vm6481 = vcmp.eq.s32.totalorder %v6476, 2
    %v6482 = vxor.u32 %v6472, 2147483648
    %v6483 = vsel %vm6481, %v6482, %v6473
    %v6484 = vsel %vm6477, %v6480, %v6483
    %v6485 = vsel %vm6474, nan, %v6484
    %v6486 = vand.u32 2147483647, %v654
    %vm6487 = vcmp.le.f32.partialorder %v6486, 0.7853982
    %vm6488 = vcmp.lt.s32.totalorder %v654, 0
    %v6489 = vand.u32 %v654, 2139095040
    %v6490 = vshrl.u32 %v6489, 23
    %v6491 = vsub.s32 %v6490, 127
    %v6492 = vand.u32 2147483647, %v654
    %v6493 = vand.u32 %v6492, 8388607
    %v6494 = vor.u32 %v6493, 8388608
    %v6495 = vsub.s32 0, %v6494
    %v6496 = vadd.s32 %v6491, 1
    %vm6497 = vcmp.gt.s32.totalorder %v6496, 0
    %v6498 = vsel %vm6497, %v6496, 0
    %v6499 = vshrl.u32 %v6498, 5
    %v6500 = vand.u32 %v6498, 31
    %v6501 = vsub.s32 32, %v6500
    %v6502 = vshrl.u32 683565275, %v6501
    %v6503 = vshll.u32 683565275, %v6500
    %v6504 = vshrl.u32 2475754826, %v6501
    %v6505 = vor.u32 %v6503, %v6504
    %v6506 = vshll.u32 2475754826, %v6500
    %v6507 = vshrl.u32 2131351028, %v6501
    %v6508 = vor.u32 %v6506, %v6507
    %v6509 = vshll.u32 2131351028, %v6500
    %v6510 = vshrl.u32 2102212464, %v6501
    %v6511 = vor.u32 %v6509, %v6510
    %v6512 = vshll.u32 2102212464, %v6500
    %v6513 = vshrl.u32 920167782, %v6501
    %v6514 = vor.u32 %v6512, %v6513
    %v6515 = vshll.u32 920167782, %v6500
    %v6516 = vshrl.u32 1326507024, %v6501
    %v6517 = vor.u32 %v6515, %v6516
    %vm6518 = vcmp.lt.s32.totalorder %v6499, 1
    %vm6519 = vcmp.lt.s32.totalorder %v6499, 2
    %vm6520 = vcmp.lt.s32.totalorder %v6499, 3
    %vm6521 = vcmp.lt.s32.totalorder %v6499, 4
    %v6522 = vsel %vm6518, %v6502, %v6505
    %v6523 = vsel %vm6521, %v6511, 2102212464
    %v6524 = vsel %vm6520, %v6508, %v6523
    %v6525 = vsel %vm6519, %v6522, %v6524
    %v6526 = vsel %vm6518, %v6505, %v6508
    %v6527 = vsel %vm6521, %v6514, 920167782
    %v6528 = vsel %vm6520, %v6511, %v6527
    %v6529 = vsel %vm6519, %v6526, %v6528
    %v6530 = vsel %vm6518, %v6508, %v6511
    %v6531 = vsel %vm6521, %v6517, 1326507024
    %v6532 = vsel %vm6520, %v6514, %v6531
    %v6533 = vsel %vm6519, %v6530, %v6532
    %v6534 = vshll.u32 %v6494, 8
    %v6535 = vmul.u32.u64.compose %v6534, %v6533
    %v6536 = vextract.low.u32 %v6535
    %v6537 = vextract.high.u32 %v6535
    %v6538 = vmul.u32.u64.compose %v6534, %v6529
    %v6539 = vextract.low.u32 %v6538
    %v6540 = vextract.high.u32 %v6538
    %v6541 = vmul.u32 %v6534, %v6525
    %v6542 = vadd.s32 %v6537, %v6539
    %vm6543 = vc.u32 %v6537, %v6539
    %v6544 = vadd.s32 %v6540, 1
    %v6545 = vsel %vm6543, %v6544, %v6540
    %v6546 = vadd.s32 %v6541, %v6545
    %v6547 = vadd.s32 %v6546, 536870912
    %v6548 = vshrl.u32 %v6547, 30
    %v6549 = vshll.u32 %v6548, 30
    %v6550 = vsub.s32 %v6546, %v6549
    %vm6551 = vcmp.lt.s32.totalorder %v6550, 0
    %v6552 = vsub.s32 0, %v6550
    %v6553 = vsel %vm6551, %v6552, %v6550
    %v6554 = vclz %v6553
    %v6555 = vsub.s32 %v6554, 2
    %vm6556 = vcmp.gt.s32.totalorder 0, %v6555
    %v6557 = vsel %vm6556, 0, %v6555
    %v6558 = vsub.s32 32, %v6557
    %v6559 = vshll.u32 %v6550, %v6557
    %v6560 = vshrl.u32 %v6542, %v6558
    %v6561 = vor.u32 %v6559, %v6560
    %v6562 = vsub.s32 4294967266, %v6557
    %v6563 = vadd.s32 %v6562, 127
    %v6564 = vshll.u32 %v6563, 23
    %v6565 = vor.u32 4788187, %v6564
    %v6566 = vand.u32 2147483647, %v6565
    %v6568 = vcvt.s32.f32 %v6561
    %v6569 = vmul.f32 %v6568, %v6566
    %v6570 = vxor.u32 %v6569, 2147483648
    %v6571 = vsel %vm6488, %v6570, %v6569
    %v6572 = vsub.s32 4, %v6548
    %v6573 = vsel %vm6488, %v6572, %v6548
    %v6574 = vsel %vm6487, %v654, %v6571
    %v6575 = vsel %vm6487, 0, %v6573
    %v6576 = vcosq.f32.pop %v6574
    %v6577 = vsinq.f32.pop %v6574
    %vm6578 = vweird.f32 %v654
    %v6579 = vadd.s32 %v6575, 3
    %v6580 = vand.u32 %v6579, 3
    %vm6581 = vcmp.lt.s32.totalorder %v6580, 2
    %vm6582 = vcmp.eq.s32.totalorder %v6580, 0
    %v6583 = vxor.u32 %v6577, 2147483648
    %v6584 = vsel %vm6582, %v6576, %v6583
    %vm6585 = vcmp.eq.s32.totalorder %v6580, 2
    %v6586 = vxor.u32 %v6576, 2147483648
    %v6587 = vsel %vm6585, %v6586, %v6577
    %v6588 = vsel %vm6581, %v6584, %v6587
    %v6589 = vsel %vm6578, nan, %v6588
    %v6590 = vand.u32 2147483647, %v655
    %vm6591 = vcmp.le.f32.partialorder %v6590, 0.7853982
    %vm6592 = vcmp.lt.s32.totalorder %v655, 0
    %v6593 = vand.u32 %v655, 2139095040
    %v6594 = vshrl.u32 %v6593, 23
    %v6595 = vsub.s32 %v6594, 127
    %v6596 = vand.u32 2147483647, %v655
    %v6597 = vand.u32 %v6596, 8388607
    %v6598 = vor.u32 %v6597, 8388608
    %v6599 = vsub.s32 0, %v6598
    %v6600 = vadd.s32 %v6595, 1
    %vm6601 = vcmp.gt.s32.totalorder %v6600, 0
    %v6602 = vsel %vm6601, %v6600, 0
    %v6603 = vshrl.u32 %v6602, 5
    %v6604 = vand.u32 %v6602, 31
    %v6605 = vsub.s32 32, %v6604
    %v6606 = vshrl.u32 683565275, %v6605
    %v6607 = vshll.u32 683565275, %v6604
    %v6608 = vshrl.u32 2475754826, %v6605
    %v6609 = vor.u32 %v6607, %v6608
    %v6610 = vshll.u32 2475754826, %v6604
    %v6611 = vshrl.u32 2131351028, %v6605
    %v6612 = vor.u32 %v6610, %v6611
    %v6613 = vshll.u32 2131351028, %v6604
    %v6614 = vshrl.u32 2102212464, %v6605
    %v6615 = vor.u32 %v6613, %v6614
    %v6616 = vshll.u32 2102212464, %v6604
    %v6617 = vshrl.u32 920167782, %v6605
    %v6618 = vor.u32 %v6616, %v6617
    %v6619 = vshll.u32 920167782, %v6604
    %v6620 = vshrl.u32 1326507024, %v6605
    %v6621 = vor.u32 %v6619, %v6620
    %vm6622 = vcmp.lt.s32.totalorder %v6603, 1
    %vm6623 = vcmp.lt.s32.totalorder %v6603, 2
    %vm6624 = vcmp.lt.s32.totalorder %v6603, 3
    %vm6625 = vcmp.lt.s32.totalorder %v6603, 4
    %v6626 = vsel %vm6622, %v6606, %v6609
    %v6627 = vsel %vm6625, %v6615, 2102212464
    %v6628 = vsel %vm6624, %v6612, %v6627
    %v6629 = vsel %vm6623, %v6626, %v6628
    %v6630 = vsel %vm6622, %v6609, %v6612
    %v6631 = vsel %vm6625, %v6618, 920167782
    %v6632 = vsel %vm6624, %v6615, %v6631
    %v6633 = vsel %vm6623, %v6630, %v6632
    %v6634 = vsel %vm6622, %v6612, %v6615
    %v6635 = vsel %vm6625, %v6621, 1326507024
    %v6636 = vsel %vm6624, %v6618, %v6635
    %v6637 = vsel %vm6623, %v6634, %v6636
    %v6638 = vshll.u32 %v6598, 8
    %v6639 = vmul.u32.u64.compose %v6638, %v6637
    %v6640 = vextract.low.u32 %v6639
    %v6641 = vextract.high.u32 %v6639
    %v6642 = vmul.u32.u64.compose %v6638, %v6633
    %v6643 = vextract.low.u32 %v6642
    %v6644 = vextract.high.u32 %v6642
    %v6645 = vmul.u32 %v6638, %v6629
    %v6646 = vadd.s32 %v6641, %v6643
    %vm6647 = vc.u32 %v6641, %v6643
    %v6648 = vadd.s32 %v6644, 1
    %v6649 = vsel %vm6647, %v6648, %v6644
    %v6650 = vadd.s32 %v6645, %v6649
    %v6651 = vadd.s32 %v6650, 536870912
    %v6652 = vshrl.u32 %v6651, 30
    %v6653 = vshll.u32 %v6652, 30
    %v6654 = vsub.s32 %v6650, %v6653
    %vm6655 = vcmp.lt.s32.totalorder %v6654, 0
    %v6656 = vsub.s32 0, %v6654
    %v6657 = vsel %vm6655, %v6656, %v6654
    %v6658 = vclz %v6657
    %v6659 = vsub.s32 %v6658, 2
    %vm6660 = vcmp.gt.s32.totalorder 0, %v6659
    %v6661 = vsel %vm6660, 0, %v6659
    %v6662 = vsub.s32 32, %v6661
    %v6663 = vshll.u32 %v6654, %v6661
    %v6664 = vshrl.u32 %v6646, %v6662
    %v6665 = vor.u32 %v6663, %v6664
    %v6666 = vsub.s32 4294967266, %v6661
    %v6667 = vadd.s32 %v6666, 127
    %v6668 = vshll.u32 %v6667, 23
    %v6669 = vor.u32 4788187, %v6668
    %v6670 = vand.u32 2147483647, %v6669
    %v6672 = vcvt.s32.f32 %v6665
    %v6673 = vmul.f32 %v6672, %v6670
    %v6674 = vxor.u32 %v6673, 2147483648
    %v6675 = vsel %vm6592, %v6674, %v6673
    %v6676 = vsub.s32 4, %v6652
    %v6677 = vsel %vm6592, %v6676, %v6652
    %v6678 = vsel %vm6591, %v655, %v6675
    %v6679 = vsel %vm6591, 0, %v6677
    %v6680 = vcosq.f32.pop %v6678
    %v6681 = vsinq.f32.pop %v6678
    %vm6682 = vweird.f32 %v655
    %v6683 = vadd.s32 %v6679, 3
    %v6684 = vand.u32 %v6683, 3
    %vm6685 = vcmp.lt.s32.totalorder %v6684, 2
    %vm6686 = vcmp.eq.s32.totalorder %v6684, 0
    %v6687 = vxor.u32 %v6681, 2147483648
    %v6688 = vsel %vm6686, %v6680, %v6687
    %vm6689 = vcmp.eq.s32.totalorder %v6684, 2
    %v6690 = vxor.u32 %v6680, 2147483648
    %v6691 = vsel %vm6689, %v6690, %v6681
    %v6692 = vsel %vm6685, %v6688, %v6691
    %v6693 = vsel %vm6682, nan, %v6692
    %v6694 = vand.u32 2147483647, %v656
    %vm6695 = vcmp.le.f32.partialorder %v6694, 0.7853982
    %vm6696 = vcmp.lt.s32.totalorder %v656, 0
    %v6697 = vand.u32 %v656, 2139095040
    %v6698 = vshrl.u32 %v6697, 23
    %v6699 = vsub.s32 %v6698, 127
    %v6700 = vand.u32 2147483647, %v656
    %v6701 = vand.u32 %v6700, 8388607
    %v6702 = vor.u32 %v6701, 8388608
    %v6703 = vsub.s32 0, %v6702
    %v6704 = vadd.s32 %v6699, 1
    %vm6705 = vcmp.gt.s32.totalorder %v6704, 0
    %v6706 = vsel %vm6705, %v6704, 0
    %v6707 = vshrl.u32 %v6706, 5
    %v6708 = vand.u32 %v6706, 31
    %v6709 = vsub.s32 32, %v6708
    %v6710 = vshrl.u32 683565275, %v6709
    %v6711 = vshll.u32 683565275, %v6708
    %v6712 = vshrl.u32 2475754826, %v6709
    %v6713 = vor.u32 %v6711, %v6712
    %v6714 = vshll.u32 2475754826, %v6708
    %v6715 = vshrl.u32 2131351028, %v6709
    %v6716 = vor.u32 %v6714, %v6715
    %v6717 = vshll.u32 2131351028, %v6708
    %v6718 = vshrl.u32 2102212464, %v6709
    %v6719 = vor.u32 %v6717, %v6718
    %v6720 = vshll.u32 2102212464, %v6708
    %v6721 = vshrl.u32 920167782, %v6709
    %v6722 = vor.u32 %v6720, %v6721
    %v6723 = vshll.u32 920167782, %v6708
    %v6724 = vshrl.u32 1326507024, %v6709
    %v6725 = vor.u32 %v6723, %v6724
    %vm6726 = vcmp.lt.s32.totalorder %v6707, 1
    %vm6727 = vcmp.lt.s32.totalorder %v6707, 2
    %vm6728 = vcmp.lt.s32.totalorder %v6707, 3
    %vm6729 = vcmp.lt.s32.totalorder %v6707, 4
    %v6730 = vsel %vm6726, %v6710, %v6713
    %v6731 = vsel %vm6729, %v6719, 2102212464
    %v6732 = vsel %vm6728, %v6716, %v6731
    %v6733 = vsel %vm6727, %v6730, %v6732
    %v6734 = vsel %vm6726, %v6713, %v6716
    %v6735 = vsel %vm6729, %v6722, 920167782
    %v6736 = vsel %vm6728, %v6719, %v6735
    %v6737 = vsel %vm6727, %v6734, %v6736
    %v6738 = vsel %vm6726, %v6716, %v6719
    %v6739 = vsel %vm6729, %v6725, 1326507024
    %v6740 = vsel %vm6728, %v6722, %v6739
    %v6741 = vsel %vm6727, %v6738, %v6740
    %v6742 = vshll.u32 %v6702, 8
    %v6743 = vmul.u32.u64.compose %v6742, %v6741
    %v6744 = vextract.low.u32 %v6743
    %v6745 = vextract.high.u32 %v6743
    %v6746 = vmul.u32.u64.compose %v6742, %v6737
    %v6747 = vextract.low.u32 %v6746
    %v6748 = vextract.high.u32 %v6746
    %v6749 = vmul.u32 %v6742, %v6733
    %v6750 = vadd.s32 %v6745, %v6747
    %vm6751 = vc.u32 %v6745, %v6747
    %v6752 = vadd.s32 %v6748, 1
    %v6753 = vsel %vm6751, %v6752, %v6748
    %v6754 = vadd.s32 %v6749, %v6753
    %v6755 = vadd.s32 %v6754, 536870912
    %v6756 = vshrl.u32 %v6755, 30
    %v6757 = vshll.u32 %v6756, 30
    %v6758 = vsub.s32 %v6754, %v6757
    %vm6759 = vcmp.lt.s32.totalorder %v6758, 0
    %v6760 = vsub.s32 0, %v6758
    %v6761 = vsel %vm6759, %v6760, %v6758
    %v6762 = vclz %v6761
    %v6763 = vsub.s32 %v6762, 2
    %vm6764 = vcmp.gt.s32.totalorder 0, %v6763
    %v6765 = vsel %vm6764, 0, %v6763
    %v6766 = vsub.s32 32, %v6765
    %v6767 = vshll.u32 %v6758, %v6765
    %v6768 = vshrl.u32 %v6750, %v6766
    %v6769 = vor.u32 %v6767, %v6768
    %v6770 = vsub.s32 4294967266, %v6765
    %v6771 = vadd.s32 %v6770, 127
    %v6772 = vshll.u32 %v6771, 23
    %v6773 = vor.u32 4788187, %v6772
    %v6774 = vand.u32 2147483647, %v6773
    %v6776 = vcvt.s32.f32 %v6769
    %v6777 = vmul.f32 %v6776, %v6774
    %v6778 = vxor.u32 %v6777, 2147483648
    %v6779 = vsel %vm6696, %v6778, %v6777
    %v6780 = vsub.s32 4, %v6756
    %v6781 = vsel %vm6696, %v6780, %v6756
    %v6782 = vsel %vm6695, %v656, %v6779
    %v6783 = vsel %vm6695, 0, %v6781
    %v6784 = vcosq.f32.pop %v6782
    %v6785 = vsinq.f32.pop %v6782
    %vm6786 = vweird.f32 %v656
    %v6787 = vadd.s32 %v6783, 3
    %v6788 = vand.u32 %v6787, 3
    %vm6789 = vcmp.lt.s32.totalorder %v6788, 2
    %vm6790 = vcmp.eq.s32.totalorder %v6788, 0
    %v6791 = vxor.u32 %v6785, 2147483648
    %v6792 = vsel %vm6790, %v6784, %v6791
    %vm6793 = vcmp.eq.s32.totalorder %v6788, 2
    %v6794 = vxor.u32 %v6784, 2147483648
    %v6795 = vsel %vm6793, %v6794, %v6785
    %v6796 = vsel %vm6789, %v6792, %v6795
    %v6797 = vsel %vm6786, nan, %v6796
    %v6798 = vand.u32 2147483647, %v657
    %vm6799 = vcmp.le.f32.partialorder %v6798, 0.7853982
    %vm6800 = vcmp.lt.s32.totalorder %v657, 0
    %v6801 = vand.u32 %v657, 2139095040
    %v6802 = vshrl.u32 %v6801, 23
    %v6803 = vsub.s32 %v6802, 127
    %v6804 = vand.u32 2147483647, %v657
    %v6805 = vand.u32 %v6804, 8388607
    %v6806 = vor.u32 %v6805, 8388608
    %v6807 = vsub.s32 0, %v6806
    %v6808 = vadd.s32 %v6803, 1
    %vm6809 = vcmp.gt.s32.totalorder %v6808, 0
    %v6810 = vsel %vm6809, %v6808, 0
    %v6811 = vshrl.u32 %v6810, 5
    %v6812 = vand.u32 %v6810, 31
    %v6813 = vsub.s32 32, %v6812
    %v6814 = vshrl.u32 683565275, %v6813
    %v6815 = vshll.u32 683565275, %v6812
    %v6816 = vshrl.u32 2475754826, %v6813
    %v6817 = vor.u32 %v6815, %v6816
    %v6818 = vshll.u32 2475754826, %v6812
    %v6819 = vshrl.u32 2131351028, %v6813
    %v6820 = vor.u32 %v6818, %v6819
    %v6821 = vshll.u32 2131351028, %v6812
    %v6822 = vshrl.u32 2102212464, %v6813
    %v6823 = vor.u32 %v6821, %v6822
    %v6824 = vshll.u32 2102212464, %v6812
    %v6825 = vshrl.u32 920167782, %v6813
    %v6826 = vor.u32 %v6824, %v6825
    %v6827 = vshll.u32 920167782, %v6812
    %v6828 = vshrl.u32 1326507024, %v6813
    %v6829 = vor.u32 %v6827, %v6828
    %vm6830 = vcmp.lt.s32.totalorder %v6811, 1
    %vm6831 = vcmp.lt.s32.totalorder %v6811, 2
    %vm6832 = vcmp.lt.s32.totalorder %v6811, 3
    %vm6833 = vcmp.lt.s32.totalorder %v6811, 4
    %v6834 = vsel %vm6830, %v6814, %v6817
    %v6835 = vsel %vm6833, %v6823, 2102212464
    %v6836 = vsel %vm6832, %v6820, %v6835
    %v6837 = vsel %vm6831, %v6834, %v6836
    %v6838 = vsel %vm6830, %v6817, %v6820
    %v6839 = vsel %vm6833, %v6826, 920167782
    %v6840 = vsel %vm6832, %v6823, %v6839
    %v6841 = vsel %vm6831, %v6838, %v6840
    %v6842 = vsel %vm6830, %v6820, %v6823
    %v6843 = vsel %vm6833, %v6829, 1326507024
    %v6844 = vsel %vm6832, %v6826, %v6843
    %v6845 = vsel %vm6831, %v6842, %v6844
    %v6846 = vshll.u32 %v6806, 8
    %v6847 = vmul.u32.u64.compose %v6846, %v6845
    %v6848 = vextract.low.u32 %v6847
    %v6849 = vextract.high.u32 %v6847
    %v6850 = vmul.u32.u64.compose %v6846, %v6841
    %v6851 = vextract.low.u32 %v6850
    %v6852 = vextract.high.u32 %v6850
    %v6853 = vmul.u32 %v6846, %v6837
    %v6854 = vadd.s32 %v6849, %v6851
    %vm6855 = vc.u32 %v6849, %v6851
    %v6856 = vadd.s32 %v6852, 1
    %v6857 = vsel %vm6855, %v6856, %v6852
    %v6858 = vadd.s32 %v6853, %v6857
    %v6859 = vadd.s32 %v6858, 536870912
    %v6860 = vshrl.u32 %v6859, 30
    %v6861 = vshll.u32 %v6860, 30
    %v6862 = vsub.s32 %v6858, %v6861
    %vm6863 = vcmp.lt.s32.totalorder %v6862, 0
    %v6864 = vsub.s32 0, %v6862
    %v6865 = vsel %vm6863, %v6864, %v6862
    %v6866 = vclz %v6865
    %v6867 = vsub.s32 %v6866, 2
    %vm6868 = vcmp.gt.s32.totalorder 0, %v6867
    %v6869 = vsel %vm6868, 0, %v6867
    %v6870 = vsub.s32 32, %v6869
    %v6871 = vshll.u32 %v6862, %v6869
    %v6872 = vshrl.u32 %v6854, %v6870
    %v6873 = vor.u32 %v6871, %v6872
    %v6874 = vsub.s32 4294967266, %v6869
    %v6875 = vadd.s32 %v6874, 127
    %v6876 = vshll.u32 %v6875, 23
    %v6877 = vor.u32 4788187, %v6876
    %v6878 = vand.u32 2147483647, %v6877
    %v6880 = vcvt.s32.f32 %v6873
    %v6881 = vmul.f32 %v6880, %v6878
    %v6882 = vxor.u32 %v6881, 2147483648
    %v6883 = vsel %vm6800, %v6882, %v6881
    %v6884 = vsub.s32 4, %v6860
    %v6885 = vsel %vm6800, %v6884, %v6860
    %v6886 = vsel %vm6799, %v657, %v6883
    %v6887 = vsel %vm6799, 0, %v6885
    %v6888 = vcosq.f32.pop %v6886
    %v6889 = vsinq.f32.pop %v6886
    %vm6890 = vweird.f32 %v657
    %v6891 = vadd.s32 %v6887, 3
    %v6892 = vand.u32 %v6891, 3
    %vm6893 = vcmp.lt.s32.totalorder %v6892, 2
    %vm6894 = vcmp.eq.s32.totalorder %v6892, 0
    %v6895 = vxor.u32 %v6889, 2147483648
    %v6896 = vsel %vm6894, %v6888, %v6895
    %vm6897 = vcmp.eq.s32.totalorder %v6892, 2
    %v6898 = vxor.u32 %v6888, 2147483648
    %v6899 = vsel %vm6897, %v6898, %v6889
    %v6900 = vsel %vm6893, %v6896, %v6899
    %v6901 = vsel %vm6890, nan, %v6900
    %v6902 = vand.u32 2147483647, %v658
    %vm6903 = vcmp.le.f32.partialorder %v6902, 0.7853982
    %vm6904 = vcmp.lt.s32.totalorder %v658, 0
    %v6905 = vand.u32 %v658, 2139095040
    %v6906 = vshrl.u32 %v6905, 23
    %v6907 = vsub.s32 %v6906, 127
    %v6908 = vand.u32 2147483647, %v658
    %v6909 = vand.u32 %v6908, 8388607
    %v6910 = vor.u32 %v6909, 8388608
    %v6911 = vsub.s32 0, %v6910
    %v6912 = vadd.s32 %v6907, 1
    %vm6913 = vcmp.gt.s32.totalorder %v6912, 0
    %v6914 = vsel %vm6913, %v6912, 0
    %v6915 = vshrl.u32 %v6914, 5
    %v6916 = vand.u32 %v6914, 31
    %v6917 = vsub.s32 32, %v6916
    %v6918 = vshrl.u32 683565275, %v6917
    %v6919 = vshll.u32 683565275, %v6916
    %v6920 = vshrl.u32 2475754826, %v6917
    %v6921 = vor.u32 %v6919, %v6920
    %v6922 = vshll.u32 2475754826, %v6916
    %v6923 = vshrl.u32 2131351028, %v6917
    %v6924 = vor.u32 %v6922, %v6923
    %v6925 = vshll.u32 2131351028, %v6916
    %v6926 = vshrl.u32 2102212464, %v6917
    %v6927 = vor.u32 %v6925, %v6926
    %v6928 = vshll.u32 2102212464, %v6916
    %v6929 = vshrl.u32 920167782, %v6917
    %v6930 = vor.u32 %v6928, %v6929
    %v6931 = vshll.u32 920167782, %v6916
    %v6932 = vshrl.u32 1326507024, %v6917
    %v6933 = vor.u32 %v6931, %v6932
    %vm6934 = vcmp.lt.s32.totalorder %v6915, 1
    %vm6935 = vcmp.lt.s32.totalorder %v6915, 2
    %vm6936 = vcmp.lt.s32.totalorder %v6915, 3
    %vm6937 = vcmp.lt.s32.totalorder %v6915, 4
    %v6938 = vsel %vm6934, %v6918, %v6921
    %v6939 = vsel %vm6937, %v6927, 2102212464
    %v6940 = vsel %vm6936, %v6924, %v6939
    %v6941 = vsel %vm6935, %v6938, %v6940
    %v6942 = vsel %vm6934, %v6921, %v6924
    %v6943 = vsel %vm6937, %v6930, 920167782
    %v6944 = vsel %vm6936, %v6927, %v6943
    %v6945 = vsel %vm6935, %v6942, %v6944
    %v6946 = vsel %vm6934, %v6924, %v6927
    %v6947 = vsel %vm6937, %v6933, 1326507024
    %v6948 = vsel %vm6936, %v6930, %v6947
    %v6949 = vsel %vm6935, %v6946, %v6948
    %v6950 = vshll.u32 %v6910, 8
    %v6951 = vmul.u32.u64.compose %v6950, %v6949
    %v6952 = vextract.low.u32 %v6951
    %v6953 = vextract.high.u32 %v6951
    %v6954 = vmul.u32.u64.compose %v6950, %v6945
    %v6955 = vextract.low.u32 %v6954
    %v6956 = vextract.high.u32 %v6954
    %v6957 = vmul.u32 %v6950, %v6941
    %v6958 = vadd.s32 %v6953, %v6955
    %vm6959 = vc.u32 %v6953, %v6955
    %v6960 = vadd.s32 %v6956, 1
    %v6961 = vsel %vm6959, %v6960, %v6956
    %v6962 = vadd.s32 %v6957, %v6961
    %v6963 = vadd.s32 %v6962, 536870912
    %v6964 = vshrl.u32 %v6963, 30
    %v6965 = vshll.u32 %v6964, 30
    %v6966 = vsub.s32 %v6962, %v6965
    %vm6967 = vcmp.lt.s32.totalorder %v6966, 0
    %v6968 = vsub.s32 0, %v6966
    %v6969 = vsel %vm6967, %v6968, %v6966
    %v6970 = vclz %v6969
    %v6971 = vsub.s32 %v6970, 2
    %vm6972 = vcmp.gt.s32.totalorder 0, %v6971
    %v6973 = vsel %vm6972, 0, %v6971
    %v6974 = vsub.s32 32, %v6973
    %v6975 = vshll.u32 %v6966, %v6973
    %v6976 = vshrl.u32 %v6958, %v6974
    %v6977 = vor.u32 %v6975, %v6976
    %v6978 = vsub.s32 4294967266, %v6973
    %v6979 = vadd.s32 %v6978, 127
    %v6980 = vshll.u32 %v6979, 23
    %v6981 = vor.u32 4788187, %v6980
    %v6982 = vand.u32 2147483647, %v6981
    %v6984 = vcvt.s32.f32 %v6977
    %v6985 = vmul.f32 %v6984, %v6982
    %v6986 = vxor.u32 %v6985, 2147483648
    %v6987 = vsel %vm6904, %v6986, %v6985
    %v6988 = vsub.s32 4, %v6964
    %v6989 = vsel %vm6904, %v6988, %v6964
    %v6990 = vsel %vm6903, %v658, %v6987
    %v6991 = vsel %vm6903, 0, %v6989
    %v6992 = vcosq.f32.pop %v6990
    %v6993 = vsinq.f32.pop %v6990
    %vm6994 = vweird.f32 %v658
    %v6995 = vadd.s32 %v6991, 3
    %v6996 = vand.u32 %v6995, 3
    %vm6997 = vcmp.lt.s32.totalorder %v6996, 2
    %vm6998 = vcmp.eq.s32.totalorder %v6996, 0
    %v6999 = vxor.u32 %v6993, 2147483648
    %v7000 = vsel %vm6998, %v6992, %v6999
    %vm7001 = vcmp.eq.s32.totalorder %v6996, 2
    %v7002 = vxor.u32 %v6992, 2147483648
    %v7003 = vsel %vm7001, %v7002, %v6993
    %v7004 = vsel %vm6997, %v7000, %v7003
    %v7005 = vsel %vm6994, nan, %v7004
    %v7006 = vand.u32 2147483647, %v659
    %vm7007 = vcmp.le.f32.partialorder %v7006, 0.7853982
    %vm7008 = vcmp.lt.s32.totalorder %v659, 0
    %v7009 = vand.u32 %v659, 2139095040
    %v7010 = vshrl.u32 %v7009, 23
    %v7011 = vsub.s32 %v7010, 127
    %v7012 = vand.u32 2147483647, %v659
    %v7013 = vand.u32 %v7012, 8388607
    %v7014 = vor.u32 %v7013, 8388608
    %v7015 = vsub.s32 0, %v7014
    %v7016 = vadd.s32 %v7011, 1
    %vm7017 = vcmp.gt.s32.totalorder %v7016, 0
    %v7018 = vsel %vm7017, %v7016, 0
    %v7019 = vshrl.u32 %v7018, 5
    %v7020 = vand.u32 %v7018, 31
    %v7021 = vsub.s32 32, %v7020
    %v7022 = vshrl.u32 683565275, %v7021
    %v7023 = vshll.u32 683565275, %v7020
    %v7024 = vshrl.u32 2475754826, %v7021
    %v7025 = vor.u32 %v7023, %v7024
    %v7026 = vshll.u32 2475754826, %v7020
    %v7027 = vshrl.u32 2131351028, %v7021
    %v7028 = vor.u32 %v7026, %v7027
    %v7029 = vshll.u32 2131351028, %v7020
    %v7030 = vshrl.u32 2102212464, %v7021
    %v7031 = vor.u32 %v7029, %v7030
    %v7032 = vshll.u32 2102212464, %v7020
    %v7033 = vshrl.u32 920167782, %v7021
    %v7034 = vor.u32 %v7032, %v7033
    %v7035 = vshll.u32 920167782, %v7020
    %v7036 = vshrl.u32 1326507024, %v7021
    %v7037 = vor.u32 %v7035, %v7036
    %vm7038 = vcmp.lt.s32.totalorder %v7019, 1
    %vm7039 = vcmp.lt.s32.totalorder %v7019, 2
    %vm7040 = vcmp.lt.s32.totalorder %v7019, 3
    %vm7041 = vcmp.lt.s32.totalorder %v7019, 4
    %v7042 = vsel %vm7038, %v7022, %v7025
    %v7043 = vsel %vm7041, %v7031, 2102212464
    %v7044 = vsel %vm7040, %v7028, %v7043
    %v7045 = vsel %vm7039, %v7042, %v7044
    %v7046 = vsel %vm7038, %v7025, %v7028
    %v7047 = vsel %vm7041, %v7034, 920167782
    %v7048 = vsel %vm7040, %v7031, %v7047
    %v7049 = vsel %vm7039, %v7046, %v7048
    %v7050 = vsel %vm7038, %v7028, %v7031
    %v7051 = vsel %vm7041, %v7037, 1326507024
    %v7052 = vsel %vm7040, %v7034, %v7051
    %v7053 = vsel %vm7039, %v7050, %v7052
    %v7054 = vshll.u32 %v7014, 8
    %v7055 = vmul.u32.u64.compose %v7054, %v7053
    %v7056 = vextract.low.u32 %v7055
    %v7057 = vextract.high.u32 %v7055
    %v7058 = vmul.u32.u64.compose %v7054, %v7049
    %v7059 = vextract.low.u32 %v7058
    %v7060 = vextract.high.u32 %v7058
    %v7061 = vmul.u32 %v7054, %v7045
    %v7062 = vadd.s32 %v7057, %v7059
    %vm7063 = vc.u32 %v7057, %v7059
    %v7064 = vadd.s32 %v7060, 1
    %v7065 = vsel %vm7063, %v7064, %v7060
    %v7066 = vadd.s32 %v7061, %v7065
    %v7067 = vadd.s32 %v7066, 536870912
    %v7068 = vshrl.u32 %v7067, 30
    %v7069 = vshll.u32 %v7068, 30
    %v7070 = vsub.s32 %v7066, %v7069
    %vm7071 = vcmp.lt.s32.totalorder %v7070, 0
    %v7072 = vsub.s32 0, %v7070
    %v7073 = vsel %vm7071, %v7072, %v7070
    %v7074 = vclz %v7073
    %v7075 = vsub.s32 %v7074, 2
    %vm7076 = vcmp.gt.s32.totalorder 0, %v7075
    %v7077 = vsel %vm7076, 0, %v7075
    %v7078 = vsub.s32 32, %v7077
    %v7079 = vshll.u32 %v7070, %v7077
    %v7080 = vshrl.u32 %v7062, %v7078
    %v7081 = vor.u32 %v7079, %v7080
    %v7082 = vsub.s32 4294967266, %v7077
    %v7083 = vadd.s32 %v7082, 127
    %v7084 = vshll.u32 %v7083, 23
    %v7085 = vor.u32 4788187, %v7084
    %v7086 = vand.u32 2147483647, %v7085
    %v7088 = vcvt.s32.f32 %v7081
    %v7089 = vmul.f32 %v7088, %v7086
    %v7090 = vxor.u32 %v7089, 2147483648
    %v7091 = vsel %vm7008, %v7090, %v7089
    %v7092 = vsub.s32 4, %v7068
    %v7093 = vsel %vm7008, %v7092, %v7068
    %v7094 = vsel %vm7007, %v659, %v7091
    %v7095 = vsel %vm7007, 0, %v7093
    %v7096 = vcosq.f32.pop %v7094
    %v7097 = vsinq.f32.pop %v7094
    %vm7098 = vweird.f32 %v659
    %v7099 = vadd.s32 %v7095, 3
    %v7100 = vand.u32 %v7099, 3
    %vm7101 = vcmp.lt.s32.totalorder %v7100, 2
    %vm7102 = vcmp.eq.s32.totalorder %v7100, 0
    %v7103 = vxor.u32 %v7097, 2147483648
    %v7104 = vsel %vm7102, %v7096, %v7103
    %vm7105 = vcmp.eq.s32.totalorder %v7100, 2
    %v7106 = vxor.u32 %v7096, 2147483648
    %v7107 = vsel %vm7105, %v7106, %v7097
    %v7108 = vsel %vm7101, %v7104, %v7107
    %v7109 = vsel %vm7098, nan, %v7108
    %v7110 = vand.u32 2147483647, %v660
    %vm7111 = vcmp.le.f32.partialorder %v7110, 0.7853982
    %vm7112 = vcmp.lt.s32.totalorder %v660, 0
    %v7113 = vand.u32 %v660, 2139095040
    %v7114 = vshrl.u32 %v7113, 23
    %v7115 = vsub.s32 %v7114, 127
    %v7116 = vand.u32 2147483647, %v660
    %v7117 = vand.u32 %v7116, 8388607
    %v7118 = vor.u32 %v7117, 8388608
    %v7119 = vsub.s32 0, %v7118
    %v7120 = vadd.s32 %v7115, 1
    %vm7121 = vcmp.gt.s32.totalorder %v7120, 0
    %v7122 = vsel %vm7121, %v7120, 0
    %v7123 = vshrl.u32 %v7122, 5
    %v7124 = vand.u32 %v7122, 31
    %v7125 = vsub.s32 32, %v7124
    %v7126 = vshrl.u32 683565275, %v7125
    %v7127 = vshll.u32 683565275, %v7124
    %v7128 = vshrl.u32 2475754826, %v7125
    %v7129 = vor.u32 %v7127, %v7128
    %v7130 = vshll.u32 2475754826, %v7124
    %v7131 = vshrl.u32 2131351028, %v7125
    %v7132 = vor.u32 %v7130, %v7131
    %v7133 = vshll.u32 2131351028, %v7124
    %v7134 = vshrl.u32 2102212464, %v7125
    %v7135 = vor.u32 %v7133, %v7134
    %v7136 = vshll.u32 2102212464, %v7124
    %v7137 = vshrl.u32 920167782, %v7125
    %v7138 = vor.u32 %v7136, %v7137
    %v7139 = vshll.u32 920167782, %v7124
    %v7140 = vshrl.u32 1326507024, %v7125
    %v7141 = vor.u32 %v7139, %v7140
    %vm7142 = vcmp.lt.s32.totalorder %v7123, 1
    %vm7143 = vcmp.lt.s32.totalorder %v7123, 2
    %vm7144 = vcmp.lt.s32.totalorder %v7123, 3
    %vm7145 = vcmp.lt.s32.totalorder %v7123, 4
    %v7146 = vsel %vm7142, %v7126, %v7129
    %v7147 = vsel %vm7145, %v7135, 2102212464
    %v7148 = vsel %vm7144, %v7132, %v7147
    %v7149 = vsel %vm7143, %v7146, %v7148
    %v7150 = vsel %vm7142, %v7129, %v7132
    %v7151 = vsel %vm7145, %v7138, 920167782
    %v7152 = vsel %vm7144, %v7135, %v7151
    %v7153 = vsel %vm7143, %v7150, %v7152
    %v7154 = vsel %vm7142, %v7132, %v7135
    %v7155 = vsel %vm7145, %v7141, 1326507024
    %v7156 = vsel %vm7144, %v7138, %v7155
    %v7157 = vsel %vm7143, %v7154, %v7156
    %v7158 = vshll.u32 %v7118, 8
    %v7159 = vmul.u32.u64.compose %v7158, %v7157
    %v7160 = vextract.low.u32 %v7159
    %v7161 = vextract.high.u32 %v7159
    %v7162 = vmul.u32.u64.compose %v7158, %v7153
    %v7163 = vextract.low.u32 %v7162
    %v7164 = vextract.high.u32 %v7162
    %v7165 = vmul.u32 %v7158, %v7149
    %v7166 = vadd.s32 %v7161, %v7163
    %vm7167 = vc.u32 %v7161, %v7163
    %v7168 = vadd.s32 %v7164, 1
    %v7169 = vsel %vm7167, %v7168, %v7164
    %v7170 = vadd.s32 %v7165, %v7169
    %v7171 = vadd.s32 %v7170, 536870912
    %v7172 = vshrl.u32 %v7171, 30
    %v7173 = vshll.u32 %v7172, 30
    %v7174 = vsub.s32 %v7170, %v7173
    %vm7175 = vcmp.lt.s32.totalorder %v7174, 0
    %v7176 = vsub.s32 0, %v7174
    %v7177 = vsel %vm7175, %v7176, %v7174
    %v7178 = vclz %v7177
    %v7179 = vsub.s32 %v7178, 2
    %vm7180 = vcmp.gt.s32.totalorder 0, %v7179
    %v7181 = vsel %vm7180, 0, %v7179
    %v7182 = vsub.s32 32, %v7181
    %v7183 = vshll.u32 %v7174, %v7181
    %v7184 = vshrl.u32 %v7166, %v7182
    %v7185 = vor.u32 %v7183, %v7184
    %v7186 = vsub.s32 4294967266, %v7181
    %v7187 = vadd.s32 %v7186, 127
    %v7188 = vshll.u32 %v7187, 23
    %v7189 = vor.u32 4788187, %v7188
    %v7190 = vand.u32 2147483647, %v7189
    %v7192 = vcvt.s32.f32 %v7185
    %v7193 = vmul.f32 %v7192, %v7190
    %v7194 = vxor.u32 %v7193, 2147483648
    %v7195 = vsel %vm7112, %v7194, %v7193
    %v7196 = vsub.s32 4, %v7172
    %v7197 = vsel %vm7112, %v7196, %v7172
    %v7198 = vsel %vm7111, %v660, %v7195
    %v7199 = vsel %vm7111, 0, %v7197
    %v7200 = vcosq.f32.pop %v7198
    %v7201 = vsinq.f32.pop %v7198
    %vm7202 = vweird.f32 %v660
    %v7203 = vadd.s32 %v7199, 3
    %v7204 = vand.u32 %v7203, 3
    %vm7205 = vcmp.lt.s32.totalorder %v7204, 2
    %vm7206 = vcmp.eq.s32.totalorder %v7204, 0
    %v7207 = vxor.u32 %v7201, 2147483648
    %v7208 = vsel %vm7206, %v7200, %v7207
    %vm7209 = vcmp.eq.s32.totalorder %v7204, 2
    %v7210 = vxor.u32 %v7200, 2147483648
    %v7211 = vsel %vm7209, %v7210, %v7201
    %v7212 = vsel %vm7205, %v7208, %v7211
    %v7213 = vsel %vm7202, nan, %v7212
    %v7214 = vand.u32 2147483647, %v661
    %vm7215 = vcmp.le.f32.partialorder %v7214, 0.7853982
    %vm7216 = vcmp.lt.s32.totalorder %v661, 0
    %v7217 = vand.u32 %v661, 2139095040
    %v7218 = vshrl.u32 %v7217, 23
    %v7219 = vsub.s32 %v7218, 127
    %v7220 = vand.u32 2147483647, %v661
    %v7221 = vand.u32 %v7220, 8388607
    %v7222 = vor.u32 %v7221, 8388608
    %v7223 = vsub.s32 0, %v7222
    %v7224 = vadd.s32 %v7219, 1
    %vm7225 = vcmp.gt.s32.totalorder %v7224, 0
    %v7226 = vsel %vm7225, %v7224, 0
    %v7227 = vshrl.u32 %v7226, 5
    %v7228 = vand.u32 %v7226, 31
    %v7229 = vsub.s32 32, %v7228
    %v7230 = vshrl.u32 683565275, %v7229
    %v7231 = vshll.u32 683565275, %v7228
    %v7232 = vshrl.u32 2475754826, %v7229
    %v7233 = vor.u32 %v7231, %v7232
    %v7234 = vshll.u32 2475754826, %v7228
    %v7235 = vshrl.u32 2131351028, %v7229
    %v7236 = vor.u32 %v7234, %v7235
    %v7237 = vshll.u32 2131351028, %v7228
    %v7238 = vshrl.u32 2102212464, %v7229
    %v7239 = vor.u32 %v7237, %v7238
    %v7240 = vshll.u32 2102212464, %v7228
    %v7241 = vshrl.u32 920167782, %v7229
    %v7242 = vor.u32 %v7240, %v7241
    %v7243 = vshll.u32 920167782, %v7228
    %v7244 = vshrl.u32 1326507024, %v7229
    %v7245 = vor.u32 %v7243, %v7244
    %vm7246 = vcmp.lt.s32.totalorder %v7227, 1
    %vm7247 = vcmp.lt.s32.totalorder %v7227, 2
    %vm7248 = vcmp.lt.s32.totalorder %v7227, 3
    %vm7249 = vcmp.lt.s32.totalorder %v7227, 4
    %v7250 = vsel %vm7246, %v7230, %v7233
    %v7251 = vsel %vm7249, %v7239, 2102212464
    %v7252 = vsel %vm7248, %v7236, %v7251
    %v7253 = vsel %vm7247, %v7250, %v7252
    %v7254 = vsel %vm7246, %v7233, %v7236
    %v7255 = vsel %vm7249, %v7242, 920167782
    %v7256 = vsel %vm7248, %v7239, %v7255
    %v7257 = vsel %vm7247, %v7254, %v7256
    %v7258 = vsel %vm7246, %v7236, %v7239
    %v7259 = vsel %vm7249, %v7245, 1326507024
    %v7260 = vsel %vm7248, %v7242, %v7259
    %v7261 = vsel %vm7247, %v7258, %v7260
    %v7262 = vshll.u32 %v7222, 8
    %v7263 = vmul.u32.u64.compose %v7262, %v7261
    %v7264 = vextract.low.u32 %v7263
    %v7265 = vextract.high.u32 %v7263
    %v7266 = vmul.u32.u64.compose %v7262, %v7257
    %v7267 = vextract.low.u32 %v7266
    %v7268 = vextract.high.u32 %v7266
    %v7269 = vmul.u32 %v7262, %v7253
    %v7270 = vadd.s32 %v7265, %v7267
    %vm7271 = vc.u32 %v7265, %v7267
    %v7272 = vadd.s32 %v7268, 1
    %v7273 = vsel %vm7271, %v7272, %v7268
    %v7274 = vadd.s32 %v7269, %v7273
    %v7275 = vadd.s32 %v7274, 536870912
    %v7276 = vshrl.u32 %v7275, 30
    %v7277 = vshll.u32 %v7276, 30
    %v7278 = vsub.s32 %v7274, %v7277
    %vm7279 = vcmp.lt.s32.totalorder %v7278, 0
    %v7280 = vsub.s32 0, %v7278
    %v7281 = vsel %vm7279, %v7280, %v7278
    %v7282 = vclz %v7281
    %v7283 = vsub.s32 %v7282, 2
    %vm7284 = vcmp.gt.s32.totalorder 0, %v7283
    %v7285 = vsel %vm7284, 0, %v7283
    %v7286 = vsub.s32 32, %v7285
    %v7287 = vshll.u32 %v7278, %v7285
    %v7288 = vshrl.u32 %v7270, %v7286
    %v7289 = vor.u32 %v7287, %v7288
    %v7290 = vsub.s32 4294967266, %v7285
    %v7291 = vadd.s32 %v7290, 127
    %v7292 = vshll.u32 %v7291, 23
    %v7293 = vor.u32 4788187, %v7292
    %v7294 = vand.u32 2147483647, %v7293
    %v7296 = vcvt.s32.f32 %v7289
    %v7297 = vmul.f32 %v7296, %v7294
    %v7298 = vxor.u32 %v7297, 2147483648
    %v7299 = vsel %vm7216, %v7298, %v7297
    %v7300 = vsub.s32 4, %v7276
    %v7301 = vsel %vm7216, %v7300, %v7276
    %v7302 = vsel %vm7215, %v661, %v7299
    %v7303 = vsel %vm7215, 0, %v7301
    %v7304 = vcosq.f32.pop %v7302
    %v7305 = vsinq.f32.pop %v7302
    %vm7306 = vweird.f32 %v661
    %v7307 = vadd.s32 %v7303, 3
    %v7308 = vand.u32 %v7307, 3
    %vm7309 = vcmp.lt.s32.totalorder %v7308, 2
    %vm7310 = vcmp.eq.s32.totalorder %v7308, 0
    %v7311 = vxor.u32 %v7305, 2147483648
    %v7312 = vsel %vm7310, %v7304, %v7311
    %vm7313 = vcmp.eq.s32.totalorder %v7308, 2
    %v7314 = vxor.u32 %v7304, 2147483648
    %v7315 = vsel %vm7313, %v7314, %v7305
    %v7316 = vsel %vm7309, %v7312, %v7315
    %v7317 = vsel %vm7306, nan, %v7316
    %v7318 = vld [vmem:[%s3] sm:$0xf]
    %v7319 = vld [vmem:[%s3 + $0x4] sm:$0xf]
    %v7320 = vld [vmem:[%s3 + $0x8] sm:$0xf]
    %v7321 = vld [vmem:[%s3 + $0xc] sm:$0xf]
    %v7322 = vld [vmem:[%s3 + $0x10] sm:$0xf]
    %v7323 = vld [vmem:[%s3 + $0x14] sm:$0xf]
    %v7324 = vld [vmem:[%s3 + $0x18] sm:$0xf]
    %v7325 = vld [vmem:[%s3 + $0x1c] sm:$0xf]
    %v7326 = vpack.c.bf16 %v2429, %v765
    %v7327 = vpack.c.bf16 %v2533, %v869
    %v7328 = vpack.c.bf16 %v2637, %v973
    %v7329 = vpack.c.bf16 %v2741, %v1077
    %v7330 = vpack.c.bf16 %v2845, %v1181
    %v7331 = vpack.c.bf16 %v2949, %v1285
    %v7332 = vpack.c.bf16 %v3053, %v1389
    %v7333 = vpack.c.bf16 %v3157, %v1493
    %v7334 = vpack.c.bf16 %v3261, %v1597
    %v7335 = vpack.c.bf16 %v3365, %v1701
    %v7336 = vpack.c.bf16 %v3469, %v1805
    %v7337 = vpack.c.bf16 %v3573, %v1909
    %v7338 = vpack.c.bf16 %v3677, %v2013
    %v7339 = vpack.c.bf16 %v3781, %v2117
    %v7340 = vpack.c.bf16 %v3885, %v2221
    %v7341 = vpack.c.bf16 %v3989, %v2325
    %v7342 = vpack.c.bf16 %v5757, %v4093
    %v7343 = vpack.c.bf16 %v5861, %v4197
    %v7344 = vpack.c.bf16 %v5965, %v4301
    %v7345 = vpack.c.bf16 %v6069, %v4405
    %v7346 = vpack.c.bf16 %v6173, %v4509
    %v7347 = vpack.c.bf16 %v6277, %v4613
    %v7348 = vpack.c.bf16 %v6381, %v4717
    %v7349 = vpack.c.bf16 %v6485, %v4821
    %v7350 = vpack.c.bf16 %v6589, %v4925
    %v7351 = vpack.c.bf16 %v6693, %v5029
    %v7352 = vpack.c.bf16 %v6797, %v5133
    %v7353 = vpack.c.bf16 %v6901, %v5237
    %v7354 = vpack.c.bf16 %v7005, %v5341
    %v7355 = vpack.c.bf16 %v7109, %v5445
    %v7356 = vpack.c.bf16 %v7213, %v5549
    %v7357 = vpack.c.bf16 %v7317, %v5653
    %v7358 = vld [vmem:[%s4] sm:$0xff]
    %v7359 = vld [vmem:[%s4 + $0x8] sm:$0xff]
    %v7360 = vld [vmem:[%s4 + $0x10] sm:$0xff]
    %v7361 = vld [vmem:[%s4 + $0x18] sm:$0xff]
    %v7362 = vld [vmem:[%s4 + $0x20] sm:$0xff]
    %v7363 = vld [vmem:[%s4 + $0x28] sm:$0xff]
    %v7364 = vld [vmem:[%s4 + $0x30] sm:$0xff]
    %v7365 = vld [vmem:[%s4 + $0x38] sm:$0xff]
    %7367 = vset.pattern.permute.xlu0 0
    %7368 = vperm.xlu0 %7367, %v7358
    %v7369 = vpop.permute.xlu0 %7368
    %7372 = vset.pattern.permute.xlu0 0
    %7373 = vperm.xlu0 %7372, %v7359
    %v7374 = vpop.permute.xlu0 %7373
    %7377 = vset.pattern.permute.xlu0 0
    %7378 = vperm.xlu0 %7377, %v7360
    %v7379 = vpop.permute.xlu0 %7378
    %7382 = vset.pattern.permute.xlu0 0
    %7383 = vperm.xlu0 %7382, %v7361
    %v7384 = vpop.permute.xlu0 %7383
    %7387 = vset.pattern.permute.xlu0 0
    %7388 = vperm.xlu0 %7387, %v7362
    %v7389 = vpop.permute.xlu0 %7388
    %7392 = vset.pattern.permute.xlu0 0
    %7393 = vperm.xlu0 %7392, %v7363
    %v7394 = vpop.permute.xlu0 %7393
    %7397 = vset.pattern.permute.xlu0 0
    %7398 = vperm.xlu0 %7397, %v7364
    %v7399 = vpop.permute.xlu0 %7398
    %7402 = vset.pattern.permute.xlu0 0
    %7403 = vperm.xlu0 %7402, %v7365
    %v7404 = vpop.permute.xlu0 %7403
    %v7414 = vunpack.c.l.b16 %v7318
    %v7415 = vunpack.c.l.b16 %v7319
    %v7416 = vunpack.c.l.b16 %v7320
    %v7417 = vunpack.c.l.b16 %v7321
    %v7418 = vunpack.c.l.b16 %v7322
    %v7419 = vunpack.c.l.b16 %v7323
    %v7420 = vunpack.c.l.b16 %v7324
    %v7421 = vunpack.c.l.b16 %v7325
    %v7422 = vpack.c.b16 %v7415, %v7414
    %v7423 = vpack.c.b16 %v7417, %v7416
    %v7424 = vpack.c.b16 %v7419, %v7418
    %v7425 = vpack.c.b16 %v7421, %v7420
    %vm7426 = vcmask 261120
    %v7428 = vsel %vm7426, %v7422, 0
    %v7431 = vsel %vm7426, %v7423, 0
    %v7434 = vsel %vm7426, %v7424, 0
    %v7437 = vsel %vm7426, %v7425, 0
    %7439 = vmatprep.subr.bf16.mxu0 %v7327
    %7440 = vmatpush1.bf16.msra.mxu0 %v7326
    %7441 = vmatprep.subr.bf16.mxu0 %v7343
    %7442 = vmatpush1.bf16.msra.mxu0 %v7342
    %7443 = vmatprep.subr.bf16.mxu0 0
    %7444 = vmatpush1.bf16.msra.mxu0 0
    %7445 = vmatprep.subr.bf16.mxu0 0
    %7446 = vmatpush1.bf16.msra.mxu0 0
    %7447 = vmatprep.subr.bf16.mxu0 0
    %7448 = vmatpush1.bf16.msra.mxu0 0
    %7449 = vmatprep.subr.bf16.mxu0 0
    %7450 = vmatpush1.bf16.msra.mxu0 0
    %7451 = vmatprep.subr.bf16.mxu0 0
    %7452 = vmatpush1.bf16.msra.mxu0 0
    %7453 = vmatprep.subr.bf16.mxu0 0
    %7454 = vmatpush1.bf16.msra.mxu0 0
    %7455 = vmatprep.subr.bf16.mxu0 0
    %7456 = vmatpush1.bf16.msra.mxu0 0
    %7457 = vmatprep.subr.bf16.mxu0 0
    %7458 = vmatpush1.bf16.msra.mxu0 0
    %7459 = vmatprep.subr.bf16.mxu0 0
    %7460 = vmatpush1.bf16.msra.mxu0 0
    %7461 = vmatprep.subr.bf16.mxu0 0
    %7462 = vmatpush1.bf16.msra.mxu0 0
    %7463 = vmatprep.subr.bf16.mxu0 0
    %7464 = vmatpush1.bf16.msra.mxu0 0
    %7465 = vmatprep.subr.bf16.mxu0 0
    %7466 = vmatpush1.bf16.msra.mxu0 0
    %7467 = vmatprep.subr.bf16.mxu0 0
    %7468 = vmatpush1.bf16.msra.mxu0 0
    %7469 = vmatprep.subr.bf16.mxu0 0
    %7470 = vmatpush1.bf16.msra.mxu0 0
    %7471 = vmatprep.mubr.bf16.mxu0 0
    %7472 = vmatmul.mubr.bf16.gmra.mrb[0].mxu0 %v7428
    %v7473 = vpop.f32.mrb[0].mxu0
    %v7474 = vadd.f32 %v7369, %v7473
    %v7475 = vpop.f32.mrb[0].mxu0
    %v7476 = vadd.f32 %v7369, %v7475
    %v7477 = vpop.f32.mrb[0].mxu0
    %v7478 = vadd.f32 %v7374, %v7477
    %v7479 = vpop.f32.mrb[0].mxu0
    %v7480 = vadd.f32 %v7374, %v7479
    %7481 = vmatprep.mubr.bf16.mxu0 0
    %7482 = vmatmul.mubr.bf16.gmra.mrb[0].mxu0 %v7431
    %v7483 = vpop.f32.mrb[0].mxu0
    %v7484 = vadd.f32 %v7379, %v7483
    %v7485 = vpop.f32.mrb[0].mxu0
    %v7486 = vadd.f32 %v7379, %v7485
    %v7487 = vpop.f32.mrb[0].mxu0
    %v7488 = vadd.f32 %v7384, %v7487
    %v7489 = vpop.f32.mrb[0].mxu0
    %v7490 = vadd.f32 %v7384, %v7489
    %7491 = vmatprep.mubr.bf16.mxu0 0
    %7492 = vmatmul.mubr.bf16.gmra.mrb[0].mxu0 %v7434
    %v7493 = vpop.f32.mrb[0].mxu0
    %v7494 = vadd.f32 %v7389, %v7493
    %v7495 = vpop.f32.mrb[0].mxu0
    %v7496 = vadd.f32 %v7389, %v7495
    %v7497 = vpop.f32.mrb[0].mxu0
    %v7498 = vadd.f32 %v7394, %v7497
    %v7499 = vpop.f32.mrb[0].mxu0
    %v7500 = vadd.f32 %v7394, %v7499
    %7501 = vmatprep.mubr.bf16.mxu0 0
    %7502 = vmatmul.mubr.bf16.gmra.mrb[0].mxu0 %v7437
    %v7503 = vpop.f32.mrb[0].mxu0
    %v7504 = vadd.f32 %v7399, %v7503
    %v7505 = vpop.f32.mrb[0].mxu0
    %v7506 = vadd.f32 %v7399, %v7505
    %v7507 = vpop.f32.mrb[0].mxu0
    %v7508 = vadd.f32 %v7404, %v7507
    %v7509 = vpop.f32.mrb[0].mxu0
    %v7510 = vadd.f32 %v7404, %v7509
    %7511 = vdwg.mxu0
    %7512 = vmatprep.subr.bf16.mxu0 %v7329
    %7513 = vmatpush1.bf16.msra.mxu0 %v7328
    %7514 = vmatprep.subr.bf16.mxu0 %v7345
    %7515 = vmatpush1.bf16.msra.mxu0 %v7344
    %7516 = vmatprep.subr.bf16.mxu0 0
    %7517 = vmatpush1.bf16.msra.mxu0 0
    %7518 = vmatprep.subr.bf16.mxu0 0
    %7519 = vmatpush1.bf16.msra.mxu0 0
    %7520 = vmatprep.subr.bf16.mxu0 0
    %7521 = vmatpush1.bf16.msra.mxu0 0
    %7522 = vmatprep.subr.bf16.mxu0 0
    %7523 = vmatpush1.bf16.msra.mxu0 0
    %7524 = vmatprep.subr.bf16.mxu0 0
    %7525 = vmatpush1.bf16.msra.mxu0 0
    %7526 = vmatprep.subr.bf16.mxu0 0
    %7527 = vmatpush1.bf16.msra.mxu0 0
    %7528 = vmatprep.subr.bf16.mxu0 0
    %7529 = vmatpush1.bf16.msra.mxu0 0
    %7530 = vmatprep.subr.bf16.mxu0 0
    %7531 = vmatpush1.bf16.msra.mxu0 0
    %7532 = vmatprep.subr.bf16.mxu0 0
    %7533 = vmatpush1.bf16.msra.mxu0 0
    %7534 = vmatprep.subr.bf16.mxu0 0
    %7535 = vmatpush1.bf16.msra.mxu0 0
    %7536 = vmatprep.subr.bf16.mxu0 0
    %7537 = vmatpush1.bf16.msra.mxu0 0
    %7538 = vmatprep.subr.bf16.mxu0 0
    %7539 = vmatpush1.bf16.msra.mxu0 0
    %7540 = vmatprep.subr.bf16.mxu0 0
    %7541 = vmatpush1.bf16.msra.mxu0 0
    %7542 = vmatprep.subr.bf16.mxu0 0
    %7543 = vmatpush1.bf16.msra.mxu0 0
    %7544 = vmatprep.mubr.bf16.mxu0 0
    %7545 = vmatmul.mubr.bf16.gmra.mrb[0].mxu0 %v7428
    %v7546 = vpop.f32.mrb[0].mxu0
    %v7547 = vadd.f32 %v7369, %v7546
    %v7548 = vpop.f32.mrb[0].mxu0
    %v7549 = vadd.f32 %v7369, %v7548
    %v7550 = vpop.f32.mrb[0].mxu0
    %v7551 = vadd.f32 %v7374, %v7550
    %v7552 = vpop.f32.mrb[0].mxu0
    %v7553 = vadd.f32 %v7374, %v7552
    %7554 = vmatprep.mubr.bf16.mxu0 0
    %7555 = vmatmul.mubr.bf16.gmra.mrb[0].mxu0 %v7431
    %v7556 = vpop.f32.mrb[0].mxu0
    %v7557 = vadd.f32 %v7379, %v7556
    %v7558 = vpop.f32.mrb[0].mxu0
    %v7559 = vadd.f32 %v7379, %v7558
    %v7560 = vpop.f32.mrb[0].mxu0
    %v7561 = vadd.f32 %v7384, %v7560
    %v7562 = vpop.f32.mrb[0].mxu0
    %v7563 = vadd.f32 %v7384, %v7562
    %7564 = vmatprep.mubr.bf16.mxu0 0
    %7565 = vmatmul.mubr.bf16.gmra.mrb[0].mxu0 %v7434
    %v7566 = vpop.f32.mrb[0].mxu0
    %v7567 = vadd.f32 %v7389, %v7566
    %v7568 = vpop.f32.mrb[0].mxu0
    %v7569 = vadd.f32 %v7389, %v7568
    %v7570 = vpop.f32.mrb[0].mxu0
    %v7571 = vadd.f32 %v7394, %v7570
    %v7572 = vpop.f32.mrb[0].mxu0
    %v7573 = vadd.f32 %v7394, %v7572
    %7574 = vmatprep.mubr.bf16.mxu0 0
    %7575 = vmatmul.mubr.bf16.gmra.mrb[0].mxu0 %v7437
    %v7576 = vpop.f32.mrb[0].mxu0
    %v7577 = vadd.f32 %v7399, %v7576
    %v7578 = vpop.f32.mrb[0].mxu0
    %v7579 = vadd.f32 %v7399, %v7578
    %v7580 = vpop.f32.mrb[0].mxu0
    %v7581 = vadd.f32 %v7404, %v7580
    %v7582 = vpop.f32.mrb[0].mxu0
    %v7583 = vadd.f32 %v7404, %v7582
    %7584 = vdwg.mxu0
    %7585 = vmatprep.subr.bf16.mxu0 %v7331
    %7586 = vmatpush1.bf16.msra.mxu0 %v7330
    %7587 = vmatprep.subr.bf16.mxu0 %v7347
    %7588 = vmatpush1.bf16.msra.mxu0 %v7346
    %7589 = vmatprep.subr.bf16.mxu0 0
    %7590 = vmatpush1.bf16.msra.mxu0 0
    %7591 = vmatprep.subr.bf16.mxu0 0
    %7592 = vmatpush1.bf16.msra.mxu0 0
    %7593 = vmatprep.subr.bf16.mxu0 0
    %7594 = vmatpush1.bf16.msra.mxu0 0
    %7595 = vmatprep.subr.bf16.mxu0 0
    %7596 = vmatpush1.bf16.msra.mxu0 0
    %7597 = vmatprep.subr.bf16.mxu0 0
    %7598 = vmatpush1.bf16.msra.mxu0 0
    %7599 = vmatprep.subr.bf16.mxu0 0
    %7600 = vmatpush1.bf16.msra.mxu0 0
    %7601 = vmatprep.subr.bf16.mxu0 0
    %7602 = vmatpush1.bf16.msra.mxu0 0
    %7603 = vmatprep.subr.bf16.mxu0 0
    %7604 = vmatpush1.bf16.msra.mxu0 0
    %7605 = vmatprep.subr.bf16.mxu0 0
    %7606 = vmatpush1.bf16.msra.mxu0 0
    %7607 = vmatprep.subr.bf16.mxu0 0
    %7608 = vmatpush1.bf16.msra.mxu0 0
    %7609 = vmatprep.subr.bf16.mxu0 0
    %7610 = vmatpush1.bf16.msra.mxu0 0
    %7611 = vmatprep.subr.bf16.mxu0 0
    %7612 = vmatpush1.bf16.msra.mxu0 0
    %7613 = vmatprep.subr.bf16.mxu0 0
    %7614 = vmatpush1.bf16.msra.mxu0 0
    %7615 = vmatprep.subr.bf16.mxu0 0
    %7616 = vmatpush1.bf16.msra.mxu0 0
    %7617 = vmatprep.mubr.bf16.mxu0 0
    %7618 = vmatmul.mubr.bf16.gmra.mrb[0].mxu0 %v7428
    %v7619 = vpop.f32.mrb[0].mxu0
    %v7620 = vadd.f32 %v7369, %v7619
    %v7621 = vpop.f32.mrb[0].mxu0
    %v7622 = vadd.f32 %v7369, %v7621
    %v7623 = vpop.f32.mrb[0].mxu0
    %v7624 = vadd.f32 %v7374, %v7623
    %v7625 = vpop.f32.mrb[0].mxu0
    %v7626 = vadd.f32 %v7374, %v7625
    %7627 = vmatprep.mubr.bf16.mxu0 0
    %7628 = vmatmul.mubr.bf16.gmra.mrb[0].mxu0 %v7431
    %v7629 = vpop.f32.mrb[0].mxu0
    %v7630 = vadd.f32 %v7379, %v7629
    %v7631 = vpop.f32.mrb[0].mxu0
    %v7632 = vadd.f32 %v7379, %v7631
    %v7633 = vpop.f32.mrb[0].mxu0
    %v7634 = vadd.f32 %v7384, %v7633
    %v7635 = vpop.f32.mrb[0].mxu0
    %v7636 = vadd.f32 %v7384, %v7635
    %7637 = vmatprep.mubr.bf16.mxu0 0
    %7638 = vmatmul.mubr.bf16.gmra.mrb[0].mxu0 %v7434
    %v7639 = vpop.f32.mrb[0].mxu0
    %v7640 = vadd.f32 %v7389, %v7639
    %v7641 = vpop.f32.mrb[0].mxu0
    %v7642 = vadd.f32 %v7389, %v7641
    %v7643 = vpop.f32.mrb[0].mxu0
    %v7644 = vadd.f32 %v7394, %v7643
    %v7645 = vpop.f32.mrb[0].mxu0
    %v7646 = vadd.f32 %v7394, %v7645
    %7647 = vmatprep.mubr.bf16.mxu0 0
    %7648 = vmatmul.mubr.bf16.gmra.mrb[0].mxu0 %v7437
    %v7649 = vpop.f32.mrb[0].mxu0
    %v7650 = vadd.f32 %v7399, %v7649
    %v7651 = vpop.f32.mrb[0].mxu0
    %v7652 = vadd.f32 %v7399, %v7651
    %v7653 = vpop.f32.mrb[0].mxu0
    %v7654 = vadd.f32 %v7404, %v7653
    %v7655 = vpop.f32.mrb[0].mxu0
    %v7656 = vadd.f32 %v7404, %v7655
    %7657 = vdwg.mxu0
    %7658 = vmatprep.subr.bf16.mxu0 %v7333
    %7659 = vmatpush1.bf16.msra.mxu0 %v7332
    %7660 = vmatprep.subr.bf16.mxu0 %v7349
    %7661 = vmatpush1.bf16.msra.mxu0 %v7348
    %7662 = vmatprep.subr.bf16.mxu0 0
    %7663 = vmatpush1.bf16.msra.mxu0 0
    %7664 = vmatprep.subr.bf16.mxu0 0
    %7665 = vmatpush1.bf16.msra.mxu0 0
    %7666 = vmatprep.subr.bf16.mxu0 0
    %7667 = vmatpush1.bf16.msra.mxu0 0
    %7668 = vmatprep.subr.bf16.mxu0 0
    %7669 = vmatpush1.bf16.msra.mxu0 0
    %7670 = vmatprep.subr.bf16.mxu0 0
    %7671 = vmatpush1.bf16.msra.mxu0 0
    %7672 = vmatprep.subr.bf16.mxu0 0
    %7673 = vmatpush1.bf16.msra.mxu0 0
    %7674 = vmatprep.subr.bf16.mxu0 0
    %7675 = vmatpush1.bf16.msra.mxu0 0
    %7676 = vmatprep.subr.bf16.mxu0 0
    %7677 = vmatpush1.bf16.msra.mxu0 0
    %7678 = vmatprep.subr.bf16.mxu0 0
    %7679 = vmatpush1.bf16.msra.mxu0 0
    %7680 = vmatprep.subr.bf16.mxu0 0
    %7681 = vmatpush1.bf16.msra.mxu0 0
    %7682 = vmatprep.subr.bf16.mxu0 0
    %7683 = vmatpush1.bf16.msra.mxu0 0
    %7684 = vmatprep.subr.bf16.mxu0 0
    %7685 = vmatpush1.bf16.msra.mxu0 0
    %7686 = vmatprep.subr.bf16.mxu0 0
    %7687 = vmatpush1.bf16.msra.mxu0 0
    %7688 = vmatprep.subr.bf16.mxu0 0
    %7689 = vmatpush1.bf16.msra.mxu0 0
    %7690 = vmatprep.mubr.bf16.mxu0 0
    %7691 = vmatmul.mubr.bf16.gmra.mrb[0].mxu0 %v7428
    %v7692 = vpop.f32.mrb[0].mxu0
    %v7693 = vadd.f32 %v7369, %v7692
    %v7694 = vpop.f32.mrb[0].mxu0
    %v7695 = vadd.f32 %v7369, %v7694
    %v7696 = vpop.f32.mrb[0].mxu0
    %v7697 = vadd.f32 %v7374, %v7696
    %v7698 = vpop.f32.mrb[0].mxu0
    %v7699 = vadd.f32 %v7374, %v7698
    %7700 = vmatprep.mubr.bf16.mxu0 0
    %7701 = vmatmul.mubr.bf16.gmra.mrb[0].mxu0 %v7431
    %v7702 = vpop.f32.mrb[0].mxu0
    %v7703 = vadd.f32 %v7379, %v7702
    %v7704 = vpop.f32.mrb[0].mxu0
    %v7705 = vadd.f32 %v7379, %v7704
    %v7706 = vpop.f32.mrb[0].mxu0
    %v7707 = vadd.f32 %v7384, %v7706
    %v7708 = vpop.f32.mrb[0].mxu0
    %v7709 = vadd.f32 %v7384, %v7708
    %7710 = vmatprep.mubr.bf16.mxu0 0
    %7711 = vmatmul.mubr.bf16.gmra.mrb[0].mxu0 %v7434
    %v7712 = vpop.f32.mrb[0].mxu0
    %v7713 = vadd.f32 %v7389, %v7712
    %v7714 = vpop.f32.mrb[0].mxu0
    %v7715 = vadd.f32 %v7389, %v7714
    %v7716 = vpop.f32.mrb[0].mxu0
    %v7717 = vadd.f32 %v7394, %v7716
    %v7718 = vpop.f32.mrb[0].mxu0
    %v7719 = vadd.f32 %v7394, %v7718
    %7720 = vmatprep.mubr.bf16.mxu0 0
    %7721 = vmatmul.mubr.bf16.gmra.mrb[0].mxu0 %v7437
    %v7722 = vpop.f32.mrb[0].mxu0
    %v7723 = vadd.f32 %v7399, %v7722
    %v7724 = vpop.f32.mrb[0].mxu0
    %v7725 = vadd.f32 %v7399, %v7724
    %v7726 = vpop.f32.mrb[0].mxu0
    %v7727 = vadd.f32 %v7404, %v7726
    %v7728 = vpop.f32.mrb[0].mxu0
    %v7729 = vadd.f32 %v7404, %v7728
    %7730 = vdwg.mxu0
    %7731 = vmatprep.subr.bf16.mxu0 %v7335
    %7732 = vmatpush1.bf16.msra.mxu0 %v7334
    %7733 = vmatprep.subr.bf16.mxu0 %v7351
    %7734 = vmatpush1.bf16.msra.mxu0 %v7350
    %7735 = vmatprep.subr.bf16.mxu0 0
    %7736 = vmatpush1.bf16.msra.mxu0 0
    %7737 = vmatprep.subr.bf16.mxu0 0
    %7738 = vmatpush1.bf16.msra.mxu0 0
    %7739 = vmatprep.subr.bf16.mxu0 0
    %7740 = vmatpush1.bf16.msra.mxu0 0
    %7741 = vmatprep.subr.bf16.mxu0 0
    %7742 = vmatpush1.bf16.msra.mxu0 0
    %7743 = vmatprep.subr.bf16.mxu0 0
    %7744 = vmatpush1.bf16.msra.mxu0 0
    %7745 = vmatprep.subr.bf16.mxu0 0
    %7746 = vmatpush1.bf16.msra.mxu0 0
    %7747 = vmatprep.subr.bf16.mxu0 0
    %7748 = vmatpush1.bf16.msra.mxu0 0
    %7749 = vmatprep.subr.bf16.mxu0 0
    %7750 = vmatpush1.bf16.msra.mxu0 0
    %7751 = vmatprep.subr.bf16.mxu0 0
    %7752 = vmatpush1.bf16.msra.mxu0 0
    %7753 = vmatprep.subr.bf16.mxu0 0
    %7754 = vmatpush1.bf16.msra.mxu0 0
    %7755 = vmatprep.subr.bf16.mxu0 0
    %7756 = vmatpush1.bf16.msra.mxu0 0
    %7757 = vmatprep.subr.bf16.mxu0 0
    %7758 = vmatpush1.bf16.msra.mxu0 0
    %7759 = vmatprep.subr.bf16.mxu0 0
    %7760 = vmatpush1.bf16.msra.mxu0 0
    %7761 = vmatprep.subr.bf16.mxu0 0
    %7762 = vmatpush1.bf16.msra.mxu0 0
    %7763 = vmatprep.mubr.bf16.mxu0 0
    %7764 = vmatmul.mubr.bf16.gmra.mrb[0].mxu0 %v7428
    %v7765 = vpop.f32.mrb[0].mxu0
    %v7766 = vadd.f32 %v7369, %v7765
    %v7767 = vpop.f32.mrb[0].mxu0
    %v7768 = vadd.f32 %v7369, %v7767
    %v7769 = vpop.f32.mrb[0].mxu0
    %v7770 = vadd.f32 %v7374, %v7769
    %v7771 = vpop.f32.mrb[0].mxu0
    %v7772 = vadd.f32 %v7374, %v7771
    %7773 = vmatprep.mubr.bf16.mxu0 0
    %7774 = vmatmul.mubr.bf16.gmra.mrb[0].mxu0 %v7431
    %v7775 = vpop.f32.mrb[0].mxu0
    %v7776 = vadd.f32 %v7379, %v7775
    %v7777 = vpop.f32.mrb[0].mxu0
    %v7778 = vadd.f32 %v7379, %v7777
    %v7779 = vpop.f32.mrb[0].mxu0
    %v7780 = vadd.f32 %v7384, %v7779
    %v7781 = vpop.f32.mrb[0].mxu0
    %v7782 = vadd.f32 %v7384, %v7781
    %7783 = vmatprep.mubr.bf16.mxu0 0
    %7784 = vmatmul.mubr.bf16.gmra.mrb[0].mxu0 %v7434
    %v7785 = vpop.f32.mrb[0].mxu0
    %v7786 = vadd.f32 %v7389, %v7785
    %v7787 = vpop.f32.mrb[0].mxu0
    %v7788 = vadd.f32 %v7389, %v7787
    %v7789 = vpop.f32.mrb[0].mxu0
    %v7790 = vadd.f32 %v7394, %v7789
    %v7791 = vpop.f32.mrb[0].mxu0
    %v7792 = vadd.f32 %v7394, %v7791
    %7793 = vmatprep.mubr.bf16.mxu0 0
    %7794 = vmatmul.mubr.bf16.gmra.mrb[0].mxu0 %v7437
    %v7795 = vpop.f32.mrb[0].mxu0
    %v7796 = vadd.f32 %v7399, %v7795
    %v7797 = vpop.f32.mrb[0].mxu0
    %v7798 = vadd.f32 %v7399, %v7797
    %v7799 = vpop.f32.mrb[0].mxu0
    %v7800 = vadd.f32 %v7404, %v7799
    %v7801 = vpop.f32.mrb[0].mxu0
    %v7802 = vadd.f32 %v7404, %v7801
    %7803 = vdwg.mxu0
    %7804 = vmatprep.subr.bf16.mxu0 %v7337
    %7805 = vmatpush1.bf16.msra.mxu0 %v7336
    %7806 = vmatprep.subr.bf16.mxu0 %v7353
    %7807 = vmatpush1.bf16.msra.mxu0 %v7352
    %7808 = vmatprep.subr.bf16.mxu0 0
    %7809 = vmatpush1.bf16.msra.mxu0 0
    %7810 = vmatprep.subr.bf16.mxu0 0
    %7811 = vmatpush1.bf16.msra.mxu0 0
    %7812 = vmatprep.subr.bf16.mxu0 0
    %7813 = vmatpush1.bf16.msra.mxu0 0
    %7814 = vmatprep.subr.bf16.mxu0 0
    %7815 = vmatpush1.bf16.msra.mxu0 0
    %7816 = vmatprep.subr.bf16.mxu0 0
    %7817 = vmatpush1.bf16.msra.mxu0 0
    %7818 = vmatprep.subr.bf16.mxu0 0
    %7819 = vmatpush1.bf16.msra.mxu0 0
    %7820 = vmatprep.subr.bf16.mxu0 0
    %7821 = vmatpush1.bf16.msra.mxu0 0
    %7822 = vmatprep.subr.bf16.mxu0 0
    %7823 = vmatpush1.bf16.msra.mxu0 0
    %7824 = vmatprep.subr.bf16.mxu0 0
    %7825 = vmatpush1.bf16.msra.mxu0 0
    %7826 = vmatprep.subr.bf16.mxu0 0
    %7827 = vmatpush1.bf16.msra.mxu0 0
    %7828 = vmatprep.subr.bf16.mxu0 0
    %7829 = vmatpush1.bf16.msra.mxu0 0
    %7830 = vmatprep.subr.bf16.mxu0 0
    %7831 = vmatpush1.bf16.msra.mxu0 0
    %7832 = vmatprep.subr.bf16.mxu0 0
    %7833 = vmatpush1.bf16.msra.mxu0 0
    %7834 = vmatprep.subr.bf16.mxu0 0
    %7835 = vmatpush1.bf16.msra.mxu0 0
    %7836 = vmatprep.mubr.bf16.mxu0 0
    %7837 = vmatmul.mubr.bf16.gmra.mrb[0].mxu0 %v7428
    %v7838 = vpop.f32.mrb[0].mxu0
    %v7839 = vadd.f32 %v7369, %v7838
    %v7840 = vpop.f32.mrb[0].mxu0
    %v7841 = vadd.f32 %v7369, %v7840
    %v7842 = vpop.f32.mrb[0].mxu0
    %v7843 = vadd.f32 %v7374, %v7842
    %v7844 = vpop.f32.mrb[0].mxu0
    %v7845 = vadd.f32 %v7374, %v7844
    %7846 = vmatprep.mubr.bf16.mxu0 0
    %7847 = vmatmul.mubr.bf16.gmra.mrb[0].mxu0 %v7431
    %v7848 = vpop.f32.mrb[0].mxu0
    %v7849 = vadd.f32 %v7379, %v7848
    %v7850 = vpop.f32.mrb[0].mxu0
    %v7851 = vadd.f32 %v7379, %v7850
    %v7852 = vpop.f32.mrb[0].mxu0
    %v7853 = vadd.f32 %v7384, %v7852
    %v7854 = vpop.f32.mrb[0].mxu0
    %v7855 = vadd.f32 %v7384, %v7854
    %7856 = vmatprep.mubr.bf16.mxu0 0
    %7857 = vmatmul.mubr.bf16.gmra.mrb[0].mxu0 %v7434
    %v7858 = vpop.f32.mrb[0].mxu0
    %v7859 = vadd.f32 %v7389, %v7858
    %v7860 = vpop.f32.mrb[0].mxu0
    %v7861 = vadd.f32 %v7389, %v7860
    %v7862 = vpop.f32.mrb[0].mxu0
    %v7863 = vadd.f32 %v7394, %v7862
    %v7864 = vpop.f32.mrb[0].mxu0
    %v7865 = vadd.f32 %v7394, %v7864
    %7866 = vmatprep.mubr.bf16.mxu0 0
    %7867 = vmatmul.mubr.bf16.gmra.mrb[0].mxu0 %v7437
    %v7868 = vpop.f32.mrb[0].mxu0
    %v7869 = vadd.f32 %v7399, %v7868
    %v7870 = vpop.f32.mrb[0].mxu0
    %v7871 = vadd.f32 %v7399, %v7870
    %v7872 = vpop.f32.mrb[0].mxu0
    %v7873 = vadd.f32 %v7404, %v7872
    %v7874 = vpop.f32.mrb[0].mxu0
    %v7875 = vadd.f32 %v7404, %v7874
    %7876 = vdwg.mxu0
    %7877 = vmatprep.subr.bf16.mxu0 %v7339
    %7878 = vmatpush1.bf16.msra.mxu0 %v7338
    %7879 = vmatprep.subr.bf16.mxu0 %v7355
    %7880 = vmatpush1.bf16.msra.mxu0 %v7354
    %7881 = vmatprep.subr.bf16.mxu0 0
    %7882 = vmatpush1.bf16.msra.mxu0 0
    %7883 = vmatprep.subr.bf16.mxu0 0
    %7884 = vmatpush1.bf16.msra.mxu0 0
    %7885 = vmatprep.subr.bf16.mxu0 0
    %7886 = vmatpush1.bf16.msra.mxu0 0
    %7887 = vmatprep.subr.bf16.mxu0 0
    %7888 = vmatpush1.bf16.msra.mxu0 0
    %7889 = vmatprep.subr.bf16.mxu0 0
    %7890 = vmatpush1.bf16.msra.mxu0 0
    %7891 = vmatprep.subr.bf16.mxu0 0
    %7892 = vmatpush1.bf16.msra.mxu0 0
    %7893 = vmatprep.subr.bf16.mxu0 0
    %7894 = vmatpush1.bf16.msra.mxu0 0
    %7895 = vmatprep.subr.bf16.mxu0 0
    %7896 = vmatpush1.bf16.msra.mxu0 0
    %7897 = vmatprep.subr.bf16.mxu0 0
    %7898 = vmatpush1.bf16.msra.mxu0 0
    %7899 = vmatprep.subr.bf16.mxu0 0
    %7900 = vmatpush1.bf16.msra.mxu0 0
    %7901 = vmatprep.subr.bf16.mxu0 0
    %7902 = vmatpush1.bf16.msra.mxu0 0
    %7903 = vmatprep.subr.bf16.mxu0 0
    %7904 = vmatpush1.bf16.msra.mxu0 0
    %7905 = vmatprep.subr.bf16.mxu0 0
    %7906 = vmatpush1.bf16.msra.mxu0 0
    %7907 = vmatprep.subr.bf16.mxu0 0
    %7908 = vmatpush1.bf16.msra.mxu0 0
    %7909 = vmatprep.mubr.bf16.mxu0 0
    %7910 = vmatmul.mubr.bf16.gmra.mrb[0].mxu0 %v7428
    %v7911 = vpop.f32.mrb[0].mxu0
    %v7912 = vadd.f32 %v7369, %v7911
    %v7913 = vpop.f32.mrb[0].mxu0
    %v7914 = vadd.f32 %v7369, %v7913
    %v7915 = vpop.f32.mrb[0].mxu0
    %v7916 = vadd.f32 %v7374, %v7915
    %v7917 = vpop.f32.mrb[0].mxu0
    %v7918 = vadd.f32 %v7374, %v7917
    %7919 = vmatprep.mubr.bf16.mxu0 0
    %7920 = vmatmul.mubr.bf16.gmra.mrb[0].mxu0 %v7431
    %v7921 = vpop.f32.mrb[0].mxu0
    %v7922 = vadd.f32 %v7379, %v7921
    %v7923 = vpop.f32.mrb[0].mxu0
    %v7924 = vadd.f32 %v7379, %v7923
    %v7925 = vpop.f32.mrb[0].mxu0
    %v7926 = vadd.f32 %v7384, %v7925
    %v7927 = vpop.f32.mrb[0].mxu0
    %v7928 = vadd.f32 %v7384, %v7927
    %7929 = vmatprep.mubr.bf16.mxu0 0
    %7930 = vmatmul.mubr.bf16.gmra.mrb[0].mxu0 %v7434
    %v7931 = vpop.f32.mrb[0].mxu0
    %v7932 = vadd.f32 %v7389, %v7931
    %v7933 = vpop.f32.mrb[0].mxu0
    %v7934 = vadd.f32 %v7389, %v7933
    %v7935 = vpop.f32.mrb[0].mxu0
    %v7936 = vadd.f32 %v7394, %v7935
    %v7937 = vpop.f32.mrb[0].mxu0
    %v7938 = vadd.f32 %v7394, %v7937
    %7939 = vmatprep.mubr.bf16.mxu0 0
    %7940 = vmatmul.mubr.bf16.gmra.mrb[0].mxu0 %v7437
    %v7941 = vpop.f32.mrb[0].mxu0
    %v7942 = vadd.f32 %v7399, %v7941
    %v7943 = vpop.f32.mrb[0].mxu0
    %v7944 = vadd.f32 %v7399, %v7943
    %v7945 = vpop.f32.mrb[0].mxu0
    %v7946 = vadd.f32 %v7404, %v7945
    %v7947 = vpop.f32.mrb[0].mxu0
    %v7948 = vadd.f32 %v7404, %v7947
    %7949 = vdwg.mxu0
    %7950 = vmatprep.subr.bf16.mxu0 %v7341
    %7951 = vmatpush1.bf16.msra.mxu0 %v7340
    %7952 = vmatprep.subr.bf16.mxu0 %v7357
    %7953 = vmatpush1.bf16.msra.mxu0 %v7356
    %7954 = vmatprep.subr.bf16.mxu0 0
    %7955 = vmatpush1.bf16.msra.mxu0 0
    %7956 = vmatprep.subr.bf16.mxu0 0
    %7957 = vmatpush1.bf16.msra.mxu0 0
    %7958 = vmatprep.subr.bf16.mxu0 0
    %7959 = vmatpush1.bf16.msra.mxu0 0
    %7960 = vmatprep.subr.bf16.mxu0 0
    %7961 = vmatpush1.bf16.msra.mxu0 0
    %7962 = vmatprep.subr.bf16.mxu0 0
    %7963 = vmatpush1.bf16.msra.mxu0 0
    %7964 = vmatprep.subr.bf16.mxu0 0
    %7965 = vmatpush1.bf16.msra.mxu0 0
    %7966 = vmatprep.subr.bf16.mxu0 0
    %7967 = vmatpush1.bf16.msra.mxu0 0
    %7968 = vmatprep.subr.bf16.mxu0 0
    %7969 = vmatpush1.bf16.msra.mxu0 0
    %7970 = vmatprep.subr.bf16.mxu0 0
    %7971 = vmatpush1.bf16.msra.mxu0 0
    %7972 = vmatprep.subr.bf16.mxu0 0
    %7973 = vmatpush1.bf16.msra.mxu0 0
    %7974 = vmatprep.subr.bf16.mxu0 0
    %7975 = vmatpush1.bf16.msra.mxu0 0
    %7976 = vmatprep.subr.bf16.mxu0 0
    %7977 = vmatpush1.bf16.msra.mxu0 0
    %7978 = vmatprep.subr.bf16.mxu0 0
    %7979 = vmatpush1.bf16.msra.mxu0 0
    %7980 = vmatprep.subr.bf16.mxu0 0
    %7981 = vmatpush1.bf16.msra.mxu0 0
    %7982 = vmatprep.mubr.bf16.mxu0 0
    %7983 = vmatmul.mubr.bf16.gmra.mrb[0].mxu0 %v7428
    %v7984 = vpop.f32.mrb[0].mxu0
    %v7985 = vadd.f32 %v7369, %v7984
    %v7986 = vpop.f32.mrb[0].mxu0
    %v7987 = vadd.f32 %v7369, %v7986
    %v7988 = vpop.f32.mrb[0].mxu0
    %v7989 = vadd.f32 %v7374, %v7988
    %v7990 = vpop.f32.mrb[0].mxu0
    %v7991 = vadd.f32 %v7374, %v7990
    %7992 = vmatprep.mubr.bf16.mxu0 0
    %7993 = vmatmul.mubr.bf16.gmra.mrb[0].mxu0 %v7431
    %v7994 = vpop.f32.mrb[0].mxu0
    %v7995 = vadd.f32 %v7379, %v7994
    %v7996 = vpop.f32.mrb[0].mxu0
    %v7997 = vadd.f32 %v7379, %v7996
    %v7998 = vpop.f32.mrb[0].mxu0
    %v7999 = vadd.f32 %v7384, %v7998
    %v8000 = vpop.f32.mrb[0].mxu0
    %v8001 = vadd.f32 %v7384, %v8000
    %8002 = vmatprep.mubr.bf16.mxu0 0
    %8003 = vmatmul.mubr.bf16.gmra.mrb[0].mxu0 %v7434
    %v8004 = vpop.f32.mrb[0].mxu0
    %v8005 = vadd.f32 %v7389, %v8004
    %v8006 = vpop.f32.mrb[0].mxu0
    %v8007 = vadd.f32 %v7389, %v8006
    %v8008 = vpop.f32.mrb[0].mxu0
    %v8009 = vadd.f32 %v7394, %v8008
    %v8010 = vpop.f32.mrb[0].mxu0
    %v8011 = vadd.f32 %v7394, %v8010
    %8012 = vmatprep.mubr.bf16.mxu0 0
    %8013 = vmatmul.mubr.bf16.gmra.mrb[0].mxu0 %v7437
    %v8014 = vpop.f32.mrb[0].mxu0
    %v8015 = vadd.f32 %v7399, %v8014
    %v8016 = vpop.f32.mrb[0].mxu0
    %v8017 = vadd.f32 %v7399, %v8016
    %v8018 = vpop.f32.mrb[0].mxu0
    %v8019 = vadd.f32 %v7404, %v8018
    %v8020 = vpop.f32.mrb[0].mxu0
    %v8021 = vadd.f32 %v7404, %v8020
    %8022 = vdwg.mxu0
    %v8023 = vmul.f32 %v7474, 0.01
    %v8024 = vmul.f32 %v7476, 0.01
    %v8025 = vmul.f32 %v7547, 0.01
    %v8026 = vmul.f32 %v7549, 0.01
    %v8027 = vmul.f32 %v7620, 0.01
    %v8028 = vmul.f32 %v7622, 0.01
    %v8029 = vmul.f32 %v7693, 0.01
    %v8030 = vmul.f32 %v7695, 0.01
    %v8031 = vmul.f32 %v7766, 0.01
    %v8032 = vmul.f32 %v7768, 0.01
    %v8033 = vmul.f32 %v7839, 0.01
    %v8034 = vmul.f32 %v7841, 0.01
    %v8035 = vmul.f32 %v7912, 0.01
    %v8036 = vmul.f32 %v7914, 0.01
    %v8037 = vmul.f32 %v7985, 0.01
    %v8038 = vmul.f32 %v7987, 0.01
    %v8039 = vmul.f32 %v7478, 0.01
    %v8040 = vmul.f32 %v7480, 0.01
    %v8041 = vmul.f32 %v7551, 0.01
    %v8042 = vmul.f32 %v7553, 0.01
    %v8043 = vmul.f32 %v7624, 0.01
    %v8044 = vmul.f32 %v7626, 0.01
    %v8045 = vmul.f32 %v7697, 0.01
    %v8046 = vmul.f32 %v7699, 0.01
    %v8047 = vmul.f32 %v7770, 0.01
    %v8048 = vmul.f32 %v7772, 0.01
    %v8049 = vmul.f32 %v7843, 0.01
    %v8050 = vmul.f32 %v7845, 0.01
    %v8051 = vmul.f32 %v7916, 0.01
    %v8052 = vmul.f32 %v7918, 0.01
    %v8053 = vmul.f32 %v7989, 0.01
    %v8054 = vmul.f32 %v7991, 0.01
    %v8055 = vmul.f32 %v7484, 0.01
    %v8056 = vmul.f32 %v7486, 0.01
    %v8057 = vmul.f32 %v7557, 0.01
    %v8058 = vmul.f32 %v7559, 0.01
    %v8059 = vmul.f32 %v7630, 0.01
    %v8060 = vmul.f32 %v7632, 0.01
    %v8061 = vmul.f32 %v7703, 0.01
    %v8062 = vmul.f32 %v7705, 0.01
    %v8063 = vmul.f32 %v7776, 0.01
    %v8064 = vmul.f32 %v7778, 0.01
    %v8065 = vmul.f32 %v7849, 0.01
    %v8066 = vmul.f32 %v7851, 0.01
    %v8067 = vmul.f32 %v7922, 0.01
    %v8068 = vmul.f32 %v7924, 0.01
    %v8069 = vmul.f32 %v7995, 0.01
    %v8070 = vmul.f32 %v7997, 0.01
    %v8071 = vmul.f32 %v7488, 0.01
    %v8072 = vmul.f32 %v7490, 0.01
    %v8073 = vmul.f32 %v7561, 0.01
    %v8074 = vmul.f32 %v7563, 0.01
    %v8075 = vmul.f32 %v7634, 0.01
    %v8076 = vmul.f32 %v7636, 0.01
    %v8077 = vmul.f32 %v7707, 0.01
    %v8078 = vmul.f32 %v7709, 0.01
    %v8079 = vmul.f32 %v7780, 0.01
    %v8080 = vmul.f32 %v7782, 0.01
    %v8081 = vmul.f32 %v7853, 0.01
    %v8082 = vmul.f32 %v7855, 0.01
    %v8083 = vmul.f32 %v7926, 0.01
    %v8084 = vmul.f32 %v7928, 0.01
    %v8085 = vmul.f32 %v7999, 0.01
    %v8086 = vmul.f32 %v8001, 0.01
    %v8087 = vmul.f32 %v7494, 0.01
    %v8088 = vmul.f32 %v7496, 0.01
    %v8089 = vmul.f32 %v7567, 0.01
    %v8090 = vmul.f32 %v7569, 0.01
    %v8091 = vmul.f32 %v7640, 0.01
    %v8092 = vmul.f32 %v7642, 0.01
    %v8093 = vmul.f32 %v7713, 0.01
    %v8094 = vmul.f32 %v7715, 0.01
    %v8095 = vmul.f32 %v7786, 0.01
    %v8096 = vmul.f32 %v7788, 0.01
    %v8097 = vmul.f32 %v7859, 0.01
    %v8098 = vmul.f32 %v7861, 0.01
    %v8099 = vmul.f32 %v7932, 0.01
    %v8100 = vmul.f32 %v7934, 0.01
    %v8101 = vmul.f32 %v8005, 0.01
    %v8102 = vmul.f32 %v8007, 0.01
    %v8103 = vmul.f32 %v7498, 0.01
    %v8104 = vmul.f32 %v7500, 0.01
    %v8105 = vmul.f32 %v7571, 0.01
    %v8106 = vmul.f32 %v7573, 0.01
    %v8107 = vmul.f32 %v7644, 0.01
    %v8108 = vmul.f32 %v7646, 0.01
    %v8109 = vmul.f32 %v7717, 0.01
    %v8110 = vmul.f32 %v7719, 0.01
    %v8111 = vmul.f32 %v7790, 0.01
    %v8112 = vmul.f32 %v7792, 0.01
    %v8113 = vmul.f32 %v7863, 0.01
    %v8114 = vmul.f32 %v7865, 0.01
    %v8115 = vmul.f32 %v7936, 0.01
    %v8116 = vmul.f32 %v7938, 0.01
    %v8117 = vmul.f32 %v8009, 0.01
    %v8118 = vmul.f32 %v8011, 0.01
    %v8119 = vmul.f32 %v7504, 0.01
    %v8120 = vmul.f32 %v7506, 0.01
    %v8121 = vmul.f32 %v7577, 0.01
    %v8122 = vmul.f32 %v7579, 0.01
    %v8123 = vmul.f32 %v7650, 0.01
    %v8124 = vmul.f32 %v7652, 0.01
    %v8125 = vmul.f32 %v7723, 0.01
    %v8126 = vmul.f32 %v7725, 0.01
    %v8127 = vmul.f32 %v7796, 0.01
    %v8128 = vmul.f32 %v7798, 0.01
    %v8129 = vmul.f32 %v7869, 0.01
    %v8130 = vmul.f32 %v7871, 0.01
    %v8131 = vmul.f32 %v7942, 0.01
    %v8132 = vmul.f32 %v7944, 0.01
    %v8133 = vmul.f32 %v8015, 0.01
    %v8134 = vmul.f32 %v8017, 0.01
    %v8135 = vmul.f32 %v7508, 0.01
    %v8136 = vmul.f32 %v7510, 0.01
    %v8137 = vmul.f32 %v7581, 0.01
    %v8138 = vmul.f32 %v7583, 0.01
    %v8139 = vmul.f32 %v7654, 0.01
    %v8140 = vmul.f32 %v7656, 0.01
    %v8141 = vmul.f32 %v7727, 0.01
    %v8142 = vmul.f32 %v7729, 0.01
    %v8143 = vmul.f32 %v7800, 0.01
    %v8144 = vmul.f32 %v7802, 0.01
    %v8145 = vmul.f32 %v7873, 0.01
    %v8146 = vmul.f32 %v7875, 0.01
    %v8147 = vmul.f32 %v7946, 0.01
    %v8148 = vmul.f32 %v7948, 0.01
    %v8149 = vmul.f32 %v8019, 0.01
    %v8150 = vmul.f32 %v8021, 0.01
    %v8151 = vmax.f32 %v7474, %v8023
    %v8152 = vmax.f32 %v7476, %v8024
    %v8153 = vmax.f32 %v7547, %v8025
    %v8154 = vmax.f32 %v7549, %v8026
    %v8155 = vmax.f32 %v7620, %v8027
    %v8156 = vmax.f32 %v7622, %v8028
    %v8157 = vmax.f32 %v7693, %v8029
    %v8158 = vmax.f32 %v7695, %v8030
    %v8159 = vmax.f32 %v7766, %v8031
    %v8160 = vmax.f32 %v7768, %v8032
    %v8161 = vmax.f32 %v7839, %v8033
    %v8162 = vmax.f32 %v7841, %v8034
    %v8163 = vmax.f32 %v7912, %v8035
    %v8164 = vmax.f32 %v7914, %v8036
    %v8165 = vmax.f32 %v7985, %v8037
    %v8166 = vmax.f32 %v7987, %v8038
    %v8167 = vmax.f32 %v7478, %v8039
    %v8168 = vmax.f32 %v7480, %v8040
    %v8169 = vmax.f32 %v7551, %v8041
    %v8170 = vmax.f32 %v7553, %v8042
    %v8171 = vmax.f32 %v7624, %v8043
    %v8172 = vmax.f32 %v7626, %v8044
    %v8173 = vmax.f32 %v7697, %v8045
    %v8174 = vmax.f32 %v7699, %v8046
    %v8175 = vmax.f32 %v7770, %v8047
    %v8176 = vmax.f32 %v7772, %v8048
    %v8177 = vmax.f32 %v7843, %v8049
    %v8178 = vmax.f32 %v7845, %v8050
    %v8179 = vmax.f32 %v7916, %v8051
    %v8180 = vmax.f32 %v7918, %v8052
    %v8181 = vmax.f32 %v7989, %v8053
    %v8182 = vmax.f32 %v7991, %v8054
    %v8183 = vmax.f32 %v7484, %v8055
    %v8184 = vmax.f32 %v7486, %v8056
    %v8185 = vmax.f32 %v7557, %v8057
    %v8186 = vmax.f32 %v7559, %v8058
    %v8187 = vmax.f32 %v7630, %v8059
    %v8188 = vmax.f32 %v7632, %v8060
    %v8189 = vmax.f32 %v7703, %v8061
    %v8190 = vmax.f32 %v7705, %v8062
    %v8191 = vmax.f32 %v7776, %v8063
    %v8192 = vmax.f32 %v7778, %v8064
    %v8193 = vmax.f32 %v7849, %v8065
    %v8194 = vmax.f32 %v7851, %v8066
    %v8195 = vmax.f32 %v7922, %v8067
    %v8196 = vmax.f32 %v7924, %v8068
    %v8197 = vmax.f32 %v7995, %v8069
    %v8198 = vmax.f32 %v7997, %v8070
    %v8199 = vmax.f32 %v7488, %v8071
    %v8200 = vmax.f32 %v7490, %v8072
    %v8201 = vmax.f32 %v7561, %v8073
    %v8202 = vmax.f32 %v7563, %v8074
    %v8203 = vmax.f32 %v7634, %v8075
    %v8204 = vmax.f32 %v7636, %v8076
    %v8205 = vmax.f32 %v7707, %v8077
    %v8206 = vmax.f32 %v7709, %v8078
    %v8207 = vmax.f32 %v7780, %v8079
    %v8208 = vmax.f32 %v7782, %v8080
    %v8209 = vmax.f32 %v7853, %v8081
    %v8210 = vmax.f32 %v7855, %v8082
    %v8211 = vmax.f32 %v7926, %v8083
    %v8212 = vmax.f32 %v7928, %v8084
    %v8213 = vmax.f32 %v7999, %v8085
    %v8214 = vmax.f32 %v8001, %v8086
    %v8215 = vmax.f32 %v7494, %v8087
    %v8216 = vmax.f32 %v7496, %v8088
    %v8217 = vmax.f32 %v7567, %v8089
    %v8218 = vmax.f32 %v7569, %v8090
    %v8219 = vmax.f32 %v7640, %v8091
    %v8220 = vmax.f32 %v7642, %v8092
    %v8221 = vmax.f32 %v7713, %v8093
    %v8222 = vmax.f32 %v7715, %v8094
    %v8223 = vmax.f32 %v7786, %v8095
    %v8224 = vmax.f32 %v7788, %v8096
    %v8225 = vmax.f32 %v7859, %v8097
    %v8226 = vmax.f32 %v7861, %v8098
    %v8227 = vmax.f32 %v7932, %v8099
    %v8228 = vmax.f32 %v7934, %v8100
    %v8229 = vmax.f32 %v8005, %v8101
    %v8230 = vmax.f32 %v8007, %v8102
    %v8231 = vmax.f32 %v7498, %v8103
    %v8232 = vmax.f32 %v7500, %v8104
    %v8233 = vmax.f32 %v7571, %v8105
    %v8234 = vmax.f32 %v7573, %v8106
    %v8235 = vmax.f32 %v7644, %v8107
    %v8236 = vmax.f32 %v7646, %v8108
    %v8237 = vmax.f32 %v7717, %v8109
    %v8238 = vmax.f32 %v7719, %v8110
    %v8239 = vmax.f32 %v7790, %v8111
    %v8240 = vmax.f32 %v7792, %v8112
    %v8241 = vmax.f32 %v7863, %v8113
    %v8242 = vmax.f32 %v7865, %v8114
    %v8243 = vmax.f32 %v7936, %v8115
    %v8244 = vmax.f32 %v7938, %v8116
    %v8245 = vmax.f32 %v8009, %v8117
    %v8246 = vmax.f32 %v8011, %v8118
    %v8247 = vmax.f32 %v7504, %v8119
    %v8248 = vmax.f32 %v7506, %v8120
    %v8249 = vmax.f32 %v7577, %v8121
    %v8250 = vmax.f32 %v7579, %v8122
    %v8251 = vmax.f32 %v7650, %v8123
    %v8252 = vmax.f32 %v7652, %v8124
    %v8253 = vmax.f32 %v7723, %v8125
    %v8254 = vmax.f32 %v7725, %v8126
    %v8255 = vmax.f32 %v7796, %v8127
    %v8256 = vmax.f32 %v7798, %v8128
    %v8257 = vmax.f32 %v7869, %v8129
    %v8258 = vmax.f32 %v7871, %v8130
    %v8259 = vmax.f32 %v7942, %v8131
    %v8260 = vmax.f32 %v7944, %v8132
    %v8261 = vmax.f32 %v8015, %v8133
    %v8262 = vmax.f32 %v8017, %v8134
    %v8263 = vmax.f32 %v7508, %v8135
    %v8264 = vmax.f32 %v7510, %v8136
    %v8265 = vmax.f32 %v7581, %v8137
    %v8266 = vmax.f32 %v7583, %v8138
    %v8267 = vmax.f32 %v7654, %v8139
    %v8268 = vmax.f32 %v7656, %v8140
    %v8269 = vmax.f32 %v7727, %v8141
    %v8270 = vmax.f32 %v7729, %v8142
    %v8271 = vmax.f32 %v7800, %v8143
    %v8272 = vmax.f32 %v7802, %v8144
    %v8273 = vmax.f32 %v7873, %v8145
    %v8274 = vmax.f32 %v7875, %v8146
    %v8275 = vmax.f32 %v7946, %v8147
    %v8276 = vmax.f32 %v7948, %v8148
    %v8277 = vmax.f32 %v8019, %v8149
    %v8278 = vmax.f32 %v8021, %v8150
    %v8279 = vld [vmem:[%s5] sm:$0xf]
    %v8280 = vld [vmem:[%s5 + $0x4] sm:$0xf]
    %v8281 = vld [vmem:[%s5 + $0x8] sm:$0xf]
    %v8282 = vld [vmem:[%s5 + $0xc] sm:$0xf]
    %v8283 = vld [vmem:[%s5 + $0x10] sm:$0xf]
    %v8284 = vld [vmem:[%s5 + $0x14] sm:$0xf]
    %v8285 = vld [vmem:[%s5 + $0x18] sm:$0xf]
    %v8286 = vld [vmem:[%s5 + $0x1c] sm:$0xf]
    %v8287 = vpack.c.bf16 %v8167, %v8151
    %v8288 = vpack.c.bf16 %v8168, %v8152
    %v8289 = vpack.c.bf16 %v8169, %v8153
    %v8290 = vpack.c.bf16 %v8170, %v8154
    %v8291 = vpack.c.bf16 %v8171, %v8155
    %v8292 = vpack.c.bf16 %v8172, %v8156
    %v8293 = vpack.c.bf16 %v8173, %v8157
    %v8294 = vpack.c.bf16 %v8174, %v8158
    %v8295 = vpack.c.bf16 %v8175, %v8159
    %v8296 = vpack.c.bf16 %v8176, %v8160
    %v8297 = vpack.c.bf16 %v8177, %v8161
    %v8298 = vpack.c.bf16 %v8178, %v8162
    %v8299 = vpack.c.bf16 %v8179, %v8163
    %v8300 = vpack.c.bf16 %v8180, %v8164
    %v8301 = vpack.c.bf16 %v8181, %v8165
    %v8302 = vpack.c.bf16 %v8182, %v8166
    %v8303 = vpack.c.bf16 %v8199, %v8183
    %v8304 = vpack.c.bf16 %v8200, %v8184
    %v8305 = vpack.c.bf16 %v8201, %v8185
    %v8306 = vpack.c.bf16 %v8202, %v8186
    %v8307 = vpack.c.bf16 %v8203, %v8187
    %v8308 = vpack.c.bf16 %v8204, %v8188
    %v8309 = vpack.c.bf16 %v8205, %v8189
    %v8310 = vpack.c.bf16 %v8206, %v8190
    %v8311 = vpack.c.bf16 %v8207, %v8191
    %v8312 = vpack.c.bf16 %v8208, %v8192
    %v8313 = vpack.c.bf16 %v8209, %v8193
    %v8314 = vpack.c.bf16 %v8210, %v8194
    %v8315 = vpack.c.bf16 %v8211, %v8195
    %v8316 = vpack.c.bf16 %v8212, %v8196
    %v8317 = vpack.c.bf16 %v8213, %v8197
    %v8318 = vpack.c.bf16 %v8214, %v8198
    %v8319 = vpack.c.bf16 %v8231, %v8215
    %v8320 = vpack.c.bf16 %v8232, %v8216
    %v8321 = vpack.c.bf16 %v8233, %v8217
    %v8322 = vpack.c.bf16 %v8234, %v8218
    %v8323 = vpack.c.bf16 %v8235, %v8219
    %v8324 = vpack.c.bf16 %v8236, %v8220
    %v8325 = vpack.c.bf16 %v8237, %v8221
    %v8326 = vpack.c.bf16 %v8238, %v8222
    %v8327 = vpack.c.bf16 %v8239, %v8223
    %v8328 = vpack.c.bf16 %v8240, %v8224
    %v8329 = vpack.c.bf16 %v8241, %v8225
    %v8330 = vpack.c.bf16 %v8242, %v8226
    %v8331 = vpack.c.bf16 %v8243, %v8227
    %v8332 = vpack.c.bf16 %v8244, %v8228
    %v8333 = vpack.c.bf16 %v8245, %v8229
    %v8334 = vpack.c.bf16 %v8246, %v8230
    %v8335 = vpack.c.bf16 %v8263, %v8247
    %v8336 = vpack.c.bf16 %v8264, %v8248
    %v8337 = vpack.c.bf16 %v8265, %v8249
    %v8338 = vpack.c.bf16 %v8266, %v8250
    %v8339 = vpack.c.bf16 %v8267, %v8251
    %v8340 = vpack.c.bf16 %v8268, %v8252
    %v8341 = vpack.c.bf16 %v8269, %v8253
    %v8342 = vpack.c.bf16 %v8270, %v8254
    %v8343 = vpack.c.bf16 %v8271, %v8255
    %v8344 = vpack.c.bf16 %v8272, %v8256
    %v8345 = vpack.c.bf16 %v8273, %v8257
    %v8346 = vpack.c.bf16 %v8274, %v8258
    %v8347 = vpack.c.bf16 %v8275, %v8259
    %v8348 = vpack.c.bf16 %v8276, %v8260
    %v8349 = vpack.c.bf16 %v8277, %v8261
    %v8350 = vpack.c.bf16 %v8278, %v8262
    %v8351 = vld [vmem:[%s6] sm:$0xff]
    %v8352 = vld [vmem:[%s6 + $0x8] sm:$0xff]
    %v8353 = vld [vmem:[%s6 + $0x10] sm:$0xff]
    %v8354 = vld [vmem:[%s6 + $0x18] sm:$0xff]
    %v8355 = vld [vmem:[%s6 + $0x20] sm:$0xff]
    %v8356 = vld [vmem:[%s6 + $0x28] sm:$0xff]
    %v8357 = vld [vmem:[%s6 + $0x30] sm:$0xff]
    %v8358 = vld [vmem:[%s6 + $0x38] sm:$0xff]
    %8360 = vset.pattern.permute.xlu0 0
    %8361 = vperm.xlu0 %8360, %v8351
    %v8362 = vpop.permute.xlu0 %8361
    %8365 = vset.pattern.permute.xlu0 0
    %8366 = vperm.xlu0 %8365, %v8352
    %v8367 = vpop.permute.xlu0 %8366
    %8370 = vset.pattern.permute.xlu0 0
    %8371 = vperm.xlu0 %8370, %v8353
    %v8372 = vpop.permute.xlu0 %8371
    %8375 = vset.pattern.permute.xlu0 0
    %8376 = vperm.xlu0 %8375, %v8354
    %v8377 = vpop.permute.xlu0 %8376
    %8380 = vset.pattern.permute.xlu0 0
    %8381 = vperm.xlu0 %8380, %v8355
    %v8382 = vpop.permute.xlu0 %8381
    %8385 = vset.pattern.permute.xlu0 0
    %8386 = vperm.xlu0 %8385, %v8356
    %v8387 = vpop.permute.xlu0 %8386
    %8390 = vset.pattern.permute.xlu0 0
    %8391 = vperm.xlu0 %8390, %v8357
    %v8392 = vpop.permute.xlu0 %8391
    %8395 = vset.pattern.permute.xlu0 0
    %8396 = vperm.xlu0 %8395, %v8358
    %v8397 = vpop.permute.xlu0 %8396
    %v8407 = vunpack.c.l.b16 %v8279
    %v8408 = vunpack.c.l.b16 %v8280
    %v8409 = vunpack.c.l.b16 %v8281
    %v8410 = vunpack.c.l.b16 %v8282
    %v8411 = vunpack.c.l.b16 %v8283
    %v8412 = vunpack.c.l.b16 %v8284
    %v8413 = vunpack.c.l.b16 %v8285
    %v8414 = vunpack.c.l.b16 %v8286
    %v8415 = vpack.c.b16 %v8408, %v8407
    %v8416 = vpack.c.b16 %v8410, %v8409
    %v8417 = vpack.c.b16 %v8412, %v8411
    %v8418 = vpack.c.b16 %v8414, %v8413
    %vm8419 = vcmask 523264
    %v8421 = vsel %vm8419, %v8415, 0
    %v8424 = vsel %vm8419, %v8416, 0
    %v8427 = vsel %vm8419, %v8417, 0
    %v8430 = vsel %vm8419, %v8418, 0
    %8432 = vmatprep.subr.bf16.mxu0 %v8288
    %8433 = vmatpush1.bf16.msra.mxu0 %v8287
    %8434 = vmatprep.subr.bf16.mxu0 %v8304
    %8435 = vmatpush1.bf16.msra.mxu0 %v8303
    %8436 = vmatprep.subr.bf16.mxu0 %v8320
    %8437 = vmatpush1.bf16.msra.mxu0 %v8319
    %8438 = vmatprep.subr.bf16.mxu0 %v8336
    %8439 = vmatpush1.bf16.msra.mxu0 %v8335
    %8440 = vmatprep.subr.bf16.mxu0 0
    %8441 = vmatpush1.bf16.msra.mxu0 0
    %8442 = vmatprep.subr.bf16.mxu0 0
    %8443 = vmatpush1.bf16.msra.mxu0 0
    %8444 = vmatprep.subr.bf16.mxu0 0
    %8445 = vmatpush1.bf16.msra.mxu0 0
    %8446 = vmatprep.subr.bf16.mxu0 0
    %8447 = vmatpush1.bf16.msra.mxu0 0
    %8448 = vmatprep.subr.bf16.mxu0 0
    %8449 = vmatpush1.bf16.msra.mxu0 0
    %8450 = vmatprep.subr.bf16.mxu0 0
    %8451 = vmatpush1.bf16.msra.mxu0 0
    %8452 = vmatprep.subr.bf16.mxu0 0
    %8453 = vmatpush1.bf16.msra.mxu0 0
    %8454 = vmatprep.subr.bf16.mxu0 0
    %8455 = vmatpush1.bf16.msra.mxu0 0
    %8456 = vmatprep.subr.bf16.mxu0 0
    %8457 = vmatpush1.bf16.msra.mxu0 0
    %8458 = vmatprep.subr.bf16.mxu0 0
    %8459 = vmatpush1.bf16.msra.mxu0 0
    %8460 = vmatprep.subr.bf16.mxu0 0
    %8461 = vmatpush1.bf16.msra.mxu0 0
    %8462 = vmatprep.subr.bf16.mxu0 0
    %8463 = vmatpush1.bf16.msra.mxu0 0
    %8464 = vmatprep.mubr.bf16.mxu0 0
    %8465 = vmatmul.mubr.bf16.gmra.mrb[0].mxu0 %v8421
    %v8466 = vpop.f32.mrb[0].mxu0
    %v8467 = vadd.f32 %v8362, %v8466
    %v8468 = vpop.f32.mrb[0].mxu0
    %v8469 = vadd.f32 %v8362, %v8468
    %v8470 = vpop.f32.mrb[0].mxu0
    %v8471 = vadd.f32 %v8367, %v8470
    %v8472 = vpop.f32.mrb[0].mxu0
    %v8473 = vadd.f32 %v8367, %v8472
    %8474 = vmatprep.mubr.bf16.mxu0 0
    %8475 = vmatmul.mubr.bf16.gmra.mrb[0].mxu0 %v8424
    %v8476 = vpop.f32.mrb[0].mxu0
    %v8477 = vadd.f32 %v8372, %v8476
    %v8478 = vpop.f32.mrb[0].mxu0
    %v8479 = vadd.f32 %v8372, %v8478
    %v8480 = vpop.f32.mrb[0].mxu0
    %v8481 = vadd.f32 %v8377, %v8480
    %v8482 = vpop.f32.mrb[0].mxu0
    %v8483 = vadd.f32 %v8377, %v8482
    %8484 = vmatprep.mubr.bf16.mxu0 0
    %8485 = vmatmul.mubr.bf16.gmra.mrb[0].mxu0 %v8427
    %v8486 = vpop.f32.mrb[0].mxu0
    %v8487 = vadd.f32 %v8382, %v8486
    %v8488 = vpop.f32.mrb[0].mxu0
    %v8489 = vadd.f32 %v8382, %v8488
    %v8490 = vpop.f32.mrb[0].mxu0
    %v8491 = vadd.f32 %v8387, %v8490
    %v8492 = vpop.f32.mrb[0].mxu0
    %v8493 = vadd.f32 %v8387, %v8492
    %8494 = vmatprep.mubr.bf16.mxu0 0
    %8495 = vmatmul.mubr.bf16.gmra.mrb[0].mxu0 %v8430
    %v8496 = vpop.f32.mrb[0].mxu0
    %v8497 = vadd.f32 %v8392, %v8496
    %v8498 = vpop.f32.mrb[0].mxu0
    %v8499 = vadd.f32 %v8392, %v8498
    %v8500 = vpop.f32.mrb[0].mxu0
    %v8501 = vadd.f32 %v8397, %v8500
    %v8502 = vpop.f32.mrb[0].mxu0
    %v8503 = vadd.f32 %v8397, %v8502
    %8504 = vdwg.mxu0
    %8505 = vmatprep.subr.bf16.mxu0 %v8290
    %8506 = vmatpush1.bf16.msra.mxu0 %v8289
    %8507 = vmatprep.subr.bf16.mxu0 %v8306
    %8508 = vmatpush1.bf16.msra.mxu0 %v8305
    %8509 = vmatprep.subr.bf16.mxu0 %v8322
    %8510 = vmatpush1.bf16.msra.mxu0 %v8321
    %8511 = vmatprep.subr.bf16.mxu0 %v8338
    %8512 = vmatpush1.bf16.msra.mxu0 %v8337
    %8513 = vmatprep.subr.bf16.mxu0 0
    %8514 = vmatpush1.bf16.msra.mxu0 0
    %8515 = vmatprep.subr.bf16.mxu0 0
    %8516 = vmatpush1.bf16.msra.mxu0 0
    %8517 = vmatprep.subr.bf16.mxu0 0
    %8518 = vmatpush1.bf16.msra.mxu0 0
    %8519 = vmatprep.subr.bf16.mxu0 0
    %8520 = vmatpush1.bf16.msra.mxu0 0
    %8521 = vmatprep.subr.bf16.mxu0 0
    %8522 = vmatpush1.bf16.msra.mxu0 0
    %8523 = vmatprep.subr.bf16.mxu0 0
    %8524 = vmatpush1.bf16.msra.mxu0 0
    %8525 = vmatprep.subr.bf16.mxu0 0
    %8526 = vmatpush1.bf16.msra.mxu0 0
    %8527 = vmatprep.subr.bf16.mxu0 0
    %8528 = vmatpush1.bf16.msra.mxu0 0
    %8529 = vmatprep.subr.bf16.mxu0 0
    %8530 = vmatpush1.bf16.msra.mxu0 0
    %8531 = vmatprep.subr.bf16.mxu0 0
    %8532 = vmatpush1.bf16.msra.mxu0 0
    %8533 = vmatprep.subr.bf16.mxu0 0
    %8534 = vmatpush1.bf16.msra.mxu0 0
    %8535 = vmatprep.subr.bf16.mxu0 0
    %8536 = vmatpush1.bf16.msra.mxu0 0
    %8537 = vmatprep.mubr.bf16.mxu0 0
    %8538 = vmatmul.mubr.bf16.gmra.mrb[0].mxu0 %v8421
    %v8539 = vpop.f32.mrb[0].mxu0
    %v8540 = vadd.f32 %v8362, %v8539
    %v8541 = vpop.f32.mrb[0].mxu0
    %v8542 = vadd.f32 %v8362, %v8541
    %v8543 = vpop.f32.mrb[0].mxu0
    %v8544 = vadd.f32 %v8367, %v8543
    %v8545 = vpop.f32.mrb[0].mxu0
    %v8546 = vadd.f32 %v8367, %v8545
    %8547 = vmatprep.mubr.bf16.mxu0 0
    %8548 = vmatmul.mubr.bf16.gmra.mrb[0].mxu0 %v8424
    %v8549 = vpop.f32.mrb[0].mxu0
    %v8550 = vadd.f32 %v8372, %v8549
    %v8551 = vpop.f32.mrb[0].mxu0
    %v8552 = vadd.f32 %v8372, %v8551
    %v8553 = vpop.f32.mrb[0].mxu0
    %v8554 = vadd.f32 %v8377, %v8553
    %v8555 = vpop.f32.mrb[0].mxu0
    %v8556 = vadd.f32 %v8377, %v8555
    %8557 = vmatprep.mubr.bf16.mxu0 0
    %8558 = vmatmul.mubr.bf16.gmra.mrb[0].mxu0 %v8427
    %v8559 = vpop.f32.mrb[0].mxu0
    %v8560 = vadd.f32 %v8382, %v8559
    %v8561 = vpop.f32.mrb[0].mxu0
    %v8562 = vadd.f32 %v8382, %v8561
    %v8563 = vpop.f32.mrb[0].mxu0
    %v8564 = vadd.f32 %v8387, %v8563
    %v8565 = vpop.f32.mrb[0].mxu0
    %v8566 = vadd.f32 %v8387, %v8565
    %8567 = vmatprep.mubr.bf16.mxu0 0
    %8568 = vmatmul.mubr.bf16.gmra.mrb[0].mxu0 %v8430
    %v8569 = vpop.f32.mrb[0].mxu0
    %v8570 = vadd.f32 %v8392, %v8569
    %v8571 = vpop.f32.mrb[0].mxu0
    %v8572 = vadd.f32 %v8392, %v8571
    %v8573 = vpop.f32.mrb[0].mxu0
    %v8574 = vadd.f32 %v8397, %v8573
    %v8575 = vpop.f32.mrb[0].mxu0
    %v8576 = vadd.f32 %v8397, %v8575
    %8577 = vdwg.mxu0
    %8578 = vmatprep.subr.bf16.mxu0 %v8292
    %8579 = vmatpush1.bf16.msra.mxu0 %v8291
    %8580 = vmatprep.subr.bf16.mxu0 %v8308
    %8581 = vmatpush1.bf16.msra.mxu0 %v8307
    %8582 = vmatprep.subr.bf16.mxu0 %v8324
    %8583 = vmatpush1.bf16.msra.mxu0 %v8323
    %8584 = vmatprep.subr.bf16.mxu0 %v8340
    %8585 = vmatpush1.bf16.msra.mxu0 %v8339
    %8586 = vmatprep.subr.bf16.mxu0 0
    %8587 = vmatpush1.bf16.msra.mxu0 0
    %8588 = vmatprep.subr.bf16.mxu0 0
    %8589 = vmatpush1.bf16.msra.mxu0 0
    %8590 = vmatprep.subr.bf16.mxu0 0
    %8591 = vmatpush1.bf16.msra.mxu0 0
    %8592 = vmatprep.subr.bf16.mxu0 0
    %8593 = vmatpush1.bf16.msra.mxu0 0
    %8594 = vmatprep.subr.bf16.mxu0 0
    %8595 = vmatpush1.bf16.msra.mxu0 0
    %8596 = vmatprep.subr.bf16.mxu0 0
    %8597 = vmatpush1.bf16.msra.mxu0 0
    %8598 = vmatprep.subr.bf16.mxu0 0
    %8599 = vmatpush1.bf16.msra.mxu0 0
    %8600 = vmatprep.subr.bf16.mxu0 0
    %8601 = vmatpush1.bf16.msra.mxu0 0
    %8602 = vmatprep.subr.bf16.mxu0 0
    %8603 = vmatpush1.bf16.msra.mxu0 0
    %8604 = vmatprep.subr.bf16.mxu0 0
    %8605 = vmatpush1.bf16.msra.mxu0 0
    %8606 = vmatprep.subr.bf16.mxu0 0
    %8607 = vmatpush1.bf16.msra.mxu0 0
    %8608 = vmatprep.subr.bf16.mxu0 0
    %8609 = vmatpush1.bf16.msra.mxu0 0
    %8610 = vmatprep.mubr.bf16.mxu0 0
    %8611 = vmatmul.mubr.bf16.gmra.mrb[0].mxu0 %v8421
    %v8612 = vpop.f32.mrb[0].mxu0
    %v8613 = vadd.f32 %v8362, %v8612
    %v8614 = vpop.f32.mrb[0].mxu0
    %v8615 = vadd.f32 %v8362, %v8614
    %v8616 = vpop.f32.mrb[0].mxu0
    %v8617 = vadd.f32 %v8367, %v8616
    %v8618 = vpop.f32.mrb[0].mxu0
    %v8619 = vadd.f32 %v8367, %v8618
    %8620 = vmatprep.mubr.bf16.mxu0 0
    %8621 = vmatmul.mubr.bf16.gmra.mrb[0].mxu0 %v8424
    %v8622 = vpop.f32.mrb[0].mxu0
    %v8623 = vadd.f32 %v8372, %v8622
    %v8624 = vpop.f32.mrb[0].mxu0
    %v8625 = vadd.f32 %v8372, %v8624
    %v8626 = vpop.f32.mrb[0].mxu0
    %v8627 = vadd.f32 %v8377, %v8626
    %v8628 = vpop.f32.mrb[0].mxu0
    %v8629 = vadd.f32 %v8377, %v8628
    %8630 = vmatprep.mubr.bf16.mxu0 0
    %8631 = vmatmul.mubr.bf16.gmra.mrb[0].mxu0 %v8427
    %v8632 = vpop.f32.mrb[0].mxu0
    %v8633 = vadd.f32 %v8382, %v8632
    %v8634 = vpop.f32.mrb[0].mxu0
    %v8635 = vadd.f32 %v8382, %v8634
    %v8636 = vpop.f32.mrb[0].mxu0
    %v8637 = vadd.f32 %v8387, %v8636
    %v8638 = vpop.f32.mrb[0].mxu0
    %v8639 = vadd.f32 %v8387, %v8638
    %8640 = vmatprep.mubr.bf16.mxu0 0
    %8641 = vmatmul.mubr.bf16.gmra.mrb[0].mxu0 %v8430
    %v8642 = vpop.f32.mrb[0].mxu0
    %v8643 = vadd.f32 %v8392, %v8642
    %v8644 = vpop.f32.mrb[0].mxu0
    %v8645 = vadd.f32 %v8392, %v8644
    %v8646 = vpop.f32.mrb[0].mxu0
    %v8647 = vadd.f32 %v8397, %v8646
    %v8648 = vpop.f32.mrb[0].mxu0
    %v8649 = vadd.f32 %v8397, %v8648
    %8650 = vdwg.mxu0
    %8651 = vmatprep.subr.bf16.mxu0 %v8294
    %8652 = vmatpush1.bf16.msra.mxu0 %v8293
    %8653 = vmatprep.subr.bf16.mxu0 %v8310
    %8654 = vmatpush1.bf16.msra.mxu0 %v8309
    %8655 = vmatprep.subr.bf16.mxu0 %v8326
    %8656 = vmatpush1.bf16.msra.mxu0 %v8325
    %8657 = vmatprep.subr.bf16.mxu0 %v8342
    %8658 = vmatpush1.bf16.msra.mxu0 %v8341
    %8659 = vmatprep.subr.bf16.mxu0 0
    %8660 = vmatpush1.bf16.msra.mxu0 0
    %8661 = vmatprep.subr.bf16.mxu0 0
    %8662 = vmatpush1.bf16.msra.mxu0 0
    %8663 = vmatprep.subr.bf16.mxu0 0
    %8664 = vmatpush1.bf16.msra.mxu0 0
    %8665 = vmatprep.subr.bf16.mxu0 0
    %8666 = vmatpush1.bf16.msra.mxu0 0
    %8667 = vmatprep.subr.bf16.mxu0 0
    %8668 = vmatpush1.bf16.msra.mxu0 0
    %8669 = vmatprep.subr.bf16.mxu0 0
    %8670 = vmatpush1.bf16.msra.mxu0 0
    %8671 = vmatprep.subr.bf16.mxu0 0
    %8672 = vmatpush1.bf16.msra.mxu0 0
    %8673 = vmatprep.subr.bf16.mxu0 0
    %8674 = vmatpush1.bf16.msra.mxu0 0
    %8675 = vmatprep.subr.bf16.mxu0 0
    %8676 = vmatpush1.bf16.msra.mxu0 0
    %8677 = vmatprep.subr.bf16.mxu0 0
    %8678 = vmatpush1.bf16.msra.mxu0 0
    %8679 = vmatprep.subr.bf16.mxu0 0
    %8680 = vmatpush1.bf16.msra.mxu0 0
    %8681 = vmatprep.subr.bf16.mxu0 0
    %8682 = vmatpush1.bf16.msra.mxu0 0
    %8683 = vmatprep.mubr.bf16.mxu0 0
    %8684 = vmatmul.mubr.bf16.gmra.mrb[0].mxu0 %v8421
    %v8685 = vpop.f32.mrb[0].mxu0
    %v8686 = vadd.f32 %v8362, %v8685
    %v8687 = vpop.f32.mrb[0].mxu0
    %v8688 = vadd.f32 %v8362, %v8687
    %v8689 = vpop.f32.mrb[0].mxu0
    %v8690 = vadd.f32 %v8367, %v8689
    %v8691 = vpop.f32.mrb[0].mxu0
    %v8692 = vadd.f32 %v8367, %v8691
    %8693 = vmatprep.mubr.bf16.mxu0 0
    %8694 = vmatmul.mubr.bf16.gmra.mrb[0].mxu0 %v8424
    %v8695 = vpop.f32.mrb[0].mxu0
    %v8696 = vadd.f32 %v8372, %v8695
    %v8697 = vpop.f32.mrb[0].mxu0
    %v8698 = vadd.f32 %v8372, %v8697
    %v8699 = vpop.f32.mrb[0].mxu0
    %v8700 = vadd.f32 %v8377, %v8699
    %v8701 = vpop.f32.mrb[0].mxu0
    %v8702 = vadd.f32 %v8377, %v8701
    %8703 = vmatprep.mubr.bf16.mxu0 0
    %8704 = vmatmul.mubr.bf16.gmra.mrb[0].mxu0 %v8427
    %v8705 = vpop.f32.mrb[0].mxu0
    %v8706 = vadd.f32 %v8382, %v8705
    %v8707 = vpop.f32.mrb[0].mxu0
    %v8708 = vadd.f32 %v8382, %v8707
    %v8709 = vpop.f32.mrb[0].mxu0
    %v8710 = vadd.f32 %v8387, %v8709
    %v8711 = vpop.f32.mrb[0].mxu0
    %v8712 = vadd.f32 %v8387, %v8711
    %8713 = vmatprep.mubr.bf16.mxu0 0
    %8714 = vmatmul.mubr.bf16.gmra.mrb[0].mxu0 %v8430
    %v8715 = vpop.f32.mrb[0].mxu0
    %v8716 = vadd.f32 %v8392, %v8715
    %v8717 = vpop.f32.mrb[0].mxu0
    %v8718 = vadd.f32 %v8392, %v8717
    %v8719 = vpop.f32.mrb[0].mxu0
    %v8720 = vadd.f32 %v8397, %v8719
    %v8721 = vpop.f32.mrb[0].mxu0
    %v8722 = vadd.f32 %v8397, %v8721
    %8723 = vdwg.mxu0
    %8724 = vmatprep.subr.bf16.mxu0 %v8296
    %8725 = vmatpush1.bf16.msra.mxu0 %v8295
    %8726 = vmatprep.subr.bf16.mxu0 %v8312
    %8727 = vmatpush1.bf16.msra.mxu0 %v8311
    %8728 = vmatprep.subr.bf16.mxu0 %v8328
    %8729 = vmatpush1.bf16.msra.mxu0 %v8327
    %8730 = vmatprep.subr.bf16.mxu0 %v8344
    %8731 = vmatpush1.bf16.msra.mxu0 %v8343
    %8732 = vmatprep.subr.bf16.mxu0 0
    %8733 = vmatpush1.bf16.msra.mxu0 0
    %8734 = vmatprep.subr.bf16.mxu0 0
    %8735 = vmatpush1.bf16.msra.mxu0 0
    %8736 = vmatprep.subr.bf16.mxu0 0
    %8737 = vmatpush1.bf16.msra.mxu0 0
    %8738 = vmatprep.subr.bf16.mxu0 0
    %8739 = vmatpush1.bf16.msra.mxu0 0
    %8740 = vmatprep.subr.bf16.mxu0 0
    %8741 = vmatpush1.bf16.msra.mxu0 0
    %8742 = vmatprep.subr.bf16.mxu0 0
    %8743 = vmatpush1.bf16.msra.mxu0 0
    %8744 = vmatprep.subr.bf16.mxu0 0
    %8745 = vmatpush1.bf16.msra.mxu0 0
    %8746 = vmatprep.subr.bf16.mxu0 0
    %8747 = vmatpush1.bf16.msra.mxu0 0
    %8748 = vmatprep.subr.bf16.mxu0 0
    %8749 = vmatpush1.bf16.msra.mxu0 0
    %8750 = vmatprep.subr.bf16.mxu0 0
    %8751 = vmatpush1.bf16.msra.mxu0 0
    %8752 = vmatprep.subr.bf16.mxu0 0
    %8753 = vmatpush1.bf16.msra.mxu0 0
    %8754 = vmatprep.subr.bf16.mxu0 0
    %8755 = vmatpush1.bf16.msra.mxu0 0
    %8756 = vmatprep.mubr.bf16.mxu0 0
    %8757 = vmatmul.mubr.bf16.gmra.mrb[0].mxu0 %v8421
    %v8758 = vpop.f32.mrb[0].mxu0
    %v8759 = vadd.f32 %v8362, %v8758
    %v8760 = vpop.f32.mrb[0].mxu0
    %v8761 = vadd.f32 %v8362, %v8760
    %v8762 = vpop.f32.mrb[0].mxu0
    %v8763 = vadd.f32 %v8367, %v8762
    %v8764 = vpop.f32.mrb[0].mxu0
    %v8765 = vadd.f32 %v8367, %v8764
    %8766 = vmatprep.mubr.bf16.mxu0 0
    %8767 = vmatmul.mubr.bf16.gmra.mrb[0].mxu0 %v8424
    %v8768 = vpop.f32.mrb[0].mxu0
    %v8769 = vadd.f32 %v8372, %v8768
    %v8770 = vpop.f32.mrb[0].mxu0
    %v8771 = vadd.f32 %v8372, %v8770
    %v8772 = vpop.f32.mrb[0].mxu0
    %v8773 = vadd.f32 %v8377, %v8772
    %v8774 = vpop.f32.mrb[0].mxu0
    %v8775 = vadd.f32 %v8377, %v8774
    %8776 = vmatprep.mubr.bf16.mxu0 0
    %8777 = vmatmul.mubr.bf16.gmra.mrb[0].mxu0 %v8427
    %v8778 = vpop.f32.mrb[0].mxu0
    %v8779 = vadd.f32 %v8382, %v8778
    %v8780 = vpop.f32.mrb[0].mxu0
    %v8781 = vadd.f32 %v8382, %v8780
    %v8782 = vpop.f32.mrb[0].mxu0
    %v8783 = vadd.f32 %v8387, %v8782
    %v8784 = vpop.f32.mrb[0].mxu0
    %v8785 = vadd.f32 %v8387, %v8784
    %8786 = vmatprep.mubr.bf16.mxu0 0
    %8787 = vmatmul.mubr.bf16.gmra.mrb[0].mxu0 %v8430
    %v8788 = vpop.f32.mrb[0].mxu0
    %v8789 = vadd.f32 %v8392, %v8788
    %v8790 = vpop.f32.mrb[0].mxu0
    %v8791 = vadd.f32 %v8392, %v8790
    %v8792 = vpop.f32.mrb[0].mxu0
    %v8793 = vadd.f32 %v8397, %v8792
    %v8794 = vpop.f32.mrb[0].mxu0
    %v8795 = vadd.f32 %v8397, %v8794
    %8796 = vdwg.mxu0
    %8797 = vmatprep.subr.bf16.mxu0 %v8298
    %8798 = vmatpush1.bf16.msra.mxu0 %v8297
    %8799 = vmatprep.subr.bf16.mxu0 %v8314
    %8800 = vmatpush1.bf16.msra.mxu0 %v8313
    %8801 = vmatprep.subr.bf16.mxu0 %v8330
    %8802 = vmatpush1.bf16.msra.mxu0 %v8329
    %8803 = vmatprep.subr.bf16.mxu0 %v8346
    %8804 = vmatpush1.bf16.msra.mxu0 %v8345
    %8805 = vmatprep.subr.bf16.mxu0 0
    %8806 = vmatpush1.bf16.msra.mxu0 0
    %8807 = vmatprep.subr.bf16.mxu0 0
    %8808 = vmatpush1.bf16.msra.mxu0 0
    %8809 = vmatprep.subr.bf16.mxu0 0
    %8810 = vmatpush1.bf16.msra.mxu0 0
    %8811 = vmatprep.subr.bf16.mxu0 0
    %8812 = vmatpush1.bf16.msra.mxu0 0
    %8813 = vmatprep.subr.bf16.mxu0 0
    %8814 = vmatpush1.bf16.msra.mxu0 0
    %8815 = vmatprep.subr.bf16.mxu0 0
    %8816 = vmatpush1.bf16.msra.mxu0 0
    %8817 = vmatprep.subr.bf16.mxu0 0
    %8818 = vmatpush1.bf16.msra.mxu0 0
    %8819 = vmatprep.subr.bf16.mxu0 0
    %8820 = vmatpush1.bf16.msra.mxu0 0
    %8821 = vmatprep.subr.bf16.mxu0 0
    %8822 = vmatpush1.bf16.msra.mxu0 0
    %8823 = vmatprep.subr.bf16.mxu0 0
    %8824 = vmatpush1.bf16.msra.mxu0 0
    %8825 = vmatprep.subr.bf16.mxu0 0
    %8826 = vmatpush1.bf16.msra.mxu0 0
    %8827 = vmatprep.subr.bf16.mxu0 0
    %8828 = vmatpush1.bf16.msra.mxu0 0
    %8829 = vmatprep.mubr.bf16.mxu0 0
    %8830 = vmatmul.mubr.bf16.gmra.mrb[0].mxu0 %v8421
    %v8831 = vpop.f32.mrb[0].mxu0
    %v8832 = vadd.f32 %v8362, %v8831
    %v8833 = vpop.f32.mrb[0].mxu0
    %v8834 = vadd.f32 %v8362, %v8833
    %v8835 = vpop.f32.mrb[0].mxu0
    %v8836 = vadd.f32 %v8367, %v8835
    %v8837 = vpop.f32.mrb[0].mxu0
    %v8838 = vadd.f32 %v8367, %v8837
    %8839 = vmatprep.mubr.bf16.mxu0 0
    %8840 = vmatmul.mubr.bf16.gmra.mrb[0].mxu0 %v8424
    %v8841 = vpop.f32.mrb[0].mxu0
    %v8842 = vadd.f32 %v8372, %v8841
    %v8843 = vpop.f32.mrb[0].mxu0
    %v8844 = vadd.f32 %v8372, %v8843
    %v8845 = vpop.f32.mrb[0].mxu0
    %v8846 = vadd.f32 %v8377, %v8845
    %v8847 = vpop.f32.mrb[0].mxu0
    %v8848 = vadd.f32 %v8377, %v8847
    %8849 = vmatprep.mubr.bf16.mxu0 0
    %8850 = vmatmul.mubr.bf16.gmra.mrb[0].mxu0 %v8427
    %v8851 = vpop.f32.mrb[0].mxu0
    %v8852 = vadd.f32 %v8382, %v8851
    %v8853 = vpop.f32.mrb[0].mxu0
    %v8854 = vadd.f32 %v8382, %v8853
    %v8855 = vpop.f32.mrb[0].mxu0
    %v8856 = vadd.f32 %v8387, %v8855
    %v8857 = vpop.f32.mrb[0].mxu0
    %v8858 = vadd.f32 %v8387, %v8857
    %8859 = vmatprep.mubr.bf16.mxu0 0
    %8860 = vmatmul.mubr.bf16.gmra.mrb[0].mxu0 %v8430
    %v8861 = vpop.f32.mrb[0].mxu0
    %v8862 = vadd.f32 %v8392, %v8861
    %v8863 = vpop.f32.mrb[0].mxu0
    %v8864 = vadd.f32 %v8392, %v8863
    %v8865 = vpop.f32.mrb[0].mxu0
    %v8866 = vadd.f32 %v8397, %v8865
    %v8867 = vpop.f32.mrb[0].mxu0
    %v8868 = vadd.f32 %v8397, %v8867
    %8869 = vdwg.mxu0
    %8870 = vmatprep.subr.bf16.mxu0 %v8300
    %8871 = vmatpush1.bf16.msra.mxu0 %v8299
    %8872 = vmatprep.subr.bf16.mxu0 %v8316
    %8873 = vmatpush1.bf16.msra.mxu0 %v8315
    %8874 = vmatprep.subr.bf16.mxu0 %v8332
    %8875 = vmatpush1.bf16.msra.mxu0 %v8331
    %8876 = vmatprep.subr.bf16.mxu0 %v8348
    %8877 = vmatpush1.bf16.msra.mxu0 %v8347
    %8878 = vmatprep.subr.bf16.mxu0 0
    %8879 = vmatpush1.bf16.msra.mxu0 0
    %8880 = vmatprep.subr.bf16.mxu0 0
    %8881 = vmatpush1.bf16.msra.mxu0 0
    %8882 = vmatprep.subr.bf16.mxu0 0
    %8883 = vmatpush1.bf16.msra.mxu0 0
    %8884 = vmatprep.subr.bf16.mxu0 0
    %8885 = vmatpush1.bf16.msra.mxu0 0
    %8886 = vmatprep.subr.bf16.mxu0 0
    %8887 = vmatpush1.bf16.msra.mxu0 0
    %8888 = vmatprep.subr.bf16.mxu0 0
    %8889 = vmatpush1.bf16.msra.mxu0 0
    %8890 = vmatprep.subr.bf16.mxu0 0
    %8891 = vmatpush1.bf16.msra.mxu0 0
    %8892 = vmatprep.subr.bf16.mxu0 0
    %8893 = vmatpush1.bf16.msra.mxu0 0
    %8894 = vmatprep.subr.bf16.mxu0 0
    %8895 = vmatpush1.bf16.msra.mxu0 0
    %8896 = vmatprep.subr.bf16.mxu0 0
    %8897 = vmatpush1.bf16.msra.mxu0 0
    %8898 = vmatprep.subr.bf16.mxu0 0
    %8899 = vmatpush1.bf16.msra.mxu0 0
    %8900 = vmatprep.subr.bf16.mxu0 0
    %8901 = vmatpush1.bf16.msra.mxu0 0
    %8902 = vmatprep.mubr.bf16.mxu0 0
    %8903 = vmatmul.mubr.bf16.gmra.mrb[0].mxu0 %v8421
    %v8904 = vpop.f32.mrb[0].mxu0
    %v8905 = vadd.f32 %v8362, %v8904
    %v8906 = vpop.f32.mrb[0].mxu0
    %v8907 = vadd.f32 %v8362, %v8906
    %v8908 = vpop.f32.mrb[0].mxu0
    %v8909 = vadd.f32 %v8367, %v8908
    %v8910 = vpop.f32.mrb[0].mxu0
    %v8911 = vadd.f32 %v8367, %v8910
    %8912 = vmatprep.mubr.bf16.mxu0 0
    %8913 = vmatmul.mubr.bf16.gmra.mrb[0].mxu0 %v8424
    %v8914 = vpop.f32.mrb[0].mxu0
    %v8915 = vadd.f32 %v8372, %v8914
    %v8916 = vpop.f32.mrb[0].mxu0
    %v8917 = vadd.f32 %v8372, %v8916
    %v8918 = vpop.f32.mrb[0].mxu0
    %v8919 = vadd.f32 %v8377, %v8918
    %v8920 = vpop.f32.mrb[0].mxu0
    %v8921 = vadd.f32 %v8377, %v8920
    %8922 = vmatprep.mubr.bf16.mxu0 0
    %8923 = vmatmul.mubr.bf16.gmra.mrb[0].mxu0 %v8427
    %v8924 = vpop.f32.mrb[0].mxu0
    %v8925 = vadd.f32 %v8382, %v8924
    %v8926 = vpop.f32.mrb[0].mxu0
    %v8927 = vadd.f32 %v8382, %v8926
    %v8928 = vpop.f32.mrb[0].mxu0
    %v8929 = vadd.f32 %v8387, %v8928
    %v8930 = vpop.f32.mrb[0].mxu0
    %v8931 = vadd.f32 %v8387, %v8930
    %8932 = vmatprep.mubr.bf16.mxu0 0
    %8933 = vmatmul.mubr.bf16.gmra.mrb[0].mxu0 %v8430
    %v8934 = vpop.f32.mrb[0].mxu0
    %v8935 = vadd.f32 %v8392, %v8934
    %v8936 = vpop.f32.mrb[0].mxu0
    %v8937 = vadd.f32 %v8392, %v8936
    %v8938 = vpop.f32.mrb[0].mxu0
    %v8939 = vadd.f32 %v8397, %v8938
    %v8940 = vpop.f32.mrb[0].mxu0
    %v8941 = vadd.f32 %v8397, %v8940
    %8942 = vdwg.mxu0
    %8943 = vmatprep.subr.bf16.mxu0 %v8302
    %8944 = vmatpush1.bf16.msra.mxu0 %v8301
    %8945 = vmatprep.subr.bf16.mxu0 %v8318
    %8946 = vmatpush1.bf16.msra.mxu0 %v8317
    %8947 = vmatprep.subr.bf16.mxu0 %v8334
    %8948 = vmatpush1.bf16.msra.mxu0 %v8333
    %8949 = vmatprep.subr.bf16.mxu0 %v8350
    %8950 = vmatpush1.bf16.msra.mxu0 %v8349
    %8951 = vmatprep.subr.bf16.mxu0 0
    %8952 = vmatpush1.bf16.msra.mxu0 0
    %8953 = vmatprep.subr.bf16.mxu0 0
    %8954 = vmatpush1.bf16.msra.mxu0 0
    %8955 = vmatprep.subr.bf16.mxu0 0
    %8956 = vmatpush1.bf16.msra.mxu0 0
    %8957 = vmatprep.subr.bf16.mxu0 0
    %8958 = vmatpush1.bf16.msra.mxu0 0
    %8959 = vmatprep.subr.bf16.mxu0 0
    %8960 = vmatpush1.bf16.msra.mxu0 0
    %8961 = vmatprep.subr.bf16.mxu0 0
    %8962 = vmatpush1.bf16.msra.mxu0 0
    %8963 = vmatprep.subr.bf16.mxu0 0
    %8964 = vmatpush1.bf16.msra.mxu0 0
    %8965 = vmatprep.subr.bf16.mxu0 0
    %8966 = vmatpush1.bf16.msra.mxu0 0
    %8967 = vmatprep.subr.bf16.mxu0 0
    %8968 = vmatpush1.bf16.msra.mxu0 0
    %8969 = vmatprep.subr.bf16.mxu0 0
    %8970 = vmatpush1.bf16.msra.mxu0 0
    %8971 = vmatprep.subr.bf16.mxu0 0
    %8972 = vmatpush1.bf16.msra.mxu0 0
    %8973 = vmatprep.subr.bf16.mxu0 0
    %8974 = vmatpush1.bf16.msra.mxu0 0
    %8975 = vmatprep.mubr.bf16.mxu0 0
    %8976 = vmatmul.mubr.bf16.gmra.mrb[0].mxu0 %v8421
    %v8977 = vpop.f32.mrb[0].mxu0
    %v8978 = vadd.f32 %v8362, %v8977
    %v8979 = vpop.f32.mrb[0].mxu0
    %v8980 = vadd.f32 %v8362, %v8979
    %v8981 = vpop.f32.mrb[0].mxu0
    %v8982 = vadd.f32 %v8367, %v8981
    %v8983 = vpop.f32.mrb[0].mxu0
    %v8984 = vadd.f32 %v8367, %v8983
    %8985 = vmatprep.mubr.bf16.mxu0 0
    %8986 = vmatmul.mubr.bf16.gmra.mrb[0].mxu0 %v8424
    %v8987 = vpop.f32.mrb[0].mxu0
    %v8988 = vadd.f32 %v8372, %v8987
    %v8989 = vpop.f32.mrb[0].mxu0
    %v8990 = vadd.f32 %v8372, %v8989
    %v8991 = vpop.f32.mrb[0].mxu0
    %v8992 = vadd.f32 %v8377, %v8991
    %v8993 = vpop.f32.mrb[0].mxu0
    %v8994 = vadd.f32 %v8377, %v8993
    %8995 = vmatprep.mubr.bf16.mxu0 0
    %8996 = vmatmul.mubr.bf16.gmra.mrb[0].mxu0 %v8427
    %v8997 = vpop.f32.mrb[0].mxu0
    %v8998 = vadd.f32 %v8382, %v8997
    %v8999 = vpop.f32.mrb[0].mxu0
    %v9000 = vadd.f32 %v8382, %v8999
    %v9001 = vpop.f32.mrb[0].mxu0
    %v9002 = vadd.f32 %v8387, %v9001
    %v9003 = vpop.f32.mrb[0].mxu0
    %v9004 = vadd.f32 %v8387, %v9003
    %9005 = vmatprep.mubr.bf16.mxu0 0
    %9006 = vmatmul.mubr.bf16.gmra.mrb[0].mxu0 %v8430
    %v9007 = vpop.f32.mrb[0].mxu0
    %v9008 = vadd.f32 %v8392, %v9007
    %v9009 = vpop.f32.mrb[0].mxu0
    %v9010 = vadd.f32 %v8392, %v9009
    %v9011 = vpop.f32.mrb[0].mxu0
    %v9012 = vadd.f32 %v8397, %v9011
    %v9013 = vpop.f32.mrb[0].mxu0
    %v9014 = vadd.f32 %v8397, %v9013
    %9015 = vdwg.mxu0
    %v9016 = vmul.f32 %v8467, 0.01
    %v9017 = vmul.f32 %v8469, 0.01
    %v9018 = vmul.f32 %v8540, 0.01
    %v9019 = vmul.f32 %v8542, 0.01
    %v9020 = vmul.f32 %v8613, 0.01
    %v9021 = vmul.f32 %v8615, 0.01
    %v9022 = vmul.f32 %v8686, 0.01
    %v9023 = vmul.f32 %v8688, 0.01
    %v9024 = vmul.f32 %v8759, 0.01
    %v9025 = vmul.f32 %v8761, 0.01
    %v9026 = vmul.f32 %v8832, 0.01
    %v9027 = vmul.f32 %v8834, 0.01
    %v9028 = vmul.f32 %v8905, 0.01
    %v9029 = vmul.f32 %v8907, 0.01
    %v9030 = vmul.f32 %v8978, 0.01
    %v9031 = vmul.f32 %v8980, 0.01
    %v9032 = vmul.f32 %v8471, 0.01
    %v9033 = vmul.f32 %v8473, 0.01
    %v9034 = vmul.f32 %v8544, 0.01
    %v9035 = vmul.f32 %v8546, 0.01
    %v9036 = vmul.f32 %v8617, 0.01
    %v9037 = vmul.f32 %v8619, 0.01
    %v9038 = vmul.f32 %v8690, 0.01
    %v9039 = vmul.f32 %v8692, 0.01
    %v9040 = vmul.f32 %v8763, 0.01
    %v9041 = vmul.f32 %v8765, 0.01
    %v9042 = vmul.f32 %v8836, 0.01
    %v9043 = vmul.f32 %v8838, 0.01
    %v9044 = vmul.f32 %v8909, 0.01
    %v9045 = vmul.f32 %v8911, 0.01
    %v9046 = vmul.f32 %v8982, 0.01
    %v9047 = vmul.f32 %v8984, 0.01
    %v9048 = vmul.f32 %v8477, 0.01
    %v9049 = vmul.f32 %v8479, 0.01
    %v9050 = vmul.f32 %v8550, 0.01
    %v9051 = vmul.f32 %v8552, 0.01
    %v9052 = vmul.f32 %v8623, 0.01
    %v9053 = vmul.f32 %v8625, 0.01
    %v9054 = vmul.f32 %v8696, 0.01
    %v9055 = vmul.f32 %v8698, 0.01
    %v9056 = vmul.f32 %v8769, 0.01
    %v9057 = vmul.f32 %v8771, 0.01
    %v9058 = vmul.f32 %v8842, 0.01
    %v9059 = vmul.f32 %v8844, 0.01
    %v9060 = vmul.f32 %v8915, 0.01
    %v9061 = vmul.f32 %v8917, 0.01
    %v9062 = vmul.f32 %v8988, 0.01
    %v9063 = vmul.f32 %v8990, 0.01
    %v9064 = vmul.f32 %v8481, 0.01
    %v9065 = vmul.f32 %v8483, 0.01
    %v9066 = vmul.f32 %v8554, 0.01
    %v9067 = vmul.f32 %v8556, 0.01
    %v9068 = vmul.f32 %v8627, 0.01
    %v9069 = vmul.f32 %v8629, 0.01
    %v9070 = vmul.f32 %v8700, 0.01
    %v9071 = vmul.f32 %v8702, 0.01
    %v9072 = vmul.f32 %v8773, 0.01
    %v9073 = vmul.f32 %v8775, 0.01
    %v9074 = vmul.f32 %v8846, 0.01
    %v9075 = vmul.f32 %v8848, 0.01
    %v9076 = vmul.f32 %v8919, 0.01
    %v9077 = vmul.f32 %v8921, 0.01
    %v9078 = vmul.f32 %v8992, 0.01
    %v9079 = vmul.f32 %v8994, 0.01
    %v9080 = vmul.f32 %v8487, 0.01
    %v9081 = vmul.f32 %v8489, 0.01
    %v9082 = vmul.f32 %v8560, 0.01
    %v9083 = vmul.f32 %v8562, 0.01
    %v9084 = vmul.f32 %v8633, 0.01
    %v9085 = vmul.f32 %v8635, 0.01
    %v9086 = vmul.f32 %v8706, 0.01
    %v9087 = vmul.f32 %v8708, 0.01
    %v9088 = vmul.f32 %v8779, 0.01
    %v9089 = vmul.f32 %v8781, 0.01
    %v9090 = vmul.f32 %v8852, 0.01
    %v9091 = vmul.f32 %v8854, 0.01
    %v9092 = vmul.f32 %v8925, 0.01
    %v9093 = vmul.f32 %v8927, 0.01
    %v9094 = vmul.f32 %v8998, 0.01
    %v9095 = vmul.f32 %v9000, 0.01
    %v9096 = vmul.f32 %v8491, 0.01
    %v9097 = vmul.f32 %v8493, 0.01
    %v9098 = vmul.f32 %v8564, 0.01
    %v9099 = vmul.f32 %v8566, 0.01
    %v9100 = vmul.f32 %v8637, 0.01
    %v9101 = vmul.f32 %v8639, 0.01
    %v9102 = vmul.f32 %v8710, 0.01
    %v9103 = vmul.f32 %v8712, 0.01
    %v9104 = vmul.f32 %v8783, 0.01
    %v9105 = vmul.f32 %v8785, 0.01
    %v9106 = vmul.f32 %v8856, 0.01
    %v9107 = vmul.f32 %v8858, 0.01
    %v9108 = vmul.f32 %v8929, 0.01
    %v9109 = vmul.f32 %v8931, 0.01
    %v9110 = vmul.f32 %v9002, 0.01
    %v9111 = vmul.f32 %v9004, 0.01
    %v9112 = vmul.f32 %v8497, 0.01
    %v9113 = vmul.f32 %v8499, 0.01
    %v9114 = vmul.f32 %v8570, 0.01
    %v9115 = vmul.f32 %v8572, 0.01
    %v9116 = vmul.f32 %v8643, 0.01
    %v9117 = vmul.f32 %v8645, 0.01
    %v9118 = vmul.f32 %v8716, 0.01
    %v9119 = vmul.f32 %v8718, 0.01
    %v9120 = vmul.f32 %v8789, 0.01
    %v9121 = vmul.f32 %v8791, 0.01
    %v9122 = vmul.f32 %v8862, 0.01
    %v9123 = vmul.f32 %v8864, 0.01
    %v9124 = vmul.f32 %v8935, 0.01
    %v9125 = vmul.f32 %v8937, 0.01
    %v9126 = vmul.f32 %v9008, 0.01
    %v9127 = vmul.f32 %v9010, 0.01
    %v9128 = vmul.f32 %v8501, 0.01
    %v9129 = vmul.f32 %v8503, 0.01
    %v9130 = vmul.f32 %v8574, 0.01
    %v9131 = vmul.f32 %v8576, 0.01
    %v9132 = vmul.f32 %v8647, 0.01
    %v9133 = vmul.f32 %v8649, 0.01
    %v9134 = vmul.f32 %v8720, 0.01
    %v9135 = vmul.f32 %v8722, 0.01
    %v9136 = vmul.f32 %v8793, 0.01
    %v9137 = vmul.f32 %v8795, 0.01
    %v9138 = vmul.f32 %v8866, 0.01
    %v9139 = vmul.f32 %v8868, 0.01
    %v9140 = vmul.f32 %v8939, 0.01
    %v9141 = vmul.f32 %v8941, 0.01
    %v9142 = vmul.f32 %v9012, 0.01
    %v9143 = vmul.f32 %v9014, 0.01
    %v9144 = vmax.f32 %v8467, %v9016
    %v9145 = vmax.f32 %v8469, %v9017
    %v9146 = vmax.f32 %v8540, %v9018
    %v9147 = vmax.f32 %v8542, %v9019
    %v9148 = vmax.f32 %v8613, %v9020
    %v9149 = vmax.f32 %v8615, %v9021
    %v9150 = vmax.f32 %v8686, %v9022
    %v9151 = vmax.f32 %v8688, %v9023
    %v9152 = vmax.f32 %v8759, %v9024
    %v9153 = vmax.f32 %v8761, %v9025
    %v9154 = vmax.f32 %v8832, %v9026
    %v9155 = vmax.f32 %v8834, %v9027
    %v9156 = vmax.f32 %v8905, %v9028
    %v9157 = vmax.f32 %v8907, %v9029
    %v9158 = vmax.f32 %v8978, %v9030
    %v9159 = vmax.f32 %v8980, %v9031
    %v9160 = vmax.f32 %v8471, %v9032
    %v9161 = vmax.f32 %v8473, %v9033
    %v9162 = vmax.f32 %v8544, %v9034
    %v9163 = vmax.f32 %v8546, %v9035
    %v9164 = vmax.f32 %v8617, %v9036
    %v9165 = vmax.f32 %v8619, %v9037
    %v9166 = vmax.f32 %v8690, %v9038
    %v9167 = vmax.f32 %v8692, %v9039
    %v9168 = vmax.f32 %v8763, %v9040
    %v9169 = vmax.f32 %v8765, %v9041
    %v9170 = vmax.f32 %v8836, %v9042
    %v9171 = vmax.f32 %v8838, %v9043
    %v9172 = vmax.f32 %v8909, %v9044
    %v9173 = vmax.f32 %v8911, %v9045
    %v9174 = vmax.f32 %v8982, %v9046
    %v9175 = vmax.f32 %v8984, %v9047
    %v9176 = vmax.f32 %v8477, %v9048
    %v9177 = vmax.f32 %v8479, %v9049
    %v9178 = vmax.f32 %v8550, %v9050
    %v9179 = vmax.f32 %v8552, %v9051
    %v9180 = vmax.f32 %v8623, %v9052
    %v9181 = vmax.f32 %v8625, %v9053
    %v9182 = vmax.f32 %v8696, %v9054
    %v9183 = vmax.f32 %v8698, %v9055
    %v9184 = vmax.f32 %v8769, %v9056
    %v9185 = vmax.f32 %v8771, %v9057
    %v9186 = vmax.f32 %v8842, %v9058
    %v9187 = vmax.f32 %v8844, %v9059
    %v9188 = vmax.f32 %v8915, %v9060
    %v9189 = vmax.f32 %v8917, %v9061
    %v9190 = vmax.f32 %v8988, %v9062
    %v9191 = vmax.f32 %v8990, %v9063
    %v9192 = vmax.f32 %v8481, %v9064
    %v9193 = vmax.f32 %v8483, %v9065
    %v9194 = vmax.f32 %v8554, %v9066
    %v9195 = vmax.f32 %v8556, %v9067
    %v9196 = vmax.f32 %v8627, %v9068
    %v9197 = vmax.f32 %v8629, %v9069
    %v9198 = vmax.f32 %v8700, %v9070
    %v9199 = vmax.f32 %v8702, %v9071
    %v9200 = vmax.f32 %v8773, %v9072
    %v9201 = vmax.f32 %v8775, %v9073
    %v9202 = vmax.f32 %v8846, %v9074
    %v9203 = vmax.f32 %v8848, %v9075
    %v9204 = vmax.f32 %v8919, %v9076
    %v9205 = vmax.f32 %v8921, %v9077
    %v9206 = vmax.f32 %v8992, %v9078
    %v9207 = vmax.f32 %v8994, %v9079
    %v9208 = vmax.f32 %v8487, %v9080
    %v9209 = vmax.f32 %v8489, %v9081
    %v9210 = vmax.f32 %v8560, %v9082
    %v9211 = vmax.f32 %v8562, %v9083
    %v9212 = vmax.f32 %v8633, %v9084
    %v9213 = vmax.f32 %v8635, %v9085
    %v9214 = vmax.f32 %v8706, %v9086
    %v9215 = vmax.f32 %v8708, %v9087
    %v9216 = vmax.f32 %v8779, %v9088
    %v9217 = vmax.f32 %v8781, %v9089
    %v9218 = vmax.f32 %v8852, %v9090
    %v9219 = vmax.f32 %v8854, %v9091
    %v9220 = vmax.f32 %v8925, %v9092
    %v9221 = vmax.f32 %v8927, %v9093
    %v9222 = vmax.f32 %v8998, %v9094
    %v9223 = vmax.f32 %v9000, %v9095
    %v9224 = vmax.f32 %v8491, %v9096
    %v9225 = vmax.f32 %v8493, %v9097
    %v9226 = vmax.f32 %v8564, %v9098
    %v9227 = vmax.f32 %v8566, %v9099
    %v9228 = vmax.f32 %v8637, %v9100
    %v9229 = vmax.f32 %v8639, %v9101
    %v9230 = vmax.f32 %v8710, %v9102
    %v9231 = vmax.f32 %v8712, %v9103
    %v9232 = vmax.f32 %v8783, %v9104
    %v9233 = vmax.f32 %v8785, %v9105
    %v9234 = vmax.f32 %v8856, %v9106
    %v9235 = vmax.f32 %v8858, %v9107
    %v9236 = vmax.f32 %v8929, %v9108
    %v9237 = vmax.f32 %v8931, %v9109
    %v9238 = vmax.f32 %v9002, %v9110
    %v9239 = vmax.f32 %v9004, %v9111
    %v9240 = vmax.f32 %v8497, %v9112
    %v9241 = vmax.f32 %v8499, %v9113
    %v9242 = vmax.f32 %v8570, %v9114
    %v9243 = vmax.f32 %v8572, %v9115
    %v9244 = vmax.f32 %v8643, %v9116
    %v9245 = vmax.f32 %v8645, %v9117
    %v9246 = vmax.f32 %v8716, %v9118
    %v9247 = vmax.f32 %v8718, %v9119
    %v9248 = vmax.f32 %v8789, %v9120
    %v9249 = vmax.f32 %v8791, %v9121
    %v9250 = vmax.f32 %v8862, %v9122
    %v9251 = vmax.f32 %v8864, %v9123
    %v9252 = vmax.f32 %v8935, %v9124
    %v9253 = vmax.f32 %v8937, %v9125
    %v9254 = vmax.f32 %v9008, %v9126
    %v9255 = vmax.f32 %v9010, %v9127
    %v9256 = vmax.f32 %v8501, %v9128
    %v9257 = vmax.f32 %v8503, %v9129
    %v9258 = vmax.f32 %v8574, %v9130
    %v9259 = vmax.f32 %v8576, %v9131
    %v9260 = vmax.f32 %v8647, %v9132
    %v9261 = vmax.f32 %v8649, %v9133
    %v9262 = vmax.f32 %v8720, %v9134
    %v9263 = vmax.f32 %v8722, %v9135
    %v9264 = vmax.f32 %v8793, %v9136
    %v9265 = vmax.f32 %v8795, %v9137
    %v9266 = vmax.f32 %v8866, %v9138
    %v9267 = vmax.f32 %v8868, %v9139
    %v9268 = vmax.f32 %v8939, %v9140
    %v9269 = vmax.f32 %v8941, %v9141
    %v9270 = vmax.f32 %v9012, %v9142
    %v9271 = vmax.f32 %v9014, %v9143
    %v9272 = vld [vmem:[%s7] sm:$0xf]
    %v9273 = vld [vmem:[%s7 + $0x4] sm:$0xf]
    %v9274 = vld [vmem:[%s7 + $0x8] sm:$0xf]
    %v9275 = vld [vmem:[%s7 + $0xc] sm:$0xf]
    %v9276 = vld [vmem:[%s7 + $0x10] sm:$0xf]
    %v9277 = vld [vmem:[%s7 + $0x14] sm:$0xf]
    %v9278 = vld [vmem:[%s7 + $0x18] sm:$0xf]
    %v9279 = vld [vmem:[%s7 + $0x1c] sm:$0xf]
    %v9280 = vpack.c.bf16 %v9160, %v9144
    %v9281 = vpack.c.bf16 %v9161, %v9145
    %v9282 = vpack.c.bf16 %v9162, %v9146
    %v9283 = vpack.c.bf16 %v9163, %v9147
    %v9284 = vpack.c.bf16 %v9164, %v9148
    %v9285 = vpack.c.bf16 %v9165, %v9149
    %v9286 = vpack.c.bf16 %v9166, %v9150
    %v9287 = vpack.c.bf16 %v9167, %v9151
    %v9288 = vpack.c.bf16 %v9168, %v9152
    %v9289 = vpack.c.bf16 %v9169, %v9153
    %v9290 = vpack.c.bf16 %v9170, %v9154
    %v9291 = vpack.c.bf16 %v9171, %v9155
    %v9292 = vpack.c.bf16 %v9172, %v9156
    %v9293 = vpack.c.bf16 %v9173, %v9157
    %v9294 = vpack.c.bf16 %v9174, %v9158
    %v9295 = vpack.c.bf16 %v9175, %v9159
    %v9296 = vpack.c.bf16 %v9192, %v9176
    %v9297 = vpack.c.bf16 %v9193, %v9177
    %v9298 = vpack.c.bf16 %v9194, %v9178
    %v9299 = vpack.c.bf16 %v9195, %v9179
    %v9300 = vpack.c.bf16 %v9196, %v9180
    %v9301 = vpack.c.bf16 %v9197, %v9181
    %v9302 = vpack.c.bf16 %v9198, %v9182
    %v9303 = vpack.c.bf16 %v9199, %v9183
    %v9304 = vpack.c.bf16 %v9200, %v9184
    %v9305 = vpack.c.bf16 %v9201, %v9185
    %v9306 = vpack.c.bf16 %v9202, %v9186
    %v9307 = vpack.c.bf16 %v9203, %v9187
    %v9308 = vpack.c.bf16 %v9204, %v9188
    %v9309 = vpack.c.bf16 %v9205, %v9189
    %v9310 = vpack.c.bf16 %v9206, %v9190
    %v9311 = vpack.c.bf16 %v9207, %v9191
    %v9312 = vpack.c.bf16 %v9224, %v9208
    %v9313 = vpack.c.bf16 %v9225, %v9209
    %v9314 = vpack.c.bf16 %v9226, %v9210
    %v9315 = vpack.c.bf16 %v9227, %v9211
    %v9316 = vpack.c.bf16 %v9228, %v9212
    %v9317 = vpack.c.bf16 %v9229, %v9213
    %v9318 = vpack.c.bf16 %v9230, %v9214
    %v9319 = vpack.c.bf16 %v9231, %v9215
    %v9320 = vpack.c.bf16 %v9232, %v9216
    %v9321 = vpack.c.bf16 %v9233, %v9217
    %v9322 = vpack.c.bf16 %v9234, %v9218
    %v9323 = vpack.c.bf16 %v9235, %v9219
    %v9324 = vpack.c.bf16 %v9236, %v9220
    %v9325 = vpack.c.bf16 %v9237, %v9221
    %v9326 = vpack.c.bf16 %v9238, %v9222
    %v9327 = vpack.c.bf16 %v9239, %v9223
    %v9328 = vpack.c.bf16 %v9256, %v9240
    %v9329 = vpack.c.bf16 %v9257, %v9241
    %v9330 = vpack.c.bf16 %v9258, %v9242
    %v9331 = vpack.c.bf16 %v9259, %v9243
    %v9332 = vpack.c.bf16 %v9260, %v9244
    %v9333 = vpack.c.bf16 %v9261, %v9245
    %v9334 = vpack.c.bf16 %v9262, %v9246
    %v9335 = vpack.c.bf16 %v9263, %v9247
    %v9336 = vpack.c.bf16 %v9264, %v9248
    %v9337 = vpack.c.bf16 %v9265, %v9249
    %v9338 = vpack.c.bf16 %v9266, %v9250
    %v9339 = vpack.c.bf16 %v9267, %v9251
    %v9340 = vpack.c.bf16 %v9268, %v9252
    %v9341 = vpack.c.bf16 %v9269, %v9253
    %v9342 = vpack.c.bf16 %v9270, %v9254
    %v9343 = vpack.c.bf16 %v9271, %v9255
    %v9344 = vld [vmem:[%s8] sm:$0xff]
    %v9345 = vld [vmem:[%s8 + $0x8] sm:$0xff]
    %v9346 = vld [vmem:[%s8 + $0x10] sm:$0xff]
    %v9347 = vld [vmem:[%s8 + $0x18] sm:$0xff]
    %v9348 = vld [vmem:[%s8 + $0x20] sm:$0xff]
    %v9349 = vld [vmem:[%s8 + $0x28] sm:$0xff]
    %v9350 = vld [vmem:[%s8 + $0x30] sm:$0xff]
    %v9351 = vld [vmem:[%s8 + $0x38] sm:$0xff]
    %9353 = vset.pattern.permute.xlu0 0
    %9354 = vperm.xlu0 %9353, %v9344
    %v9355 = vpop.permute.xlu0 %9354
    %9358 = vset.pattern.permute.xlu0 0
    %9359 = vperm.xlu0 %9358, %v9345
    %v9360 = vpop.permute.xlu0 %9359
    %9363 = vset.pattern.permute.xlu0 0
    %9364 = vperm.xlu0 %9363, %v9346
    %v9365 = vpop.permute.xlu0 %9364
    %9368 = vset.pattern.permute.xlu0 0
    %9369 = vperm.xlu0 %9368, %v9347
    %v9370 = vpop.permute.xlu0 %9369
    %9373 = vset.pattern.permute.xlu0 0
    %9374 = vperm.xlu0 %9373, %v9348
    %v9375 = vpop.permute.xlu0 %9374
    %9378 = vset.pattern.permute.xlu0 0
    %9379 = vperm.xlu0 %9378, %v9349
    %v9380 = vpop.permute.xlu0 %9379
    %9383 = vset.pattern.permute.xlu0 0
    %9384 = vperm.xlu0 %9383, %v9350
    %v9385 = vpop.permute.xlu0 %9384
    %9388 = vset.pattern.permute.xlu0 0
    %9389 = vperm.xlu0 %9388, %v9351
    %v9390 = vpop.permute.xlu0 %9389
    %v9400 = vunpack.c.l.b16 %v9272
    %v9401 = vunpack.c.l.b16 %v9273
    %v9402 = vunpack.c.l.b16 %v9274
    %v9403 = vunpack.c.l.b16 %v9275
    %v9404 = vunpack.c.l.b16 %v9276
    %v9405 = vunpack.c.l.b16 %v9277
    %v9406 = vunpack.c.l.b16 %v9278
    %v9407 = vunpack.c.l.b16 %v9279
    %v9408 = vpack.c.b16 %v9401, %v9400
    %v9409 = vpack.c.b16 %v9403, %v9402
    %v9410 = vpack.c.b16 %v9405, %v9404
    %v9411 = vpack.c.b16 %v9407, %v9406
    %v9413 = vsel %vm8419, %v9408, 0
    %v9416 = vsel %vm8419, %v9409, 0
    %v9419 = vsel %vm8419, %v9410, 0
    %v9422 = vsel %vm8419, %v9411, 0
    %9424 = vmatprep.subr.bf16.mxu0 %v9281
    %9425 = vmatpush1.bf16.msra.mxu0 %v9280
    %9426 = vmatprep.subr.bf16.mxu0 %v9297
    %9427 = vmatpush1.bf16.msra.mxu0 %v9296
    %9428 = vmatprep.subr.bf16.mxu0 %v9313
    %9429 = vmatpush1.bf16.msra.mxu0 %v9312
    %9430 = vmatprep.subr.bf16.mxu0 %v9329
    %9431 = vmatpush1.bf16.msra.mxu0 %v9328
    %9432 = vmatprep.subr.bf16.mxu0 0
    %9433 = vmatpush1.bf16.msra.mxu0 0
    %9434 = vmatprep.subr.bf16.mxu0 0
    %9435 = vmatpush1.bf16.msra.mxu0 0
    %9436 = vmatprep.subr.bf16.mxu0 0
    %9437 = vmatpush1.bf16.msra.mxu0 0
    %9438 = vmatprep.subr.bf16.mxu0 0
    %9439 = vmatpush1.bf16.msra.mxu0 0
    %9440 = vmatprep.subr.bf16.mxu0 0
    %9441 = vmatpush1.bf16.msra.mxu0 0
    %9442 = vmatprep.subr.bf16.mxu0 0
    %9443 = vmatpush1.bf16.msra.mxu0 0
    %9444 = vmatprep.subr.bf16.mxu0 0
    %9445 = vmatpush1.bf16.msra.mxu0 0
    %9446 = vmatprep.subr.bf16.mxu0 0
    %9447 = vmatpush1.bf16.msra.mxu0 0
    %9448 = vmatprep.subr.bf16.mxu0 0
    %9449 = vmatpush1.bf16.msra.mxu0 0
    %9450 = vmatprep.subr.bf16.mxu0 0
    %9451 = vmatpush1.bf16.msra.mxu0 0
    %9452 = vmatprep.subr.bf16.mxu0 0
    %9453 = vmatpush1.bf16.msra.mxu0 0
    %9454 = vmatprep.subr.bf16.mxu0 0
    %9455 = vmatpush1.bf16.msra.mxu0 0
    %9456 = vmatprep.mubr.bf16.mxu0 0
    %9457 = vmatmul.mubr.bf16.gmra.mrb[0].mxu0 %v9413
    %v9458 = vpop.f32.mrb[0].mxu0
    %v9459 = vadd.f32 %v9355, %v9458
    %v9460 = vpop.f32.mrb[0].mxu0
    %v9461 = vadd.f32 %v9355, %v9460
    %v9462 = vpop.f32.mrb[0].mxu0
    %v9463 = vadd.f32 %v9360, %v9462
    %v9464 = vpop.f32.mrb[0].mxu0
    %v9465 = vadd.f32 %v9360, %v9464
    %9466 = vmatprep.mubr.bf16.mxu0 0
    %9467 = vmatmul.mubr.bf16.gmra.mrb[0].mxu0 %v9416
    %v9468 = vpop.f32.mrb[0].mxu0
    %v9469 = vadd.f32 %v9365, %v9468
    %v9470 = vpop.f32.mrb[0].mxu0
    %v9471 = vadd.f32 %v9365, %v9470
    %v9472 = vpop.f32.mrb[0].mxu0
    %v9473 = vadd.f32 %v9370, %v9472
    %v9474 = vpop.f32.mrb[0].mxu0
    %v9475 = vadd.f32 %v9370, %v9474
    %9476 = vmatprep.mubr.bf16.mxu0 0
    %9477 = vmatmul.mubr.bf16.gmra.mrb[0].mxu0 %v9419
    %v9478 = vpop.f32.mrb[0].mxu0
    %v9479 = vadd.f32 %v9375, %v9478
    %v9480 = vpop.f32.mrb[0].mxu0
    %v9481 = vadd.f32 %v9375, %v9480
    %v9482 = vpop.f32.mrb[0].mxu0
    %v9483 = vadd.f32 %v9380, %v9482
    %v9484 = vpop.f32.mrb[0].mxu0
    %v9485 = vadd.f32 %v9380, %v9484
    %9486 = vmatprep.mubr.bf16.mxu0 0
    %9487 = vmatmul.mubr.bf16.gmra.mrb[0].mxu0 %v9422
    %v9488 = vpop.f32.mrb[0].mxu0
    %v9489 = vadd.f32 %v9385, %v9488
    %v9490 = vpop.f32.mrb[0].mxu0
    %v9491 = vadd.f32 %v9385, %v9490
    %v9492 = vpop.f32.mrb[0].mxu0
    %v9493 = vadd.f32 %v9390, %v9492
    %v9494 = vpop.f32.mrb[0].mxu0
    %v9495 = vadd.f32 %v9390, %v9494
    %9496 = vdwg.mxu0
    %9497 = vmatprep.subr.bf16.mxu0 %v9283
    %9498 = vmatpush1.bf16.msra.mxu0 %v9282
    %9499 = vmatprep.subr.bf16.mxu0 %v9299
    %9500 = vmatpush1.bf16.msra.mxu0 %v9298
    %9501 = vmatprep.subr.bf16.mxu0 %v9315
    %9502 = vmatpush1.bf16.msra.mxu0 %v9314
    %9503 = vmatprep.subr.bf16.mxu0 %v9331
    %9504 = vmatpush1.bf16.msra.mxu0 %v9330
    %9505 = vmatprep.subr.bf16.mxu0 0
    %9506 = vmatpush1.bf16.msra.mxu0 0
    %9507 = vmatprep.subr.bf16.mxu0 0
    %9508 = vmatpush1.bf16.msra.mxu0 0
    %9509 = vmatprep.subr.bf16.mxu0 0
    %9510 = vmatpush1.bf16.msra.mxu0 0
    %9511 = vmatprep.subr.bf16.mxu0 0
    %9512 = vmatpush1.bf16.msra.mxu0 0
    %9513 = vmatprep.subr.bf16.mxu0 0
    %9514 = vmatpush1.bf16.msra.mxu0 0
    %9515 = vmatprep.subr.bf16.mxu0 0
    %9516 = vmatpush1.bf16.msra.mxu0 0
    %9517 = vmatprep.subr.bf16.mxu0 0
    %9518 = vmatpush1.bf16.msra.mxu0 0
    %9519 = vmatprep.subr.bf16.mxu0 0
    %9520 = vmatpush1.bf16.msra.mxu0 0
    %9521 = vmatprep.subr.bf16.mxu0 0
    %9522 = vmatpush1.bf16.msra.mxu0 0
    %9523 = vmatprep.subr.bf16.mxu0 0
    %9524 = vmatpush1.bf16.msra.mxu0 0
    %9525 = vmatprep.subr.bf16.mxu0 0
    %9526 = vmatpush1.bf16.msra.mxu0 0
    %9527 = vmatprep.subr.bf16.mxu0 0
    %9528 = vmatpush1.bf16.msra.mxu0 0
    %9529 = vmatprep.mubr.bf16.mxu0 0
    %9530 = vmatmul.mubr.bf16.gmra.mrb[0].mxu0 %v9413
    %v9531 = vpop.f32.mrb[0].mxu0
    %v9532 = vadd.f32 %v9355, %v9531
    %v9533 = vpop.f32.mrb[0].mxu0
    %v9534 = vadd.f32 %v9355, %v9533
    %v9535 = vpop.f32.mrb[0].mxu0
    %v9536 = vadd.f32 %v9360, %v9535
    %v9537 = vpop.f32.mrb[0].mxu0
    %v9538 = vadd.f32 %v9360, %v9537
    %9539 = vmatprep.mubr.bf16.mxu0 0
    %9540 = vmatmul.mubr.bf16.gmra.mrb[0].mxu0 %v9416
    %v9541 = vpop.f32.mrb[0].mxu0
    %v9542 = vadd.f32 %v9365, %v9541
    %v9543 = vpop.f32.mrb[0].mxu0
    %v9544 = vadd.f32 %v9365, %v9543
    %v9545 = vpop.f32.mrb[0].mxu0
    %v9546 = vadd.f32 %v9370, %v9545
    %v9547 = vpop.f32.mrb[0].mxu0
    %v9548 = vadd.f32 %v9370, %v9547
    %9549 = vmatprep.mubr.bf16.mxu0 0
    %9550 = vmatmul.mubr.bf16.gmra.mrb[0].mxu0 %v9419
    %v9551 = vpop.f32.mrb[0].mxu0
    %v9552 = vadd.f32 %v9375, %v9551
    %v9553 = vpop.f32.mrb[0].mxu0
    %v9554 = vadd.f32 %v9375, %v9553
    %v9555 = vpop.f32.mrb[0].mxu0
    %v9556 = vadd.f32 %v9380, %v9555
    %v9557 = vpop.f32.mrb[0].mxu0
    %v9558 = vadd.f32 %v9380, %v9557
    %9559 = vmatprep.mubr.bf16.mxu0 0
    %9560 = vmatmul.mubr.bf16.gmra.mrb[0].mxu0 %v9422
    %v9561 = vpop.f32.mrb[0].mxu0
    %v9562 = vadd.f32 %v9385, %v9561
    %v9563 = vpop.f32.mrb[0].mxu0
    %v9564 = vadd.f32 %v9385, %v9563
    %v9565 = vpop.f32.mrb[0].mxu0
    %v9566 = vadd.f32 %v9390, %v9565
    %v9567 = vpop.f32.mrb[0].mxu0
    %v9568 = vadd.f32 %v9390, %v9567
    %9569 = vdwg.mxu0
    %9570 = vmatprep.subr.bf16.mxu0 %v9285
    %9571 = vmatpush1.bf16.msra.mxu0 %v9284
    %9572 = vmatprep.subr.bf16.mxu0 %v9301
    %9573 = vmatpush1.bf16.msra.mxu0 %v9300
    %9574 = vmatprep.subr.bf16.mxu0 %v9317
    %9575 = vmatpush1.bf16.msra.mxu0 %v9316
    %9576 = vmatprep.subr.bf16.mxu0 %v9333
    %9577 = vmatpush1.bf16.msra.mxu0 %v9332
    %9578 = vmatprep.subr.bf16.mxu0 0
    %9579 = vmatpush1.bf16.msra.mxu0 0
    %9580 = vmatprep.subr.bf16.mxu0 0
    %9581 = vmatpush1.bf16.msra.mxu0 0
    %9582 = vmatprep.subr.bf16.mxu0 0
    %9583 = vmatpush1.bf16.msra.mxu0 0
    %9584 = vmatprep.subr.bf16.mxu0 0
    %9585 = vmatpush1.bf16.msra.mxu0 0
    %9586 = vmatprep.subr.bf16.mxu0 0
    %9587 = vmatpush1.bf16.msra.mxu0 0
    %9588 = vmatprep.subr.bf16.mxu0 0
    %9589 = vmatpush1.bf16.msra.mxu0 0
    %9590 = vmatprep.subr.bf16.mxu0 0
    %9591 = vmatpush1.bf16.msra.mxu0 0
    %9592 = vmatprep.subr.bf16.mxu0 0
    %9593 = vmatpush1.bf16.msra.mxu0 0
    %9594 = vmatprep.subr.bf16.mxu0 0
    %9595 = vmatpush1.bf16.msra.mxu0 0
    %9596 = vmatprep.subr.bf16.mxu0 0
    %9597 = vmatpush1.bf16.msra.mxu0 0
    %9598 = vmatprep.subr.bf16.mxu0 0
    %9599 = vmatpush1.bf16.msra.mxu0 0
    %9600 = vmatprep.subr.bf16.mxu0 0
    %9601 = vmatpush1.bf16.msra.mxu0 0
    %9602 = vmatprep.mubr.bf16.mxu0 0
    %9603 = vmatmul.mubr.bf16.gmra.mrb[0].mxu0 %v9413
    %v9604 = vpop.f32.mrb[0].mxu0
    %v9605 = vadd.f32 %v9355, %v9604
    %v9606 = vpop.f32.mrb[0].mxu0
    %v9607 = vadd.f32 %v9355, %v9606
    %v9608 = vpop.f32.mrb[0].mxu0
    %v9609 = vadd.f32 %v9360, %v9608
    %v9610 = vpop.f32.mrb[0].mxu0
    %v9611 = vadd.f32 %v9360, %v9610
    %9612 = vmatprep.mubr.bf16.mxu0 0
    %9613 = vmatmul.mubr.bf16.gmra.mrb[0].mxu0 %v9416
    %v9614 = vpop.f32.mrb[0].mxu0
    %v9615 = vadd.f32 %v9365, %v9614
    %v9616 = vpop.f32.mrb[0].mxu0
    %v9617 = vadd.f32 %v9365, %v9616
    %v9618 = vpop.f32.mrb[0].mxu0
    %v9619 = vadd.f32 %v9370, %v9618
    %v9620 = vpop.f32.mrb[0].mxu0
    %v9621 = vadd.f32 %v9370, %v9620
    %9622 = vmatprep.mubr.bf16.mxu0 0
    %9623 = vmatmul.mubr.bf16.gmra.mrb[0].mxu0 %v9419
    %v9624 = vpop.f32.mrb[0].mxu0
    %v9625 = vadd.f32 %v9375, %v9624
    %v9626 = vpop.f32.mrb[0].mxu0
    %v9627 = vadd.f32 %v9375, %v9626
    %v9628 = vpop.f32.mrb[0].mxu0
    %v9629 = vadd.f32 %v9380, %v9628
    %v9630 = vpop.f32.mrb[0].mxu0
    %v9631 = vadd.f32 %v9380, %v9630
    %9632 = vmatprep.mubr.bf16.mxu0 0
    %9633 = vmatmul.mubr.bf16.gmra.mrb[0].mxu0 %v9422
    %v9634 = vpop.f32.mrb[0].mxu0
    %v9635 = vadd.f32 %v9385, %v9634
    %v9636 = vpop.f32.mrb[0].mxu0
    %v9637 = vadd.f32 %v9385, %v9636
    %v9638 = vpop.f32.mrb[0].mxu0
    %v9639 = vadd.f32 %v9390, %v9638
    %v9640 = vpop.f32.mrb[0].mxu0
    %v9641 = vadd.f32 %v9390, %v9640
    %9642 = vdwg.mxu0
    %9643 = vmatprep.subr.bf16.mxu0 %v9287
    %9644 = vmatpush1.bf16.msra.mxu0 %v9286
    %9645 = vmatprep.subr.bf16.mxu0 %v9303
    %9646 = vmatpush1.bf16.msra.mxu0 %v9302
    %9647 = vmatprep.subr.bf16.mxu0 %v9319
    %9648 = vmatpush1.bf16.msra.mxu0 %v9318
    %9649 = vmatprep.subr.bf16.mxu0 %v9335
    %9650 = vmatpush1.bf16.msra.mxu0 %v9334
    %9651 = vmatprep.subr.bf16.mxu0 0
    %9652 = vmatpush1.bf16.msra.mxu0 0
    %9653 = vmatprep.subr.bf16.mxu0 0
    %9654 = vmatpush1.bf16.msra.mxu0 0
    %9655 = vmatprep.subr.bf16.mxu0 0
    %9656 = vmatpush1.bf16.msra.mxu0 0
    %9657 = vmatprep.subr.bf16.mxu0 0
    %9658 = vmatpush1.bf16.msra.mxu0 0
    %9659 = vmatprep.subr.bf16.mxu0 0
    %9660 = vmatpush1.bf16.msra.mxu0 0
    %9661 = vmatprep.subr.bf16.mxu0 0
    %9662 = vmatpush1.bf16.msra.mxu0 0
    %9663 = vmatprep.subr.bf16.mxu0 0
    %9664 = vmatpush1.bf16.msra.mxu0 0
    %9665 = vmatprep.subr.bf16.mxu0 0
    %9666 = vmatpush1.bf16.msra.mxu0 0
    %9667 = vmatprep.subr.bf16.mxu0 0
    %9668 = vmatpush1.bf16.msra.mxu0 0
    %9669 = vmatprep.subr.bf16.mxu0 0
    %9670 = vmatpush1.bf16.msra.mxu0 0
    %9671 = vmatprep.subr.bf16.mxu0 0
    %9672 = vmatpush1.bf16.msra.mxu0 0
    %9673 = vmatprep.subr.bf16.mxu0 0
    %9674 = vmatpush1.bf16.msra.mxu0 0
    %9675 = vmatprep.mubr.bf16.mxu0 0
    %9676 = vmatmul.mubr.bf16.gmra.mrb[0].mxu0 %v9413
    %v9677 = vpop.f32.mrb[0].mxu0
    %v9678 = vadd.f32 %v9355, %v9677
    %v9679 = vpop.f32.mrb[0].mxu0
    %v9680 = vadd.f32 %v9355, %v9679
    %v9681 = vpop.f32.mrb[0].mxu0
    %v9682 = vadd.f32 %v9360, %v9681
    %v9683 = vpop.f32.mrb[0].mxu0
    %v9684 = vadd.f32 %v9360, %v9683
    %9685 = vmatprep.mubr.bf16.mxu0 0
    %9686 = vmatmul.mubr.bf16.gmra.mrb[0].mxu0 %v9416
    %v9687 = vpop.f32.mrb[0].mxu0
    %v9688 = vadd.f32 %v9365, %v9687
    %v9689 = vpop.f32.mrb[0].mxu0
    %v9690 = vadd.f32 %v9365, %v9689
    %v9691 = vpop.f32.mrb[0].mxu0
    %v9692 = vadd.f32 %v9370, %v9691
    %v9693 = vpop.f32.mrb[0].mxu0
    %v9694 = vadd.f32 %v9370, %v9693
    %9695 = vmatprep.mubr.bf16.mxu0 0
    %9696 = vmatmul.mubr.bf16.gmra.mrb[0].mxu0 %v9419
    %v9697 = vpop.f32.mrb[0].mxu0
    %v9698 = vadd.f32 %v9375, %v9697
    %v9699 = vpop.f32.mrb[0].mxu0
    %v9700 = vadd.f32 %v9375, %v9699
    %v9701 = vpop.f32.mrb[0].mxu0
    %v9702 = vadd.f32 %v9380, %v9701
    %v9703 = vpop.f32.mrb[0].mxu0
    %v9704 = vadd.f32 %v9380, %v9703
    %9705 = vmatprep.mubr.bf16.mxu0 0
    %9706 = vmatmul.mubr.bf16.gmra.mrb[0].mxu0 %v9422
    %v9707 = vpop.f32.mrb[0].mxu0
    %v9708 = vadd.f32 %v9385, %v9707
    %v9709 = vpop.f32.mrb[0].mxu0
    %v9710 = vadd.f32 %v9385, %v9709
    %v9711 = vpop.f32.mrb[0].mxu0
    %v9712 = vadd.f32 %v9390, %v9711
    %v9713 = vpop.f32.mrb[0].mxu0
    %v9714 = vadd.f32 %v9390, %v9713
    %9715 = vdwg.mxu0
    %9716 = vmatprep.subr.bf16.mxu0 %v9289
    %9717 = vmatpush1.bf16.msra.mxu0 %v9288
    %9718 = vmatprep.subr.bf16.mxu0 %v9305
    %9719 = vmatpush1.bf16.msra.mxu0 %v9304
    %9720 = vmatprep.subr.bf16.mxu0 %v9321
    %9721 = vmatpush1.bf16.msra.mxu0 %v9320
    %9722 = vmatprep.subr.bf16.mxu0 %v9337
    %9723 = vmatpush1.bf16.msra.mxu0 %v9336
    %9724 = vmatprep.subr.bf16.mxu0 0
    %9725 = vmatpush1.bf16.msra.mxu0 0
    %9726 = vmatprep.subr.bf16.mxu0 0
    %9727 = vmatpush1.bf16.msra.mxu0 0
    %9728 = vmatprep.subr.bf16.mxu0 0
    %9729 = vmatpush1.bf16.msra.mxu0 0
    %9730 = vmatprep.subr.bf16.mxu0 0
    %9731 = vmatpush1.bf16.msra.mxu0 0
    %9732 = vmatprep.subr.bf16.mxu0 0
    %9733 = vmatpush1.bf16.msra.mxu0 0
    %9734 = vmatprep.subr.bf16.mxu0 0
    %9735 = vmatpush1.bf16.msra.mxu0 0
    %9736 = vmatprep.subr.bf16.mxu0 0
    %9737 = vmatpush1.bf16.msra.mxu0 0
    %9738 = vmatprep.subr.bf16.mxu0 0
    %9739 = vmatpush1.bf16.msra.mxu0 0
    %9740 = vmatprep.subr.bf16.mxu0 0
    %9741 = vmatpush1.bf16.msra.mxu0 0
    %9742 = vmatprep.subr.bf16.mxu0 0
    %9743 = vmatpush1.bf16.msra.mxu0 0
    %9744 = vmatprep.subr.bf16.mxu0 0
    %9745 = vmatpush1.bf16.msra.mxu0 0
    %9746 = vmatprep.subr.bf16.mxu0 0
    %9747 = vmatpush1.bf16.msra.mxu0 0
    %9748 = vmatprep.mubr.bf16.mxu0 0
    %9749 = vmatmul.mubr.bf16.gmra.mrb[0].mxu0 %v9413
    %v9750 = vpop.f32.mrb[0].mxu0
    %v9751 = vadd.f32 %v9355, %v9750
    %v9752 = vpop.f32.mrb[0].mxu0
    %v9753 = vadd.f32 %v9355, %v9752
    %v9754 = vpop.f32.mrb[0].mxu0
    %v9755 = vadd.f32 %v9360, %v9754
    %v9756 = vpop.f32.mrb[0].mxu0
    %v9757 = vadd.f32 %v9360, %v9756
    %9758 = vmatprep.mubr.bf16.mxu0 0
    %9759 = vmatmul.mubr.bf16.gmra.mrb[0].mxu0 %v9416
    %v9760 = vpop.f32.mrb[0].mxu0
    %v9761 = vadd.f32 %v9365, %v9760
    %v9762 = vpop.f32.mrb[0].mxu0
    %v9763 = vadd.f32 %v9365, %v9762
    %v9764 = vpop.f32.mrb[0].mxu0
    %v9765 = vadd.f32 %v9370, %v9764
    %v9766 = vpop.f32.mrb[0].mxu0
    %v9767 = vadd.f32 %v9370, %v9766
    %9768 = vmatprep.mubr.bf16.mxu0 0
    %9769 = vmatmul.mubr.bf16.gmra.mrb[0].mxu0 %v9419
    %v9770 = vpop.f32.mrb[0].mxu0
    %v9771 = vadd.f32 %v9375, %v9770
    %v9772 = vpop.f32.mrb[0].mxu0
    %v9773 = vadd.f32 %v9375, %v9772
    %v9774 = vpop.f32.mrb[0].mxu0
    %v9775 = vadd.f32 %v9380, %v9774
    %v9776 = vpop.f32.mrb[0].mxu0
    %v9777 = vadd.f32 %v9380, %v9776
    %9778 = vmatprep.mubr.bf16.mxu0 0
    %9779 = vmatmul.mubr.bf16.gmra.mrb[0].mxu0 %v9422
    %v9780 = vpop.f32.mrb[0].mxu0
    %v9781 = vadd.f32 %v9385, %v9780
    %v9782 = vpop.f32.mrb[0].mxu0
    %v9783 = vadd.f32 %v9385, %v9782
    %v9784 = vpop.f32.mrb[0].mxu0
    %v9785 = vadd.f32 %v9390, %v9784
    %v9786 = vpop.f32.mrb[0].mxu0
    %v9787 = vadd.f32 %v9390, %v9786
    %9788 = vdwg.mxu0
    %9789 = vmatprep.subr.bf16.mxu0 %v9291
    %9790 = vmatpush1.bf16.msra.mxu0 %v9290
    %9791 = vmatprep.subr.bf16.mxu0 %v9307
    %9792 = vmatpush1.bf16.msra.mxu0 %v9306
    %9793 = vmatprep.subr.bf16.mxu0 %v9323
    %9794 = vmatpush1.bf16.msra.mxu0 %v9322
    %9795 = vmatprep.subr.bf16.mxu0 %v9339
    %9796 = vmatpush1.bf16.msra.mxu0 %v9338
    %9797 = vmatprep.subr.bf16.mxu0 0
    %9798 = vmatpush1.bf16.msra.mxu0 0
    %9799 = vmatprep.subr.bf16.mxu0 0
    %9800 = vmatpush1.bf16.msra.mxu0 0
    %9801 = vmatprep.subr.bf16.mxu0 0
    %9802 = vmatpush1.bf16.msra.mxu0 0
    %9803 = vmatprep.subr.bf16.mxu0 0
    %9804 = vmatpush1.bf16.msra.mxu0 0
    %9805 = vmatprep.subr.bf16.mxu0 0
    %9806 = vmatpush1.bf16.msra.mxu0 0
    %9807 = vmatprep.subr.bf16.mxu0 0
    %9808 = vmatpush1.bf16.msra.mxu0 0
    %9809 = vmatprep.subr.bf16.mxu0 0
    %9810 = vmatpush1.bf16.msra.mxu0 0
    %9811 = vmatprep.subr.bf16.mxu0 0
    %9812 = vmatpush1.bf16.msra.mxu0 0
    %9813 = vmatprep.subr.bf16.mxu0 0
    %9814 = vmatpush1.bf16.msra.mxu0 0
    %9815 = vmatprep.subr.bf16.mxu0 0
    %9816 = vmatpush1.bf16.msra.mxu0 0
    %9817 = vmatprep.subr.bf16.mxu0 0
    %9818 = vmatpush1.bf16.msra.mxu0 0
    %9819 = vmatprep.subr.bf16.mxu0 0
    %9820 = vmatpush1.bf16.msra.mxu0 0
    %9821 = vmatprep.mubr.bf16.mxu0 0
    %9822 = vmatmul.mubr.bf16.gmra.mrb[0].mxu0 %v9413
    %v9823 = vpop.f32.mrb[0].mxu0
    %v9824 = vadd.f32 %v9355, %v9823
    %v9825 = vpop.f32.mrb[0].mxu0
    %v9826 = vadd.f32 %v9355, %v9825
    %v9827 = vpop.f32.mrb[0].mxu0
    %v9828 = vadd.f32 %v9360, %v9827
    %v9829 = vpop.f32.mrb[0].mxu0
    %v9830 = vadd.f32 %v9360, %v9829
    %9831 = vmatprep.mubr.bf16.mxu0 0
    %9832 = vmatmul.mubr.bf16.gmra.mrb[0].mxu0 %v9416
    %v9833 = vpop.f32.mrb[0].mxu0
    %v9834 = vadd.f32 %v9365, %v9833
    %v9835 = vpop.f32.mrb[0].mxu0
    %v9836 = vadd.f32 %v9365, %v9835
    %v9837 = vpop.f32.mrb[0].mxu0
    %v9838 = vadd.f32 %v9370, %v9837
    %v9839 = vpop.f32.mrb[0].mxu0
    %v9840 = vadd.f32 %v9370, %v9839
    %9841 = vmatprep.mubr.bf16.mxu0 0
    %9842 = vmatmul.mubr.bf16.gmra.mrb[0].mxu0 %v9419
    %v9843 = vpop.f32.mrb[0].mxu0
    %v9844 = vadd.f32 %v9375, %v9843
    %v9845 = vpop.f32.mrb[0].mxu0
    %v9846 = vadd.f32 %v9375, %v9845
    %v9847 = vpop.f32.mrb[0].mxu0
    %v9848 = vadd.f32 %v9380, %v9847
    %v9849 = vpop.f32.mrb[0].mxu0
    %v9850 = vadd.f32 %v9380, %v9849
    %9851 = vmatprep.mubr.bf16.mxu0 0
    %9852 = vmatmul.mubr.bf16.gmra.mrb[0].mxu0 %v9422
    %v9853 = vpop.f32.mrb[0].mxu0
    %v9854 = vadd.f32 %v9385, %v9853
    %v9855 = vpop.f32.mrb[0].mxu0
    %v9856 = vadd.f32 %v9385, %v9855
    %v9857 = vpop.f32.mrb[0].mxu0
    %v9858 = vadd.f32 %v9390, %v9857
    %v9859 = vpop.f32.mrb[0].mxu0
    %v9860 = vadd.f32 %v9390, %v9859
    %9861 = vdwg.mxu0
    %9862 = vmatprep.subr.bf16.mxu0 %v9293
    %9863 = vmatpush1.bf16.msra.mxu0 %v9292
    %9864 = vmatprep.subr.bf16.mxu0 %v9309
    %9865 = vmatpush1.bf16.msra.mxu0 %v9308
    %9866 = vmatprep.subr.bf16.mxu0 %v9325
    %9867 = vmatpush1.bf16.msra.mxu0 %v9324
    %9868 = vmatprep.subr.bf16.mxu0 %v9341
    %9869 = vmatpush1.bf16.msra.mxu0 %v9340
    %9870 = vmatprep.subr.bf16.mxu0 0
    %9871 = vmatpush1.bf16.msra.mxu0 0
    %9872 = vmatprep.subr.bf16.mxu0 0
    %9873 = vmatpush1.bf16.msra.mxu0 0
    %9874 = vmatprep.subr.bf16.mxu0 0
    %9875 = vmatpush1.bf16.msra.mxu0 0
    %9876 = vmatprep.subr.bf16.mxu0 0
    %9877 = vmatpush1.bf16.msra.mxu0 0
    %9878 = vmatprep.subr.bf16.mxu0 0
    %9879 = vmatpush1.bf16.msra.mxu0 0
    %9880 = vmatprep.subr.bf16.mxu0 0
    %9881 = vmatpush1.bf16.msra.mxu0 0
    %9882 = vmatprep.subr.bf16.mxu0 0
    %9883 = vmatpush1.bf16.msra.mxu0 0
    %9884 = vmatprep.subr.bf16.mxu0 0
    %9885 = vmatpush1.bf16.msra.mxu0 0
    %9886 = vmatprep.subr.bf16.mxu0 0
    %9887 = vmatpush1.bf16.msra.mxu0 0
    %9888 = vmatprep.subr.bf16.mxu0 0
    %9889 = vmatpush1.bf16.msra.mxu0 0
    %9890 = vmatprep.subr.bf16.mxu0 0
    %9891 = vmatpush1.bf16.msra.mxu0 0
    %9892 = vmatprep.subr.bf16.mxu0 0
    %9893 = vmatpush1.bf16.msra.mxu0 0
    %9894 = vmatprep.mubr.bf16.mxu0 0
    %9895 = vmatmul.mubr.bf16.gmra.mrb[0].mxu0 %v9413
    %v9896 = vpop.f32.mrb[0].mxu0
    %v9897 = vadd.f32 %v9355, %v9896
    %v9898 = vpop.f32.mrb[0].mxu0
    %v9899 = vadd.f32 %v9355, %v9898
    %v9900 = vpop.f32.mrb[0].mxu0
    %v9901 = vadd.f32 %v9360, %v9900
    %v9902 = vpop.f32.mrb[0].mxu0
    %v9903 = vadd.f32 %v9360, %v9902
    %9904 = vmatprep.mubr.bf16.mxu0 0
    %9905 = vmatmul.mubr.bf16.gmra.mrb[0].mxu0 %v9416
    %v9906 = vpop.f32.mrb[0].mxu0
    %v9907 = vadd.f32 %v9365, %v9906
    %v9908 = vpop.f32.mrb[0].mxu0
    %v9909 = vadd.f32 %v9365, %v9908
    %v9910 = vpop.f32.mrb[0].mxu0
    %v9911 = vadd.f32 %v9370, %v9910
    %v9912 = vpop.f32.mrb[0].mxu0
    %v9913 = vadd.f32 %v9370, %v9912
    %9914 = vmatprep.mubr.bf16.mxu0 0
    %9915 = vmatmul.mubr.bf16.gmra.mrb[0].mxu0 %v9419
    %v9916 = vpop.f32.mrb[0].mxu0
    %v9917 = vadd.f32 %v9375, %v9916
    %v9918 = vpop.f32.mrb[0].mxu0
    %v9919 = vadd.f32 %v9375, %v9918
    %v9920 = vpop.f32.mrb[0].mxu0
    %v9921 = vadd.f32 %v9380, %v9920
    %v9922 = vpop.f32.mrb[0].mxu0
    %v9923 = vadd.f32 %v9380, %v9922
    %9924 = vmatprep.mubr.bf16.mxu0 0
    %9925 = vmatmul.mubr.bf16.gmra.mrb[0].mxu0 %v9422
    %v9926 = vpop.f32.mrb[0].mxu0
    %v9927 = vadd.f32 %v9385, %v9926
    %v9928 = vpop.f32.mrb[0].mxu0
    %v9929 = vadd.f32 %v9385, %v9928
    %v9930 = vpop.f32.mrb[0].mxu0
    %v9931 = vadd.f32 %v9390, %v9930
    %v9932 = vpop.f32.mrb[0].mxu0
    %v9933 = vadd.f32 %v9390, %v9932
    %9934 = vdwg.mxu0
    %9935 = vmatprep.subr.bf16.mxu0 %v9295
    %9936 = vmatpush1.bf16.msra.mxu0 %v9294
    %9937 = vmatprep.subr.bf16.mxu0 %v9311
    %9938 = vmatpush1.bf16.msra.mxu0 %v9310
    %9939 = vmatprep.subr.bf16.mxu0 %v9327
    %9940 = vmatpush1.bf16.msra.mxu0 %v9326
    %9941 = vmatprep.subr.bf16.mxu0 %v9343
    %9942 = vmatpush1.bf16.msra.mxu0 %v9342
    %9943 = vmatprep.subr.bf16.mxu0 0
    %9944 = vmatpush1.bf16.msra.mxu0 0
    %9945 = vmatprep.subr.bf16.mxu0 0
    %9946 = vmatpush1.bf16.msra.mxu0 0
    %9947 = vmatprep.subr.bf16.mxu0 0
    %9948 = vmatpush1.bf16.msra.mxu0 0
    %9949 = vmatprep.subr.bf16.mxu0 0
    %9950 = vmatpush1.bf16.msra.mxu0 0
    %9951 = vmatprep.subr.bf16.mxu0 0
    %9952 = vmatpush1.bf16.msra.mxu0 0
    %9953 = vmatprep.subr.bf16.mxu0 0
    %9954 = vmatpush1.bf16.msra.mxu0 0
    %9955 = vmatprep.subr.bf16.mxu0 0
    %9956 = vmatpush1.bf16.msra.mxu0 0
    %9957 = vmatprep.subr.bf16.mxu0 0
    %9958 = vmatpush1.bf16.msra.mxu0 0
    %9959 = vmatprep.subr.bf16.mxu0 0
    %9960 = vmatpush1.bf16.msra.mxu0 0
    %9961 = vmatprep.subr.bf16.mxu0 0
    %9962 = vmatpush1.bf16.msra.mxu0 0
    %9963 = vmatprep.subr.bf16.mxu0 0
    %9964 = vmatpush1.bf16.msra.mxu0 0
    %9965 = vmatprep.subr.bf16.mxu0 0
    %9966 = vmatpush1.bf16.msra.mxu0 0
    %9967 = vmatprep.mubr.bf16.mxu0 0
    %9968 = vmatmul.mubr.bf16.gmra.mrb[0].mxu0 %v9413
    %v9969 = vpop.f32.mrb[0].mxu0
    %v9970 = vadd.f32 %v9355, %v9969
    %v9971 = vpop.f32.mrb[0].mxu0
    %v9972 = vadd.f32 %v9355, %v9971
    %v9973 = vpop.f32.mrb[0].mxu0
    %v9974 = vadd.f32 %v9360, %v9973
    %v9975 = vpop.f32.mrb[0].mxu0
    %v9976 = vadd.f32 %v9360, %v9975
    %9977 = vmatprep.mubr.bf16.mxu0 0
    %9978 = vmatmul.mubr.bf16.gmra.mrb[0].mxu0 %v9416
    %v9979 = vpop.f32.mrb[0].mxu0
    %v9980 = vadd.f32 %v9365, %v9979
    %v9981 = vpop.f32.mrb[0].mxu0
    %v9982 = vadd.f32 %v9365, %v9981
    %v9983 = vpop.f32.mrb[0].mxu0
    %v9984 = vadd.f32 %v9370, %v9983
    %v9985 = vpop.f32.mrb[0].mxu0
    %v9986 = vadd.f32 %v9370, %v9985
    %9987 = vmatprep.mubr.bf16.mxu0 0
    %9988 = vmatmul.mubr.bf16.gmra.mrb[0].mxu0 %v9419
    %v9989 = vpop.f32.mrb[0].mxu0
    %v9990 = vadd.f32 %v9375, %v9989
    %v9991 = vpop.f32.mrb[0].mxu0
    %v9992 = vadd.f32 %v9375, %v9991
    %v9993 = vpop.f32.mrb[0].mxu0
    %v9994 = vadd.f32 %v9380, %v9993
    %v9995 = vpop.f32.mrb[0].mxu0
    %v9996 = vadd.f32 %v9380, %v9995
    %9997 = vmatprep.mubr.bf16.mxu0 0
    %9998 = vmatmul.mubr.bf16.gmra.mrb[0].mxu0 %v9422
    %v9999 = vpop.f32.mrb[0].mxu0
    %v10000 = vadd.f32 %v9385, %v9999
    %v10001 = vpop.f32.mrb[0].mxu0
    %v10002 = vadd.f32 %v9385, %v10001
    %v10003 = vpop.f32.mrb[0].mxu0
    %v10004 = vadd.f32 %v9390, %v10003
    %v10005 = vpop.f32.mrb[0].mxu0
    %v10006 = vadd.f32 %v9390, %v10005
    %10007 = vdwg.mxu0
    %v10008 = vmul.f32 %v9459, 0.01
    %v10009 = vmul.f32 %v9461, 0.01
    %v10010 = vmul.f32 %v9532, 0.01
    %v10011 = vmul.f32 %v9534, 0.01
    %v10012 = vmul.f32 %v9605, 0.01
    %v10013 = vmul.f32 %v9607, 0.01
    %v10014 = vmul.f32 %v9678, 0.01
    %v10015 = vmul.f32 %v9680, 0.01
    %v10016 = vmul.f32 %v9751, 0.01
    %v10017 = vmul.f32 %v9753, 0.01
    %v10018 = vmul.f32 %v9824, 0.01
    %v10019 = vmul.f32 %v9826, 0.01
    %v10020 = vmul.f32 %v9897, 0.01
    %v10021 = vmul.f32 %v9899, 0.01
    %v10022 = vmul.f32 %v9970, 0.01
    %v10023 = vmul.f32 %v9972, 0.01
    %v10024 = vmul.f32 %v9463, 0.01
    %v10025 = vmul.f32 %v9465, 0.01
    %v10026 = vmul.f32 %v9536, 0.01
    %v10027 = vmul.f32 %v9538, 0.01
    %v10028 = vmul.f32 %v9609, 0.01
    %v10029 = vmul.f32 %v9611, 0.01
    %v10030 = vmul.f32 %v9682, 0.01
    %v10031 = vmul.f32 %v9684, 0.01
    %v10032 = vmul.f32 %v9755, 0.01
    %v10033 = vmul.f32 %v9757, 0.01
    %v10034 = vmul.f32 %v9828, 0.01
    %v10035 = vmul.f32 %v9830, 0.01
    %v10036 = vmul.f32 %v9901, 0.01
    %v10037 = vmul.f32 %v9903, 0.01
    %v10038 = vmul.f32 %v9974, 0.01
    %v10039 = vmul.f32 %v9976, 0.01
    %v10040 = vmul.f32 %v9469, 0.01
    %v10041 = vmul.f32 %v9471, 0.01
    %v10042 = vmul.f32 %v9542, 0.01
    %v10043 = vmul.f32 %v9544, 0.01
    %v10044 = vmul.f32 %v9615, 0.01
    %v10045 = vmul.f32 %v9617, 0.01
    %v10046 = vmul.f32 %v9688, 0.01
    %v10047 = vmul.f32 %v9690, 0.01
    %v10048 = vmul.f32 %v9761, 0.01
    %v10049 = vmul.f32 %v9763, 0.01
    %v10050 = vmul.f32 %v9834, 0.01
    %v10051 = vmul.f32 %v9836, 0.01
    %v10052 = vmul.f32 %v9907, 0.01
    %v10053 = vmul.f32 %v9909, 0.01
    %v10054 = vmul.f32 %v9980, 0.01
    %v10055 = vmul.f32 %v9982, 0.01
    %v10056 = vmul.f32 %v9473, 0.01
    %v10057 = vmul.f32 %v9475, 0.01
    %v10058 = vmul.f32 %v9546, 0.01
    %v10059 = vmul.f32 %v9548, 0.01
    %v10060 = vmul.f32 %v9619, 0.01
    %v10061 = vmul.f32 %v9621, 0.01
    %v10062 = vmul.f32 %v9692, 0.01
    %v10063 = vmul.f32 %v9694, 0.01
    %v10064 = vmul.f32 %v9765, 0.01
    %v10065 = vmul.f32 %v9767, 0.01
    %v10066 = vmul.f32 %v9838, 0.01
    %v10067 = vmul.f32 %v9840, 0.01
    %v10068 = vmul.f32 %v9911, 0.01
    %v10069 = vmul.f32 %v9913, 0.01
    %v10070 = vmul.f32 %v9984, 0.01
    %v10071 = vmul.f32 %v9986, 0.01
    %v10072 = vmul.f32 %v9479, 0.01
    %v10073 = vmul.f32 %v9481, 0.01
    %v10074 = vmul.f32 %v9552, 0.01
    %v10075 = vmul.f32 %v9554, 0.01
    %v10076 = vmul.f32 %v9625, 0.01
    %v10077 = vmul.f32 %v9627, 0.01
    %v10078 = vmul.f32 %v9698, 0.01
    %v10079 = vmul.f32 %v9700, 0.01
    %v10080 = vmul.f32 %v9771, 0.01
    %v10081 = vmul.f32 %v9773, 0.01
    %v10082 = vmul.f32 %v9844, 0.01
    %v10083 = vmul.f32 %v9846, 0.01
    %v10084 = vmul.f32 %v9917, 0.01
    %v10085 = vmul.f32 %v9919, 0.01
    %v10086 = vmul.f32 %v9990, 0.01
    %v10087 = vmul.f32 %v9992, 0.01
    %v10088 = vmul.f32 %v9483, 0.01
    %v10089 = vmul.f32 %v9485, 0.01
    %v10090 = vmul.f32 %v9556, 0.01
    %v10091 = vmul.f32 %v9558, 0.01
    %v10092 = vmul.f32 %v9629, 0.01
    %v10093 = vmul.f32 %v9631, 0.01
    %v10094 = vmul.f32 %v9702, 0.01
    %v10095 = vmul.f32 %v9704, 0.01
    %v10096 = vmul.f32 %v9775, 0.01
    %v10097 = vmul.f32 %v9777, 0.01
    %v10098 = vmul.f32 %v9848, 0.01
    %v10099 = vmul.f32 %v9850, 0.01
    %v10100 = vmul.f32 %v9921, 0.01
    %v10101 = vmul.f32 %v9923, 0.01
    %v10102 = vmul.f32 %v9994, 0.01
    %v10103 = vmul.f32 %v9996, 0.01
    %v10104 = vmul.f32 %v9489, 0.01
    %v10105 = vmul.f32 %v9491, 0.01
    %v10106 = vmul.f32 %v9562, 0.01
    %v10107 = vmul.f32 %v9564, 0.01
    %v10108 = vmul.f32 %v9635, 0.01
    %v10109 = vmul.f32 %v9637, 0.01
    %v10110 = vmul.f32 %v9708, 0.01
    %v10111 = vmul.f32 %v9710, 0.01
    %v10112 = vmul.f32 %v9781, 0.01
    %v10113 = vmul.f32 %v9783, 0.01
    %v10114 = vmul.f32 %v9854, 0.01
    %v10115 = vmul.f32 %v9856, 0.01
    %v10116 = vmul.f32 %v9927, 0.01
    %v10117 = vmul.f32 %v9929, 0.01
    %v10118 = vmul.f32 %v10000, 0.01
    %v10119 = vmul.f32 %v10002, 0.01
    %v10120 = vmul.f32 %v9493, 0.01
    %v10121 = vmul.f32 %v9495, 0.01
    %v10122 = vmul.f32 %v9566, 0.01
    %v10123 = vmul.f32 %v9568, 0.01
    %v10124 = vmul.f32 %v9639, 0.01
    %v10125 = vmul.f32 %v9641, 0.01
    %v10126 = vmul.f32 %v9712, 0.01
    %v10127 = vmul.f32 %v9714, 0.01
    %v10128 = vmul.f32 %v9785, 0.01
    %v10129 = vmul.f32 %v9787, 0.01
    %v10130 = vmul.f32 %v9858, 0.01
    %v10131 = vmul.f32 %v9860, 0.01
    %v10132 = vmul.f32 %v9931, 0.01
    %v10133 = vmul.f32 %v9933, 0.01
    %v10134 = vmul.f32 %v10004, 0.01
    %v10135 = vmul.f32 %v10006, 0.01
    %v10136 = vmax.f32 %v9459, %v10008
    %v10137 = vmax.f32 %v9461, %v10009
    %v10138 = vmax.f32 %v9532, %v10010
    %v10139 = vmax.f32 %v9534, %v10011
    %v10140 = vmax.f32 %v9605, %v10012
    %v10141 = vmax.f32 %v9607, %v10013
    %v10142 = vmax.f32 %v9678, %v10014
    %v10143 = vmax.f32 %v9680, %v10015
    %v10144 = vmax.f32 %v9751, %v10016
    %v10145 = vmax.f32 %v9753, %v10017
    %v10146 = vmax.f32 %v9824, %v10018
    %v10147 = vmax.f32 %v9826, %v10019
    %v10148 = vmax.f32 %v9897, %v10020
    %v10149 = vmax.f32 %v9899, %v10021
    %v10150 = vmax.f32 %v9970, %v10022
    %v10151 = vmax.f32 %v9972, %v10023
    %v10152 = vmax.f32 %v9463, %v10024
    %v10153 = vmax.f32 %v9465, %v10025
    %v10154 = vmax.f32 %v9536, %v10026
    %v10155 = vmax.f32 %v9538, %v10027
    %v10156 = vmax.f32 %v9609, %v10028
    %v10157 = vmax.f32 %v9611, %v10029
    %v10158 = vmax.f32 %v9682, %v10030
    %v10159 = vmax.f32 %v9684, %v10031
    %v10160 = vmax.f32 %v9755, %v10032
    %v10161 = vmax.f32 %v9757, %v10033
    %v10162 = vmax.f32 %v9828, %v10034
    %v10163 = vmax.f32 %v9830, %v10035
    %v10164 = vmax.f32 %v9901, %v10036
    %v10165 = vmax.f32 %v9903, %v10037
    %v10166 = vmax.f32 %v9974, %v10038
    %v10167 = vmax.f32 %v9976, %v10039
    %v10168 = vmax.f32 %v9469, %v10040
    %v10169 = vmax.f32 %v9471, %v10041
    %v10170 = vmax.f32 %v9542, %v10042
    %v10171 = vmax.f32 %v9544, %v10043
    %v10172 = vmax.f32 %v9615, %v10044
    %v10173 = vmax.f32 %v9617, %v10045
    %v10174 = vmax.f32 %v9688, %v10046
    %v10175 = vmax.f32 %v9690, %v10047
    %v10176 = vmax.f32 %v9761, %v10048
    %v10177 = vmax.f32 %v9763, %v10049
    %v10178 = vmax.f32 %v9834, %v10050
    %v10179 = vmax.f32 %v9836, %v10051
    %v10180 = vmax.f32 %v9907, %v10052
    %v10181 = vmax.f32 %v9909, %v10053
    %v10182 = vmax.f32 %v9980, %v10054
    %v10183 = vmax.f32 %v9982, %v10055
    %v10184 = vmax.f32 %v9473, %v10056
    %v10185 = vmax.f32 %v9475, %v10057
    %v10186 = vmax.f32 %v9546, %v10058
    %v10187 = vmax.f32 %v9548, %v10059
    %v10188 = vmax.f32 %v9619, %v10060
    %v10189 = vmax.f32 %v9621, %v10061
    %v10190 = vmax.f32 %v9692, %v10062
    %v10191 = vmax.f32 %v9694, %v10063
    %v10192 = vmax.f32 %v9765, %v10064
    %v10193 = vmax.f32 %v9767, %v10065
    %v10194 = vmax.f32 %v9838, %v10066
    %v10195 = vmax.f32 %v9840, %v10067
    %v10196 = vmax.f32 %v9911, %v10068
    %v10197 = vmax.f32 %v9913, %v10069
    %v10198 = vmax.f32 %v9984, %v10070
    %v10199 = vmax.f32 %v9986, %v10071
    %v10200 = vmax.f32 %v9479, %v10072
    %v10201 = vmax.f32 %v9481, %v10073
    %v10202 = vmax.f32 %v9552, %v10074
    %v10203 = vmax.f32 %v9554, %v10075
    %v10204 = vmax.f32 %v9625, %v10076
    %v10205 = vmax.f32 %v9627, %v10077
    %v10206 = vmax.f32 %v9698, %v10078
    %v10207 = vmax.f32 %v9700, %v10079
    %v10208 = vmax.f32 %v9771, %v10080
    %v10209 = vmax.f32 %v9773, %v10081
    %v10210 = vmax.f32 %v9844, %v10082
    %v10211 = vmax.f32 %v9846, %v10083
    %v10212 = vmax.f32 %v9917, %v10084
    %v10213 = vmax.f32 %v9919, %v10085
    %v10214 = vmax.f32 %v9990, %v10086
    %v10215 = vmax.f32 %v9992, %v10087
    %v10216 = vmax.f32 %v9483, %v10088
    %v10217 = vmax.f32 %v9485, %v10089
    %v10218 = vmax.f32 %v9556, %v10090
    %v10219 = vmax.f32 %v9558, %v10091
    %v10220 = vmax.f32 %v9629, %v10092
    %v10221 = vmax.f32 %v9631, %v10093
    %v10222 = vmax.f32 %v9702, %v10094
    %v10223 = vmax.f32 %v9704, %v10095
    %v10224 = vmax.f32 %v9775, %v10096
    %v10225 = vmax.f32 %v9777, %v10097
    %v10226 = vmax.f32 %v9848, %v10098
    %v10227 = vmax.f32 %v9850, %v10099
    %v10228 = vmax.f32 %v9921, %v10100
    %v10229 = vmax.f32 %v9923, %v10101
    %v10230 = vmax.f32 %v9994, %v10102
    %v10231 = vmax.f32 %v9996, %v10103
    %v10232 = vmax.f32 %v9489, %v10104
    %v10233 = vmax.f32 %v9491, %v10105
    %v10234 = vmax.f32 %v9562, %v10106
    %v10235 = vmax.f32 %v9564, %v10107
    %v10236 = vmax.f32 %v9635, %v10108
    %v10237 = vmax.f32 %v9637, %v10109
    %v10238 = vmax.f32 %v9708, %v10110
    %v10239 = vmax.f32 %v9710, %v10111
    %v10240 = vmax.f32 %v9781, %v10112
    %v10241 = vmax.f32 %v9783, %v10113
    %v10242 = vmax.f32 %v9854, %v10114
    %v10243 = vmax.f32 %v9856, %v10115
    %v10244 = vmax.f32 %v9927, %v10116
    %v10245 = vmax.f32 %v9929, %v10117
    %v10246 = vmax.f32 %v10000, %v10118
    %v10247 = vmax.f32 %v10002, %v10119
    %v10248 = vmax.f32 %v9493, %v10120
    %v10249 = vmax.f32 %v9495, %v10121
    %v10250 = vmax.f32 %v9566, %v10122
    %v10251 = vmax.f32 %v9568, %v10123
    %v10252 = vmax.f32 %v9639, %v10124
    %v10253 = vmax.f32 %v9641, %v10125
    %v10254 = vmax.f32 %v9712, %v10126
    %v10255 = vmax.f32 %v9714, %v10127
    %v10256 = vmax.f32 %v9785, %v10128
    %v10257 = vmax.f32 %v9787, %v10129
    %v10258 = vmax.f32 %v9858, %v10130
    %v10259 = vmax.f32 %v9860, %v10131
    %v10260 = vmax.f32 %v9931, %v10132
    %v10261 = vmax.f32 %v9933, %v10133
    %v10262 = vmax.f32 %v10004, %v10134
    %v10263 = vmax.f32 %v10006, %v10135
    %v10264 = vld [vmem:[%s9] sm:$0xf]
    %v10265 = vld [vmem:[%s9 + $0x4] sm:$0xf]
    %v10266 = vld [vmem:[%s9 + $0x8] sm:$0xf]
    %v10267 = vld [vmem:[%s9 + $0xc] sm:$0xf]
    %v10268 = vld [vmem:[%s9 + $0x10] sm:$0xf]
    %v10269 = vld [vmem:[%s9 + $0x14] sm:$0xf]
    %v10270 = vld [vmem:[%s9 + $0x18] sm:$0xf]
    %v10271 = vld [vmem:[%s9 + $0x1c] sm:$0xf]
    %v10272 = vpack.c.bf16 %v10152, %v10136
    %v10273 = vpack.c.bf16 %v10153, %v10137
    %v10274 = vpack.c.bf16 %v10154, %v10138
    %v10275 = vpack.c.bf16 %v10155, %v10139
    %v10276 = vpack.c.bf16 %v10156, %v10140
    %v10277 = vpack.c.bf16 %v10157, %v10141
    %v10278 = vpack.c.bf16 %v10158, %v10142
    %v10279 = vpack.c.bf16 %v10159, %v10143
    %v10280 = vpack.c.bf16 %v10160, %v10144
    %v10281 = vpack.c.bf16 %v10161, %v10145
    %v10282 = vpack.c.bf16 %v10162, %v10146
    %v10283 = vpack.c.bf16 %v10163, %v10147
    %v10284 = vpack.c.bf16 %v10164, %v10148
    %v10285 = vpack.c.bf16 %v10165, %v10149
    %v10286 = vpack.c.bf16 %v10166, %v10150
    %v10287 = vpack.c.bf16 %v10167, %v10151
    %v10288 = vpack.c.bf16 %v10184, %v10168
    %v10289 = vpack.c.bf16 %v10185, %v10169
    %v10290 = vpack.c.bf16 %v10186, %v10170
    %v10291 = vpack.c.bf16 %v10187, %v10171
    %v10292 = vpack.c.bf16 %v10188, %v10172
    %v10293 = vpack.c.bf16 %v10189, %v10173
    %v10294 = vpack.c.bf16 %v10190, %v10174
    %v10295 = vpack.c.bf16 %v10191, %v10175
    %v10296 = vpack.c.bf16 %v10192, %v10176
    %v10297 = vpack.c.bf16 %v10193, %v10177
    %v10298 = vpack.c.bf16 %v10194, %v10178
    %v10299 = vpack.c.bf16 %v10195, %v10179
    %v10300 = vpack.c.bf16 %v10196, %v10180
    %v10301 = vpack.c.bf16 %v10197, %v10181
    %v10302 = vpack.c.bf16 %v10198, %v10182
    %v10303 = vpack.c.bf16 %v10199, %v10183
    %v10304 = vpack.c.bf16 %v10216, %v10200
    %v10305 = vpack.c.bf16 %v10217, %v10201
    %v10306 = vpack.c.bf16 %v10218, %v10202
    %v10307 = vpack.c.bf16 %v10219, %v10203
    %v10308 = vpack.c.bf16 %v10220, %v10204
    %v10309 = vpack.c.bf16 %v10221, %v10205
    %v10310 = vpack.c.bf16 %v10222, %v10206
    %v10311 = vpack.c.bf16 %v10223, %v10207
    %v10312 = vpack.c.bf16 %v10224, %v10208
    %v10313 = vpack.c.bf16 %v10225, %v10209
    %v10314 = vpack.c.bf16 %v10226, %v10210
    %v10315 = vpack.c.bf16 %v10227, %v10211
    %v10316 = vpack.c.bf16 %v10228, %v10212
    %v10317 = vpack.c.bf16 %v10229, %v10213
    %v10318 = vpack.c.bf16 %v10230, %v10214
    %v10319 = vpack.c.bf16 %v10231, %v10215
    %v10320 = vpack.c.bf16 %v10248, %v10232
    %v10321 = vpack.c.bf16 %v10249, %v10233
    %v10322 = vpack.c.bf16 %v10250, %v10234
    %v10323 = vpack.c.bf16 %v10251, %v10235
    %v10324 = vpack.c.bf16 %v10252, %v10236
    %v10325 = vpack.c.bf16 %v10253, %v10237
    %v10326 = vpack.c.bf16 %v10254, %v10238
    %v10327 = vpack.c.bf16 %v10255, %v10239
    %v10328 = vpack.c.bf16 %v10256, %v10240
    %v10329 = vpack.c.bf16 %v10257, %v10241
    %v10330 = vpack.c.bf16 %v10258, %v10242
    %v10331 = vpack.c.bf16 %v10259, %v10243
    %v10332 = vpack.c.bf16 %v10260, %v10244
    %v10333 = vpack.c.bf16 %v10261, %v10245
    %v10334 = vpack.c.bf16 %v10262, %v10246
    %v10335 = vpack.c.bf16 %v10263, %v10247
    %v10336 = vld [vmem:[%s10] sm:$0xff]
    %v10337 = vld [vmem:[%s10 + $0x8] sm:$0xff]
    %v10338 = vld [vmem:[%s10 + $0x10] sm:$0xff]
    %v10339 = vld [vmem:[%s10 + $0x18] sm:$0xff]
    %v10340 = vld [vmem:[%s10 + $0x20] sm:$0xff]
    %v10341 = vld [vmem:[%s10 + $0x28] sm:$0xff]
    %v10342 = vld [vmem:[%s10 + $0x30] sm:$0xff]
    %v10343 = vld [vmem:[%s10 + $0x38] sm:$0xff]
    %10345 = vset.pattern.permute.xlu0 0
    %10346 = vperm.xlu0 %10345, %v10336
    %v10347 = vpop.permute.xlu0 %10346
    %10350 = vset.pattern.permute.xlu0 0
    %10351 = vperm.xlu0 %10350, %v10337
    %v10352 = vpop.permute.xlu0 %10351
    %10355 = vset.pattern.permute.xlu0 0
    %10356 = vperm.xlu0 %10355, %v10338
    %v10357 = vpop.permute.xlu0 %10356
    %10360 = vset.pattern.permute.xlu0 0
    %10361 = vperm.xlu0 %10360, %v10339
    %v10362 = vpop.permute.xlu0 %10361
    %10365 = vset.pattern.permute.xlu0 0
    %10366 = vperm.xlu0 %10365, %v10340
    %v10367 = vpop.permute.xlu0 %10366
    %10370 = vset.pattern.permute.xlu0 0
    %10371 = vperm.xlu0 %10370, %v10341
    %v10372 = vpop.permute.xlu0 %10371
    %10375 = vset.pattern.permute.xlu0 0
    %10376 = vperm.xlu0 %10375, %v10342
    %v10377 = vpop.permute.xlu0 %10376
    %10380 = vset.pattern.permute.xlu0 0
    %10381 = vperm.xlu0 %10380, %v10343
    %v10382 = vpop.permute.xlu0 %10381
    %v10392 = vunpack.c.l.b16 %v10264
    %v10393 = vunpack.c.l.b16 %v10265
    %v10394 = vunpack.c.l.b16 %v10266
    %v10395 = vunpack.c.l.b16 %v10267
    %v10396 = vunpack.c.l.b16 %v10268
    %v10397 = vunpack.c.l.b16 %v10269
    %v10398 = vunpack.c.l.b16 %v10270
    %v10399 = vunpack.c.l.b16 %v10271
    %v10400 = vpack.c.b16 %v10393, %v10392
    %v10401 = vpack.c.b16 %v10395, %v10394
    %v10402 = vpack.c.b16 %v10397, %v10396
    %v10403 = vpack.c.b16 %v10399, %v10398
    %v10405 = vsel %vm8419, %v10400, 0
    %v10408 = vsel %vm8419, %v10401, 0
    %v10411 = vsel %vm8419, %v10402, 0
    %v10414 = vsel %vm8419, %v10403, 0
    %10416 = vmatprep.subr.bf16.mxu0 %v10273
    %10417 = vmatpush1.bf16.msra.mxu0 %v10272
    %10418 = vmatprep.subr.bf16.mxu0 %v10289
    %10419 = vmatpush1.bf16.msra.mxu0 %v10288
    %10420 = vmatprep.subr.bf16.mxu0 %v10305
    %10421 = vmatpush1.bf16.msra.mxu0 %v10304
    %10422 = vmatprep.subr.bf16.mxu0 %v10321
    %10423 = vmatpush1.bf16.msra.mxu0 %v10320
    %10424 = vmatprep.subr.bf16.mxu0 0
    %10425 = vmatpush1.bf16.msra.mxu0 0
    %10426 = vmatprep.subr.bf16.mxu0 0
    %10427 = vmatpush1.bf16.msra.mxu0 0
    %10428 = vmatprep.subr.bf16.mxu0 0
    %10429 = vmatpush1.bf16.msra.mxu0 0
    %10430 = vmatprep.subr.bf16.mxu0 0
    %10431 = vmatpush1.bf16.msra.mxu0 0
    %10432 = vmatprep.subr.bf16.mxu0 0
    %10433 = vmatpush1.bf16.msra.mxu0 0
    %10434 = vmatprep.subr.bf16.mxu0 0
    %10435 = vmatpush1.bf16.msra.mxu0 0
    %10436 = vmatprep.subr.bf16.mxu0 0
    %10437 = vmatpush1.bf16.msra.mxu0 0
    %10438 = vmatprep.subr.bf16.mxu0 0
    %10439 = vmatpush1.bf16.msra.mxu0 0
    %10440 = vmatprep.subr.bf16.mxu0 0
    %10441 = vmatpush1.bf16.msra.mxu0 0
    %10442 = vmatprep.subr.bf16.mxu0 0
    %10443 = vmatpush1.bf16.msra.mxu0 0
    %10444 = vmatprep.subr.bf16.mxu0 0
    %10445 = vmatpush1.bf16.msra.mxu0 0
    %10446 = vmatprep.subr.bf16.mxu0 0
    %10447 = vmatpush1.bf16.msra.mxu0 0
    %10448 = vmatprep.mubr.bf16.mxu0 0
    %10449 = vmatmul.mubr.bf16.gmra.mrb[0].mxu0 %v10405
    %v10450 = vpop.f32.mrb[0].mxu0
    %v10451 = vadd.f32 %v10347, %v10450
    %v10452 = vpop.f32.mrb[0].mxu0
    %v10453 = vadd.f32 %v10347, %v10452
    %v10454 = vpop.f32.mrb[0].mxu0
    %v10455 = vadd.f32 %v10352, %v10454
    %v10456 = vpop.f32.mrb[0].mxu0
    %v10457 = vadd.f32 %v10352, %v10456
    %10458 = vmatprep.mubr.bf16.mxu0 0
    %10459 = vmatmul.mubr.bf16.gmra.mrb[0].mxu0 %v10408
    %v10460 = vpop.f32.mrb[0].mxu0
    %v10461 = vadd.f32 %v10357, %v10460
    %v10462 = vpop.f32.mrb[0].mxu0
    %v10463 = vadd.f32 %v10357, %v10462
    %v10464 = vpop.f32.mrb[0].mxu0
    %v10465 = vadd.f32 %v10362, %v10464
    %v10466 = vpop.f32.mrb[0].mxu0
    %v10467 = vadd.f32 %v10362, %v10466
    %10468 = vmatprep.mubr.bf16.mxu0 0
    %10469 = vmatmul.mubr.bf16.gmra.mrb[0].mxu0 %v10411
    %v10470 = vpop.f32.mrb[0].mxu0
    %v10471 = vadd.f32 %v10367, %v10470
    %v10472 = vpop.f32.mrb[0].mxu0
    %v10473 = vadd.f32 %v10367, %v10472
    %v10474 = vpop.f32.mrb[0].mxu0
    %v10475 = vadd.f32 %v10372, %v10474
    %v10476 = vpop.f32.mrb[0].mxu0
    %v10477 = vadd.f32 %v10372, %v10476
    %10478 = vmatprep.mubr.bf16.mxu0 0
    %10479 = vmatmul.mubr.bf16.gmra.mrb[0].mxu0 %v10414
    %v10480 = vpop.f32.mrb[0].mxu0
    %v10481 = vadd.f32 %v10377, %v10480
    %v10482 = vpop.f32.mrb[0].mxu0
    %v10483 = vadd.f32 %v10377, %v10482
    %v10484 = vpop.f32.mrb[0].mxu0
    %v10485 = vadd.f32 %v10382, %v10484
    %v10486 = vpop.f32.mrb[0].mxu0
    %v10487 = vadd.f32 %v10382, %v10486
    %10488 = vdwg.mxu0
    %10489 = vmatprep.subr.bf16.mxu0 %v10275
    %10490 = vmatpush1.bf16.msra.mxu0 %v10274
    %10491 = vmatprep.subr.bf16.mxu0 %v10291
    %10492 = vmatpush1.bf16.msra.mxu0 %v10290
    %10493 = vmatprep.subr.bf16.mxu0 %v10307
    %10494 = vmatpush1.bf16.msra.mxu0 %v10306
    %10495 = vmatprep.subr.bf16.mxu0 %v10323
    %10496 = vmatpush1.bf16.msra.mxu0 %v10322
    %10497 = vmatprep.subr.bf16.mxu0 0
    %10498 = vmatpush1.bf16.msra.mxu0 0
    %10499 = vmatprep.subr.bf16.mxu0 0
    %10500 = vmatpush1.bf16.msra.mxu0 0
    %10501 = vmatprep.subr.bf16.mxu0 0
    %10502 = vmatpush1.bf16.msra.mxu0 0
    %10503 = vmatprep.subr.bf16.mxu0 0
    %10504 = vmatpush1.bf16.msra.mxu0 0
    %10505 = vmatprep.subr.bf16.mxu0 0
    %10506 = vmatpush1.bf16.msra.mxu0 0
    %10507 = vmatprep.subr.bf16.mxu0 0
    %10508 = vmatpush1.bf16.msra.mxu0 0
    %10509 = vmatprep.subr.bf16.mxu0 0
    %10510 = vmatpush1.bf16.msra.mxu0 0
    %10511 = vmatprep.subr.bf16.mxu0 0
    %10512 = vmatpush1.bf16.msra.mxu0 0
    %10513 = vmatprep.subr.bf16.mxu0 0
    %10514 = vmatpush1.bf16.msra.mxu0 0
    %10515 = vmatprep.subr.bf16.mxu0 0
    %10516 = vmatpush1.bf16.msra.mxu0 0
    %10517 = vmatprep.subr.bf16.mxu0 0
    %10518 = vmatpush1.bf16.msra.mxu0 0
    %10519 = vmatprep.subr.bf16.mxu0 0
    %10520 = vmatpush1.bf16.msra.mxu0 0
    %10521 = vmatprep.mubr.bf16.mxu0 0
    %10522 = vmatmul.mubr.bf16.gmra.mrb[0].mxu0 %v10405
    %v10523 = vpop.f32.mrb[0].mxu0
    %v10524 = vadd.f32 %v10347, %v10523
    %v10525 = vpop.f32.mrb[0].mxu0
    %v10526 = vadd.f32 %v10347, %v10525
    %v10527 = vpop.f32.mrb[0].mxu0
    %v10528 = vadd.f32 %v10352, %v10527
    %v10529 = vpop.f32.mrb[0].mxu0
    %v10530 = vadd.f32 %v10352, %v10529
    %10531 = vmatprep.mubr.bf16.mxu0 0
    %10532 = vmatmul.mubr.bf16.gmra.mrb[0].mxu0 %v10408
    %v10533 = vpop.f32.mrb[0].mxu0
    %v10534 = vadd.f32 %v10357, %v10533
    %v10535 = vpop.f32.mrb[0].mxu0
    %v10536 = vadd.f32 %v10357, %v10535
    %v10537 = vpop.f32.mrb[0].mxu0
    %v10538 = vadd.f32 %v10362, %v10537
    %v10539 = vpop.f32.mrb[0].mxu0
    %v10540 = vadd.f32 %v10362, %v10539
    %10541 = vmatprep.mubr.bf16.mxu0 0
    %10542 = vmatmul.mubr.bf16.gmra.mrb[0].mxu0 %v10411
    %v10543 = vpop.f32.mrb[0].mxu0
    %v10544 = vadd.f32 %v10367, %v10543
    %v10545 = vpop.f32.mrb[0].mxu0
    %v10546 = vadd.f32 %v10367, %v10545
    %v10547 = vpop.f32.mrb[0].mxu0
    %v10548 = vadd.f32 %v10372, %v10547
    %v10549 = vpop.f32.mrb[0].mxu0
    %v10550 = vadd.f32 %v10372, %v10549
    %10551 = vmatprep.mubr.bf16.mxu0 0
    %10552 = vmatmul.mubr.bf16.gmra.mrb[0].mxu0 %v10414
    %v10553 = vpop.f32.mrb[0].mxu0
    %v10554 = vadd.f32 %v10377, %v10553
    %v10555 = vpop.f32.mrb[0].mxu0
    %v10556 = vadd.f32 %v10377, %v10555
    %v10557 = vpop.f32.mrb[0].mxu0
    %v10558 = vadd.f32 %v10382, %v10557
    %v10559 = vpop.f32.mrb[0].mxu0
    %v10560 = vadd.f32 %v10382, %v10559
    %10561 = vdwg.mxu0
    %10562 = vmatprep.subr.bf16.mxu0 %v10277
    %10563 = vmatpush1.bf16.msra.mxu0 %v10276
    %10564 = vmatprep.subr.bf16.mxu0 %v10293
    %10565 = vmatpush1.bf16.msra.mxu0 %v10292
    %10566 = vmatprep.subr.bf16.mxu0 %v10309
    %10567 = vmatpush1.bf16.msra.mxu0 %v10308
    %10568 = vmatprep.subr.bf16.mxu0 %v10325
    %10569 = vmatpush1.bf16.msra.mxu0 %v10324
    %10570 = vmatprep.subr.bf16.mxu0 0
    %10571 = vmatpush1.bf16.msra.mxu0 0
    %10572 = vmatprep.subr.bf16.mxu0 0
    %10573 = vmatpush1.bf16.msra.mxu0 0
    %10574 = vmatprep.subr.bf16.mxu0 0
    %10575 = vmatpush1.bf16.msra.mxu0 0
    %10576 = vmatprep.subr.bf16.mxu0 0
    %10577 = vmatpush1.bf16.msra.mxu0 0
    %10578 = vmatprep.subr.bf16.mxu0 0
    %10579 = vmatpush1.bf16.msra.mxu0 0
    %10580 = vmatprep.subr.bf16.mxu0 0
    %10581 = vmatpush1.bf16.msra.mxu0 0
    %10582 = vmatprep.subr.bf16.mxu0 0
    %10583 = vmatpush1.bf16.msra.mxu0 0
    %10584 = vmatprep.subr.bf16.mxu0 0
    %10585 = vmatpush1.bf16.msra.mxu0 0
    %10586 = vmatprep.subr.bf16.mxu0 0
    %10587 = vmatpush1.bf16.msra.mxu0 0
    %10588 = vmatprep.subr.bf16.mxu0 0
    %10589 = vmatpush1.bf16.msra.mxu0 0
    %10590 = vmatprep.subr.bf16.mxu0 0
    %10591 = vmatpush1.bf16.msra.mxu0 0
    %10592 = vmatprep.subr.bf16.mxu0 0
    %10593 = vmatpush1.bf16.msra.mxu0 0
    %10594 = vmatprep.mubr.bf16.mxu0 0
    %10595 = vmatmul.mubr.bf16.gmra.mrb[0].mxu0 %v10405
    %v10596 = vpop.f32.mrb[0].mxu0
    %v10597 = vadd.f32 %v10347, %v10596
    %v10598 = vpop.f32.mrb[0].mxu0
    %v10599 = vadd.f32 %v10347, %v10598
    %v10600 = vpop.f32.mrb[0].mxu0
    %v10601 = vadd.f32 %v10352, %v10600
    %v10602 = vpop.f32.mrb[0].mxu0
    %v10603 = vadd.f32 %v10352, %v10602
    %10604 = vmatprep.mubr.bf16.mxu0 0
    %10605 = vmatmul.mubr.bf16.gmra.mrb[0].mxu0 %v10408
    %v10606 = vpop.f32.mrb[0].mxu0
    %v10607 = vadd.f32 %v10357, %v10606
    %v10608 = vpop.f32.mrb[0].mxu0
    %v10609 = vadd.f32 %v10357, %v10608
    %v10610 = vpop.f32.mrb[0].mxu0
    %v10611 = vadd.f32 %v10362, %v10610
    %v10612 = vpop.f32.mrb[0].mxu0
    %v10613 = vadd.f32 %v10362, %v10612
    %10614 = vmatprep.mubr.bf16.mxu0 0
    %10615 = vmatmul.mubr.bf16.gmra.mrb[0].mxu0 %v10411
    %v10616 = vpop.f32.mrb[0].mxu0
    %v10617 = vadd.f32 %v10367, %v10616
    %v10618 = vpop.f32.mrb[0].mxu0
    %v10619 = vadd.f32 %v10367, %v10618
    %v10620 = vpop.f32.mrb[0].mxu0
    %v10621 = vadd.f32 %v10372, %v10620
    %v10622 = vpop.f32.mrb[0].mxu0
    %v10623 = vadd.f32 %v10372, %v10622
    %10624 = vmatprep.mubr.bf16.mxu0 0
    %10625 = vmatmul.mubr.bf16.gmra.mrb[0].mxu0 %v10414
    %v10626 = vpop.f32.mrb[0].mxu0
    %v10627 = vadd.f32 %v10377, %v10626
    %v10628 = vpop.f32.mrb[0].mxu0
    %v10629 = vadd.f32 %v10377, %v10628
    %v10630 = vpop.f32.mrb[0].mxu0
    %v10631 = vadd.f32 %v10382, %v10630
    %v10632 = vpop.f32.mrb[0].mxu0
    %v10633 = vadd.f32 %v10382, %v10632
    %10634 = vdwg.mxu0
    %10635 = vmatprep.subr.bf16.mxu0 %v10279
    %10636 = vmatpush1.bf16.msra.mxu0 %v10278
    %10637 = vmatprep.subr.bf16.mxu0 %v10295
    %10638 = vmatpush1.bf16.msra.mxu0 %v10294
    %10639 = vmatprep.subr.bf16.mxu0 %v10311
    %10640 = vmatpush1.bf16.msra.mxu0 %v10310
    %10641 = vmatprep.subr.bf16.mxu0 %v10327
    %10642 = vmatpush1.bf16.msra.mxu0 %v10326
    %10643 = vmatprep.subr.bf16.mxu0 0
    %10644 = vmatpush1.bf16.msra.mxu0 0
    %10645 = vmatprep.subr.bf16.mxu0 0
    %10646 = vmatpush1.bf16.msra.mxu0 0
    %10647 = vmatprep.subr.bf16.mxu0 0
    %10648 = vmatpush1.bf16.msra.mxu0 0
    %10649 = vmatprep.subr.bf16.mxu0 0
    %10650 = vmatpush1.bf16.msra.mxu0 0
    %10651 = vmatprep.subr.bf16.mxu0 0
    %10652 = vmatpush1.bf16.msra.mxu0 0
    %10653 = vmatprep.subr.bf16.mxu0 0
    %10654 = vmatpush1.bf16.msra.mxu0 0
    %10655 = vmatprep.subr.bf16.mxu0 0
    %10656 = vmatpush1.bf16.msra.mxu0 0
    %10657 = vmatprep.subr.bf16.mxu0 0
    %10658 = vmatpush1.bf16.msra.mxu0 0
    %10659 = vmatprep.subr.bf16.mxu0 0
    %10660 = vmatpush1.bf16.msra.mxu0 0
    %10661 = vmatprep.subr.bf16.mxu0 0
    %10662 = vmatpush1.bf16.msra.mxu0 0
    %10663 = vmatprep.subr.bf16.mxu0 0
    %10664 = vmatpush1.bf16.msra.mxu0 0
    %10665 = vmatprep.subr.bf16.mxu0 0
    %10666 = vmatpush1.bf16.msra.mxu0 0
    %10667 = vmatprep.mubr.bf16.mxu0 0
    %10668 = vmatmul.mubr.bf16.gmra.mrb[0].mxu0 %v10405
    %v10669 = vpop.f32.mrb[0].mxu0
    %v10670 = vadd.f32 %v10347, %v10669
    %v10671 = vpop.f32.mrb[0].mxu0
    %v10672 = vadd.f32 %v10347, %v10671
    %v10673 = vpop.f32.mrb[0].mxu0
    %v10674 = vadd.f32 %v10352, %v10673
    %v10675 = vpop.f32.mrb[0].mxu0
    %v10676 = vadd.f32 %v10352, %v10675
    %10677 = vmatprep.mubr.bf16.mxu0 0
    %10678 = vmatmul.mubr.bf16.gmra.mrb[0].mxu0 %v10408
    %v10679 = vpop.f32.mrb[0].mxu0
    %v10680 = vadd.f32 %v10357, %v10679
    %v10681 = vpop.f32.mrb[0].mxu0
    %v10682 = vadd.f32 %v10357, %v10681
    %v10683 = vpop.f32.mrb[0].mxu0
    %v10684 = vadd.f32 %v10362, %v10683
    %v10685 = vpop.f32.mrb[0].mxu0
    %v10686 = vadd.f32 %v10362, %v10685
    %10687 = vmatprep.mubr.bf16.mxu0 0
    %10688 = vmatmul.mubr.bf16.gmra.mrb[0].mxu0 %v10411
    %v10689 = vpop.f32.mrb[0].mxu0
    %v10690 = vadd.f32 %v10367, %v10689
    %v10691 = vpop.f32.mrb[0].mxu0
    %v10692 = vadd.f32 %v10367, %v10691
    %v10693 = vpop.f32.mrb[0].mxu0
    %v10694 = vadd.f32 %v10372, %v10693
    %v10695 = vpop.f32.mrb[0].mxu0
    %v10696 = vadd.f32 %v10372, %v10695
    %10697 = vmatprep.mubr.bf16.mxu0 0
    %10698 = vmatmul.mubr.bf16.gmra.mrb[0].mxu0 %v10414
    %v10699 = vpop.f32.mrb[0].mxu0
    %v10700 = vadd.f32 %v10377, %v10699
    %v10701 = vpop.f32.mrb[0].mxu0
    %v10702 = vadd.f32 %v10377, %v10701
    %v10703 = vpop.f32.mrb[0].mxu0
    %v10704 = vadd.f32 %v10382, %v10703
    %v10705 = vpop.f32.mrb[0].mxu0
    %v10706 = vadd.f32 %v10382, %v10705
    %10707 = vdwg.mxu0
    %10708 = vmatprep.subr.bf16.mxu0 %v10281
    %10709 = vmatpush1.bf16.msra.mxu0 %v10280
    %10710 = vmatprep.subr.bf16.mxu0 %v10297
    %10711 = vmatpush1.bf16.msra.mxu0 %v10296
    %10712 = vmatprep.subr.bf16.mxu0 %v10313
    %10713 = vmatpush1.bf16.msra.mxu0 %v10312
    %10714 = vmatprep.subr.bf16.mxu0 %v10329
    %10715 = vmatpush1.bf16.msra.mxu0 %v10328
    %10716 = vmatprep.subr.bf16.mxu0 0
    %10717 = vmatpush1.bf16.msra.mxu0 0
    %10718 = vmatprep.subr.bf16.mxu0 0
    %10719 = vmatpush1.bf16.msra.mxu0 0
    %10720 = vmatprep.subr.bf16.mxu0 0
    %10721 = vmatpush1.bf16.msra.mxu0 0
    %10722 = vmatprep.subr.bf16.mxu0 0
    %10723 = vmatpush1.bf16.msra.mxu0 0
    %10724 = vmatprep.subr.bf16.mxu0 0
    %10725 = vmatpush1.bf16.msra.mxu0 0
    %10726 = vmatprep.subr.bf16.mxu0 0
    %10727 = vmatpush1.bf16.msra.mxu0 0
    %10728 = vmatprep.subr.bf16.mxu0 0
    %10729 = vmatpush1.bf16.msra.mxu0 0
    %10730 = vmatprep.subr.bf16.mxu0 0
    %10731 = vmatpush1.bf16.msra.mxu0 0
    %10732 = vmatprep.subr.bf16.mxu0 0
    %10733 = vmatpush1.bf16.msra.mxu0 0
    %10734 = vmatprep.subr.bf16.mxu0 0
    %10735 = vmatpush1.bf16.msra.mxu0 0
    %10736 = vmatprep.subr.bf16.mxu0 0
    %10737 = vmatpush1.bf16.msra.mxu0 0
    %10738 = vmatprep.subr.bf16.mxu0 0
    %10739 = vmatpush1.bf16.msra.mxu0 0
    %10740 = vmatprep.mubr.bf16.mxu0 0
    %10741 = vmatmul.mubr.bf16.gmra.mrb[0].mxu0 %v10405
    %v10742 = vpop.f32.mrb[0].mxu0
    %v10743 = vadd.f32 %v10347, %v10742
    %v10744 = vpop.f32.mrb[0].mxu0
    %v10745 = vadd.f32 %v10347, %v10744
    %v10746 = vpop.f32.mrb[0].mxu0
    %v10747 = vadd.f32 %v10352, %v10746
    %v10748 = vpop.f32.mrb[0].mxu0
    %v10749 = vadd.f32 %v10352, %v10748
    %10750 = vmatprep.mubr.bf16.mxu0 0
    %10751 = vmatmul.mubr.bf16.gmra.mrb[0].mxu0 %v10408
    %v10752 = vpop.f32.mrb[0].mxu0
    %v10753 = vadd.f32 %v10357, %v10752
    %v10754 = vpop.f32.mrb[0].mxu0
    %v10755 = vadd.f32 %v10357, %v10754
    %v10756 = vpop.f32.mrb[0].mxu0
    %v10757 = vadd.f32 %v10362, %v10756
    %v10758 = vpop.f32.mrb[0].mxu0
    %v10759 = vadd.f32 %v10362, %v10758
    %10760 = vmatprep.mubr.bf16.mxu0 0
    %10761 = vmatmul.mubr.bf16.gmra.mrb[0].mxu0 %v10411
    %v10762 = vpop.f32.mrb[0].mxu0
    %v10763 = vadd.f32 %v10367, %v10762
    %v10764 = vpop.f32.mrb[0].mxu0
    %v10765 = vadd.f32 %v10367, %v10764
    %v10766 = vpop.f32.mrb[0].mxu0
    %v10767 = vadd.f32 %v10372, %v10766
    %v10768 = vpop.f32.mrb[0].mxu0
    %v10769 = vadd.f32 %v10372, %v10768
    %10770 = vmatprep.mubr.bf16.mxu0 0
    %10771 = vmatmul.mubr.bf16.gmra.mrb[0].mxu0 %v10414
    %v10772 = vpop.f32.mrb[0].mxu0
    %v10773 = vadd.f32 %v10377, %v10772
    %v10774 = vpop.f32.mrb[0].mxu0
    %v10775 = vadd.f32 %v10377, %v10774
    %v10776 = vpop.f32.mrb[0].mxu0
    %v10777 = vadd.f32 %v10382, %v10776
    %v10778 = vpop.f32.mrb[0].mxu0
    %v10779 = vadd.f32 %v10382, %v10778
    %10780 = vdwg.mxu0
    %10781 = vmatprep.subr.bf16.mxu0 %v10283
    %10782 = vmatpush1.bf16.msra.mxu0 %v10282
    %10783 = vmatprep.subr.bf16.mxu0 %v10299
    %10784 = vmatpush1.bf16.msra.mxu0 %v10298
    %10785 = vmatprep.subr.bf16.mxu0 %v10315
    %10786 = vmatpush1.bf16.msra.mxu0 %v10314
    %10787 = vmatprep.subr.bf16.mxu0 %v10331
    %10788 = vmatpush1.bf16.msra.mxu0 %v10330
    %10789 = vmatprep.subr.bf16.mxu0 0
    %10790 = vmatpush1.bf16.msra.mxu0 0
    %10791 = vmatprep.subr.bf16.mxu0 0
    %10792 = vmatpush1.bf16.msra.mxu0 0
    %10793 = vmatprep.subr.bf16.mxu0 0
    %10794 = vmatpush1.bf16.msra.mxu0 0
    %10795 = vmatprep.subr.bf16.mxu0 0
    %10796 = vmatpush1.bf16.msra.mxu0 0
    %10797 = vmatprep.subr.bf16.mxu0 0
    %10798 = vmatpush1.bf16.msra.mxu0 0
    %10799 = vmatprep.subr.bf16.mxu0 0
    %10800 = vmatpush1.bf16.msra.mxu0 0
    %10801 = vmatprep.subr.bf16.mxu0 0
    %10802 = vmatpush1.bf16.msra.mxu0 0
    %10803 = vmatprep.subr.bf16.mxu0 0
    %10804 = vmatpush1.bf16.msra.mxu0 0
    %10805 = vmatprep.subr.bf16.mxu0 0
    %10806 = vmatpush1.bf16.msra.mxu0 0
    %10807 = vmatprep.subr.bf16.mxu0 0
    %10808 = vmatpush1.bf16.msra.mxu0 0
    %10809 = vmatprep.subr.bf16.mxu0 0
    %10810 = vmatpush1.bf16.msra.mxu0 0
    %10811 = vmatprep.subr.bf16.mxu0 0
    %10812 = vmatpush1.bf16.msra.mxu0 0
    %10813 = vmatprep.mubr.bf16.mxu0 0
    %10814 = vmatmul.mubr.bf16.gmra.mrb[0].mxu0 %v10405
    %v10815 = vpop.f32.mrb[0].mxu0
    %v10816 = vadd.f32 %v10347, %v10815
    %v10817 = vpop.f32.mrb[0].mxu0
    %v10818 = vadd.f32 %v10347, %v10817
    %v10819 = vpop.f32.mrb[0].mxu0
    %v10820 = vadd.f32 %v10352, %v10819
    %v10821 = vpop.f32.mrb[0].mxu0
    %v10822 = vadd.f32 %v10352, %v10821
    %10823 = vmatprep.mubr.bf16.mxu0 0
    %10824 = vmatmul.mubr.bf16.gmra.mrb[0].mxu0 %v10408
    %v10825 = vpop.f32.mrb[0].mxu0
    %v10826 = vadd.f32 %v10357, %v10825
    %v10827 = vpop.f32.mrb[0].mxu0
    %v10828 = vadd.f32 %v10357, %v10827
    %v10829 = vpop.f32.mrb[0].mxu0
    %v10830 = vadd.f32 %v10362, %v10829
    %v10831 = vpop.f32.mrb[0].mxu0
    %v10832 = vadd.f32 %v10362, %v10831
    %10833 = vmatprep.mubr.bf16.mxu0 0
    %10834 = vmatmul.mubr.bf16.gmra.mrb[0].mxu0 %v10411
    %v10835 = vpop.f32.mrb[0].mxu0
    %v10836 = vadd.f32 %v10367, %v10835
    %v10837 = vpop.f32.mrb[0].mxu0
    %v10838 = vadd.f32 %v10367, %v10837
    %v10839 = vpop.f32.mrb[0].mxu0
    %v10840 = vadd.f32 %v10372, %v10839
    %v10841 = vpop.f32.mrb[0].mxu0
    %v10842 = vadd.f32 %v10372, %v10841
    %10843 = vmatprep.mubr.bf16.mxu0 0
    %10844 = vmatmul.mubr.bf16.gmra.mrb[0].mxu0 %v10414
    %v10845 = vpop.f32.mrb[0].mxu0
    %v10846 = vadd.f32 %v10377, %v10845
    %v10847 = vpop.f32.mrb[0].mxu0
    %v10848 = vadd.f32 %v10377, %v10847
    %v10849 = vpop.f32.mrb[0].mxu0
    %v10850 = vadd.f32 %v10382, %v10849
    %v10851 = vpop.f32.mrb[0].mxu0
    %v10852 = vadd.f32 %v10382, %v10851
    %10853 = vdwg.mxu0
    %10854 = vmatprep.subr.bf16.mxu0 %v10285
    %10855 = vmatpush1.bf16.msra.mxu0 %v10284
    %10856 = vmatprep.subr.bf16.mxu0 %v10301
    %10857 = vmatpush1.bf16.msra.mxu0 %v10300
    %10858 = vmatprep.subr.bf16.mxu0 %v10317
    %10859 = vmatpush1.bf16.msra.mxu0 %v10316
    %10860 = vmatprep.subr.bf16.mxu0 %v10333
    %10861 = vmatpush1.bf16.msra.mxu0 %v10332
    %10862 = vmatprep.subr.bf16.mxu0 0
    %10863 = vmatpush1.bf16.msra.mxu0 0
    %10864 = vmatprep.subr.bf16.mxu0 0
    %10865 = vmatpush1.bf16.msra.mxu0 0
    %10866 = vmatprep.subr.bf16.mxu0 0
    %10867 = vmatpush1.bf16.msra.mxu0 0
    %10868 = vmatprep.subr.bf16.mxu0 0
    %10869 = vmatpush1.bf16.msra.mxu0 0
    %10870 = vmatprep.subr.bf16.mxu0 0
    %10871 = vmatpush1.bf16.msra.mxu0 0
    %10872 = vmatprep.subr.bf16.mxu0 0
    %10873 = vmatpush1.bf16.msra.mxu0 0
    %10874 = vmatprep.subr.bf16.mxu0 0
    %10875 = vmatpush1.bf16.msra.mxu0 0
    %10876 = vmatprep.subr.bf16.mxu0 0
    %10877 = vmatpush1.bf16.msra.mxu0 0
    %10878 = vmatprep.subr.bf16.mxu0 0
    %10879 = vmatpush1.bf16.msra.mxu0 0
    %10880 = vmatprep.subr.bf16.mxu0 0
    %10881 = vmatpush1.bf16.msra.mxu0 0
    %10882 = vmatprep.subr.bf16.mxu0 0
    %10883 = vmatpush1.bf16.msra.mxu0 0
    %10884 = vmatprep.subr.bf16.mxu0 0
    %10885 = vmatpush1.bf16.msra.mxu0 0
    %10886 = vmatprep.mubr.bf16.mxu0 0
    %10887 = vmatmul.mubr.bf16.gmra.mrb[0].mxu0 %v10405
    %v10888 = vpop.f32.mrb[0].mxu0
    %v10889 = vadd.f32 %v10347, %v10888
    %v10890 = vpop.f32.mrb[0].mxu0
    %v10891 = vadd.f32 %v10347, %v10890
    %v10892 = vpop.f32.mrb[0].mxu0
    %v10893 = vadd.f32 %v10352, %v10892
    %v10894 = vpop.f32.mrb[0].mxu0
    %v10895 = vadd.f32 %v10352, %v10894
    %10896 = vmatprep.mubr.bf16.mxu0 0
    %10897 = vmatmul.mubr.bf16.gmra.mrb[0].mxu0 %v10408
    %v10898 = vpop.f32.mrb[0].mxu0
    %v10899 = vadd.f32 %v10357, %v10898
    %v10900 = vpop.f32.mrb[0].mxu0
    %v10901 = vadd.f32 %v10357, %v10900
    %v10902 = vpop.f32.mrb[0].mxu0
    %v10903 = vadd.f32 %v10362, %v10902
    %v10904 = vpop.f32.mrb[0].mxu0
    %v10905 = vadd.f32 %v10362, %v10904
    %10906 = vmatprep.mubr.bf16.mxu0 0
    %10907 = vmatmul.mubr.bf16.gmra.mrb[0].mxu0 %v10411
    %v10908 = vpop.f32.mrb[0].mxu0
    %v10909 = vadd.f32 %v10367, %v10908
    %v10910 = vpop.f32.mrb[0].mxu0
    %v10911 = vadd.f32 %v10367, %v10910
    %v10912 = vpop.f32.mrb[0].mxu0
    %v10913 = vadd.f32 %v10372, %v10912
    %v10914 = vpop.f32.mrb[0].mxu0
    %v10915 = vadd.f32 %v10372, %v10914
    %10916 = vmatprep.mubr.bf16.mxu0 0
    %10917 = vmatmul.mubr.bf16.gmra.mrb[0].mxu0 %v10414
    %v10918 = vpop.f32.mrb[0].mxu0
    %v10919 = vadd.f32 %v10377, %v10918
    %v10920 = vpop.f32.mrb[0].mxu0
    %v10921 = vadd.f32 %v10377, %v10920
    %v10922 = vpop.f32.mrb[0].mxu0
    %v10923 = vadd.f32 %v10382, %v10922
    %v10924 = vpop.f32.mrb[0].mxu0
    %v10925 = vadd.f32 %v10382, %v10924
    %10926 = vdwg.mxu0
    %10927 = vmatprep.subr.bf16.mxu0 %v10287
    %10928 = vmatpush1.bf16.msra.mxu0 %v10286
    %10929 = vmatprep.subr.bf16.mxu0 %v10303
    %10930 = vmatpush1.bf16.msra.mxu0 %v10302
    %10931 = vmatprep.subr.bf16.mxu0 %v10319
    %10932 = vmatpush1.bf16.msra.mxu0 %v10318
    %10933 = vmatprep.subr.bf16.mxu0 %v10335
    %10934 = vmatpush1.bf16.msra.mxu0 %v10334
    %10935 = vmatprep.subr.bf16.mxu0 0
    %10936 = vmatpush1.bf16.msra.mxu0 0
    %10937 = vmatprep.subr.bf16.mxu0 0
    %10938 = vmatpush1.bf16.msra.mxu0 0
    %10939 = vmatprep.subr.bf16.mxu0 0
    %10940 = vmatpush1.bf16.msra.mxu0 0
    %10941 = vmatprep.subr.bf16.mxu0 0
    %10942 = vmatpush1.bf16.msra.mxu0 0
    %10943 = vmatprep.subr.bf16.mxu0 0
    %10944 = vmatpush1.bf16.msra.mxu0 0
    %10945 = vmatprep.subr.bf16.mxu0 0
    %10946 = vmatpush1.bf16.msra.mxu0 0
    %10947 = vmatprep.subr.bf16.mxu0 0
    %10948 = vmatpush1.bf16.msra.mxu0 0
    %10949 = vmatprep.subr.bf16.mxu0 0
    %10950 = vmatpush1.bf16.msra.mxu0 0
    %10951 = vmatprep.subr.bf16.mxu0 0
    %10952 = vmatpush1.bf16.msra.mxu0 0
    %10953 = vmatprep.subr.bf16.mxu0 0
    %10954 = vmatpush1.bf16.msra.mxu0 0
    %10955 = vmatprep.subr.bf16.mxu0 0
    %10956 = vmatpush1.bf16.msra.mxu0 0
    %10957 = vmatprep.subr.bf16.mxu0 0
    %10958 = vmatpush1.bf16.msra.mxu0 0
    %10959 = vmatprep.mubr.bf16.mxu0 0
    %10960 = vmatmul.mubr.bf16.gmra.mrb[0].mxu0 %v10405
    %v10961 = vpop.f32.mrb[0].mxu0
    %v10962 = vadd.f32 %v10347, %v10961
    %v10963 = vpop.f32.mrb[0].mxu0
    %v10964 = vadd.f32 %v10347, %v10963
    %v10965 = vpop.f32.mrb[0].mxu0
    %v10966 = vadd.f32 %v10352, %v10965
    %v10967 = vpop.f32.mrb[0].mxu0
    %v10968 = vadd.f32 %v10352, %v10967
    %10969 = vmatprep.mubr.bf16.mxu0 0
    %10970 = vmatmul.mubr.bf16.gmra.mrb[0].mxu0 %v10408
    %v10971 = vpop.f32.mrb[0].mxu0
    %v10972 = vadd.f32 %v10357, %v10971
    %v10973 = vpop.f32.mrb[0].mxu0
    %v10974 = vadd.f32 %v10357, %v10973
    %v10975 = vpop.f32.mrb[0].mxu0
    %v10976 = vadd.f32 %v10362, %v10975
    %v10977 = vpop.f32.mrb[0].mxu0
    %v10978 = vadd.f32 %v10362, %v10977
    %10979 = vmatprep.mubr.bf16.mxu0 0
    %10980 = vmatmul.mubr.bf16.gmra.mrb[0].mxu0 %v10411
    %v10981 = vpop.f32.mrb[0].mxu0
    %v10982 = vadd.f32 %v10367, %v10981
    %v10983 = vpop.f32.mrb[0].mxu0
    %v10984 = vadd.f32 %v10367, %v10983
    %v10985 = vpop.f32.mrb[0].mxu0
    %v10986 = vadd.f32 %v10372, %v10985
    %v10987 = vpop.f32.mrb[0].mxu0
    %v10988 = vadd.f32 %v10372, %v10987
    %10989 = vmatprep.mubr.bf16.mxu0 0
    %10990 = vmatmul.mubr.bf16.gmra.mrb[0].mxu0 %v10414
    %v10991 = vpop.f32.mrb[0].mxu0
    %v10992 = vadd.f32 %v10377, %v10991
    %v10993 = vpop.f32.mrb[0].mxu0
    %v10994 = vadd.f32 %v10377, %v10993
    %v10995 = vpop.f32.mrb[0].mxu0
    %v10996 = vadd.f32 %v10382, %v10995
    %v10997 = vpop.f32.mrb[0].mxu0
    %v10998 = vadd.f32 %v10382, %v10997
    %10999 = vdwg.mxu0
    %v11000 = vmul.f32 %v10451, 0.01
    %v11001 = vmul.f32 %v10453, 0.01
    %v11002 = vmul.f32 %v10524, 0.01
    %v11003 = vmul.f32 %v10526, 0.01
    %v11004 = vmul.f32 %v10597, 0.01
    %v11005 = vmul.f32 %v10599, 0.01
    %v11006 = vmul.f32 %v10670, 0.01
    %v11007 = vmul.f32 %v10672, 0.01
    %v11008 = vmul.f32 %v10743, 0.01
    %v11009 = vmul.f32 %v10745, 0.01
    %v11010 = vmul.f32 %v10816, 0.01
    %v11011 = vmul.f32 %v10818, 0.01
    %v11012 = vmul.f32 %v10889, 0.01
    %v11013 = vmul.f32 %v10891, 0.01
    %v11014 = vmul.f32 %v10962, 0.01
    %v11015 = vmul.f32 %v10964, 0.01
    %v11016 = vmul.f32 %v10455, 0.01
    %v11017 = vmul.f32 %v10457, 0.01
    %v11018 = vmul.f32 %v10528, 0.01
    %v11019 = vmul.f32 %v10530, 0.01
    %v11020 = vmul.f32 %v10601, 0.01
    %v11021 = vmul.f32 %v10603, 0.01
    %v11022 = vmul.f32 %v10674, 0.01
    %v11023 = vmul.f32 %v10676, 0.01
    %v11024 = vmul.f32 %v10747, 0.01
    %v11025 = vmul.f32 %v10749, 0.01
    %v11026 = vmul.f32 %v10820, 0.01
    %v11027 = vmul.f32 %v10822, 0.01
    %v11028 = vmul.f32 %v10893, 0.01
    %v11029 = vmul.f32 %v10895, 0.01
    %v11030 = vmul.f32 %v10966, 0.01
    %v11031 = vmul.f32 %v10968, 0.01
    %v11032 = vmul.f32 %v10461, 0.01
    %v11033 = vmul.f32 %v10463, 0.01
    %v11034 = vmul.f32 %v10534, 0.01
    %v11035 = vmul.f32 %v10536, 0.01
    %v11036 = vmul.f32 %v10607, 0.01
    %v11037 = vmul.f32 %v10609, 0.01
    %v11038 = vmul.f32 %v10680, 0.01
    %v11039 = vmul.f32 %v10682, 0.01
    %v11040 = vmul.f32 %v10753, 0.01
    %v11041 = vmul.f32 %v10755, 0.01
    %v11042 = vmul.f32 %v10826, 0.01
    %v11043 = vmul.f32 %v10828, 0.01
    %v11044 = vmul.f32 %v10899, 0.01
    %v11045 = vmul.f32 %v10901, 0.01
    %v11046 = vmul.f32 %v10972, 0.01
    %v11047 = vmul.f32 %v10974, 0.01
    %v11048 = vmul.f32 %v10465, 0.01
    %v11049 = vmul.f32 %v10467, 0.01
    %v11050 = vmul.f32 %v10538, 0.01
    %v11051 = vmul.f32 %v10540, 0.01
    %v11052 = vmul.f32 %v10611, 0.01
    %v11053 = vmul.f32 %v10613, 0.01
    %v11054 = vmul.f32 %v10684, 0.01
    %v11055 = vmul.f32 %v10686, 0.01
    %v11056 = vmul.f32 %v10757, 0.01
    %v11057 = vmul.f32 %v10759, 0.01
    %v11058 = vmul.f32 %v10830, 0.01
    %v11059 = vmul.f32 %v10832, 0.01
    %v11060 = vmul.f32 %v10903, 0.01
    %v11061 = vmul.f32 %v10905, 0.01
    %v11062 = vmul.f32 %v10976, 0.01
    %v11063 = vmul.f32 %v10978, 0.01
    %v11064 = vmul.f32 %v10471, 0.01
    %v11065 = vmul.f32 %v10473, 0.01
    %v11066 = vmul.f32 %v10544, 0.01
    %v11067 = vmul.f32 %v10546, 0.01
    %v11068 = vmul.f32 %v10617, 0.01
    %v11069 = vmul.f32 %v10619, 0.01
    %v11070 = vmul.f32 %v10690, 0.01
    %v11071 = vmul.f32 %v10692, 0.01
    %v11072 = vmul.f32 %v10763, 0.01
    %v11073 = vmul.f32 %v10765, 0.01
    %v11074 = vmul.f32 %v10836, 0.01
    %v11075 = vmul.f32 %v10838, 0.01
    %v11076 = vmul.f32 %v10909, 0.01
    %v11077 = vmul.f32 %v10911, 0.01
    %v11078 = vmul.f32 %v10982, 0.01
    %v11079 = vmul.f32 %v10984, 0.01
    %v11080 = vmul.f32 %v10475, 0.01
    %v11081 = vmul.f32 %v10477, 0.01
    %v11082 = vmul.f32 %v10548, 0.01
    %v11083 = vmul.f32 %v10550, 0.01
    %v11084 = vmul.f32 %v10621, 0.01
    %v11085 = vmul.f32 %v10623, 0.01
    %v11086 = vmul.f32 %v10694, 0.01
    %v11087 = vmul.f32 %v10696, 0.01
    %v11088 = vmul.f32 %v10767, 0.01
    %v11089 = vmul.f32 %v10769, 0.01
    %v11090 = vmul.f32 %v10840, 0.01
    %v11091 = vmul.f32 %v10842, 0.01
    %v11092 = vmul.f32 %v10913, 0.01
    %v11093 = vmul.f32 %v10915, 0.01
    %v11094 = vmul.f32 %v10986, 0.01
    %v11095 = vmul.f32 %v10988, 0.01
    %v11096 = vmul.f32 %v10481, 0.01
    %v11097 = vmul.f32 %v10483, 0.01
    %v11098 = vmul.f32 %v10554, 0.01
    %v11099 = vmul.f32 %v10556, 0.01
    %v11100 = vmul.f32 %v10627, 0.01
    %v11101 = vmul.f32 %v10629, 0.01
    %v11102 = vmul.f32 %v10700, 0.01
    %v11103 = vmul.f32 %v10702, 0.01
    %v11104 = vmul.f32 %v10773, 0.01
    %v11105 = vmul.f32 %v10775, 0.01
    %v11106 = vmul.f32 %v10846, 0.01
    %v11107 = vmul.f32 %v10848, 0.01
    %v11108 = vmul.f32 %v10919, 0.01
    %v11109 = vmul.f32 %v10921, 0.01
    %v11110 = vmul.f32 %v10992, 0.01
    %v11111 = vmul.f32 %v10994, 0.01
    %v11112 = vmul.f32 %v10485, 0.01
    %v11113 = vmul.f32 %v10487, 0.01
    %v11114 = vmul.f32 %v10558, 0.01
    %v11115 = vmul.f32 %v10560, 0.01
    %v11116 = vmul.f32 %v10631, 0.01
    %v11117 = vmul.f32 %v10633, 0.01
    %v11118 = vmul.f32 %v10704, 0.01
    %v11119 = vmul.f32 %v10706, 0.01
    %v11120 = vmul.f32 %v10777, 0.01
    %v11121 = vmul.f32 %v10779, 0.01
    %v11122 = vmul.f32 %v10850, 0.01
    %v11123 = vmul.f32 %v10852, 0.01
    %v11124 = vmul.f32 %v10923, 0.01
    %v11125 = vmul.f32 %v10925, 0.01
    %v11126 = vmul.f32 %v10996, 0.01
    %v11127 = vmul.f32 %v10998, 0.01
    %v11128 = vmax.f32 %v10451, %v11000
    %v11129 = vmax.f32 %v10453, %v11001
    %v11130 = vmax.f32 %v10524, %v11002
    %v11131 = vmax.f32 %v10526, %v11003
    %v11132 = vmax.f32 %v10597, %v11004
    %v11133 = vmax.f32 %v10599, %v11005
    %v11134 = vmax.f32 %v10670, %v11006
    %v11135 = vmax.f32 %v10672, %v11007
    %v11136 = vmax.f32 %v10743, %v11008
    %v11137 = vmax.f32 %v10745, %v11009
    %v11138 = vmax.f32 %v10816, %v11010
    %v11139 = vmax.f32 %v10818, %v11011
    %v11140 = vmax.f32 %v10889, %v11012
    %v11141 = vmax.f32 %v10891, %v11013
    %v11142 = vmax.f32 %v10962, %v11014
    %v11143 = vmax.f32 %v10964, %v11015
    %v11144 = vmax.f32 %v10455, %v11016
    %v11145 = vmax.f32 %v10457, %v11017
    %v11146 = vmax.f32 %v10528, %v11018
    %v11147 = vmax.f32 %v10530, %v11019
    %v11148 = vmax.f32 %v10601, %v11020
    %v11149 = vmax.f32 %v10603, %v11021
    %v11150 = vmax.f32 %v10674, %v11022
    %v11151 = vmax.f32 %v10676, %v11023
    %v11152 = vmax.f32 %v10747, %v11024
    %v11153 = vmax.f32 %v10749, %v11025
    %v11154 = vmax.f32 %v10820, %v11026
    %v11155 = vmax.f32 %v10822, %v11027
    %v11156 = vmax.f32 %v10893, %v11028
    %v11157 = vmax.f32 %v10895, %v11029
    %v11158 = vmax.f32 %v10966, %v11030
    %v11159 = vmax.f32 %v10968, %v11031
    %v11160 = vmax.f32 %v10461, %v11032
    %v11161 = vmax.f32 %v10463, %v11033
    %v11162 = vmax.f32 %v10534, %v11034
    %v11163 = vmax.f32 %v10536, %v11035
    %v11164 = vmax.f32 %v10607, %v11036
    %v11165 = vmax.f32 %v10609, %v11037
    %v11166 = vmax.f32 %v10680, %v11038
    %v11167 = vmax.f32 %v10682, %v11039
    %v11168 = vmax.f32 %v10753, %v11040
    %v11169 = vmax.f32 %v10755, %v11041
    %v11170 = vmax.f32 %v10826, %v11042
    %v11171 = vmax.f32 %v10828, %v11043
    %v11172 = vmax.f32 %v10899, %v11044
    %v11173 = vmax.f32 %v10901, %v11045
    %v11174 = vmax.f32 %v10972, %v11046
    %v11175 = vmax.f32 %v10974, %v11047
    %v11176 = vmax.f32 %v10465, %v11048
    %v11177 = vmax.f32 %v10467, %v11049
    %v11178 = vmax.f32 %v10538, %v11050
    %v11179 = vmax.f32 %v10540, %v11051
    %v11180 = vmax.f32 %v10611, %v11052
    %v11181 = vmax.f32 %v10613, %v11053
    %v11182 = vmax.f32 %v10684, %v11054
    %v11183 = vmax.f32 %v10686, %v11055
    %v11184 = vmax.f32 %v10757, %v11056
    %v11185 = vmax.f32 %v10759, %v11057
    %v11186 = vmax.f32 %v10830, %v11058
    %v11187 = vmax.f32 %v10832, %v11059
    %v11188 = vmax.f32 %v10903, %v11060
    %v11189 = vmax.f32 %v10905, %v11061
    %v11190 = vmax.f32 %v10976, %v11062
    %v11191 = vmax.f32 %v10978, %v11063
    %v11192 = vmax.f32 %v10471, %v11064
    %v11193 = vmax.f32 %v10473, %v11065
    %v11194 = vmax.f32 %v10544, %v11066
    %v11195 = vmax.f32 %v10546, %v11067
    %v11196 = vmax.f32 %v10617, %v11068
    %v11197 = vmax.f32 %v10619, %v11069
    %v11198 = vmax.f32 %v10690, %v11070
    %v11199 = vmax.f32 %v10692, %v11071
    %v11200 = vmax.f32 %v10763, %v11072
    %v11201 = vmax.f32 %v10765, %v11073
    %v11202 = vmax.f32 %v10836, %v11074
    %v11203 = vmax.f32 %v10838, %v11075
    %v11204 = vmax.f32 %v10909, %v11076
    %v11205 = vmax.f32 %v10911, %v11077
    %v11206 = vmax.f32 %v10982, %v11078
    %v11207 = vmax.f32 %v10984, %v11079
    %v11208 = vmax.f32 %v10475, %v11080
    %v11209 = vmax.f32 %v10477, %v11081
    %v11210 = vmax.f32 %v10548, %v11082
    %v11211 = vmax.f32 %v10550, %v11083
    %v11212 = vmax.f32 %v10621, %v11084
    %v11213 = vmax.f32 %v10623, %v11085
    %v11214 = vmax.f32 %v10694, %v11086
    %v11215 = vmax.f32 %v10696, %v11087
    %v11216 = vmax.f32 %v10767, %v11088
    %v11217 = vmax.f32 %v10769, %v11089
    %v11218 = vmax.f32 %v10840, %v11090
    %v11219 = vmax.f32 %v10842, %v11091
    %v11220 = vmax.f32 %v10913, %v11092
    %v11221 = vmax.f32 %v10915, %v11093
    %v11222 = vmax.f32 %v10986, %v11094
    %v11223 = vmax.f32 %v10988, %v11095
    %v11224 = vmax.f32 %v10481, %v11096
    %v11225 = vmax.f32 %v10483, %v11097
    %v11226 = vmax.f32 %v10554, %v11098
    %v11227 = vmax.f32 %v10556, %v11099
    %v11228 = vmax.f32 %v10627, %v11100
    %v11229 = vmax.f32 %v10629, %v11101
    %v11230 = vmax.f32 %v10700, %v11102
    %v11231 = vmax.f32 %v10702, %v11103
    %v11232 = vmax.f32 %v10773, %v11104
    %v11233 = vmax.f32 %v10775, %v11105
    %v11234 = vmax.f32 %v10846, %v11106
    %v11235 = vmax.f32 %v10848, %v11107
    %v11236 = vmax.f32 %v10919, %v11108
    %v11237 = vmax.f32 %v10921, %v11109
    %v11238 = vmax.f32 %v10992, %v11110
    %v11239 = vmax.f32 %v10994, %v11111
    %v11240 = vmax.f32 %v10485, %v11112
    %v11241 = vmax.f32 %v10487, %v11113
    %v11242 = vmax.f32 %v10558, %v11114
    %v11243 = vmax.f32 %v10560, %v11115
    %v11244 = vmax.f32 %v10631, %v11116
    %v11245 = vmax.f32 %v10633, %v11117
    %v11246 = vmax.f32 %v10704, %v11118
    %v11247 = vmax.f32 %v10706, %v11119
    %v11248 = vmax.f32 %v10777, %v11120
    %v11249 = vmax.f32 %v10779, %v11121
    %v11250 = vmax.f32 %v10850, %v11122
    %v11251 = vmax.f32 %v10852, %v11123
    %v11252 = vmax.f32 %v10923, %v11124
    %v11253 = vmax.f32 %v10925, %v11125
    %v11254 = vmax.f32 %v10996, %v11126
    %v11255 = vmax.f32 %v10998, %v11127
    %v11256 = vld [vmem:[%s11] sm:$0x3]
    %v11257 = vpack.c.bf16 %v11144, %v11128
    %v11258 = vpack.c.bf16 %v11145, %v11129
    %v11259 = vpack.c.bf16 %v11146, %v11130
    %v11260 = vpack.c.bf16 %v11147, %v11131
    %v11261 = vpack.c.bf16 %v11148, %v11132
    %v11262 = vpack.c.bf16 %v11149, %v11133
    %v11263 = vpack.c.bf16 %v11150, %v11134
    %v11264 = vpack.c.bf16 %v11151, %v11135
    %v11265 = vpack.c.bf16 %v11152, %v11136
    %v11266 = vpack.c.bf16 %v11153, %v11137
    %v11267 = vpack.c.bf16 %v11154, %v11138
    %v11268 = vpack.c.bf16 %v11155, %v11139
    %v11269 = vpack.c.bf16 %v11156, %v11140
    %v11270 = vpack.c.bf16 %v11157, %v11141
    %v11271 = vpack.c.bf16 %v11158, %v11142
    %v11272 = vpack.c.bf16 %v11159, %v11143
    %v11273 = vpack.c.bf16 %v11176, %v11160
    %v11274 = vpack.c.bf16 %v11177, %v11161
    %v11275 = vpack.c.bf16 %v11178, %v11162
    %v11276 = vpack.c.bf16 %v11179, %v11163
    %v11277 = vpack.c.bf16 %v11180, %v11164
    %v11278 = vpack.c.bf16 %v11181, %v11165
    %v11279 = vpack.c.bf16 %v11182, %v11166
    %v11280 = vpack.c.bf16 %v11183, %v11167
    %v11281 = vpack.c.bf16 %v11184, %v11168
    %v11282 = vpack.c.bf16 %v11185, %v11169
    %v11283 = vpack.c.bf16 %v11186, %v11170
    %v11284 = vpack.c.bf16 %v11187, %v11171
    %v11285 = vpack.c.bf16 %v11188, %v11172
    %v11286 = vpack.c.bf16 %v11189, %v11173
    %v11287 = vpack.c.bf16 %v11190, %v11174
    %v11288 = vpack.c.bf16 %v11191, %v11175
    %v11289 = vpack.c.bf16 %v11208, %v11192
    %v11290 = vpack.c.bf16 %v11209, %v11193
    %v11291 = vpack.c.bf16 %v11210, %v11194
    %v11292 = vpack.c.bf16 %v11211, %v11195
    %v11293 = vpack.c.bf16 %v11212, %v11196
    %v11294 = vpack.c.bf16 %v11213, %v11197
    %v11295 = vpack.c.bf16 %v11214, %v11198
    %v11296 = vpack.c.bf16 %v11215, %v11199
    %v11297 = vpack.c.bf16 %v11216, %v11200
    %v11298 = vpack.c.bf16 %v11217, %v11201
    %v11299 = vpack.c.bf16 %v11218, %v11202
    %v11300 = vpack.c.bf16 %v11219, %v11203
    %v11301 = vpack.c.bf16 %v11220, %v11204
    %v11302 = vpack.c.bf16 %v11221, %v11205
    %v11303 = vpack.c.bf16 %v11222, %v11206
    %v11304 = vpack.c.bf16 %v11223, %v11207
    %v11305 = vpack.c.bf16 %v11240, %v11224
    %v11306 = vpack.c.bf16 %v11241, %v11225
    %v11307 = vpack.c.bf16 %v11242, %v11226
    %v11308 = vpack.c.bf16 %v11243, %v11227
    %v11309 = vpack.c.bf16 %v11244, %v11228
    %v11310 = vpack.c.bf16 %v11245, %v11229
    %v11311 = vpack.c.bf16 %v11246, %v11230
    %v11312 = vpack.c.bf16 %v11247, %v11231
    %v11313 = vpack.c.bf16 %v11248, %v11232
    %v11314 = vpack.c.bf16 %v11249, %v11233
    %v11315 = vpack.c.bf16 %v11250, %v11234
    %v11316 = vpack.c.bf16 %v11251, %v11235
    %v11317 = vpack.c.bf16 %v11252, %v11236
    %v11318 = vpack.c.bf16 %v11253, %v11237
    %v11319 = vpack.c.bf16 %v11254, %v11238
    %v11320 = vpack.c.bf16 %v11255, %v11239
    %v11321 = vld [vmem:[%s12] sm:$0x7]
    %11323 = vset.pattern.permute.xlu0 0
    %11324 = vperm.xlu0 %11323, %v11321
    %v11325 = vpop.permute.xlu0 %11324
    %v11328 = vsel %vm8419, %v11256, 0
    %11330 = vmatprep.subr.bf16.mxu0 %v11258
    %11331 = vmatpush1.bf16.msra.mxu0 %v11257
    %11332 = vmatprep.subr.bf16.mxu0 %v11274
    %11333 = vmatpush1.bf16.msra.mxu0 %v11273
    %11334 = vmatprep.subr.bf16.mxu0 %v11290
    %11335 = vmatpush1.bf16.msra.mxu0 %v11289
    %11336 = vmatprep.subr.bf16.mxu0 %v11306
    %11337 = vmatpush1.bf16.msra.mxu0 %v11305
    %11338 = vmatprep.subr.bf16.mxu0 0
    %11339 = vmatpush1.bf16.msra.mxu0 0
    %11340 = vmatprep.subr.bf16.mxu0 0
    %11341 = vmatpush1.bf16.msra.mxu0 0
    %11342 = vmatprep.subr.bf16.mxu0 0
    %11343 = vmatpush1.bf16.msra.mxu0 0
    %11344 = vmatprep.subr.bf16.mxu0 0
    %11345 = vmatpush1.bf16.msra.mxu0 0
    %11346 = vmatprep.subr.bf16.mxu0 0
    %11347 = vmatpush1.bf16.msra.mxu0 0
    %11348 = vmatprep.subr.bf16.mxu0 0
    %11349 = vmatpush1.bf16.msra.mxu0 0
    %11350 = vmatprep.subr.bf16.mxu0 0
    %11351 = vmatpush1.bf16.msra.mxu0 0
    %11352 = vmatprep.subr.bf16.mxu0 0
    %11353 = vmatpush1.bf16.msra.mxu0 0
    %11354 = vmatprep.subr.bf16.mxu0 0
    %11355 = vmatpush1.bf16.msra.mxu0 0
    %11356 = vmatprep.subr.bf16.mxu0 0
    %11357 = vmatpush1.bf16.msra.mxu0 0
    %11358 = vmatprep.subr.bf16.mxu0 0
    %11359 = vmatpush1.bf16.msra.mxu0 0
    %11360 = vmatprep.subr.bf16.mxu0 0
    %11361 = vmatpush1.bf16.msra.mxu0 0
    %11362 = vmatprep.mubr.bf16.mxu0 0
    %11363 = vmatmul.mubr.bf16.gmra.mrb[0].mxu0 %v11328
    %v11364 = vpop.f32.mrb[0].mxu0
    %v11365 = vadd.f32 %v11325, %v11364
    %v11366 = vpop.f32.mrb[0].mxu0
    %v11367 = vadd.f32 %v11325, %v11366
    %v11368 = vpop.f32.mrb[0].mxu0
    %v11369 = vpop.f32.mrb[0].mxu0
    %11370 = vdwg.mxu0
    %11371 = vmatprep.subr.bf16.mxu0 %v11260
    %11372 = vmatpush1.bf16.msra.mxu0 %v11259
    %11373 = vmatprep.subr.bf16.mxu0 %v11276
    %11374 = vmatpush1.bf16.msra.mxu0 %v11275
    %11375 = vmatprep.subr.bf16.mxu0 %v11292
    %11376 = vmatpush1.bf16.msra.mxu0 %v11291
    %11377 = vmatprep.subr.bf16.mxu0 %v11308
    %11378 = vmatpush1.bf16.msra.mxu0 %v11307
    %11379 = vmatprep.subr.bf16.mxu0 0
    %11380 = vmatpush1.bf16.msra.mxu0 0
    %11381 = vmatprep.subr.bf16.mxu0 0
    %11382 = vmatpush1.bf16.msra.mxu0 0
    %11383 = vmatprep.subr.bf16.mxu0 0
    %11384 = vmatpush1.bf16.msra.mxu0 0
    %11385 = vmatprep.subr.bf16.mxu0 0
    %11386 = vmatpush1.bf16.msra.mxu0 0
    %11387 = vmatprep.subr.bf16.mxu0 0
    %11388 = vmatpush1.bf16.msra.mxu0 0
    %11389 = vmatprep.subr.bf16.mxu0 0
    %11390 = vmatpush1.bf16.msra.mxu0 0
    %11391 = vmatprep.subr.bf16.mxu0 0
    %11392 = vmatpush1.bf16.msra.mxu0 0
    %11393 = vmatprep.subr.bf16.mxu0 0
    %11394 = vmatpush1.bf16.msra.mxu0 0
    %11395 = vmatprep.subr.bf16.mxu0 0
    %11396 = vmatpush1.bf16.msra.mxu0 0
    %11397 = vmatprep.subr.bf16.mxu0 0
    %11398 = vmatpush1.bf16.msra.mxu0 0
    %11399 = vmatprep.subr.bf16.mxu0 0
    %11400 = vmatpush1.bf16.msra.mxu0 0
    %11401 = vmatprep.subr.bf16.mxu0 0
    %11402 = vmatpush1.bf16.msra.mxu0 0
    %11403 = vmatprep.mubr.bf16.mxu0 0
    %11404 = vmatmul.mubr.bf16.gmra.mrb[0].mxu0 %v11328
    %v11405 = vpop.f32.mrb[0].mxu0
    %v11406 = vadd.f32 %v11325, %v11405
    %v11407 = vpop.f32.mrb[0].mxu0
    %v11408 = vadd.f32 %v11325, %v11407
    %v11409 = vpop.f32.mrb[0].mxu0
    %v11410 = vpop.f32.mrb[0].mxu0
    %11411 = vdwg.mxu0
    %11412 = vmatprep.subr.bf16.mxu0 %v11262
    %11413 = vmatpush1.bf16.msra.mxu0 %v11261
    %11414 = vmatprep.subr.bf16.mxu0 %v11278
    %11415 = vmatpush1.bf16.msra.mxu0 %v11277
    %11416 = vmatprep.subr.bf16.mxu0 %v11294
    %11417 = vmatpush1.bf16.msra.mxu0 %v11293
    %11418 = vmatprep.subr.bf16.mxu0 %v11310
    %11419 = vmatpush1.bf16.msra.mxu0 %v11309
    %11420 = vmatprep.subr.bf16.mxu0 0
    %11421 = vmatpush1.bf16.msra.mxu0 0
    %11422 = vmatprep.subr.bf16.mxu0 0
    %11423 = vmatpush1.bf16.msra.mxu0 0
    %11424 = vmatprep.subr.bf16.mxu0 0
    %11425 = vmatpush1.bf16.msra.mxu0 0
    %11426 = vmatprep.subr.bf16.mxu0 0
    %11427 = vmatpush1.bf16.msra.mxu0 0
    %11428 = vmatprep.subr.bf16.mxu0 0
    %11429 = vmatpush1.bf16.msra.mxu0 0
    %11430 = vmatprep.subr.bf16.mxu0 0
    %11431 = vmatpush1.bf16.msra.mxu0 0
    %11432 = vmatprep.subr.bf16.mxu0 0
    %11433 = vmatpush1.bf16.msra.mxu0 0
    %11434 = vmatprep.subr.bf16.mxu0 0
    %11435 = vmatpush1.bf16.msra.mxu0 0
    %11436 = vmatprep.subr.bf16.mxu0 0
    %11437 = vmatpush1.bf16.msra.mxu0 0
    %11438 = vmatprep.subr.bf16.mxu0 0
    %11439 = vmatpush1.bf16.msra.mxu0 0
    %11440 = vmatprep.subr.bf16.mxu0 0
    %11441 = vmatpush1.bf16.msra.mxu0 0
    %11442 = vmatprep.subr.bf16.mxu0 0
    %11443 = vmatpush1.bf16.msra.mxu0 0
    %11444 = vmatprep.mubr.bf16.mxu0 0
    %11445 = vmatmul.mubr.bf16.gmra.mrb[0].mxu0 %v11328
    %v11446 = vpop.f32.mrb[0].mxu0
    %v11447 = vadd.f32 %v11325, %v11446
    %v11448 = vpop.f32.mrb[0].mxu0
    %v11449 = vadd.f32 %v11325, %v11448
    %v11450 = vpop.f32.mrb[0].mxu0
    %v11451 = vpop.f32.mrb[0].mxu0
    %11452 = vdwg.mxu0
    %11453 = vmatprep.subr.bf16.mxu0 %v11264
    %11454 = vmatpush1.bf16.msra.mxu0 %v11263
    %11455 = vmatprep.subr.bf16.mxu0 %v11280
    %11456 = vmatpush1.bf16.msra.mxu0 %v11279
    %11457 = vmatprep.subr.bf16.mxu0 %v11296
    %11458 = vmatpush1.bf16.msra.mxu0 %v11295
    %11459 = vmatprep.subr.bf16.mxu0 %v11312
    %11460 = vmatpush1.bf16.msra.mxu0 %v11311
    %11461 = vmatprep.subr.bf16.mxu0 0
    %11462 = vmatpush1.bf16.msra.mxu0 0
    %11463 = vmatprep.subr.bf16.mxu0 0
    %11464 = vmatpush1.bf16.msra.mxu0 0
    %11465 = vmatprep.subr.bf16.mxu0 0
    %11466 = vmatpush1.bf16.msra.mxu0 0
    %11467 = vmatprep.subr.bf16.mxu0 0
    %11468 = vmatpush1.bf16.msra.mxu0 0
    %11469 = vmatprep.subr.bf16.mxu0 0
    %11470 = vmatpush1.bf16.msra.mxu0 0
    %11471 = vmatprep.subr.bf16.mxu0 0
    %11472 = vmatpush1.bf16.msra.mxu0 0
    %11473 = vmatprep.subr.bf16.mxu0 0
    %11474 = vmatpush1.bf16.msra.mxu0 0
    %11475 = vmatprep.subr.bf16.mxu0 0
    %11476 = vmatpush1.bf16.msra.mxu0 0
    %11477 = vmatprep.subr.bf16.mxu0 0
    %11478 = vmatpush1.bf16.msra.mxu0 0
    %11479 = vmatprep.subr.bf16.mxu0 0
    %11480 = vmatpush1.bf16.msra.mxu0 0
    %11481 = vmatprep.subr.bf16.mxu0 0
    %11482 = vmatpush1.bf16.msra.mxu0 0
    %11483 = vmatprep.subr.bf16.mxu0 0
    %11484 = vmatpush1.bf16.msra.mxu0 0
    %11485 = vmatprep.mubr.bf16.mxu0 0
    %11486 = vmatmul.mubr.bf16.gmra.mrb[0].mxu0 %v11328
    %v11487 = vpop.f32.mrb[0].mxu0
    %v11488 = vadd.f32 %v11325, %v11487
    %v11489 = vpop.f32.mrb[0].mxu0
    %v11490 = vadd.f32 %v11325, %v11489
    %v11491 = vpop.f32.mrb[0].mxu0
    %v11492 = vpop.f32.mrb[0].mxu0
    %11493 = vdwg.mxu0
    %11494 = vmatprep.subr.bf16.mxu0 %v11266
    %11495 = vmatpush1.bf16.msra.mxu0 %v11265
    %11496 = vmatprep.subr.bf16.mxu0 %v11282
    %11497 = vmatpush1.bf16.msra.mxu0 %v11281
    %11498 = vmatprep.subr.bf16.mxu0 %v11298
    %11499 = vmatpush1.bf16.msra.mxu0 %v11297
    %11500 = vmatprep.subr.bf16.mxu0 %v11314
    %11501 = vmatpush1.bf16.msra.mxu0 %v11313
    %11502 = vmatprep.subr.bf16.mxu0 0
    %11503 = vmatpush1.bf16.msra.mxu0 0
    %11504 = vmatprep.subr.bf16.mxu0 0
    %11505 = vmatpush1.bf16.msra.mxu0 0
    %11506 = vmatprep.subr.bf16.mxu0 0
    %11507 = vmatpush1.bf16.msra.mxu0 0
    %11508 = vmatprep.subr.bf16.mxu0 0
    %11509 = vmatpush1.bf16.msra.mxu0 0
    %11510 = vmatprep.subr.bf16.mxu0 0
    %11511 = vmatpush1.bf16.msra.mxu0 0
    %11512 = vmatprep.subr.bf16.mxu0 0
    %11513 = vmatpush1.bf16.msra.mxu0 0
    %11514 = vmatprep.subr.bf16.mxu0 0
    %11515 = vmatpush1.bf16.msra.mxu0 0
    %11516 = vmatprep.subr.bf16.mxu0 0
    %11517 = vmatpush1.bf16.msra.mxu0 0
    %11518 = vmatprep.subr.bf16.mxu0 0
    %11519 = vmatpush1.bf16.msra.mxu0 0
    %11520 = vmatprep.subr.bf16.mxu0 0
    %11521 = vmatpush1.bf16.msra.mxu0 0
    %11522 = vmatprep.subr.bf16.mxu0 0
    %11523 = vmatpush1.bf16.msra.mxu0 0
    %11524 = vmatprep.subr.bf16.mxu0 0
    %11525 = vmatpush1.bf16.msra.mxu0 0
    %11526 = vmatprep.mubr.bf16.mxu0 0
    %11527 = vmatmul.mubr.bf16.gmra.mrb[0].mxu0 %v11328
    %v11528 = vpop.f32.mrb[0].mxu0
    %v11529 = vadd.f32 %v11325, %v11528
    %v11530 = vpop.f32.mrb[0].mxu0
    %v11531 = vadd.f32 %v11325, %v11530
    %v11532 = vpop.f32.mrb[0].mxu0
    %v11533 = vpop.f32.mrb[0].mxu0
    %11534 = vdwg.mxu0
    %11535 = vmatprep.subr.bf16.mxu0 %v11268
    %11536 = vmatpush1.bf16.msra.mxu0 %v11267
    %11537 = vmatprep.subr.bf16.mxu0 %v11284
    %11538 = vmatpush1.bf16.msra.mxu0 %v11283
    %11539 = vmatprep.subr.bf16.mxu0 %v11300
    %11540 = vmatpush1.bf16.msra.mxu0 %v11299
    %11541 = vmatprep.subr.bf16.mxu0 %v11316
    %11542 = vmatpush1.bf16.msra.mxu0 %v11315
    %11543 = vmatprep.subr.bf16.mxu0 0
    %11544 = vmatpush1.bf16.msra.mxu0 0
    %11545 = vmatprep.subr.bf16.mxu0 0
    %11546 = vmatpush1.bf16.msra.mxu0 0
    %11547 = vmatprep.subr.bf16.mxu0 0
    %11548 = vmatpush1.bf16.msra.mxu0 0
    %11549 = vmatprep.subr.bf16.mxu0 0
    %11550 = vmatpush1.bf16.msra.mxu0 0
    %11551 = vmatprep.subr.bf16.mxu0 0
    %11552 = vmatpush1.bf16.msra.mxu0 0
    %11553 = vmatprep.subr.bf16.mxu0 0
    %11554 = vmatpush1.bf16.msra.mxu0 0
    %11555 = vmatprep.subr.bf16.mxu0 0
    %11556 = vmatpush1.bf16.msra.mxu0 0
    %11557 = vmatprep.subr.bf16.mxu0 0
    %11558 = vmatpush1.bf16.msra.mxu0 0
    %11559 = vmatprep.subr.bf16.mxu0 0
    %11560 = vmatpush1.bf16.msra.mxu0 0
    %11561 = vmatprep.subr.bf16.mxu0 0
    %11562 = vmatpush1.bf16.msra.mxu0 0
    %11563 = vmatprep.subr.bf16.mxu0 0
    %11564 = vmatpush1.bf16.msra.mxu0 0
    %11565 = vmatprep.subr.bf16.mxu0 0
    %11566 = vmatpush1.bf16.msra.mxu0 0
    %11567 = vmatprep.mubr.bf16.mxu0 0
    %11568 = vmatmul.mubr.bf16.gmra.mrb[0].mxu0 %v11328
    %v11569 = vpop.f32.mrb[0].mxu0
    %v11570 = vadd.f32 %v11325, %v11569
    %v11571 = vpop.f32.mrb[0].mxu0
    %v11572 = vadd.f32 %v11325, %v11571
    %v11573 = vpop.f32.mrb[0].mxu0
    %v11574 = vpop.f32.mrb[0].mxu0
    %11575 = vdwg.mxu0
    %11576 = vmatprep.subr.bf16.mxu0 %v11270
    %11577 = vmatpush1.bf16.msra.mxu0 %v11269
    %11578 = vmatprep.subr.bf16.mxu0 %v11286
    %11579 = vmatpush1.bf16.msra.mxu0 %v11285
    %11580 = vmatprep.subr.bf16.mxu0 %v11302
    %11581 = vmatpush1.bf16.msra.mxu0 %v11301
    %11582 = vmatprep.subr.bf16.mxu0 %v11318
    %11583 = vmatpush1.bf16.msra.mxu0 %v11317
    %11584 = vmatprep.subr.bf16.mxu0 0
    %11585 = vmatpush1.bf16.msra.mxu0 0
    %11586 = vmatprep.subr.bf16.mxu0 0
    %11587 = vmatpush1.bf16.msra.mxu0 0
    %11588 = vmatprep.subr.bf16.mxu0 0
    %11589 = vmatpush1.bf16.msra.mxu0 0
    %11590 = vmatprep.subr.bf16.mxu0 0
    %11591 = vmatpush1.bf16.msra.mxu0 0
    %11592 = vmatprep.subr.bf16.mxu0 0
    %11593 = vmatpush1.bf16.msra.mxu0 0
    %11594 = vmatprep.subr.bf16.mxu0 0
    %11595 = vmatpush1.bf16.msra.mxu0 0
    %11596 = vmatprep.subr.bf16.mxu0 0
    %11597 = vmatpush1.bf16.msra.mxu0 0
    %11598 = vmatprep.subr.bf16.mxu0 0
    %11599 = vmatpush1.bf16.msra.mxu0 0
    %11600 = vmatprep.subr.bf16.mxu0 0
    %11601 = vmatpush1.bf16.msra.mxu0 0
    %11602 = vmatprep.subr.bf16.mxu0 0
    %11603 = vmatpush1.bf16.msra.mxu0 0
    %11604 = vmatprep.subr.bf16.mxu0 0
    %11605 = vmatpush1.bf16.msra.mxu0 0
    %11606 = vmatprep.subr.bf16.mxu0 0
    %11607 = vmatpush1.bf16.msra.mxu0 0
    %11608 = vmatprep.mubr.bf16.mxu0 0
    %11609 = vmatmul.mubr.bf16.gmra.mrb[0].mxu0 %v11328
    %v11610 = vpop.f32.mrb[0].mxu0
    %v11611 = vadd.f32 %v11325, %v11610
    %v11612 = vpop.f32.mrb[0].mxu0
    %v11613 = vadd.f32 %v11325, %v11612
    %v11614 = vpop.f32.mrb[0].mxu0
    %v11615 = vpop.f32.mrb[0].mxu0
    %11616 = vdwg.mxu0
    %11617 = vmatprep.subr.bf16.mxu0 %v11272
    %11618 = vmatpush1.bf16.msra.mxu0 %v11271
    %11619 = vmatprep.subr.bf16.mxu0 %v11288
    %11620 = vmatpush1.bf16.msra.mxu0 %v11287
    %11621 = vmatprep.subr.bf16.mxu0 %v11304
    %11622 = vmatpush1.bf16.msra.mxu0 %v11303
    %11623 = vmatprep.subr.bf16.mxu0 %v11320
    %11624 = vmatpush1.bf16.msra.mxu0 %v11319
    %11625 = vmatprep.subr.bf16.mxu0 0
    %11626 = vmatpush1.bf16.msra.mxu0 0
    %11627 = vmatprep.subr.bf16.mxu0 0
    %11628 = vmatpush1.bf16.msra.mxu0 0
    %11629 = vmatprep.subr.bf16.mxu0 0
    %11630 = vmatpush1.bf16.msra.mxu0 0
    %11631 = vmatprep.subr.bf16.mxu0 0
    %11632 = vmatpush1.bf16.msra.mxu0 0
    %11633 = vmatprep.subr.bf16.mxu0 0
    %11634 = vmatpush1.bf16.msra.mxu0 0
    %11635 = vmatprep.subr.bf16.mxu0 0
    %11636 = vmatpush1.bf16.msra.mxu0 0
    %11637 = vmatprep.subr.bf16.mxu0 0
    %11638 = vmatpush1.bf16.msra.mxu0 0
    %11639 = vmatprep.subr.bf16.mxu0 0
    %11640 = vmatpush1.bf16.msra.mxu0 0
    %11641 = vmatprep.subr.bf16.mxu0 0
    %11642 = vmatpush1.bf16.msra.mxu0 0
    %11643 = vmatprep.subr.bf16.mxu0 0
    %11644 = vmatpush1.bf16.msra.mxu0 0
    %11645 = vmatprep.subr.bf16.mxu0 0
    %11646 = vmatpush1.bf16.msra.mxu0 0
    %11647 = vmatprep.subr.bf16.mxu0 0
    %11648 = vmatpush1.bf16.msra.mxu0 0
    %11649 = vmatprep.mubr.bf16.mxu0 0
    %11650 = vmatmul.mubr.bf16.gmra.mrb[0].mxu0 %v11328
    %v11651 = vpop.f32.mrb[0].mxu0
    %v11652 = vadd.f32 %v11325, %v11651
    %v11653 = vpop.f32.mrb[0].mxu0
    %v11654 = vadd.f32 %v11325, %v11653
    %v11655 = vpop.f32.mrb[0].mxu0
    %v11656 = vpop.f32.mrb[0].mxu0
    %11657 = vdwg.mxu0
    %v11674 = vcombine.low %v11365, %v11367
    %v11675 = vcombine.low %v11406, %v11408
    %v11676 = vcombine.low %v11447, %v11449
    %v11677 = vcombine.low %v11488, %v11490
    %v11678 = vcombine.low %v11529, %v11531
    %v11679 = vcombine.low %v11570, %v11572
    %v11680 = vcombine.low %v11611, %v11613
    %v11681 = vcombine.low %v11652, %v11654
    %11690 = vst [vmem:[#allocation2] sm:$0x77] %v11674
    %11691 = vst [vmem:[#allocation2 + $0x8] sm:$0x77] %v11675
    %11692 = vst [vmem:[#allocation2 + $0x10] sm:$0x77] %v11676
    %11693 = vst [vmem:[#allocation2 + $0x18] sm:$0x77] %v11677
    %11694 = vst [vmem:[#allocation2 + $0x20] sm:$0x77] %v11678
    %11695 = vst [vmem:[#allocation2 + $0x28] sm:$0x77] %v11679
    %11696 = vst [vmem:[#allocation2 + $0x30] sm:$0x77] %v11680
    %11697 = vst [vmem:[#allocation2 + $0x38] sm:$0x77] %v11681
    // Predicated region
    $region54: #{tpu_custom_call.1} parent=1 // pred_check
      _
    $region55: #{tpu_custom_call.1} parent=1 // pred_check_branch
      %11699 = sbr.rel (0) target = $region57
    $region56: #{tpu_custom_call.1} parent=1 // pred_region
      %s11701 = ssub.s32 1024, 1024
      %11702 = vsyncadd [#allocation3], %s11701
      %s11704 = sshll.u32 [#allocation2], 4
      %s11705 = int_to_ptr.vmem [resolvable:$true] %s11704
      %11707 = dma.vmem_to_hbm [thread:$0]  %s11705, 1024, %s13, [#allocation3]
    $region57: #{tpu_custom_call.1} parent=1 // pred_fallthru
      _
    // Predicated region
    $region58: #{tpu_custom_call.1} parent=1 // pred_check
      _
    $region59: #{tpu_custom_call.1} parent=1 // pred_check_branch
      %11709 = sbr.rel (0) target = $region61
    $region60: #{tpu_custom_call.1} parent=1 // pred_region
      %11710 = dma.done [#allocation3], 1024
    $region61: #{tpu_custom_call.1} parent=1 // pred_fallthru
      _
    %11711 = vsyncpa [#allocation3], 1

</llo_original>
